<compile_context>
chip_gen: v6e
topology: v6e:2x2x1
jax: 0.10.0
libtpu: 0.0.40
codegen_flags: <defaults>
</compile_context>

<pallas_src>
import functools

import jax
import jax.numpy as jnp
from jax.experimental import pallas as pl
from jax.experimental.pallas import tpu as pltpu

NUM_CLASSES = 3
NUM_BOX_PARAMETERS = 7
OUT_PAD = 128   # lane-dense padded output width (sliced back to NUM_BOX_PARAMETERS)


def _pack_width(num_classes):
    # packed input = [xyz (3) | one-hot labels (C) | zero pad], rounded up to 8 cols
    return max(8, ((3 + num_classes + 7) // 8) * 8)


def box_estimator_kernel(
    xin_ref,
    w1_ref, b1_ref, w2_ref, b2_ref, w3_ref, b3_ref, w4_ref, b4_ref,
    wf1a_ref, wf1b_ref, bf1_ref, wf2_ref, bf2_ref, wf3_ref, bf3_ref,
    out_ref,
):
    f32 = jnp.float32
    bf16 = jnp.bfloat16

    xin = xin_ref[...]                       # (tile_m, PACK) bf16: [xyz | labels | 0]

    # shared-MLP stack (per-point Linear layers; no activations in reference forward)
    # w1 is zero-padded to PACK rows, so xin @ w1p == xyz @ w1.
    h = jnp.dot(xin, w1_ref[...], preferred_element_type=f32) + b1_ref[...]
    h = jnp.dot(h.astype(bf16), w2_ref[...], preferred_element_type=f32) + b2_ref[...]
    h = jnp.dot(h.astype(bf16), w3_ref[...], preferred_element_type=f32) + b3_ref[...]
    h = jnp.dot(h.astype(bf16), w4_ref[...], preferred_element_type=f32) + b4_ref[...]

    # fc1 on concat([h, labels], -1), expressed as a split matmul (no concat).
    # wf1b is zero-padded to PACK rows so xin @ wf1bp == labels @ wf1b.
    h = (jnp.dot(h.astype(bf16), wf1a_ref[...], preferred_element_type=f32)
         + jnp.dot(xin, wf1b_ref[...], preferred_element_type=f32)
         + bf1_ref[...])

    h = jnp.dot(h.astype(bf16), wf2_ref[...], preferred_element_type=f32) + bf2_ref[...]
    # fc3 weight is pre-padded to OUT_PAD columns (zeros) for a lane-dense store
    h = jnp.dot(h.astype(bf16), wf3_ref[...], preferred_element_type=f32) + bf3_ref[...]

    out_ref[...] = h.astype(out_ref.dtype)


def _full_spec(shape):
    # whole-array block, constant block index -> fetched only once across the grid
    return pl.BlockSpec(shape, lambda i: (0, 0))


@functools.partial(jax.jit, static_argnames=("tile_m",))
def box_estimator_forward(point_cloud, input_labels, params, *, tile_m=512):
    B, N, _ = point_cloud.shape
    C = input_labels.shape[-1]
    M = B * N
    PACK = params[0].shape[0]        # w1p is (PACK, 128)

    # Keep at least two grid steps when possible so v7x's two TensorCores both get
    # work (the row axis is the only "parallel" axis).
    while tile_m > 128 and -(-M // tile_m) < 2:
        tile_m //= 2
    n_tiles = -(-M // tile_m)
    M_pad = n_tiles * tile_m

    # Pack coords + labels into one bf16 (M_pad, PACK) array (padding rows are zero;
    # they produce garbage rows that are sliced away below — every row is independent).
    packed = jnp.zeros((M_pad, PACK), jnp.bfloat16)
    packed = packed.at[:M, :3].set(point_cloud.reshape(M, 3).astype(jnp.bfloat16))
    packed = packed.at[:M, 3:3 + C].set(input_labels.reshape(M, C).astype(jnp.bfloat16))

    in_spec = pl.BlockSpec((tile_m, PACK), lambda i: (i, 0))
    out_spec = pl.BlockSpec((tile_m, OUT_PAD), lambda i: (i, 0))
    weight_specs = [_full_spec(p.shape) for p in params]

    out_padded = pl.pallas_call(
        box_estimator_kernel,
        out_shape=jax.ShapeDtypeStruct((M_pad, OUT_PAD), jnp.float32),
        grid_spec=pltpu.PrefetchScalarGridSpec(
            num_scalar_prefetch=0,
            grid=(n_tiles,),
            in_specs=[in_spec] + weight_specs,
            out_specs=out_spec,
        ),
        compiler_params=pltpu.CompilerParams(
            dimension_semantics=("parallel",),
            vmem_limit_bytes=32 * 1024 * 1024,
        ),
    )(packed, *params)

    return out_padded[:M, :NUM_BOX_PARAMETERS].reshape(B, N, NUM_BOX_PARAMETERS)


def init_params(key, num_classes=NUM_CLASSES, num_box_parameters=NUM_BOX_PARAMETERS):
    """Deterministic PyTorch-nn.Linear-style init (uniform +-1/sqrt(fan_in)).

    Weights are stored as (in, out), zero-padded where needed, and pre-cast to
    bfloat16 once; biases stay float32 (added on the VPU after f32 accumulation).
    """
    f32 = jnp.float32
    bf16 = jnp.bfloat16
    PACK = _pack_width(num_classes)

    def linear(key, fan_in, fan_out):
        kw, kb = jax.random.split(key)
        bound = 1.0 / jnp.sqrt(jnp.float32(fan_in))
        w = jax.random.uniform(kw, (fan_in, fan_out), f32, -bound, bound)
        b = jax.random.uniform(kb, (1, fan_out), f32, -bound, bound)
        return w, b

    keys = jax.random.split(key, 7)
    w1, b1 = linear(keys[0], 3, 128)
    w2, b2 = linear(keys[1], 128, 128)
    w3, b3 = linear(keys[2], 128, 256)
    w4, b4 = linear(keys[3], 256, 512)
    wf1, bf1 = linear(keys[4], 512 + num_classes, 512)
    wf2, bf2 = linear(keys[5], 512, 256)
    wf3, bf3 = linear(keys[6], 256, num_box_parameters)

    # mlp1 weight padded to PACK input rows (rows 0..2 = xyz, rest zero)
    w1p = jnp.zeros((PACK, 128), f32).at[:3, :].set(w1).astype(bf16)
    # fc1 split: point-feature part and label part; label part padded to PACK rows
    # (rows 3..3+C-1 = labels, rest zero) so it consumes the same packed input tile.
    wf1a = wf1[:512, :].astype(bf16)                                    # (512, 512)
    wf1bp = (jnp.zeros((PACK, 512), f32)
             .at[3:3 + num_classes, :].set(wf1[512:, :]).astype(bf16))  # (PACK, 512)
    # fc3 padded to OUT_PAD output lanes (zeros) for a lane-dense kernel store
    wf3p = (jnp.zeros((256, OUT_PAD), f32)
            .at[:, :num_box_parameters].set(wf3).astype(bf16))
    bf3p = jnp.zeros((1, OUT_PAD), f32).at[:, :num_box_parameters].set(bf3[0])

    return (w1p, b1,
            w2.astype(bf16), b2,
            w3.astype(bf16), b3,
            w4.astype(bf16), b4,
            wf1a, wf1bp, bf1,
            wf2.astype(bf16), bf2,
            wf3p, bf3p)


def reference_forward(point_cloud, input_labels, params):
    """Plain-JAX reference mirroring the kernel math (bf16 operands, f32 accumulate)."""
    (w1p, b1, w2, b2, w3, b3, w4, b4,
     wf1a, wf1bp, bf1, wf2, bf2, wf3p, bf3p) = params
    f32 = jnp.float32
    bf16 = jnp.bfloat16
    B, N, _ = point_cloud.shape
    C = input_labels.shape[-1]
    M = B * N
    PACK = w1p.shape[0]

    packed = jnp.zeros((M, PACK), bf16)
    packed = packed.at[:, :3].set(point_cloud.reshape(M, 3).astype(bf16))
    packed = packed.at[:, 3:3 + C].set(input_labels.reshape(M, C).astype(bf16))

    h = jnp.dot(packed, w1p, preferred_element_type=f32) + b1
    h = jnp.dot(h.astype(bf16), w2, preferred_element_type=f32) + b2
    h = jnp.dot(h.astype(bf16), w3, preferred_element_type=f32) + b3
    h = jnp.dot(h.astype(bf16), w4, preferred_element_type=f32) + b4
    h = (jnp.dot(h.astype(bf16), wf1a, preferred_element_type=f32)
         + jnp.dot(packed, wf1bp, preferred_element_type=f32) + bf1)
    h = jnp.dot(h.astype(bf16), wf2, preferred_element_type=f32) + bf2
    h = jnp.dot(h.astype(bf16), wf3p, preferred_element_type=f32) + bf3p
    return h[:, :NUM_BOX_PARAMETERS].reshape(B, N, NUM_BOX_PARAMETERS)


if __name__ == "__main__":
    key = jax.random.PRNGKey(0)
    k_pc, k_lab, k_par = jax.random.split(key, 3)

    # 512 points per frustum (matches the module's MaxPool1d(kernel_size=512)),
    # batch of 2 -> M = 1024 rows -> a 2-step row grid at tile_m=512.
    B, N = 2, 512
    point_cloud = jax.random.normal(k_pc, (B, N, 3), jnp.float32)
    # one-hot class labels broadcast per point (same class vector for every point)
    cls_ids = jax.random.randint(k_lab, (B,), 0, NUM_CLASSES)
    one_hot = jax.nn.one_hot(cls_ids, NUM_CLASSES, dtype=jnp.float32)   # (B, C)
    input_labels = jnp.broadcast_to(one_hot[:, None, :], (B, N, NUM_CLASSES))

    params = init_params(k_par)

    out = box_estimator_forward(point_cloud, input_labels, params)
    out = jax.block_until_ready(out)

    ref = reference_forward(point_cloud, input_labels, params)
    assert out.shape == (B, N, NUM_BOX_PARAMETERS), out.shape
    assert jnp.allclose(out, ref, atol=2e-2, rtol=2e-2), "mismatch vs reference"

    # TODO(synk): reference forward's `torch.cat(outputs, input_labels, dim=-1)` is
    # invalid PyTorch as written; implemented as the intended cat([outputs, labels], -1).
    # TODO(synk): the module defines MaxPool1d(512) but never uses it in forward();
    # it is therefore not part of this kernel.
    print("KERNEL_OK")
</pallas_src>

<mosaic_0001>
module attributes {stable_mosaic.version = 11 : i64} {
  func.func @box_estimator_kernel(%arg0: i32, %arg1: memref<512x8xbf16, #tpu.memory_space<vmem>>, %arg2: memref<8x128xbf16, #tpu.memory_space<vmem>>, %arg3: memref<1x128xf32, #tpu.memory_space<vmem>>, %arg4: memref<128x128xbf16, #tpu.memory_space<vmem>>, %arg5: memref<1x128xf32, #tpu.memory_space<vmem>>, %arg6: memref<128x256xbf16, #tpu.memory_space<vmem>>, %arg7: memref<1x256xf32, #tpu.memory_space<vmem>>, %arg8: memref<256x512xbf16, #tpu.memory_space<vmem>>, %arg9: memref<1x512xf32, #tpu.memory_space<vmem>>, %arg10: memref<512x512xbf16, #tpu.memory_space<vmem>>, %arg11: memref<8x512xbf16, #tpu.memory_space<vmem>>, %arg12: memref<1x512xf32, #tpu.memory_space<vmem>>, %arg13: memref<512x256xbf16, #tpu.memory_space<vmem>>, %arg14: memref<1x256xf32, #tpu.memory_space<vmem>>, %arg15: memref<256x128xbf16, #tpu.memory_space<vmem>>, %arg16: memref<1x128xf32, #tpu.memory_space<vmem>>, %arg17: memref<512x128xf32, #tpu.memory_space<vmem>>) attributes {dimension_semantics = [#tpu.dimension_semantics<parallel>], iteration_bounds = array<i64: 2>, scalar_prefetch = 0 : i64, scratch_operands = 0 : i64, tpu.core_type = #tpu.core_type<tc>, window_params = [{transform_indices = @transform_0, window_bounds = array<i64: 512, 8>}, {pipeline_mode = #tpu.pipeline_mode<synchronous>, transform_indices = @transform_1, window_bounds = array<i64: 8, 128>}, {pipeline_mode = #tpu.pipeline_mode<synchronous>, transform_indices = @transform_2, window_bounds = array<i64: 1, 128>}, {pipeline_mode = #tpu.pipeline_mode<synchronous>, transform_indices = @transform_3, window_bounds = array<i64: 128, 128>}, {pipeline_mode = #tpu.pipeline_mode<synchronous>, transform_indices = @transform_4, window_bounds = array<i64: 1, 128>}, {pipeline_mode = #tpu.pipeline_mode<synchronous>, transform_indices = @transform_5, window_bounds = array<i64: 128, 256>}, {pipeline_mode = #tpu.pipeline_mode<synchronous>, transform_indices = @transform_6, window_bounds = array<i64: 1, 256>}, {pipeline_mode = #tpu.pipeline_mode<synchronous>, transform_indices = @transform_7, window_bounds = array<i64: 256, 512>}, {pipeline_mode = #tpu.pipeline_mode<synchronous>, transform_indices = @transform_8, window_bounds = array<i64: 1, 512>}, {pipeline_mode = #tpu.pipeline_mode<synchronous>, transform_indices = @transform_9, window_bounds = array<i64: 512, 512>}, {pipeline_mode = #tpu.pipeline_mode<synchronous>, transform_indices = @transform_10, window_bounds = array<i64: 8, 512>}, {pipeline_mode = #tpu.pipeline_mode<synchronous>, transform_indices = @transform_11, window_bounds = array<i64: 1, 512>}, {pipeline_mode = #tpu.pipeline_mode<synchronous>, transform_indices = @transform_12, window_bounds = array<i64: 512, 256>}, {pipeline_mode = #tpu.pipeline_mode<synchronous>, transform_indices = @transform_13, window_bounds = array<i64: 1, 256>}, {pipeline_mode = #tpu.pipeline_mode<synchronous>, transform_indices = @transform_14, window_bounds = array<i64: 256, 128>}, {pipeline_mode = #tpu.pipeline_mode<synchronous>, transform_indices = @transform_15, window_bounds = array<i64: 1, 128>}, {transform_indices = @transform_16, window_bounds = array<i64: 512, 128>}]} {
    %c0 = arith.constant 0 : index
    %c0_0 = arith.constant 0 : index
    %0 = vector.load %arg1[%c0, %c0_0] : memref<512x8xbf16, #tpu.memory_space<vmem>>, vector<512x8xbf16>
    %c0_1 = arith.constant 0 : index
    %c0_2 = arith.constant 0 : index
    %1 = vector.load %arg2[%c0_1, %c0_2] : memref<8x128xbf16, #tpu.memory_space<vmem>>, vector<8x128xbf16>
    %cst = arith.constant dense<0.000000e+00> : vector<512x128xf32>
    %2 = tpu.matmul %0, %1, %cst {dimension_numbers = #tpu.dot_dimension_numbers<[1], [0], [0], [1], [0, 0, 1, 1], [], []>} : vector<512x8xbf16>, vector<8x128xbf16>, vector<512x128xf32> -> vector<512x128xf32>
    %c0_3 = arith.constant 0 : index
    %c0_4 = arith.constant 0 : index
    %3 = vector.load %arg3[%c0_3, %c0_4] : memref<1x128xf32, #tpu.memory_space<vmem>>, vector<1x128xf32>
    %4 = vector.broadcast %3 : vector<1x128xf32> to vector<512x128xf32>
    %5 = arith.addf %2, %4 : vector<512x128xf32>
    %6 = arith.truncf %5 : vector<512x128xf32> to vector<512x128xbf16>
    %c0_5 = arith.constant 0 : index
    %c0_6 = arith.constant 0 : index
    %7 = vector.load %arg4[%c0_5, %c0_6] : memref<128x128xbf16, #tpu.memory_space<vmem>>, vector<128x128xbf16>
    %cst_7 = arith.constant dense<0.000000e+00> : vector<512x128xf32>
    %8 = tpu.matmul %6, %7, %cst_7 {dimension_numbers = #tpu.dot_dimension_numbers<[1], [0], [0], [1], [0, 0, 1, 1], [], []>} : vector<512x128xbf16>, vector<128x128xbf16>, vector<512x128xf32> -> vector<512x128xf32>
    %c0_8 = arith.constant 0 : index
    %c0_9 = arith.constant 0 : index
    %9 = vector.load %arg5[%c0_8, %c0_9] : memref<1x128xf32, #tpu.memory_space<vmem>>, vector<1x128xf32>
    %10 = vector.broadcast %9 : vector<1x128xf32> to vector<512x128xf32>
    %11 = arith.addf %8, %10 : vector<512x128xf32>
    %12 = arith.truncf %11 : vector<512x128xf32> to vector<512x128xbf16>
    %c0_10 = arith.constant 0 : index
    %c0_11 = arith.constant 0 : index
    %13 = vector.load %arg6[%c0_10, %c0_11] : memref<128x256xbf16, #tpu.memory_space<vmem>>, vector<128x256xbf16>
    %cst_12 = arith.constant dense<0.000000e+00> : vector<512x256xf32>
    %14 = tpu.matmul %12, %13, %cst_12 {dimension_numbers = #tpu.dot_dimension_numbers<[1], [0], [0], [1], [0, 0, 1, 1], [], []>} : vector<512x128xbf16>, vector<128x256xbf16>, vector<512x256xf32> -> vector<512x256xf32>
    %c0_13 = arith.constant 0 : index
    %c0_14 = arith.constant 0 : index
    %15 = vector.load %arg7[%c0_13, %c0_14] : memref<1x256xf32, #tpu.memory_space<vmem>>, vector<1x256xf32>
    %16 = vector.broadcast %15 : vector<1x256xf32> to vector<512x256xf32>
    %17 = arith.addf %14, %16 : vector<512x256xf32>
    %18 = arith.truncf %17 : vector<512x256xf32> to vector<512x256xbf16>
    %c0_15 = arith.constant 0 : index
    %c0_16 = arith.constant 0 : index
    %19 = vector.load %arg8[%c0_15, %c0_16] : memref<256x512xbf16, #tpu.memory_space<vmem>>, vector<256x512xbf16>
    %cst_17 = arith.constant dense<0.000000e+00> : vector<512x512xf32>
    %20 = tpu.matmul %18, %19, %cst_17 {dimension_numbers = #tpu.dot_dimension_numbers<[1], [0], [0], [1], [0, 0, 1, 1], [], []>} : vector<512x256xbf16>, vector<256x512xbf16>, vector<512x512xf32> -> vector<512x512xf32>
    %c0_18 = arith.constant 0 : index
    %c0_19 = arith.constant 0 : index
    %21 = vector.load %arg9[%c0_18, %c0_19] : memref<1x512xf32, #tpu.memory_space<vmem>>, vector<1x512xf32>
    %22 = vector.broadcast %21 : vector<1x512xf32> to vector<512x512xf32>
    %23 = arith.addf %20, %22 : vector<512x512xf32>
    %24 = arith.truncf %23 : vector<512x512xf32> to vector<512x512xbf16>
    %c0_20 = arith.constant 0 : index
    %c0_21 = arith.constant 0 : index
    %25 = vector.load %arg10[%c0_20, %c0_21] : memref<512x512xbf16, #tpu.memory_space<vmem>>, vector<512x512xbf16>
    %cst_22 = arith.constant dense<0.000000e+00> : vector<512x512xf32>
    %26 = tpu.matmul %24, %25, %cst_22 {dimension_numbers = #tpu.dot_dimension_numbers<[1], [0], [0], [1], [0, 0, 1, 1], [], []>} : vector<512x512xbf16>, vector<512x512xbf16>, vector<512x512xf32> -> vector<512x512xf32>
    %c0_23 = arith.constant 0 : index
    %c0_24 = arith.constant 0 : index
    %27 = vector.load %arg11[%c0_23, %c0_24] : memref<8x512xbf16, #tpu.memory_space<vmem>>, vector<8x512xbf16>
    %cst_25 = arith.constant dense<0.000000e+00> : vector<512x512xf32>
    %28 = tpu.matmul %0, %27, %cst_25 {dimension_numbers = #tpu.dot_dimension_numbers<[1], [0], [0], [1], [0, 0, 1, 1], [], []>} : vector<512x8xbf16>, vector<8x512xbf16>, vector<512x512xf32> -> vector<512x512xf32>
    %29 = arith.addf %26, %28 : vector<512x512xf32>
    %c0_26 = arith.constant 0 : index
    %c0_27 = arith.constant 0 : index
    %30 = vector.load %arg12[%c0_26, %c0_27] : memref<1x512xf32, #tpu.memory_space<vmem>>, vector<1x512xf32>
    %31 = vector.broadcast %30 : vector<1x512xf32> to vector<512x512xf32>
    %32 = arith.addf %29, %31 : vector<512x512xf32>
    %33 = arith.truncf %32 : vector<512x512xf32> to vector<512x512xbf16>
    %c0_28 = arith.constant 0 : index
    %c0_29 = arith.constant 0 : index
    %34 = vector.load %arg13[%c0_28, %c0_29] : memref<512x256xbf16, #tpu.memory_space<vmem>>, vector<512x256xbf16>
    %cst_30 = arith.constant dense<0.000000e+00> : vector<512x256xf32>
    %35 = tpu.matmul %33, %34, %cst_30 {dimension_numbers = #tpu.dot_dimension_numbers<[1], [0], [0], [1], [0, 0, 1, 1], [], []>} : vector<512x512xbf16>, vector<512x256xbf16>, vector<512x256xf32> -> vector<512x256xf32>
    %c0_31 = arith.constant 0 : index
    %c0_32 = arith.constant 0 : index
    %36 = vector.load %arg14[%c0_31, %c0_32] : memref<1x256xf32, #tpu.memory_space<vmem>>, vector<1x256xf32>
    %37 = vector.broadcast %36 : vector<1x256xf32> to vector<512x256xf32>
    %38 = arith.addf %35, %37 : vector<512x256xf32>
    %39 = arith.truncf %38 : vector<512x256xf32> to vector<512x256xbf16>
    %c0_33 = arith.constant 0 : index
    %c0_34 = arith.constant 0 : index
    %40 = vector.load %arg15[%c0_33, %c0_34] : memref<256x128xbf16, #tpu.memory_space<vmem>>, vector<256x128xbf16>
    %cst_35 = arith.constant dense<0.000000e+00> : vector<512x128xf32>
    %41 = tpu.matmul %39, %40, %cst_35 {dimension_numbers = #tpu.dot_dimension_numbers<[1], [0], [0], [1], [0, 0, 1, 1], [], []>} : vector<512x256xbf16>, vector<256x128xbf16>, vector<512x128xf32> -> vector<512x128xf32>
    %c0_36 = arith.constant 0 : index
    %c0_37 = arith.constant 0 : index
    %42 = vector.load %arg16[%c0_36, %c0_37] : memref<1x128xf32, #tpu.memory_space<vmem>>, vector<1x128xf32>
    %43 = vector.broadcast %42 : vector<1x128xf32> to vector<512x128xf32>
    %44 = arith.addf %41, %43 : vector<512x128xf32>
    %c0_38 = arith.constant 0 : index
    %c0_39 = arith.constant 0 : index
    %45 = vector.load %arg17[%c0_38, %c0_39] : memref<512x128xf32, #tpu.memory_space<vmem>>, vector<512x128xf32>
    tpu.vector_store %arg17[%c0_38, %c0_39], %44 {strides = array<i32>} : memref<512x128xf32, #tpu.memory_space<vmem>>, vector<512x128xf32>,
    return
  }
  func.func @transform_0(%arg0: i32) -> (i32, i32) {
    %c0_i32 = arith.constant 0 : i32
    %c0_i32_0 = arith.constant 0 : i32
    return %arg0, %c0_i32 : i32, i32
  }
  func.func @transform_1(%arg0: i32) -> (i32, i32) {
    %c0_i32 = arith.constant 0 : i32
    %c0_i32_0 = arith.constant 0 : i32
    %c0_i32_1 = arith.constant 0 : i32
    return %c0_i32, %c0_i32_0 : i32, i32
  }
  func.func @transform_2(%arg0: i32) -> (i32, i32) {
    %c0_i32 = arith.constant 0 : i32
    %c0_i32_0 = arith.constant 0 : i32
    %c0_i32_1 = arith.constant 0 : i32
    return %c0_i32, %c0_i32_0 : i32, i32
  }
  func.func @transform_3(%arg0: i32) -> (i32, i32) {
    %c0_i32 = arith.constant 0 : i32
    %c0_i32_0 = arith.constant 0 : i32
    %c0_i32_1 = arith.constant 0 : i32
    return %c0_i32, %c0_i32_0 : i32, i32
  }
  func.func @transform_4(%arg0: i32) -> (i32, i32) {
    %c0_i32 = arith.constant 0 : i32
    %c0_i32_0 = arith.constant 0 : i32
    %c0_i32_1 = arith.constant 0 : i32
    return %c0_i32, %c0_i32_0 : i32, i32
  }
  func.func @transform_5(%arg0: i32) -> (i32, i32) {
    %c0_i32 = arith.constant 0 : i32
    %c0_i32_0 = arith.constant 0 : i32
    %c0_i32_1 = arith.constant 0 : i32
    return %c0_i32, %c0_i32_0 : i32, i32
  }
  func.func @transform_6(%arg0: i32) -> (i32, i32) {
    %c0_i32 = arith.constant 0 : i32
    %c0_i32_0 = arith.constant 0 : i32
    %c0_i32_1 = arith.constant 0 : i32
    return %c0_i32, %c0_i32_0 : i32, i32
  }
  func.func @transform_7(%arg0: i32) -> (i32, i32) {
    %c0_i32 = arith.constant 0 : i32
    %c0_i32_0 = arith.constant 0 : i32
    %c0_i32_1 = arith.constant 0 : i32
    return %c0_i32, %c0_i32_0 : i32, i32
  }
  func.func @transform_8(%arg0: i32) -> (i32, i32) {
    %c0_i32 = arith.constant 0 : i32
    %c0_i32_0 = arith.constant 0 : i32
    %c0_i32_1 = arith.constant 0 : i32
    return %c0_i32, %c0_i32_0 : i32, i32
  }
  func.func @transform_9(%arg0: i32) -> (i32, i32) {
    %c0_i32 = arith.constant 0 : i32
    %c0_i32_0 = arith.constant 0 : i32
    %c0_i32_1 = arith.constant 0 : i32
    return %c0_i32, %c0_i32_0 : i32, i32
  }
  func.func @transform_10(%arg0: i32) -> (i32, i32) {
    %c0_i32 = arith.constant 0 : i32
    %c0_i32_0 = arith.constant 0 : i32
    %c0_i32_1 = arith.constant 0 : i32
    return %c0_i32, %c0_i32_0 : i32, i32
  }
  func.func @transform_11(%arg0: i32) -> (i32, i32) {
    %c0_i32 = arith.constant 0 : i32
    %c0_i32_0 = arith.constant 0 : i32
    %c0_i32_1 = arith.constant 0 : i32
    return %c0_i32, %c0_i32_0 : i32, i32
  }
  func.func @transform_12(%arg0: i32) -> (i32, i32) {
    %c0_i32 = arith.constant 0 : i32
    %c0_i32_0 = arith.constant 0 : i32
    %c0_i32_1 = arith.constant 0 : i32
    return %c0_i32, %c0_i32_0 : i32, i32
  }
  func.func @transform_13(%arg0: i32) -> (i32, i32) {
    %c0_i32 = arith.constant 0 : i32
    %c0_i32_0 = arith.constant 0 : i32
    %c0_i32_1 = arith.constant 0 : i32
    return %c0_i32, %c0_i32_0 : i32, i32
  }
  func.func @transform_14(%arg0: i32) -> (i32, i32) {
    %c0_i32 = arith.constant 0 : i32
    %c0_i32_0 = arith.constant 0 : i32
    %c0_i32_1 = arith.constant 0 : i32
    return %c0_i32, %c0_i32_0 : i32, i32
  }
  func.func @transform_15(%arg0: i32) -> (i32, i32) {
    %c0_i32 = arith.constant 0 : i32
    %c0_i32_0 = arith.constant 0 : i32
    %c0_i32_1 = arith.constant 0 : i32
    return %c0_i32, %c0_i32_0 : i32, i32
  }
  func.func @transform_16(%arg0: i32) -> (i32, i32) {
    %c0_i32 = arith.constant 0 : i32
    %c0_i32_0 = arith.constant 0 : i32
    return %arg0, %c0_i32 : i32, i32
  }
}

</mosaic_0001>

<llo_original>
// kernel: box_estimator_forward.1
$region0: #{box_estimator_forward.1}
  #allocation0 [shape = 'u32[]', space=smem, size = 0x4, offset = 0x4, fixed_abs, tag = 'smem constant byte address 0x4 - core index']
  #allocation1 [shape = 'u32[144,128]{1,0:T(1,128)}', space=vmem, size = 0x12000, scoped, tag = 'internal scratch']
  %s0 = inlined_call_operand.vmem [shape: bf16[1024,8], index: 0, kind: input, shape index: {}]
  %s1 = inlined_call_operand.vmem [shape: bf16[8,128], index: 1, kind: input, shape index: {}]
  %s2 = inlined_call_operand.vmem [shape: f32[1,128], index: 2, kind: input, shape index: {}]
  %s3 = inlined_call_operand.vmem [shape: bf16[128,128], index: 3, kind: input, shape index: {}]
  %s4 = inlined_call_operand.vmem [shape: f32[1,128], index: 4, kind: input, shape index: {}]
  %s5 = inlined_call_operand.vmem [shape: bf16[128,256], index: 5, kind: input, shape index: {}]
  %s6 = inlined_call_operand.vmem [shape: f32[1,256], index: 6, kind: input, shape index: {}]
  %s7 = inlined_call_operand.vmem [shape: bf16[256,512], index: 7, kind: input, shape index: {}]
  %s8 = inlined_call_operand.vmem [shape: f32[1,512], index: 8, kind: input, shape index: {}]
  %s9 = inlined_call_operand.vmem [shape: bf16[512,512], index: 9, kind: input, shape index: {}]
  %s10 = inlined_call_operand.vmem [shape: bf16[8,512], index: 10, kind: input, shape index: {}]
  %s11 = inlined_call_operand.vmem [shape: f32[1,512], index: 11, kind: input, shape index: {}]
  %s12 = inlined_call_operand.vmem [shape: bf16[512,256], index: 12, kind: input, shape index: {}]
  %s13 = inlined_call_operand.vmem [shape: f32[1,256], index: 13, kind: input, shape index: {}]
  %s14 = inlined_call_operand.vmem [shape: bf16[256,128], index: 14, kind: input, shape index: {}]
  %s15 = inlined_call_operand.vmem [shape: f32[1,128], index: 15, kind: input, shape index: {}]
  %s16 = inlined_call_operand.vmem [shape: f32[1024,128], index: 16, kind: output, shape index: {}]
  %s17 = sld [smem:[#allocation0]]
  $region97: #{box_estimator_forward.1} parent=0
    _
  %s19 = ssub.s32 1, %s17
  %s20 = scalar_select 0, %s19, %s17
  loop: start=0, step=1, limit=4
  $region2: #{box_estimator_forward.1} parent=0 // loop_pre_header
    _
  $region3: #{box_estimator_forward.1} parent=0 // loop_header
    %s22 = sphi 0, %s26
    %p23 = scmp.ge.s32.totalorder %s22, 4
    %s32 = sphi 0, %s34
    %s35 = sphi 0, %s32
    %s36 = sphi 0, %s35
    %s52 = sphi 0, %s36
    %s56 = sphi 0, %s56
    %s58 = sphi 0, %s56
    %s59 = sphi 0, %s58
    %s73 = sphi 0, %s59
    %s77 = sphi 0, %s77
    %s79 = sphi 0, %s77
    %s80 = sphi 0, %s79
    %s94 = sphi 0, %s80
    %s98 = sphi 0, %s98
    %s100 = sphi 0, %s98
    %s101 = sphi 0, %s100
    %s115 = sphi 0, %s101
    %s119 = sphi 0, %s119
    %s121 = sphi 0, %s119
    %s122 = sphi 0, %s121
    %s136 = sphi 0, %s122
    %s140 = sphi 0, %s140
    %s142 = sphi 0, %s140
    %s143 = sphi 0, %s142
    %s157 = sphi 0, %s143
    %s161 = sphi 0, %s161
    %s163 = sphi 0, %s161
    %s164 = sphi 0, %s163
    %s178 = sphi 0, %s164
    %s182 = sphi 0, %s182
    %s184 = sphi 0, %s182
    %s185 = sphi 0, %s184
    %s199 = sphi 0, %s185
    %s203 = sphi 0, %s203
    %s205 = sphi 0, %s203
    %s206 = sphi 0, %s205
    %s220 = sphi 0, %s206
    %s224 = sphi 0, %s224
    %s226 = sphi 0, %s224
    %s227 = sphi 0, %s226
    %s241 = sphi 0, %s227
    %s245 = sphi 0, %s245
    %s247 = sphi 0, %s245
    %s248 = sphi 0, %s247
    %s262 = sphi 0, %s248
    %s266 = sphi 0, %s266
    %s268 = sphi 0, %s266
    %s269 = sphi 0, %s268
    %s283 = sphi 0, %s269
    %s287 = sphi 0, %s287
    %s289 = sphi 0, %s287
    %s290 = sphi 0, %s289
    %s304 = sphi 0, %s290
    %s308 = sphi 0, %s308
    %s310 = sphi 0, %s308
    %s311 = sphi 0, %s310
    %s325 = sphi 0, %s311
    %s329 = sphi 0, %s329
    %s331 = sphi 0, %s329
    %s332 = sphi 0, %s331
    %s346 = sphi 0, %s332
    %s350 = sphi 0, %s350
    %s352 = sphi 0, %s350
    %s353 = sphi 0, %s352
    %s367 = sphi 0, %s353
    %s373 = sphi 0, %s375
    %s376 = sphi 0, %s373
    %s377 = sphi 0, %s376
    %s393 = sphi 0, %s377
  $region4: #{box_estimator_forward.1} parent=0 // loop_header_branch
    %25 = sbr.rel (%p23) target = $region8
  $region5: #{box_estimator_forward.1} parent=0 // loop_body
    %s27 = ssub.s32 %s22, 1
    %s28 = ssub.s32 %s22, 2
    %s29 = sadd.s32 %s22, 1
    %s30 = ssub.s32 %s22, %s29
    %p31 = scmp.eq.s32.totalorder %s30, 0
    %s33 = sadd.s32 %s32, 1
    %s34 = scalar_select %p31, %s32, %s33
    %p37 = pneg %p31
    %p38 = scmp.eq.s32.totalorder %s22, 1
    %p39 = por %p37, %p38
    %p40 = scmp.ne.s32.totalorder %s32, %s35
    %p41 = scmp.eq.s32.totalorder %s22, 0
    %p42 = por %p40, %p41
    %p43 = scmp.ne.s32.totalorder %s32, %s35
    %p44 = scmp.eq.s32.totalorder %s27, 1
    %p45 = por %p43, %p44
    %p46 = scmp.ne.s32.totalorder %s35, %s36
    %p47 = scmp.eq.s32.totalorder %s27, 0
    %p48 = por %p46, %p47
    %p49 = scmp.ne.s32.totalorder %s35, %s36
    %p50 = scmp.eq.s32.totalorder %s28, 1
    %p51 = por %p49, %p50
    %p53 = scmp.ne.s32.totalorder %s36, %s52
    %p54 = scmp.eq.s32.totalorder %s28, 0
    %p55 = por %p53, %p54
    %s57 = sadd.s32 %s56, 1
    %p60 = scmp.eq.s32.totalorder %s22, 1
    %p61 = scmp.ne.s32.totalorder %s56, %s58
    %p62 = scmp.eq.s32.totalorder %s22, 0
    %p63 = por %p61, %p62
    %p64 = scmp.ne.s32.totalorder %s56, %s58
    %p65 = scmp.eq.s32.totalorder %s27, 1
    %p66 = por %p64, %p65
    %p67 = scmp.ne.s32.totalorder %s58, %s59
    %p68 = scmp.eq.s32.totalorder %s27, 0
    %p69 = por %p67, %p68
    %p70 = scmp.ne.s32.totalorder %s58, %s59
    %p71 = scmp.eq.s32.totalorder %s28, 1
    %p72 = por %p70, %p71
    %p74 = scmp.ne.s32.totalorder %s59, %s73
    %p75 = scmp.eq.s32.totalorder %s28, 0
    %p76 = por %p74, %p75
    %s78 = sadd.s32 %s77, 1
    %p81 = scmp.eq.s32.totalorder %s22, 1
    %p82 = scmp.ne.s32.totalorder %s77, %s79
    %p83 = scmp.eq.s32.totalorder %s22, 0
    %p84 = por %p82, %p83
    %p85 = scmp.ne.s32.totalorder %s77, %s79
    %p86 = scmp.eq.s32.totalorder %s27, 1
    %p87 = por %p85, %p86
    %p88 = scmp.ne.s32.totalorder %s79, %s80
    %p89 = scmp.eq.s32.totalorder %s27, 0
    %p90 = por %p88, %p89
    %p91 = scmp.ne.s32.totalorder %s79, %s80
    %p92 = scmp.eq.s32.totalorder %s28, 1
    %p93 = por %p91, %p92
    %p95 = scmp.ne.s32.totalorder %s80, %s94
    %p96 = scmp.eq.s32.totalorder %s28, 0
    %p97 = por %p95, %p96
    %s99 = sadd.s32 %s98, 1
    %p102 = scmp.eq.s32.totalorder %s22, 1
    %p103 = scmp.ne.s32.totalorder %s98, %s100
    %p104 = scmp.eq.s32.totalorder %s22, 0
    %p105 = por %p103, %p104
    %p106 = scmp.ne.s32.totalorder %s98, %s100
    %p107 = scmp.eq.s32.totalorder %s27, 1
    %p108 = por %p106, %p107
    %p109 = scmp.ne.s32.totalorder %s100, %s101
    %p110 = scmp.eq.s32.totalorder %s27, 0
    %p111 = por %p109, %p110
    %p112 = scmp.ne.s32.totalorder %s100, %s101
    %p113 = scmp.eq.s32.totalorder %s28, 1
    %p114 = por %p112, %p113
    %p116 = scmp.ne.s32.totalorder %s101, %s115
    %p117 = scmp.eq.s32.totalorder %s28, 0
    %p118 = por %p116, %p117
    %s120 = sadd.s32 %s119, 1
    %p123 = scmp.eq.s32.totalorder %s22, 1
    %p124 = scmp.ne.s32.totalorder %s119, %s121
    %p125 = scmp.eq.s32.totalorder %s22, 0
    %p126 = por %p124, %p125
    %p127 = scmp.ne.s32.totalorder %s119, %s121
    %p128 = scmp.eq.s32.totalorder %s27, 1
    %p129 = por %p127, %p128
    %p130 = scmp.ne.s32.totalorder %s121, %s122
    %p131 = scmp.eq.s32.totalorder %s27, 0
    %p132 = por %p130, %p131
    %p133 = scmp.ne.s32.totalorder %s121, %s122
    %p134 = scmp.eq.s32.totalorder %s28, 1
    %p135 = por %p133, %p134
    %p137 = scmp.ne.s32.totalorder %s122, %s136
    %p138 = scmp.eq.s32.totalorder %s28, 0
    %p139 = por %p137, %p138
    %s141 = sadd.s32 %s140, 1
    %p144 = scmp.eq.s32.totalorder %s22, 1
    %p145 = scmp.ne.s32.totalorder %s140, %s142
    %p146 = scmp.eq.s32.totalorder %s22, 0
    %p147 = por %p145, %p146
    %p148 = scmp.ne.s32.totalorder %s140, %s142
    %p149 = scmp.eq.s32.totalorder %s27, 1
    %p150 = por %p148, %p149
    %p151 = scmp.ne.s32.totalorder %s142, %s143
    %p152 = scmp.eq.s32.totalorder %s27, 0
    %p153 = por %p151, %p152
    %p154 = scmp.ne.s32.totalorder %s142, %s143
    %p155 = scmp.eq.s32.totalorder %s28, 1
    %p156 = por %p154, %p155
    %p158 = scmp.ne.s32.totalorder %s143, %s157
    %p159 = scmp.eq.s32.totalorder %s28, 0
    %p160 = por %p158, %p159
    %s162 = sadd.s32 %s161, 1
    %p165 = scmp.eq.s32.totalorder %s22, 1
    %p166 = scmp.ne.s32.totalorder %s161, %s163
    %p167 = scmp.eq.s32.totalorder %s22, 0
    %p168 = por %p166, %p167
    %p169 = scmp.ne.s32.totalorder %s161, %s163
    %p170 = scmp.eq.s32.totalorder %s27, 1
    %p171 = por %p169, %p170
    %p172 = scmp.ne.s32.totalorder %s163, %s164
    %p173 = scmp.eq.s32.totalorder %s27, 0
    %p174 = por %p172, %p173
    %p175 = scmp.ne.s32.totalorder %s163, %s164
    %p176 = scmp.eq.s32.totalorder %s28, 1
    %p177 = por %p175, %p176
    %p179 = scmp.ne.s32.totalorder %s164, %s178
    %p180 = scmp.eq.s32.totalorder %s28, 0
    %p181 = por %p179, %p180
    %s183 = sadd.s32 %s182, 1
    %p186 = scmp.eq.s32.totalorder %s22, 1
    %p187 = scmp.ne.s32.totalorder %s182, %s184
    %p188 = scmp.eq.s32.totalorder %s22, 0
    %p189 = por %p187, %p188
    %p190 = scmp.ne.s32.totalorder %s182, %s184
    %p191 = scmp.eq.s32.totalorder %s27, 1
    %p192 = por %p190, %p191
    %p193 = scmp.ne.s32.totalorder %s184, %s185
    %p194 = scmp.eq.s32.totalorder %s27, 0
    %p195 = por %p193, %p194
    %p196 = scmp.ne.s32.totalorder %s184, %s185
    %p197 = scmp.eq.s32.totalorder %s28, 1
    %p198 = por %p196, %p197
    %p200 = scmp.ne.s32.totalorder %s185, %s199
    %p201 = scmp.eq.s32.totalorder %s28, 0
    %p202 = por %p200, %p201
    %s204 = sadd.s32 %s203, 1
    %p207 = scmp.eq.s32.totalorder %s22, 1
    %p208 = scmp.ne.s32.totalorder %s203, %s205
    %p209 = scmp.eq.s32.totalorder %s22, 0
    %p210 = por %p208, %p209
    %p211 = scmp.ne.s32.totalorder %s203, %s205
    %p212 = scmp.eq.s32.totalorder %s27, 1
    %p213 = por %p211, %p212
    %p214 = scmp.ne.s32.totalorder %s205, %s206
    %p215 = scmp.eq.s32.totalorder %s27, 0
    %p216 = por %p214, %p215
    %p217 = scmp.ne.s32.totalorder %s205, %s206
    %p218 = scmp.eq.s32.totalorder %s28, 1
    %p219 = por %p217, %p218
    %p221 = scmp.ne.s32.totalorder %s206, %s220
    %p222 = scmp.eq.s32.totalorder %s28, 0
    %p223 = por %p221, %p222
    %s225 = sadd.s32 %s224, 1
    %p228 = scmp.eq.s32.totalorder %s22, 1
    %p229 = scmp.ne.s32.totalorder %s224, %s226
    %p230 = scmp.eq.s32.totalorder %s22, 0
    %p231 = por %p229, %p230
    %p232 = scmp.ne.s32.totalorder %s224, %s226
    %p233 = scmp.eq.s32.totalorder %s27, 1
    %p234 = por %p232, %p233
    %p235 = scmp.ne.s32.totalorder %s226, %s227
    %p236 = scmp.eq.s32.totalorder %s27, 0
    %p237 = por %p235, %p236
    %p238 = scmp.ne.s32.totalorder %s226, %s227
    %p239 = scmp.eq.s32.totalorder %s28, 1
    %p240 = por %p238, %p239
    %p242 = scmp.ne.s32.totalorder %s227, %s241
    %p243 = scmp.eq.s32.totalorder %s28, 0
    %p244 = por %p242, %p243
    %s246 = sadd.s32 %s245, 1
    %p249 = scmp.eq.s32.totalorder %s22, 1
    %p250 = scmp.ne.s32.totalorder %s245, %s247
    %p251 = scmp.eq.s32.totalorder %s22, 0
    %p252 = por %p250, %p251
    %p253 = scmp.ne.s32.totalorder %s245, %s247
    %p254 = scmp.eq.s32.totalorder %s27, 1
    %p255 = por %p253, %p254
    %p256 = scmp.ne.s32.totalorder %s247, %s248
    %p257 = scmp.eq.s32.totalorder %s27, 0
    %p258 = por %p256, %p257
    %p259 = scmp.ne.s32.totalorder %s247, %s248
    %p260 = scmp.eq.s32.totalorder %s28, 1
    %p261 = por %p259, %p260
    %p263 = scmp.ne.s32.totalorder %s248, %s262
    %p264 = scmp.eq.s32.totalorder %s28, 0
    %p265 = por %p263, %p264
    %s267 = sadd.s32 %s266, 1
    %p270 = scmp.eq.s32.totalorder %s22, 1
    %p271 = scmp.ne.s32.totalorder %s266, %s268
    %p272 = scmp.eq.s32.totalorder %s22, 0
    %p273 = por %p271, %p272
    %p274 = scmp.ne.s32.totalorder %s266, %s268
    %p275 = scmp.eq.s32.totalorder %s27, 1
    %p276 = por %p274, %p275
    %p277 = scmp.ne.s32.totalorder %s268, %s269
    %p278 = scmp.eq.s32.totalorder %s27, 0
    %p279 = por %p277, %p278
    %p280 = scmp.ne.s32.totalorder %s268, %s269
    %p281 = scmp.eq.s32.totalorder %s28, 1
    %p282 = por %p280, %p281
    %p284 = scmp.ne.s32.totalorder %s269, %s283
    %p285 = scmp.eq.s32.totalorder %s28, 0
    %p286 = por %p284, %p285
    %s288 = sadd.s32 %s287, 1
    %p291 = scmp.eq.s32.totalorder %s22, 1
    %p292 = scmp.ne.s32.totalorder %s287, %s289
    %p293 = scmp.eq.s32.totalorder %s22, 0
    %p294 = por %p292, %p293
    %p295 = scmp.ne.s32.totalorder %s287, %s289
    %p296 = scmp.eq.s32.totalorder %s27, 1
    %p297 = por %p295, %p296
    %p298 = scmp.ne.s32.totalorder %s289, %s290
    %p299 = scmp.eq.s32.totalorder %s27, 0
    %p300 = por %p298, %p299
    %p301 = scmp.ne.s32.totalorder %s289, %s290
    %p302 = scmp.eq.s32.totalorder %s28, 1
    %p303 = por %p301, %p302
    %p305 = scmp.ne.s32.totalorder %s290, %s304
    %p306 = scmp.eq.s32.totalorder %s28, 0
    %p307 = por %p305, %p306
    %s309 = sadd.s32 %s308, 1
    %p312 = scmp.eq.s32.totalorder %s22, 1
    %p313 = scmp.ne.s32.totalorder %s308, %s310
    %p314 = scmp.eq.s32.totalorder %s22, 0
    %p315 = por %p313, %p314
    %p316 = scmp.ne.s32.totalorder %s308, %s310
    %p317 = scmp.eq.s32.totalorder %s27, 1
    %p318 = por %p316, %p317
    %p319 = scmp.ne.s32.totalorder %s310, %s311
    %p320 = scmp.eq.s32.totalorder %s27, 0
    %p321 = por %p319, %p320
    %p322 = scmp.ne.s32.totalorder %s310, %s311
    %p323 = scmp.eq.s32.totalorder %s28, 1
    %p324 = por %p322, %p323
    %p326 = scmp.ne.s32.totalorder %s311, %s325
    %p327 = scmp.eq.s32.totalorder %s28, 0
    %p328 = por %p326, %p327
    %s330 = sadd.s32 %s329, 1
    %p333 = scmp.eq.s32.totalorder %s22, 1
    %p334 = scmp.ne.s32.totalorder %s329, %s331
    %p335 = scmp.eq.s32.totalorder %s22, 0
    %p336 = por %p334, %p335
    %p337 = scmp.ne.s32.totalorder %s329, %s331
    %p338 = scmp.eq.s32.totalorder %s27, 1
    %p339 = por %p337, %p338
    %p340 = scmp.ne.s32.totalorder %s331, %s332
    %p341 = scmp.eq.s32.totalorder %s27, 0
    %p342 = por %p340, %p341
    %p343 = scmp.ne.s32.totalorder %s331, %s332
    %p344 = scmp.eq.s32.totalorder %s28, 1
    %p345 = por %p343, %p344
    %p347 = scmp.ne.s32.totalorder %s332, %s346
    %p348 = scmp.eq.s32.totalorder %s28, 0
    %p349 = por %p347, %p348
    %s351 = sadd.s32 %s350, 1
    %p354 = scmp.eq.s32.totalorder %s22, 1
    %p355 = scmp.ne.s32.totalorder %s350, %s352
    %p356 = scmp.eq.s32.totalorder %s22, 0
    %p357 = por %p355, %p356
    %p358 = scmp.ne.s32.totalorder %s350, %s352
    %p359 = scmp.eq.s32.totalorder %s27, 1
    %p360 = por %p358, %p359
    %p361 = scmp.ne.s32.totalorder %s352, %s353
    %p362 = scmp.eq.s32.totalorder %s27, 0
    %p363 = por %p361, %p362
    %p364 = scmp.ne.s32.totalorder %s352, %s353
    %p365 = scmp.eq.s32.totalorder %s28, 1
    %p366 = por %p364, %p365
    %p368 = scmp.ne.s32.totalorder %s353, %s367
    %p369 = scmp.eq.s32.totalorder %s28, 0
    %p370 = por %p368, %p369
    %s371 = ssub.s32 %s22, %s29
    %p372 = scmp.eq.s32.totalorder %s371, 0
    %s374 = sadd.s32 %s373, 1
    %s375 = scalar_select %p372, %s373, %s374
    %p378 = pneg %p372
    %p379 = scmp.eq.s32.totalorder %s22, 1
    %p380 = por %p378, %p379
    %p381 = scmp.ne.s32.totalorder %s373, %s376
    %p382 = scmp.eq.s32.totalorder %s22, 0
    %p383 = por %p381, %p382
    %p384 = scmp.ne.s32.totalorder %s373, %s376
    %p385 = scmp.eq.s32.totalorder %s27, 1
    %p386 = por %p384, %p385
    %p387 = scmp.ne.s32.totalorder %s376, %s377
    %p388 = scmp.eq.s32.totalorder %s27, 0
    %p389 = por %p387, %p388
    %p390 = scmp.ne.s32.totalorder %s376, %s377
    %p391 = scmp.eq.s32.totalorder %s28, 1
    %p392 = por %p390, %p391
    %p394 = scmp.ne.s32.totalorder %s377, %s393
    %p395 = scmp.eq.s32.totalorder %s28, 0
    %p396 = por %p394, %p395
    %p397 = scmp.le.s32.totalorder 1, %s22
    %p398 = scmp.lt.s32.totalorder %s22, 3
    %p399 = pnand %p397, %p398
    %p400 = pneg %p399
    // Predicated region
    $region9: #{box_estimator_forward.1} parent=5 // pred_check
      _
    $region10: #{box_estimator_forward.1} parent=5 // pred_check_branch
      %402 = sbr.rel (%p399) target = $region12
    $region11: #{box_estimator_forward.1} parent=5 // pred_region
      %s403 = ssub.s32 %s22, 1
      // Predicated region
      $region13: #{box_estimator_forward.1} parent=11 // pred_check
        %p404 = pneg %p69
      $region14: #{box_estimator_forward.1} parent=11 // pred_check_branch
        %406 = sbr.rel (%p404) target = $region16
      $region15: #{box_estimator_forward.1} parent=11 // pred_region
        _
      $region16: #{box_estimator_forward.1} parent=11 // pred_fallthru
        _
      // Predicated region
      $region17: #{box_estimator_forward.1} parent=11 // pred_check
        %p407 = pneg %p90
      $region18: #{box_estimator_forward.1} parent=11 // pred_check_branch
        %409 = sbr.rel (%p407) target = $region20
      $region19: #{box_estimator_forward.1} parent=11 // pred_region
        _
      $region20: #{box_estimator_forward.1} parent=11 // pred_fallthru
        _
      // Predicated region
      $region21: #{box_estimator_forward.1} parent=11 // pred_check
        %p410 = pneg %p111
      $region22: #{box_estimator_forward.1} parent=11 // pred_check_branch
        %412 = sbr.rel (%p410) target = $region24
      $region23: #{box_estimator_forward.1} parent=11 // pred_region
        _
      $region24: #{box_estimator_forward.1} parent=11 // pred_fallthru
        _
      // Predicated region
      $region25: #{box_estimator_forward.1} parent=11 // pred_check
        %p413 = pneg %p132
      $region26: #{box_estimator_forward.1} parent=11 // pred_check_branch
        %415 = sbr.rel (%p413) target = $region28
      $region27: #{box_estimator_forward.1} parent=11 // pred_region
        _
      $region28: #{box_estimator_forward.1} parent=11 // pred_fallthru
        _
      // Predicated region
      $region29: #{box_estimator_forward.1} parent=11 // pred_check
        %p416 = pneg %p153
      $region30: #{box_estimator_forward.1} parent=11 // pred_check_branch
        %418 = sbr.rel (%p416) target = $region32
      $region31: #{box_estimator_forward.1} parent=11 // pred_region
        _
      $region32: #{box_estimator_forward.1} parent=11 // pred_fallthru
        _
      // Predicated region
      $region33: #{box_estimator_forward.1} parent=11 // pred_check
        %p419 = pneg %p174
      $region34: #{box_estimator_forward.1} parent=11 // pred_check_branch
        %421 = sbr.rel (%p419) target = $region36
      $region35: #{box_estimator_forward.1} parent=11 // pred_region
        _
      $region36: #{box_estimator_forward.1} parent=11 // pred_fallthru
        _
      // Predicated region
      $region37: #{box_estimator_forward.1} parent=11 // pred_check
        %p422 = pneg %p195
      $region38: #{box_estimator_forward.1} parent=11 // pred_check_branch
        %424 = sbr.rel (%p422) target = $region40
      $region39: #{box_estimator_forward.1} parent=11 // pred_region
        _
      $region40: #{box_estimator_forward.1} parent=11 // pred_fallthru
        _
      // Predicated region
      $region41: #{box_estimator_forward.1} parent=11 // pred_check
        %p425 = pneg %p216
      $region42: #{box_estimator_forward.1} parent=11 // pred_check_branch
        %427 = sbr.rel (%p425) target = $region44
      $region43: #{box_estimator_forward.1} parent=11 // pred_region
        _
      $region44: #{box_estimator_forward.1} parent=11 // pred_fallthru
        _
      // Predicated region
      $region45: #{box_estimator_forward.1} parent=11 // pred_check
        %p428 = pneg %p237
      $region46: #{box_estimator_forward.1} parent=11 // pred_check_branch
        %430 = sbr.rel (%p428) target = $region48
      $region47: #{box_estimator_forward.1} parent=11 // pred_region
        _
      $region48: #{box_estimator_forward.1} parent=11 // pred_fallthru
        _
      // Predicated region
      $region49: #{box_estimator_forward.1} parent=11 // pred_check
        %p431 = pneg %p258
      $region50: #{box_estimator_forward.1} parent=11 // pred_check_branch
        %433 = sbr.rel (%p431) target = $region52
      $region51: #{box_estimator_forward.1} parent=11 // pred_region
        _
      $region52: #{box_estimator_forward.1} parent=11 // pred_fallthru
        _
      // Predicated region
      $region53: #{box_estimator_forward.1} parent=11 // pred_check
        %p434 = pneg %p279
      $region54: #{box_estimator_forward.1} parent=11 // pred_check_branch
        %436 = sbr.rel (%p434) target = $region56
      $region55: #{box_estimator_forward.1} parent=11 // pred_region
        _
      $region56: #{box_estimator_forward.1} parent=11 // pred_fallthru
        _
      // Predicated region
      $region57: #{box_estimator_forward.1} parent=11 // pred_check
        %p437 = pneg %p300
      $region58: #{box_estimator_forward.1} parent=11 // pred_check_branch
        %439 = sbr.rel (%p437) target = $region60
      $region59: #{box_estimator_forward.1} parent=11 // pred_region
        _
      $region60: #{box_estimator_forward.1} parent=11 // pred_fallthru
        _
      // Predicated region
      $region61: #{box_estimator_forward.1} parent=11 // pred_check
        %p440 = pneg %p321
      $region62: #{box_estimator_forward.1} parent=11 // pred_check_branch
        %442 = sbr.rel (%p440) target = $region64
      $region63: #{box_estimator_forward.1} parent=11 // pred_region
        _
      $region64: #{box_estimator_forward.1} parent=11 // pred_fallthru
        _
      // Predicated region
      $region65: #{box_estimator_forward.1} parent=11 // pred_check
        %p443 = pneg %p342
      $region66: #{box_estimator_forward.1} parent=11 // pred_check_branch
        %445 = sbr.rel (%p443) target = $region68
      $region67: #{box_estimator_forward.1} parent=11 // pred_region
        _
      $region68: #{box_estimator_forward.1} parent=11 // pred_fallthru
        _
      // Predicated region
      $region69: #{box_estimator_forward.1} parent=11 // pred_check
        %p446 = pneg %p363
      $region70: #{box_estimator_forward.1} parent=11 // pred_check_branch
        %448 = sbr.rel (%p446) target = $region72
      $region71: #{box_estimator_forward.1} parent=11 // pred_region
        _
      $region72: #{box_estimator_forward.1} parent=11 // pred_fallthru
        _
    $region12: #{box_estimator_forward.1} parent=5 // pred_fallthru
      _
    %p449 = scmp.lt.s32.totalorder %s22, 2
    // Predicated region
    $region73: #{box_estimator_forward.1} parent=5 // pred_check
      %p450 = pneg %p449
    $region74: #{box_estimator_forward.1} parent=5 // pred_check_branch
      %452 = sbr.rel (%p450) target = $region76
    $region75: #{box_estimator_forward.1} parent=5 // pred_region
      // Predicated region
      $region77: #{box_estimator_forward.1} parent=75 // pred_check
        %p453 = pneg %p42
      $region78: #{box_estimator_forward.1} parent=75 // pred_check_branch
        %455 = sbr.rel (%p453) target = $region80
      $region79: #{box_estimator_forward.1} parent=75 // pred_region
        %s456 = smul.u32 64, %s22
        %p457 = scmp.lt.s32.totalorder %s456, 127
        %s458 = scalar_select %p457, %s456, 127
        %s459 = smul.addr %s458, 4
        %s460 = scalar_lea.vmem %s0, %s459
        %s461 = smul.u32 64, %s22
      $region80: #{box_estimator_forward.1} parent=75 // pred_fallthru
        _
    $region76: #{box_estimator_forward.1} parent=5 // pred_fallthru
      _
    %p462 = scmp.le.s32.totalorder 1, %s22
    %p463 = scmp.lt.s32.totalorder %s22, 3
    %p464 = pnand %p462, %p463
    %p465 = pneg %p464
    // Predicated region
    $region81: #{box_estimator_forward.1} parent=5 // pred_check
      _
    $region82: #{box_estimator_forward.1} parent=5 // pred_check_branch
      %467 = sbr.rel (%p464) target = $region84
    $region83: #{box_estimator_forward.1} parent=5 // pred_region
      %s468 = ssub.s32 %s22, 1
      %s469 = smul.u32 64, %s27
      %p470 = scmp.lt.s32.totalorder %s469, 127
      %s471 = scalar_select %p470, %s469, 127
      %s472 = smul.addr %s471, 4
      %s473 = scalar_lea.vmem %s0, %s472
      %p474 = pneg %p48
      %p475 = pneg %p45
      %p476 = pneg %p69
      %p477 = pneg %p66
      %p478 = pneg %p90
      %p479 = pneg %p87
      %p480 = pneg %p111
      %p481 = pneg %p108
      %p482 = pneg %p132
      %p483 = pneg %p129
      %p484 = pneg %p153
      %p485 = pneg %p150
      %p486 = pneg %p174
      %p487 = pneg %p171
      %p488 = pneg %p195
      %p489 = pneg %p192
      %p490 = pneg %p216
      %p491 = pneg %p213
      %p492 = pneg %p237
      %p493 = pneg %p234
      %p494 = pneg %p258
      %p495 = pneg %p255
      %p496 = pneg %p279
      %p497 = pneg %p276
      %p498 = pneg %p300
      %p499 = pneg %p297
      %p500 = pneg %p321
      %p501 = pneg %p318
      %p502 = pneg %p342
      %p503 = pneg %p339
      %p504 = pneg %p363
      %p505 = pneg %p360
      %p506 = pneg %p389
      %p507 = pneg %p386
      %s508 = smul.u32 64, %s27
      %p509 = scmp.lt.s32.totalorder %s508, 127
      %s510 = scalar_select %p509, %s508, 127
      %s511 = smul.addr %s510, 8
      %s512 = scalar_lea.vmem %s16, %s511
      %s513 = smul.u32 64, %s27
      %p514 = scmp.lt.s32.totalorder %s513, 127
      %s515 = scalar_select %p514, %s513, 127
      %s516 = smul.addr %s515, 4
      %s517 = scalar_lea.vmem %s0, %s516
      %s518 = smul.u32 64, %s27
      %s519 = smul.u32 64, %s27
      %p520 = scmp.lt.s32.totalorder %s519, 127
      %s521 = scalar_select %p520, %s519, 127
      %s522 = smul.addr %s521, 8
      %s523 = scalar_lea.vmem %s16, %s522
      %s524 = smul.u32 64, %s27
      %v526 = vld [vmem:[%s517] sm:$0xf]
      %v527 = vld [vmem:[%s517 + $0x4] sm:$0xf]
      %v528 = vld [vmem:[%s517 + $0x8] sm:$0xf]
      %v529 = vld [vmem:[%s517 + $0xc] sm:$0xf]
      %v530 = vld [vmem:[%s517 + $0x10] sm:$0xf]
      %v531 = vld [vmem:[%s517 + $0x14] sm:$0xf]
      %v532 = vld [vmem:[%s517 + $0x18] sm:$0xf]
      %v533 = vld [vmem:[%s517 + $0x1c] sm:$0xf]
      %v534 = vld [vmem:[%s517 + $0x20] sm:$0xf]
      %v535 = vld [vmem:[%s517 + $0x24] sm:$0xf]
      %v536 = vld [vmem:[%s517 + $0x28] sm:$0xf]
      %v537 = vld [vmem:[%s517 + $0x2c] sm:$0xf]
      %v538 = vld [vmem:[%s517 + $0x30] sm:$0xf]
      %v539 = vld [vmem:[%s517 + $0x34] sm:$0xf]
      %v540 = vld [vmem:[%s517 + $0x38] sm:$0xf]
      %v541 = vld [vmem:[%s517 + $0x3c] sm:$0xf]
      %v542 = vld [vmem:[%s517 + $0x40] sm:$0xf]
      %v543 = vld [vmem:[%s517 + $0x44] sm:$0xf]
      %v544 = vld [vmem:[%s517 + $0x48] sm:$0xf]
      %v545 = vld [vmem:[%s517 + $0x4c] sm:$0xf]
      %v546 = vld [vmem:[%s517 + $0x50] sm:$0xf]
      %v547 = vld [vmem:[%s517 + $0x54] sm:$0xf]
      %v548 = vld [vmem:[%s517 + $0x58] sm:$0xf]
      %v549 = vld [vmem:[%s517 + $0x5c] sm:$0xf]
      %v550 = vld [vmem:[%s517 + $0x60] sm:$0xf]
      %v551 = vld [vmem:[%s517 + $0x64] sm:$0xf]
      %v552 = vld [vmem:[%s517 + $0x68] sm:$0xf]
      %v553 = vld [vmem:[%s517 + $0x6c] sm:$0xf]
      %v554 = vld [vmem:[%s517 + $0x70] sm:$0xf]
      %v555 = vld [vmem:[%s517 + $0x74] sm:$0xf]
      %v556 = vld [vmem:[%s517 + $0x78] sm:$0xf]
      %v557 = vld [vmem:[%s517 + $0x7c] sm:$0xf]
      %v558 = vld [vmem:[%s517 + $0x80] sm:$0xf]
      %v559 = vld [vmem:[%s517 + $0x84] sm:$0xf]
      %v560 = vld [vmem:[%s517 + $0x88] sm:$0xf]
      %v561 = vld [vmem:[%s517 + $0x8c] sm:$0xf]
      %v562 = vld [vmem:[%s517 + $0x90] sm:$0xf]
      %v563 = vld [vmem:[%s517 + $0x94] sm:$0xf]
      %v564 = vld [vmem:[%s517 + $0x98] sm:$0xf]
      %v565 = vld [vmem:[%s517 + $0x9c] sm:$0xf]
      %v566 = vld [vmem:[%s517 + $0xa0] sm:$0xf]
      %v567 = vld [vmem:[%s517 + $0xa4] sm:$0xf]
      %v568 = vld [vmem:[%s517 + $0xa8] sm:$0xf]
      %v569 = vld [vmem:[%s517 + $0xac] sm:$0xf]
      %v570 = vld [vmem:[%s517 + $0xb0] sm:$0xf]
      %v571 = vld [vmem:[%s517 + $0xb4] sm:$0xf]
      %v572 = vld [vmem:[%s517 + $0xb8] sm:$0xf]
      %v573 = vld [vmem:[%s517 + $0xbc] sm:$0xf]
      %v574 = vld [vmem:[%s517 + $0xc0] sm:$0xf]
      %v575 = vld [vmem:[%s517 + $0xc4] sm:$0xf]
      %v576 = vld [vmem:[%s517 + $0xc8] sm:$0xf]
      %v577 = vld [vmem:[%s517 + $0xcc] sm:$0xf]
      %v578 = vld [vmem:[%s517 + $0xd0] sm:$0xf]
      %v579 = vld [vmem:[%s517 + $0xd4] sm:$0xf]
      %v580 = vld [vmem:[%s517 + $0xd8] sm:$0xf]
      %v581 = vld [vmem:[%s517 + $0xdc] sm:$0xf]
      %v582 = vld [vmem:[%s517 + $0xe0] sm:$0xf]
      %v583 = vld [vmem:[%s517 + $0xe4] sm:$0xf]
      %v584 = vld [vmem:[%s517 + $0xe8] sm:$0xf]
      %v585 = vld [vmem:[%s517 + $0xec] sm:$0xf]
      %v586 = vld [vmem:[%s517 + $0xf0] sm:$0xf]
      %v587 = vld [vmem:[%s517 + $0xf4] sm:$0xf]
      %v588 = vld [vmem:[%s517 + $0xf8] sm:$0xf]
      %v589 = vld [vmem:[%s517 + $0xfc] sm:$0xf]
      %v590 = vld [vmem:[%s1] sm:$0xf]
      %v591 = vld [vmem:[%s2] sm:$0x1]
      %v593 = vlaneseq
      %v594 = vshrl.u32 %v593, 7
      %v595 = vsub.s32 0, %v594
      %v596 = vrot.slane %v591, %v595
      %v662 = vunpack.c.l.b16 %v526
      %v663 = vunpack.c.l.b16 %v527
      %v664 = vunpack.c.l.b16 %v528
      %v665 = vunpack.c.l.b16 %v529
      %v666 = vunpack.c.l.b16 %v530
      %v667 = vunpack.c.l.b16 %v531
      %v668 = vunpack.c.l.b16 %v532
      %v669 = vunpack.c.l.b16 %v533
      %v670 = vunpack.c.l.b16 %v534
      %v671 = vunpack.c.l.b16 %v535
      %v672 = vunpack.c.l.b16 %v536
      %v673 = vunpack.c.l.b16 %v537
      %v674 = vunpack.c.l.b16 %v538
      %v675 = vunpack.c.l.b16 %v539
      %v676 = vunpack.c.l.b16 %v540
      %v677 = vunpack.c.l.b16 %v541
      %v678 = vunpack.c.l.b16 %v542
      %v679 = vunpack.c.l.b16 %v543
      %v680 = vunpack.c.l.b16 %v544
      %v681 = vunpack.c.l.b16 %v545
      %v682 = vunpack.c.l.b16 %v546
      %v683 = vunpack.c.l.b16 %v547
      %v684 = vunpack.c.l.b16 %v548
      %v685 = vunpack.c.l.b16 %v549
      %v686 = vunpack.c.l.b16 %v550
      %v687 = vunpack.c.l.b16 %v551
      %v688 = vunpack.c.l.b16 %v552
      %v689 = vunpack.c.l.b16 %v553
      %v690 = vunpack.c.l.b16 %v554
      %v691 = vunpack.c.l.b16 %v555
      %v692 = vunpack.c.l.b16 %v556
      %v693 = vunpack.c.l.b16 %v557
      %v694 = vunpack.c.l.b16 %v558
      %v695 = vunpack.c.l.b16 %v559
      %v696 = vunpack.c.l.b16 %v560
      %v697 = vunpack.c.l.b16 %v561
      %v698 = vunpack.c.l.b16 %v562
      %v699 = vunpack.c.l.b16 %v563
      %v700 = vunpack.c.l.b16 %v564
      %v701 = vunpack.c.l.b16 %v565
      %v702 = vunpack.c.l.b16 %v566
      %v703 = vunpack.c.l.b16 %v567
      %v704 = vunpack.c.l.b16 %v568
      %v705 = vunpack.c.l.b16 %v569
      %v706 = vunpack.c.l.b16 %v570
      %v707 = vunpack.c.l.b16 %v571
      %v708 = vunpack.c.l.b16 %v572
      %v709 = vunpack.c.l.b16 %v573
      %v710 = vunpack.c.l.b16 %v574
      %v711 = vunpack.c.l.b16 %v575
      %v712 = vunpack.c.l.b16 %v576
      %v713 = vunpack.c.l.b16 %v577
      %v714 = vunpack.c.l.b16 %v578
      %v715 = vunpack.c.l.b16 %v579
      %v716 = vunpack.c.l.b16 %v580
      %v717 = vunpack.c.l.b16 %v581
      %v718 = vunpack.c.l.b16 %v582
      %v719 = vunpack.c.l.b16 %v583
      %v720 = vunpack.c.l.b16 %v584
      %v721 = vunpack.c.l.b16 %v585
      %v722 = vunpack.c.l.b16 %v586
      %v723 = vunpack.c.l.b16 %v587
      %v724 = vunpack.c.l.b16 %v588
      %v725 = vunpack.c.l.b16 %v589
      %v726 = vpack.c.b16 %v663, %v662
      %v727 = vpack.c.b16 %v665, %v664
      %v728 = vpack.c.b16 %v667, %v666
      %v729 = vpack.c.b16 %v669, %v668
      %v730 = vpack.c.b16 %v671, %v670
      %v731 = vpack.c.b16 %v673, %v672
      %v732 = vpack.c.b16 %v675, %v674
      %v733 = vpack.c.b16 %v677, %v676
      %v734 = vpack.c.b16 %v679, %v678
      %v735 = vpack.c.b16 %v681, %v680
      %v736 = vpack.c.b16 %v683, %v682
      %v737 = vpack.c.b16 %v685, %v684
      %v738 = vpack.c.b16 %v687, %v686
      %v739 = vpack.c.b16 %v689, %v688
      %v740 = vpack.c.b16 %v691, %v690
      %v741 = vpack.c.b16 %v693, %v692
      %v742 = vpack.c.b16 %v695, %v694
      %v743 = vpack.c.b16 %v697, %v696
      %v744 = vpack.c.b16 %v699, %v698
      %v745 = vpack.c.b16 %v701, %v700
      %v746 = vpack.c.b16 %v703, %v702
      %v747 = vpack.c.b16 %v705, %v704
      %v748 = vpack.c.b16 %v707, %v706
      %v749 = vpack.c.b16 %v709, %v708
      %v750 = vpack.c.b16 %v711, %v710
      %v751 = vpack.c.b16 %v713, %v712
      %v752 = vpack.c.b16 %v715, %v714
      %v753 = vpack.c.b16 %v717, %v716
      %v754 = vpack.c.b16 %v719, %v718
      %v755 = vpack.c.b16 %v721, %v720
      %v756 = vpack.c.b16 %v723, %v722
      %v757 = vpack.c.b16 %v725, %v724
      %vm758 = vcmask 64512
      %v760 = vsel %vm758, %v726, 0
      %v763 = vsel %vm758, %v727, 0
      %v766 = vsel %vm758, %v728, 0
      %v769 = vsel %vm758, %v729, 0
      %v772 = vsel %vm758, %v730, 0
      %v775 = vsel %vm758, %v731, 0
      %v778 = vsel %vm758, %v732, 0
      %v781 = vsel %vm758, %v733, 0
      %v784 = vsel %vm758, %v734, 0
      %v787 = vsel %vm758, %v735, 0
      %v790 = vsel %vm758, %v736, 0
      %v793 = vsel %vm758, %v737, 0
      %v796 = vsel %vm758, %v738, 0
      %v799 = vsel %vm758, %v739, 0
      %v802 = vsel %vm758, %v740, 0
      %v805 = vsel %vm758, %v741, 0
      %v808 = vsel %vm758, %v742, 0
      %v811 = vsel %vm758, %v743, 0
      %v814 = vsel %vm758, %v744, 0
      %v817 = vsel %vm758, %v745, 0
      %v820 = vsel %vm758, %v746, 0
      %v823 = vsel %vm758, %v747, 0
      %v826 = vsel %vm758, %v748, 0
      %v829 = vsel %vm758, %v749, 0
      %v832 = vsel %vm758, %v750, 0
      %v835 = vsel %vm758, %v751, 0
      %v838 = vsel %vm758, %v752, 0
      %v841 = vsel %vm758, %v753, 0
      %v844 = vsel %vm758, %v754, 0
      %v847 = vsel %vm758, %v755, 0
      %v850 = vsel %vm758, %v756, 0
      %v853 = vsel %vm758, %v757, 0
      %vm855 = vcmask 1043456
      %v857 = vsel %vm855, %v590, 0
      %859 = vmatprep.subr.bf16.mxu0 0
      %860 = vmatpush1.bf16.msra.mxu0 0
      %861 = vmatprep.subr.bf16.mxu0 0
      %862 = vmatpush1.bf16.msra.mxu0 0
      %863 = vmatprep.subr.bf16.mxu0 0
      %864 = vmatpush1.bf16.msra.mxu0 0
      %865 = vmatprep.subr.bf16.mxu0 0
      %866 = vmatpush1.bf16.msra.mxu0 0
      %867 = vmatprep.subr.bf16.mxu0 0
      %868 = vmatpush1.bf16.msra.mxu0 0
      %869 = vmatprep.subr.bf16.mxu0 0
      %870 = vmatpush1.bf16.msra.mxu0 0
      %871 = vmatprep.subr.bf16.mxu0 0
      %872 = vmatpush1.bf16.msra.mxu0 0
      %873 = vmatprep.subr.bf16.mxu0 0
      %874 = vmatpush1.bf16.msra.mxu0 %v857
      %875 = vmatprep.subr.bf16.mxu0 0
      %876 = vmatpush2.bf16.msra.mxu0 0
      %877 = vmatprep.subr.bf16.mxu0 0
      %878 = vmatpush2.bf16.msra.mxu0 0
      %879 = vmatprep.subr.bf16.mxu0 0
      %880 = vmatpush2.bf16.msra.mxu0 0
      %881 = vmatprep.subr.bf16.mxu0 0
      %882 = vmatpush2.bf16.msra.mxu0 0
      %883 = vmatprep.subr.bf16.mxu0 0
      %884 = vmatpush2.bf16.msra.mxu0 0
      %885 = vmatprep.subr.bf16.mxu0 0
      %886 = vmatpush2.bf16.msra.mxu0 0
      %887 = vmatprep.subr.bf16.mxu0 0
      %888 = vmatpush2.bf16.msra.mxu0 0
      %889 = vmatprep.subr.bf16.mxu0 0
      %890 = vmatpush2.bf16.msra.mxu0 0
      %891 = vmatprep.mubr.bf16.mxu0 0
      %892 = vmatmul.mubr.bf16.gmra.mxu0 %v760
      %v893 = vpop.f32.mrf.mxu0
      %v894 = vadd.f32 %v596, %v893
      %v895 = vpop.f32.mrf.mxu0
      %v896 = vpop.f32.mrf.mxu0
      %v897 = vadd.f32 %v596, %v896
      %v898 = vpop.f32.mrf.mxu0
      %899 = vmatprep.mubr.bf16.mxu0 0
      %900 = vmatmul.mubr.bf16.gmra.mxu0 %v763
      %v901 = vpop.f32.mrf.mxu0
      %v902 = vadd.f32 %v596, %v901
      %v903 = vpop.f32.mrf.mxu0
      %v904 = vpop.f32.mrf.mxu0
      %v905 = vadd.f32 %v596, %v904
      %v906 = vpop.f32.mrf.mxu0
      %907 = vmatprep.mubr.bf16.mxu0 0
      %908 = vmatmul.mubr.bf16.gmra.mxu0 %v766
      %v909 = vpop.f32.mrf.mxu0
      %v910 = vadd.f32 %v596, %v909
      %v911 = vpop.f32.mrf.mxu0
      %v912 = vpop.f32.mrf.mxu0
      %v913 = vadd.f32 %v596, %v912
      %v914 = vpop.f32.mrf.mxu0
      %915 = vmatprep.mubr.bf16.mxu0 0
      %916 = vmatmul.mubr.bf16.gmra.mxu0 %v769
      %v917 = vpop.f32.mrf.mxu0
      %v918 = vadd.f32 %v596, %v917
      %v919 = vpop.f32.mrf.mxu0
      %v920 = vpop.f32.mrf.mxu0
      %v921 = vadd.f32 %v596, %v920
      %v922 = vpop.f32.mrf.mxu0
      %923 = vmatprep.mubr.bf16.mxu0 0
      %924 = vmatmul.mubr.bf16.gmra.mxu0 %v772
      %v925 = vpop.f32.mrf.mxu0
      %v926 = vadd.f32 %v596, %v925
      %v927 = vpop.f32.mrf.mxu0
      %v928 = vpop.f32.mrf.mxu0
      %v929 = vadd.f32 %v596, %v928
      %v930 = vpop.f32.mrf.mxu0
      %931 = vmatprep.mubr.bf16.mxu0 0
      %932 = vmatmul.mubr.bf16.gmra.mxu0 %v775
      %v933 = vpop.f32.mrf.mxu0
      %v934 = vadd.f32 %v596, %v933
      %v935 = vpop.f32.mrf.mxu0
      %v936 = vpop.f32.mrf.mxu0
      %v937 = vadd.f32 %v596, %v936
      %v938 = vpop.f32.mrf.mxu0
      %939 = vmatprep.mubr.bf16.mxu0 0
      %940 = vmatmul.mubr.bf16.gmra.mxu0 %v778
      %v941 = vpop.f32.mrf.mxu0
      %v942 = vadd.f32 %v596, %v941
      %v943 = vpop.f32.mrf.mxu0
      %v944 = vpop.f32.mrf.mxu0
      %v945 = vadd.f32 %v596, %v944
      %v946 = vpop.f32.mrf.mxu0
      %947 = vmatprep.mubr.bf16.mxu0 0
      %948 = vmatmul.mubr.bf16.gmra.mxu0 %v781
      %v949 = vpop.f32.mrf.mxu0
      %v950 = vadd.f32 %v596, %v949
      %v951 = vpop.f32.mrf.mxu0
      %v952 = vpop.f32.mrf.mxu0
      %v953 = vadd.f32 %v596, %v952
      %v954 = vpop.f32.mrf.mxu0
      %955 = vmatprep.mubr.bf16.mxu0 0
      %956 = vmatmul.mubr.bf16.gmra.mxu0 %v784
      %v957 = vpop.f32.mrf.mxu0
      %v958 = vadd.f32 %v596, %v957
      %v959 = vpop.f32.mrf.mxu0
      %v960 = vpop.f32.mrf.mxu0
      %v961 = vadd.f32 %v596, %v960
      %v962 = vpop.f32.mrf.mxu0
      %963 = vmatprep.mubr.bf16.mxu0 0
      %964 = vmatmul.mubr.bf16.gmra.mxu0 %v787
      %v965 = vpop.f32.mrf.mxu0
      %v966 = vadd.f32 %v596, %v965
      %v967 = vpop.f32.mrf.mxu0
      %v968 = vpop.f32.mrf.mxu0
      %v969 = vadd.f32 %v596, %v968
      %v970 = vpop.f32.mrf.mxu0
      %971 = vmatprep.mubr.bf16.mxu0 0
      %972 = vmatmul.mubr.bf16.gmra.mxu0 %v790
      %v973 = vpop.f32.mrf.mxu0
      %v974 = vadd.f32 %v596, %v973
      %v975 = vpop.f32.mrf.mxu0
      %v976 = vpop.f32.mrf.mxu0
      %v977 = vadd.f32 %v596, %v976
      %v978 = vpop.f32.mrf.mxu0
      %979 = vmatprep.mubr.bf16.mxu0 0
      %980 = vmatmul.mubr.bf16.gmra.mxu0 %v793
      %v981 = vpop.f32.mrf.mxu0
      %v982 = vadd.f32 %v596, %v981
      %v983 = vpop.f32.mrf.mxu0
      %v984 = vpop.f32.mrf.mxu0
      %v985 = vadd.f32 %v596, %v984
      %v986 = vpop.f32.mrf.mxu0
      %987 = vmatprep.mubr.bf16.mxu0 0
      %988 = vmatmul.mubr.bf16.gmra.mxu0 %v796
      %v989 = vpop.f32.mrf.mxu0
      %v990 = vadd.f32 %v596, %v989
      %v991 = vpop.f32.mrf.mxu0
      %v992 = vpop.f32.mrf.mxu0
      %v993 = vadd.f32 %v596, %v992
      %v994 = vpop.f32.mrf.mxu0
      %995 = vmatprep.mubr.bf16.mxu0 0
      %996 = vmatmul.mubr.bf16.gmra.mxu0 %v799
      %v997 = vpop.f32.mrf.mxu0
      %v998 = vadd.f32 %v596, %v997
      %v999 = vpop.f32.mrf.mxu0
      %v1000 = vpop.f32.mrf.mxu0
      %v1001 = vadd.f32 %v596, %v1000
      %v1002 = vpop.f32.mrf.mxu0
      %1003 = vmatprep.mubr.bf16.mxu0 0
      %1004 = vmatmul.mubr.bf16.gmra.mxu0 %v802
      %v1005 = vpop.f32.mrf.mxu0
      %v1006 = vadd.f32 %v596, %v1005
      %v1007 = vpop.f32.mrf.mxu0
      %v1008 = vpop.f32.mrf.mxu0
      %v1009 = vadd.f32 %v596, %v1008
      %v1010 = vpop.f32.mrf.mxu0
      %1011 = vmatprep.mubr.bf16.mxu0 0
      %1012 = vmatmul.mubr.bf16.gmra.mxu0 %v805
      %v1013 = vpop.f32.mrf.mxu0
      %v1014 = vadd.f32 %v596, %v1013
      %v1015 = vpop.f32.mrf.mxu0
      %v1016 = vpop.f32.mrf.mxu0
      %v1017 = vadd.f32 %v596, %v1016
      %v1018 = vpop.f32.mrf.mxu0
      %1019 = vmatprep.mubr.bf16.mxu0 0
      %1020 = vmatmul.mubr.bf16.gmra.mxu0 %v808
      %v1021 = vpop.f32.mrf.mxu0
      %v1022 = vadd.f32 %v596, %v1021
      %v1023 = vpop.f32.mrf.mxu0
      %v1024 = vpop.f32.mrf.mxu0
      %v1025 = vadd.f32 %v596, %v1024
      %v1026 = vpop.f32.mrf.mxu0
      %1027 = vmatprep.mubr.bf16.mxu0 0
      %1028 = vmatmul.mubr.bf16.gmra.mxu0 %v811
      %v1029 = vpop.f32.mrf.mxu0
      %v1030 = vadd.f32 %v596, %v1029
      %v1031 = vpop.f32.mrf.mxu0
      %v1032 = vpop.f32.mrf.mxu0
      %v1033 = vadd.f32 %v596, %v1032
      %v1034 = vpop.f32.mrf.mxu0
      %1035 = vmatprep.mubr.bf16.mxu0 0
      %1036 = vmatmul.mubr.bf16.gmra.mxu0 %v814
      %v1037 = vpop.f32.mrf.mxu0
      %v1038 = vadd.f32 %v596, %v1037
      %v1039 = vpop.f32.mrf.mxu0
      %v1040 = vpop.f32.mrf.mxu0
      %v1041 = vadd.f32 %v596, %v1040
      %v1042 = vpop.f32.mrf.mxu0
      %1043 = vmatprep.mubr.bf16.mxu0 0
      %1044 = vmatmul.mubr.bf16.gmra.mxu0 %v817
      %v1045 = vpop.f32.mrf.mxu0
      %v1046 = vadd.f32 %v596, %v1045
      %v1047 = vpop.f32.mrf.mxu0
      %v1048 = vpop.f32.mrf.mxu0
      %v1049 = vadd.f32 %v596, %v1048
      %v1050 = vpop.f32.mrf.mxu0
      %1051 = vmatprep.mubr.bf16.mxu0 0
      %1052 = vmatmul.mubr.bf16.gmra.mxu0 %v820
      %v1053 = vpop.f32.mrf.mxu0
      %v1054 = vadd.f32 %v596, %v1053
      %v1055 = vpop.f32.mrf.mxu0
      %v1056 = vpop.f32.mrf.mxu0
      %v1057 = vadd.f32 %v596, %v1056
      %v1058 = vpop.f32.mrf.mxu0
      %1059 = vmatprep.mubr.bf16.mxu0 0
      %1060 = vmatmul.mubr.bf16.gmra.mxu0 %v823
      %v1061 = vpop.f32.mrf.mxu0
      %v1062 = vadd.f32 %v596, %v1061
      %v1063 = vpop.f32.mrf.mxu0
      %v1064 = vpop.f32.mrf.mxu0
      %v1065 = vadd.f32 %v596, %v1064
      %v1066 = vpop.f32.mrf.mxu0
      %1067 = vmatprep.mubr.bf16.mxu0 0
      %1068 = vmatmul.mubr.bf16.gmra.mxu0 %v826
      %v1069 = vpop.f32.mrf.mxu0
      %v1070 = vadd.f32 %v596, %v1069
      %v1071 = vpop.f32.mrf.mxu0
      %v1072 = vpop.f32.mrf.mxu0
      %v1073 = vadd.f32 %v596, %v1072
      %v1074 = vpop.f32.mrf.mxu0
      %1075 = vmatprep.mubr.bf16.mxu0 0
      %1076 = vmatmul.mubr.bf16.gmra.mxu0 %v829
      %v1077 = vpop.f32.mrf.mxu0
      %v1078 = vadd.f32 %v596, %v1077
      %v1079 = vpop.f32.mrf.mxu0
      %v1080 = vpop.f32.mrf.mxu0
      %v1081 = vadd.f32 %v596, %v1080
      %v1082 = vpop.f32.mrf.mxu0
      %1083 = vmatprep.mubr.bf16.mxu0 0
      %1084 = vmatmul.mubr.bf16.gmra.mxu0 %v832
      %v1085 = vpop.f32.mrf.mxu0
      %v1086 = vadd.f32 %v596, %v1085
      %v1087 = vpop.f32.mrf.mxu0
      %v1088 = vpop.f32.mrf.mxu0
      %v1089 = vadd.f32 %v596, %v1088
      %v1090 = vpop.f32.mrf.mxu0
      %1091 = vmatprep.mubr.bf16.mxu0 0
      %1092 = vmatmul.mubr.bf16.gmra.mxu0 %v835
      %v1093 = vpop.f32.mrf.mxu0
      %v1094 = vadd.f32 %v596, %v1093
      %v1095 = vpop.f32.mrf.mxu0
      %v1096 = vpop.f32.mrf.mxu0
      %v1097 = vadd.f32 %v596, %v1096
      %v1098 = vpop.f32.mrf.mxu0
      %1099 = vmatprep.mubr.bf16.mxu0 0
      %1100 = vmatmul.mubr.bf16.gmra.mxu0 %v838
      %v1101 = vpop.f32.mrf.mxu0
      %v1102 = vadd.f32 %v596, %v1101
      %v1103 = vpop.f32.mrf.mxu0
      %v1104 = vpop.f32.mrf.mxu0
      %v1105 = vadd.f32 %v596, %v1104
      %v1106 = vpop.f32.mrf.mxu0
      %1107 = vmatprep.mubr.bf16.mxu0 0
      %1108 = vmatmul.mubr.bf16.gmra.mxu0 %v841
      %v1109 = vpop.f32.mrf.mxu0
      %v1110 = vadd.f32 %v596, %v1109
      %v1111 = vpop.f32.mrf.mxu0
      %v1112 = vpop.f32.mrf.mxu0
      %v1113 = vadd.f32 %v596, %v1112
      %v1114 = vpop.f32.mrf.mxu0
      %1115 = vmatprep.mubr.bf16.mxu0 0
      %1116 = vmatmul.mubr.bf16.gmra.mxu0 %v844
      %v1117 = vpop.f32.mrf.mxu0
      %v1118 = vadd.f32 %v596, %v1117
      %v1119 = vpop.f32.mrf.mxu0
      %v1120 = vpop.f32.mrf.mxu0
      %v1121 = vadd.f32 %v596, %v1120
      %v1122 = vpop.f32.mrf.mxu0
      %1123 = vmatprep.mubr.bf16.mxu0 0
      %1124 = vmatmul.mubr.bf16.gmra.mxu0 %v847
      %v1125 = vpop.f32.mrf.mxu0
      %v1126 = vadd.f32 %v596, %v1125
      %v1127 = vpop.f32.mrf.mxu0
      %v1128 = vpop.f32.mrf.mxu0
      %v1129 = vadd.f32 %v596, %v1128
      %v1130 = vpop.f32.mrf.mxu0
      %1131 = vmatprep.mubr.bf16.mxu0 0
      %1132 = vmatmul.mubr.bf16.gmra.mxu0 %v850
      %v1133 = vpop.f32.mrf.mxu0
      %v1134 = vadd.f32 %v596, %v1133
      %v1135 = vpop.f32.mrf.mxu0
      %v1136 = vpop.f32.mrf.mxu0
      %v1137 = vadd.f32 %v596, %v1136
      %v1138 = vpop.f32.mrf.mxu0
      %1139 = vmatprep.mubr.bf16.mxu0 0
      %1140 = vmatmul.mubr.bf16.gmra.mxu0 %v853
      %v1141 = vpop.f32.mrf.mxu0
      %v1142 = vadd.f32 %v596, %v1141
      %v1143 = vpop.f32.mrf.mxu0
      %v1144 = vpop.f32.mrf.mxu0
      %v1145 = vadd.f32 %v596, %v1144
      %v1146 = vpop.f32.mrf.mxu0
      %1147 = vdwg.mxu0
      %v1148 = vpack.c.bf16 %v897, %v894
      %v1149 = vpack.c.bf16 %v905, %v902
      %v1150 = vpack.c.bf16 %v913, %v910
      %v1151 = vpack.c.bf16 %v921, %v918
      %v1152 = vpack.c.bf16 %v929, %v926
      %v1153 = vpack.c.bf16 %v937, %v934
      %v1154 = vpack.c.bf16 %v945, %v942
      %v1155 = vpack.c.bf16 %v953, %v950
      %v1156 = vpack.c.bf16 %v961, %v958
      %v1157 = vpack.c.bf16 %v969, %v966
      %v1158 = vpack.c.bf16 %v977, %v974
      %v1159 = vpack.c.bf16 %v985, %v982
      %v1160 = vpack.c.bf16 %v993, %v990
      %v1161 = vpack.c.bf16 %v1001, %v998
      %v1162 = vpack.c.bf16 %v1009, %v1006
      %v1163 = vpack.c.bf16 %v1017, %v1014
      %v1164 = vpack.c.bf16 %v1025, %v1022
      %v1165 = vpack.c.bf16 %v1033, %v1030
      %v1166 = vpack.c.bf16 %v1041, %v1038
      %v1167 = vpack.c.bf16 %v1049, %v1046
      %v1168 = vpack.c.bf16 %v1057, %v1054
      %v1169 = vpack.c.bf16 %v1065, %v1062
      %v1170 = vpack.c.bf16 %v1073, %v1070
      %v1171 = vpack.c.bf16 %v1081, %v1078
      %v1172 = vpack.c.bf16 %v1089, %v1086
      %v1173 = vpack.c.bf16 %v1097, %v1094
      %v1174 = vpack.c.bf16 %v1105, %v1102
      %v1175 = vpack.c.bf16 %v1113, %v1110
      %v1176 = vpack.c.bf16 %v1121, %v1118
      %v1177 = vpack.c.bf16 %v1129, %v1126
      %v1178 = vpack.c.bf16 %v1137, %v1134
      %v1179 = vpack.c.bf16 %v1145, %v1142
      %v1180 = vld [vmem:[%s3] sm:$0xf]
      %v1181 = vld [vmem:[%s3 + $0x4] sm:$0xf]
      %v1182 = vld [vmem:[%s3 + $0x8] sm:$0xf]
      %v1183 = vld [vmem:[%s3 + $0xc] sm:$0xf]
      %v1184 = vld [vmem:[%s3 + $0x10] sm:$0xf]
      %v1185 = vld [vmem:[%s3 + $0x14] sm:$0xf]
      %v1186 = vld [vmem:[%s3 + $0x18] sm:$0xf]
      %v1187 = vld [vmem:[%s3 + $0x1c] sm:$0xf]
      %v1188 = vld [vmem:[%s3 + $0x20] sm:$0xf]
      %v1189 = vld [vmem:[%s3 + $0x24] sm:$0xf]
      %v1190 = vld [vmem:[%s3 + $0x28] sm:$0xf]
      %v1191 = vld [vmem:[%s3 + $0x2c] sm:$0xf]
      %v1192 = vld [vmem:[%s3 + $0x30] sm:$0xf]
      %v1193 = vld [vmem:[%s3 + $0x34] sm:$0xf]
      %v1194 = vld [vmem:[%s3 + $0x38] sm:$0xf]
      %v1195 = vld [vmem:[%s3 + $0x3c] sm:$0xf]
      %v1196 = vld [vmem:[%s4] sm:$0x1]
      %v1198 = vlaneseq
      %v1199 = vshrl.u32 %v1198, 7
      %v1200 = vsub.s32 0, %v1199
      %v1201 = vrot.slane %v1196, %v1200
      %v1219 = vunpack.c.l.b16 %v1180
      %v1220 = vunpack.c.l.b16 %v1181
      %v1221 = vunpack.c.l.b16 %v1182
      %v1222 = vunpack.c.l.b16 %v1183
      %v1223 = vunpack.c.l.b16 %v1184
      %v1224 = vunpack.c.l.b16 %v1185
      %v1225 = vunpack.c.l.b16 %v1186
      %v1226 = vunpack.c.l.b16 %v1187
      %v1227 = vunpack.c.l.b16 %v1188
      %v1228 = vunpack.c.l.b16 %v1189
      %v1229 = vunpack.c.l.b16 %v1190
      %v1230 = vunpack.c.l.b16 %v1191
      %v1231 = vunpack.c.l.b16 %v1192
      %v1232 = vunpack.c.l.b16 %v1193
      %v1233 = vunpack.c.l.b16 %v1194
      %v1234 = vunpack.c.l.b16 %v1195
      %v1235 = vpack.c.b16 %v1220, %v1219
      %v1236 = vpack.c.b16 %v1222, %v1221
      %v1237 = vpack.c.b16 %v1224, %v1223
      %v1238 = vpack.c.b16 %v1226, %v1225
      %v1239 = vpack.c.b16 %v1228, %v1227
      %v1240 = vpack.c.b16 %v1230, %v1229
      %v1241 = vpack.c.b16 %v1232, %v1231
      %v1242 = vpack.c.b16 %v1234, %v1233
      %1251 = vmatprep.subr.bf16.mxu0 0
      %1252 = vmatpush1.bf16.msra.mxu0 %v1242
      %1253 = vmatprep.subr.bf16.mxu0 0
      %1254 = vmatpush1.bf16.msra.mxu0 %v1241
      %1255 = vmatprep.subr.bf16.mxu0 0
      %1256 = vmatpush1.bf16.msra.mxu0 %v1240
      %1257 = vmatprep.subr.bf16.mxu0 0
      %1258 = vmatpush1.bf16.msra.mxu0 %v1239
      %1259 = vmatprep.subr.bf16.mxu0 0
      %1260 = vmatpush1.bf16.msra.mxu0 %v1238
      %1261 = vmatprep.subr.bf16.mxu0 0
      %1262 = vmatpush1.bf16.msra.mxu0 %v1237
      %1263 = vmatprep.subr.bf16.mxu0 0
      %1264 = vmatpush1.bf16.msra.mxu0 %v1236
      %1265 = vmatprep.subr.bf16.mxu0 0
      %1266 = vmatpush1.bf16.msra.mxu0 %v1235
      %1267 = vmatprep.subr.bf16.mxu0 0
      %1268 = vmatpush2.bf16.msra.mxu0 0
      %1269 = vmatprep.subr.bf16.mxu0 0
      %1270 = vmatpush2.bf16.msra.mxu0 0
      %1271 = vmatprep.subr.bf16.mxu0 0
      %1272 = vmatpush2.bf16.msra.mxu0 0
      %1273 = vmatprep.subr.bf16.mxu0 0
      %1274 = vmatpush2.bf16.msra.mxu0 0
      %1275 = vmatprep.subr.bf16.mxu0 0
      %1276 = vmatpush2.bf16.msra.mxu0 0
      %1277 = vmatprep.subr.bf16.mxu0 0
      %1278 = vmatpush2.bf16.msra.mxu0 0
      %1279 = vmatprep.subr.bf16.mxu0 0
      %1280 = vmatpush2.bf16.msra.mxu0 0
      %1281 = vmatprep.subr.bf16.mxu0 0
      %1282 = vmatpush2.bf16.msra.mxu0 0
      %1283 = vmatprep.mubr.bf16.mxu0 0
      %1284 = vmatmul.mubr.bf16.gmra.mxu0 %v1148
      %v1285 = vpop.f32.mrf.mxu0
      %v1286 = vadd.f32 %v1201, %v1285
      %v1287 = vpop.f32.mrf.mxu0
      %v1288 = vpop.f32.mrf.mxu0
      %v1289 = vadd.f32 %v1201, %v1288
      %v1290 = vpop.f32.mrf.mxu0
      %1291 = vmatprep.mubr.bf16.mxu0 0
      %1292 = vmatmul.mubr.bf16.gmra.mxu0 %v1149
      %v1293 = vpop.f32.mrf.mxu0
      %v1294 = vadd.f32 %v1201, %v1293
      %v1295 = vpop.f32.mrf.mxu0
      %v1296 = vpop.f32.mrf.mxu0
      %v1297 = vadd.f32 %v1201, %v1296
      %v1298 = vpop.f32.mrf.mxu0
      %1299 = vmatprep.mubr.bf16.mxu0 0
      %1300 = vmatmul.mubr.bf16.gmra.mxu0 %v1150
      %v1301 = vpop.f32.mrf.mxu0
      %v1302 = vadd.f32 %v1201, %v1301
      %v1303 = vpop.f32.mrf.mxu0
      %v1304 = vpop.f32.mrf.mxu0
      %v1305 = vadd.f32 %v1201, %v1304
      %v1306 = vpop.f32.mrf.mxu0
      %1307 = vmatprep.mubr.bf16.mxu0 0
      %1308 = vmatmul.mubr.bf16.gmra.mxu0 %v1151
      %v1309 = vpop.f32.mrf.mxu0
      %v1310 = vadd.f32 %v1201, %v1309
      %v1311 = vpop.f32.mrf.mxu0
      %v1312 = vpop.f32.mrf.mxu0
      %v1313 = vadd.f32 %v1201, %v1312
      %v1314 = vpop.f32.mrf.mxu0
      %1315 = vmatprep.mubr.bf16.mxu0 0
      %1316 = vmatmul.mubr.bf16.gmra.mxu0 %v1152
      %v1317 = vpop.f32.mrf.mxu0
      %v1318 = vadd.f32 %v1201, %v1317
      %v1319 = vpop.f32.mrf.mxu0
      %v1320 = vpop.f32.mrf.mxu0
      %v1321 = vadd.f32 %v1201, %v1320
      %v1322 = vpop.f32.mrf.mxu0
      %1323 = vmatprep.mubr.bf16.mxu0 0
      %1324 = vmatmul.mubr.bf16.gmra.mxu0 %v1153
      %v1325 = vpop.f32.mrf.mxu0
      %v1326 = vadd.f32 %v1201, %v1325
      %v1327 = vpop.f32.mrf.mxu0
      %v1328 = vpop.f32.mrf.mxu0
      %v1329 = vadd.f32 %v1201, %v1328
      %v1330 = vpop.f32.mrf.mxu0
      %1331 = vmatprep.mubr.bf16.mxu0 0
      %1332 = vmatmul.mubr.bf16.gmra.mxu0 %v1154
      %v1333 = vpop.f32.mrf.mxu0
      %v1334 = vadd.f32 %v1201, %v1333
      %v1335 = vpop.f32.mrf.mxu0
      %v1336 = vpop.f32.mrf.mxu0
      %v1337 = vadd.f32 %v1201, %v1336
      %v1338 = vpop.f32.mrf.mxu0
      %1339 = vmatprep.mubr.bf16.mxu0 0
      %1340 = vmatmul.mubr.bf16.gmra.mxu0 %v1155
      %v1341 = vpop.f32.mrf.mxu0
      %v1342 = vadd.f32 %v1201, %v1341
      %v1343 = vpop.f32.mrf.mxu0
      %v1344 = vpop.f32.mrf.mxu0
      %v1345 = vadd.f32 %v1201, %v1344
      %v1346 = vpop.f32.mrf.mxu0
      %1347 = vmatprep.mubr.bf16.mxu0 0
      %1348 = vmatmul.mubr.bf16.gmra.mxu0 %v1156
      %v1349 = vpop.f32.mrf.mxu0
      %v1350 = vadd.f32 %v1201, %v1349
      %v1351 = vpop.f32.mrf.mxu0
      %v1352 = vpop.f32.mrf.mxu0
      %v1353 = vadd.f32 %v1201, %v1352
      %v1354 = vpop.f32.mrf.mxu0
      %1355 = vmatprep.mubr.bf16.mxu0 0
      %1356 = vmatmul.mubr.bf16.gmra.mxu0 %v1157
      %v1357 = vpop.f32.mrf.mxu0
      %v1358 = vadd.f32 %v1201, %v1357
      %v1359 = vpop.f32.mrf.mxu0
      %v1360 = vpop.f32.mrf.mxu0
      %v1361 = vadd.f32 %v1201, %v1360
      %v1362 = vpop.f32.mrf.mxu0
      %1363 = vmatprep.mubr.bf16.mxu0 0
      %1364 = vmatmul.mubr.bf16.gmra.mxu0 %v1158
      %v1365 = vpop.f32.mrf.mxu0
      %v1366 = vadd.f32 %v1201, %v1365
      %v1367 = vpop.f32.mrf.mxu0
      %v1368 = vpop.f32.mrf.mxu0
      %v1369 = vadd.f32 %v1201, %v1368
      %v1370 = vpop.f32.mrf.mxu0
      %1371 = vmatprep.mubr.bf16.mxu0 0
      %1372 = vmatmul.mubr.bf16.gmra.mxu0 %v1159
      %v1373 = vpop.f32.mrf.mxu0
      %v1374 = vadd.f32 %v1201, %v1373
      %v1375 = vpop.f32.mrf.mxu0
      %v1376 = vpop.f32.mrf.mxu0
      %v1377 = vadd.f32 %v1201, %v1376
      %v1378 = vpop.f32.mrf.mxu0
      %1379 = vmatprep.mubr.bf16.mxu0 0
      %1380 = vmatmul.mubr.bf16.gmra.mxu0 %v1160
      %v1381 = vpop.f32.mrf.mxu0
      %v1382 = vadd.f32 %v1201, %v1381
      %v1383 = vpop.f32.mrf.mxu0
      %v1384 = vpop.f32.mrf.mxu0
      %v1385 = vadd.f32 %v1201, %v1384
      %v1386 = vpop.f32.mrf.mxu0
      %1387 = vmatprep.mubr.bf16.mxu0 0
      %1388 = vmatmul.mubr.bf16.gmra.mxu0 %v1161
      %v1389 = vpop.f32.mrf.mxu0
      %v1390 = vadd.f32 %v1201, %v1389
      %v1391 = vpop.f32.mrf.mxu0
      %v1392 = vpop.f32.mrf.mxu0
      %v1393 = vadd.f32 %v1201, %v1392
      %v1394 = vpop.f32.mrf.mxu0
      %1395 = vmatprep.mubr.bf16.mxu0 0
      %1396 = vmatmul.mubr.bf16.gmra.mxu0 %v1162
      %v1397 = vpop.f32.mrf.mxu0
      %v1398 = vadd.f32 %v1201, %v1397
      %v1399 = vpop.f32.mrf.mxu0
      %v1400 = vpop.f32.mrf.mxu0
      %v1401 = vadd.f32 %v1201, %v1400
      %v1402 = vpop.f32.mrf.mxu0
      %1403 = vmatprep.mubr.bf16.mxu0 0
      %1404 = vmatmul.mubr.bf16.gmra.mxu0 %v1163
      %v1405 = vpop.f32.mrf.mxu0
      %v1406 = vadd.f32 %v1201, %v1405
      %v1407 = vpop.f32.mrf.mxu0
      %v1408 = vpop.f32.mrf.mxu0
      %v1409 = vadd.f32 %v1201, %v1408
      %v1410 = vpop.f32.mrf.mxu0
      %1411 = vmatprep.mubr.bf16.mxu0 0
      %1412 = vmatmul.mubr.bf16.gmra.mxu0 %v1164
      %v1413 = vpop.f32.mrf.mxu0
      %v1414 = vadd.f32 %v1201, %v1413
      %v1415 = vpop.f32.mrf.mxu0
      %v1416 = vpop.f32.mrf.mxu0
      %v1417 = vadd.f32 %v1201, %v1416
      %v1418 = vpop.f32.mrf.mxu0
      %1419 = vmatprep.mubr.bf16.mxu0 0
      %1420 = vmatmul.mubr.bf16.gmra.mxu0 %v1165
      %v1421 = vpop.f32.mrf.mxu0
      %v1422 = vadd.f32 %v1201, %v1421
      %v1423 = vpop.f32.mrf.mxu0
      %v1424 = vpop.f32.mrf.mxu0
      %v1425 = vadd.f32 %v1201, %v1424
      %v1426 = vpop.f32.mrf.mxu0
      %1427 = vmatprep.mubr.bf16.mxu0 0
      %1428 = vmatmul.mubr.bf16.gmra.mxu0 %v1166
      %v1429 = vpop.f32.mrf.mxu0
      %v1430 = vadd.f32 %v1201, %v1429
      %v1431 = vpop.f32.mrf.mxu0
      %v1432 = vpop.f32.mrf.mxu0
      %v1433 = vadd.f32 %v1201, %v1432
      %v1434 = vpop.f32.mrf.mxu0
      %1435 = vmatprep.mubr.bf16.mxu0 0
      %1436 = vmatmul.mubr.bf16.gmra.mxu0 %v1167
      %v1437 = vpop.f32.mrf.mxu0
      %v1438 = vadd.f32 %v1201, %v1437
      %v1439 = vpop.f32.mrf.mxu0
      %v1440 = vpop.f32.mrf.mxu0
      %v1441 = vadd.f32 %v1201, %v1440
      %v1442 = vpop.f32.mrf.mxu0
      %1443 = vmatprep.mubr.bf16.mxu0 0
      %1444 = vmatmul.mubr.bf16.gmra.mxu0 %v1168
      %v1445 = vpop.f32.mrf.mxu0
      %v1446 = vadd.f32 %v1201, %v1445
      %v1447 = vpop.f32.mrf.mxu0
      %v1448 = vpop.f32.mrf.mxu0
      %v1449 = vadd.f32 %v1201, %v1448
      %v1450 = vpop.f32.mrf.mxu0
      %1451 = vmatprep.mubr.bf16.mxu0 0
      %1452 = vmatmul.mubr.bf16.gmra.mxu0 %v1169
      %v1453 = vpop.f32.mrf.mxu0
      %v1454 = vadd.f32 %v1201, %v1453
      %v1455 = vpop.f32.mrf.mxu0
      %v1456 = vpop.f32.mrf.mxu0
      %v1457 = vadd.f32 %v1201, %v1456
      %v1458 = vpop.f32.mrf.mxu0
      %1459 = vmatprep.mubr.bf16.mxu0 0
      %1460 = vmatmul.mubr.bf16.gmra.mxu0 %v1170
      %v1461 = vpop.f32.mrf.mxu0
      %v1462 = vadd.f32 %v1201, %v1461
      %v1463 = vpop.f32.mrf.mxu0
      %v1464 = vpop.f32.mrf.mxu0
      %v1465 = vadd.f32 %v1201, %v1464
      %v1466 = vpop.f32.mrf.mxu0
      %1467 = vmatprep.mubr.bf16.mxu0 0
      %1468 = vmatmul.mubr.bf16.gmra.mxu0 %v1171
      %v1469 = vpop.f32.mrf.mxu0
      %v1470 = vadd.f32 %v1201, %v1469
      %v1471 = vpop.f32.mrf.mxu0
      %v1472 = vpop.f32.mrf.mxu0
      %v1473 = vadd.f32 %v1201, %v1472
      %v1474 = vpop.f32.mrf.mxu0
      %1475 = vmatprep.mubr.bf16.mxu0 0
      %1476 = vmatmul.mubr.bf16.gmra.mxu0 %v1172
      %v1477 = vpop.f32.mrf.mxu0
      %v1478 = vadd.f32 %v1201, %v1477
      %v1479 = vpop.f32.mrf.mxu0
      %v1480 = vpop.f32.mrf.mxu0
      %v1481 = vadd.f32 %v1201, %v1480
      %v1482 = vpop.f32.mrf.mxu0
      %1483 = vmatprep.mubr.bf16.mxu0 0
      %1484 = vmatmul.mubr.bf16.gmra.mxu0 %v1173
      %v1485 = vpop.f32.mrf.mxu0
      %v1486 = vadd.f32 %v1201, %v1485
      %v1487 = vpop.f32.mrf.mxu0
      %v1488 = vpop.f32.mrf.mxu0
      %v1489 = vadd.f32 %v1201, %v1488
      %v1490 = vpop.f32.mrf.mxu0
      %1491 = vmatprep.mubr.bf16.mxu0 0
      %1492 = vmatmul.mubr.bf16.gmra.mxu0 %v1174
      %v1493 = vpop.f32.mrf.mxu0
      %v1494 = vadd.f32 %v1201, %v1493
      %v1495 = vpop.f32.mrf.mxu0
      %v1496 = vpop.f32.mrf.mxu0
      %v1497 = vadd.f32 %v1201, %v1496
      %v1498 = vpop.f32.mrf.mxu0
      %1499 = vmatprep.mubr.bf16.mxu0 0
      %1500 = vmatmul.mubr.bf16.gmra.mxu0 %v1175
      %v1501 = vpop.f32.mrf.mxu0
      %v1502 = vadd.f32 %v1201, %v1501
      %v1503 = vpop.f32.mrf.mxu0
      %v1504 = vpop.f32.mrf.mxu0
      %v1505 = vadd.f32 %v1201, %v1504
      %v1506 = vpop.f32.mrf.mxu0
      %1507 = vmatprep.mubr.bf16.mxu0 0
      %1508 = vmatmul.mubr.bf16.gmra.mxu0 %v1176
      %v1509 = vpop.f32.mrf.mxu0
      %v1510 = vadd.f32 %v1201, %v1509
      %v1511 = vpop.f32.mrf.mxu0
      %v1512 = vpop.f32.mrf.mxu0
      %v1513 = vadd.f32 %v1201, %v1512
      %v1514 = vpop.f32.mrf.mxu0
      %1515 = vmatprep.mubr.bf16.mxu0 0
      %1516 = vmatmul.mubr.bf16.gmra.mxu0 %v1177
      %v1517 = vpop.f32.mrf.mxu0
      %v1518 = vadd.f32 %v1201, %v1517
      %v1519 = vpop.f32.mrf.mxu0
      %v1520 = vpop.f32.mrf.mxu0
      %v1521 = vadd.f32 %v1201, %v1520
      %v1522 = vpop.f32.mrf.mxu0
      %1523 = vmatprep.mubr.bf16.mxu0 0
      %1524 = vmatmul.mubr.bf16.gmra.mxu0 %v1178
      %v1525 = vpop.f32.mrf.mxu0
      %v1526 = vadd.f32 %v1201, %v1525
      %v1527 = vpop.f32.mrf.mxu0
      %v1528 = vpop.f32.mrf.mxu0
      %v1529 = vadd.f32 %v1201, %v1528
      %v1530 = vpop.f32.mrf.mxu0
      %1531 = vmatprep.mubr.bf16.mxu0 0
      %1532 = vmatmul.mubr.bf16.gmra.mxu0 %v1179
      %v1533 = vpop.f32.mrf.mxu0
      %v1534 = vadd.f32 %v1201, %v1533
      %v1535 = vpop.f32.mrf.mxu0
      %v1536 = vpop.f32.mrf.mxu0
      %v1537 = vadd.f32 %v1201, %v1536
      %v1538 = vpop.f32.mrf.mxu0
      %1539 = vdwg.mxu0
      %v1540 = vpack.c.bf16 %v1289, %v1286
      %v1541 = vpack.c.bf16 %v1297, %v1294
      %v1542 = vpack.c.bf16 %v1305, %v1302
      %v1543 = vpack.c.bf16 %v1313, %v1310
      %v1544 = vpack.c.bf16 %v1321, %v1318
      %v1545 = vpack.c.bf16 %v1329, %v1326
      %v1546 = vpack.c.bf16 %v1337, %v1334
      %v1547 = vpack.c.bf16 %v1345, %v1342
      %v1548 = vpack.c.bf16 %v1353, %v1350
      %v1549 = vpack.c.bf16 %v1361, %v1358
      %v1550 = vpack.c.bf16 %v1369, %v1366
      %v1551 = vpack.c.bf16 %v1377, %v1374
      %v1552 = vpack.c.bf16 %v1385, %v1382
      %v1553 = vpack.c.bf16 %v1393, %v1390
      %v1554 = vpack.c.bf16 %v1401, %v1398
      %v1555 = vpack.c.bf16 %v1409, %v1406
      %v1556 = vpack.c.bf16 %v1417, %v1414
      %v1557 = vpack.c.bf16 %v1425, %v1422
      %v1558 = vpack.c.bf16 %v1433, %v1430
      %v1559 = vpack.c.bf16 %v1441, %v1438
      %v1560 = vpack.c.bf16 %v1449, %v1446
      %v1561 = vpack.c.bf16 %v1457, %v1454
      %v1562 = vpack.c.bf16 %v1465, %v1462
      %v1563 = vpack.c.bf16 %v1473, %v1470
      %v1564 = vpack.c.bf16 %v1481, %v1478
      %v1565 = vpack.c.bf16 %v1489, %v1486
      %v1566 = vpack.c.bf16 %v1497, %v1494
      %v1567 = vpack.c.bf16 %v1505, %v1502
      %v1568 = vpack.c.bf16 %v1513, %v1510
      %v1569 = vpack.c.bf16 %v1521, %v1518
      %v1570 = vpack.c.bf16 %v1529, %v1526
      %v1571 = vpack.c.bf16 %v1537, %v1534
      %v1572 = vld [vmem:[%s5] sm:$0xff]
      %v1573 = vld [vmem:[%s5 + $0x8] sm:$0xff]
      %v1574 = vld [vmem:[%s5 + $0x10] sm:$0xff]
      %v1575 = vld [vmem:[%s5 + $0x18] sm:$0xff]
      %v1576 = vld [vmem:[%s5 + $0x20] sm:$0xff]
      %v1577 = vld [vmem:[%s5 + $0x28] sm:$0xff]
      %v1578 = vld [vmem:[%s5 + $0x30] sm:$0xff]
      %v1579 = vld [vmem:[%s5 + $0x38] sm:$0xff]
      %v1580 = vld [vmem:[%s5 + $0x40] sm:$0xff]
      %v1581 = vld [vmem:[%s5 + $0x48] sm:$0xff]
      %v1582 = vld [vmem:[%s5 + $0x50] sm:$0xff]
      %v1583 = vld [vmem:[%s5 + $0x58] sm:$0xff]
      %v1584 = vld [vmem:[%s5 + $0x60] sm:$0xff]
      %v1585 = vld [vmem:[%s5 + $0x68] sm:$0xff]
      %v1586 = vld [vmem:[%s5 + $0x70] sm:$0xff]
      %v1587 = vld [vmem:[%s5 + $0x78] sm:$0xff]
      %v1588 = vld [vmem:[%s6] sm:$0x3]
      %v1590 = vlaneseq
      %v1591 = vshrl.u32 %v1590, 7
      %v1592 = vsub.s32 0, %v1591
      %v1593 = vrot.slane %v1588, %v1592
      %v1594 = vlaneseq
      %v1595 = vshrl.u32 %v1594, 7
      %v1596 = vsub.s32 1, %v1595
      %v1597 = vrot.slane %v1588, %v1596
      %v1616 = vunpack.c.l.b16 %v1572
      %v1617 = vunpack.c.h.b16 %v1572
      %v1618 = vunpack.c.l.b16 %v1573
      %v1619 = vunpack.c.h.b16 %v1573
      %v1620 = vunpack.c.l.b16 %v1574
      %v1621 = vunpack.c.h.b16 %v1574
      %v1622 = vunpack.c.l.b16 %v1575
      %v1623 = vunpack.c.h.b16 %v1575
      %v1624 = vunpack.c.l.b16 %v1576
      %v1625 = vunpack.c.h.b16 %v1576
      %v1626 = vunpack.c.l.b16 %v1577
      %v1627 = vunpack.c.h.b16 %v1577
      %v1628 = vunpack.c.l.b16 %v1578
      %v1629 = vunpack.c.h.b16 %v1578
      %v1630 = vunpack.c.l.b16 %v1579
      %v1631 = vunpack.c.h.b16 %v1579
      %v1632 = vunpack.c.l.b16 %v1580
      %v1633 = vunpack.c.h.b16 %v1580
      %v1634 = vunpack.c.l.b16 %v1581
      %v1635 = vunpack.c.h.b16 %v1581
      %v1636 = vunpack.c.l.b16 %v1582
      %v1637 = vunpack.c.h.b16 %v1582
      %v1638 = vunpack.c.l.b16 %v1583
      %v1639 = vunpack.c.h.b16 %v1583
      %v1640 = vunpack.c.l.b16 %v1584
      %v1641 = vunpack.c.h.b16 %v1584
      %v1642 = vunpack.c.l.b16 %v1585
      %v1643 = vunpack.c.h.b16 %v1585
      %v1644 = vunpack.c.l.b16 %v1586
      %v1645 = vunpack.c.h.b16 %v1586
      %v1646 = vunpack.c.l.b16 %v1587
      %v1647 = vunpack.c.h.b16 %v1587
      %v1648 = vpack.c.b16 %v1618, %v1616
      %v1649 = vpack.c.b16 %v1619, %v1617
      %v1650 = vpack.c.b16 %v1622, %v1620
      %v1651 = vpack.c.b16 %v1623, %v1621
      %v1652 = vpack.c.b16 %v1626, %v1624
      %v1653 = vpack.c.b16 %v1627, %v1625
      %v1654 = vpack.c.b16 %v1630, %v1628
      %v1655 = vpack.c.b16 %v1631, %v1629
      %v1656 = vpack.c.b16 %v1634, %v1632
      %v1657 = vpack.c.b16 %v1635, %v1633
      %v1658 = vpack.c.b16 %v1638, %v1636
      %v1659 = vpack.c.b16 %v1639, %v1637
      %v1660 = vpack.c.b16 %v1642, %v1640
      %v1661 = vpack.c.b16 %v1643, %v1641
      %v1662 = vpack.c.b16 %v1646, %v1644
      %v1663 = vpack.c.b16 %v1647, %v1645
      %1680 = vmatprep.subr.bf16.mxu0 %v1663
      %1681 = vmatpush1.bf16.msra.mxu0 %v1662
      %1682 = vmatprep.subr.bf16.mxu0 %v1661
      %1683 = vmatpush1.bf16.msra.mxu0 %v1660
      %1684 = vmatprep.subr.bf16.mxu0 %v1659
      %1685 = vmatpush1.bf16.msra.mxu0 %v1658
      %1686 = vmatprep.subr.bf16.mxu0 %v1657
      %1687 = vmatpush1.bf16.msra.mxu0 %v1656
      %1688 = vmatprep.subr.bf16.mxu0 %v1655
      %1689 = vmatpush1.bf16.msra.mxu0 %v1654
      %1690 = vmatprep.subr.bf16.mxu0 %v1653
      %1691 = vmatpush1.bf16.msra.mxu0 %v1652
      %1692 = vmatprep.subr.bf16.mxu0 %v1651
      %1693 = vmatpush1.bf16.msra.mxu0 %v1650
      %1694 = vmatprep.subr.bf16.mxu0 %v1649
      %1695 = vmatpush1.bf16.msra.mxu0 %v1648
      %1696 = vmatprep.subr.bf16.mxu0 0
      %1697 = vmatpush2.bf16.msra.mxu0 0
      %1698 = vmatprep.subr.bf16.mxu0 0
      %1699 = vmatpush2.bf16.msra.mxu0 0
      %1700 = vmatprep.subr.bf16.mxu0 0
      %1701 = vmatpush2.bf16.msra.mxu0 0
      %1702 = vmatprep.subr.bf16.mxu0 0
      %1703 = vmatpush2.bf16.msra.mxu0 0
      %1704 = vmatprep.subr.bf16.mxu0 0
      %1705 = vmatpush2.bf16.msra.mxu0 0
      %1706 = vmatprep.subr.bf16.mxu0 0
      %1707 = vmatpush2.bf16.msra.mxu0 0
      %1708 = vmatprep.subr.bf16.mxu0 0
      %1709 = vmatpush2.bf16.msra.mxu0 0
      %1710 = vmatprep.subr.bf16.mxu0 0
      %1711 = vmatpush2.bf16.msra.mxu0 0
      %1712 = vmatprep.mubr.bf16.mxu0 0
      %1713 = vmatmul.mubr.bf16.gmra.mxu0 %v1540
      %v1714 = vpop.f32.mrf.mxu0
      %v1715 = vadd.f32 %v1593, %v1714
      %v1716 = vpop.f32.mrf.mxu0
      %v1717 = vadd.f32 %v1597, %v1716
      %v1718 = vpop.f32.mrf.mxu0
      %v1719 = vadd.f32 %v1593, %v1718
      %v1720 = vpop.f32.mrf.mxu0
      %v1721 = vadd.f32 %v1597, %v1720
      %1722 = vmatprep.mubr.bf16.mxu0 0
      %1723 = vmatmul.mubr.bf16.gmra.mxu0 %v1541
      %v1724 = vpop.f32.mrf.mxu0
      %v1725 = vadd.f32 %v1593, %v1724
      %v1726 = vpop.f32.mrf.mxu0
      %v1727 = vadd.f32 %v1597, %v1726
      %v1728 = vpop.f32.mrf.mxu0
      %v1729 = vadd.f32 %v1593, %v1728
      %v1730 = vpop.f32.mrf.mxu0
      %v1731 = vadd.f32 %v1597, %v1730
      %1732 = vmatprep.mubr.bf16.mxu0 0
      %1733 = vmatmul.mubr.bf16.gmra.mxu0 %v1542
      %v1734 = vpop.f32.mrf.mxu0
      %v1735 = vadd.f32 %v1593, %v1734
      %v1736 = vpop.f32.mrf.mxu0
      %v1737 = vadd.f32 %v1597, %v1736
      %v1738 = vpop.f32.mrf.mxu0
      %v1739 = vadd.f32 %v1593, %v1738
      %v1740 = vpop.f32.mrf.mxu0
      %v1741 = vadd.f32 %v1597, %v1740
      %1742 = vmatprep.mubr.bf16.mxu0 0
      %1743 = vmatmul.mubr.bf16.gmra.mxu0 %v1543
      %v1744 = vpop.f32.mrf.mxu0
      %v1745 = vadd.f32 %v1593, %v1744
      %v1746 = vpop.f32.mrf.mxu0
      %v1747 = vadd.f32 %v1597, %v1746
      %v1748 = vpop.f32.mrf.mxu0
      %v1749 = vadd.f32 %v1593, %v1748
      %v1750 = vpop.f32.mrf.mxu0
      %v1751 = vadd.f32 %v1597, %v1750
      %1752 = vmatprep.mubr.bf16.mxu0 0
      %1753 = vmatmul.mubr.bf16.gmra.mxu0 %v1544
      %v1754 = vpop.f32.mrf.mxu0
      %v1755 = vadd.f32 %v1593, %v1754
      %v1756 = vpop.f32.mrf.mxu0
      %v1757 = vadd.f32 %v1597, %v1756
      %v1758 = vpop.f32.mrf.mxu0
      %v1759 = vadd.f32 %v1593, %v1758
      %v1760 = vpop.f32.mrf.mxu0
      %v1761 = vadd.f32 %v1597, %v1760
      %1762 = vmatprep.mubr.bf16.mxu0 0
      %1763 = vmatmul.mubr.bf16.gmra.mxu0 %v1545
      %v1764 = vpop.f32.mrf.mxu0
      %v1765 = vadd.f32 %v1593, %v1764
      %v1766 = vpop.f32.mrf.mxu0
      %v1767 = vadd.f32 %v1597, %v1766
      %v1768 = vpop.f32.mrf.mxu0
      %v1769 = vadd.f32 %v1593, %v1768
      %v1770 = vpop.f32.mrf.mxu0
      %v1771 = vadd.f32 %v1597, %v1770
      %1772 = vmatprep.mubr.bf16.mxu0 0
      %1773 = vmatmul.mubr.bf16.gmra.mxu0 %v1546
      %v1774 = vpop.f32.mrf.mxu0
      %v1775 = vadd.f32 %v1593, %v1774
      %v1776 = vpop.f32.mrf.mxu0
      %v1777 = vadd.f32 %v1597, %v1776
      %v1778 = vpop.f32.mrf.mxu0
      %v1779 = vadd.f32 %v1593, %v1778
      %v1780 = vpop.f32.mrf.mxu0
      %v1781 = vadd.f32 %v1597, %v1780
      %1782 = vmatprep.mubr.bf16.mxu0 0
      %1783 = vmatmul.mubr.bf16.gmra.mxu0 %v1547
      %v1784 = vpop.f32.mrf.mxu0
      %v1785 = vadd.f32 %v1593, %v1784
      %v1786 = vpop.f32.mrf.mxu0
      %v1787 = vadd.f32 %v1597, %v1786
      %v1788 = vpop.f32.mrf.mxu0
      %v1789 = vadd.f32 %v1593, %v1788
      %v1790 = vpop.f32.mrf.mxu0
      %v1791 = vadd.f32 %v1597, %v1790
      %1792 = vmatprep.mubr.bf16.mxu0 0
      %1793 = vmatmul.mubr.bf16.gmra.mxu0 %v1548
      %v1794 = vpop.f32.mrf.mxu0
      %v1795 = vadd.f32 %v1593, %v1794
      %v1796 = vpop.f32.mrf.mxu0
      %v1797 = vadd.f32 %v1597, %v1796
      %v1798 = vpop.f32.mrf.mxu0
      %v1799 = vadd.f32 %v1593, %v1798
      %v1800 = vpop.f32.mrf.mxu0
      %v1801 = vadd.f32 %v1597, %v1800
      %1802 = vmatprep.mubr.bf16.mxu0 0
      %1803 = vmatmul.mubr.bf16.gmra.mxu0 %v1549
      %v1804 = vpop.f32.mrf.mxu0
      %v1805 = vadd.f32 %v1593, %v1804
      %v1806 = vpop.f32.mrf.mxu0
      %v1807 = vadd.f32 %v1597, %v1806
      %v1808 = vpop.f32.mrf.mxu0
      %v1809 = vadd.f32 %v1593, %v1808
      %v1810 = vpop.f32.mrf.mxu0
      %v1811 = vadd.f32 %v1597, %v1810
      %1812 = vmatprep.mubr.bf16.mxu0 0
      %1813 = vmatmul.mubr.bf16.gmra.mxu0 %v1550
      %v1814 = vpop.f32.mrf.mxu0
      %v1815 = vadd.f32 %v1593, %v1814
      %v1816 = vpop.f32.mrf.mxu0
      %v1817 = vadd.f32 %v1597, %v1816
      %v1818 = vpop.f32.mrf.mxu0
      %v1819 = vadd.f32 %v1593, %v1818
      %v1820 = vpop.f32.mrf.mxu0
      %v1821 = vadd.f32 %v1597, %v1820
      %1822 = vmatprep.mubr.bf16.mxu0 0
      %1823 = vmatmul.mubr.bf16.gmra.mxu0 %v1551
      %v1824 = vpop.f32.mrf.mxu0
      %v1825 = vadd.f32 %v1593, %v1824
      %v1826 = vpop.f32.mrf.mxu0
      %v1827 = vadd.f32 %v1597, %v1826
      %v1828 = vpop.f32.mrf.mxu0
      %v1829 = vadd.f32 %v1593, %v1828
      %v1830 = vpop.f32.mrf.mxu0
      %v1831 = vadd.f32 %v1597, %v1830
      %1832 = vmatprep.mubr.bf16.mxu0 0
      %1833 = vmatmul.mubr.bf16.gmra.mxu0 %v1552
      %v1834 = vpop.f32.mrf.mxu0
      %v1835 = vadd.f32 %v1593, %v1834
      %v1836 = vpop.f32.mrf.mxu0
      %v1837 = vadd.f32 %v1597, %v1836
      %v1838 = vpop.f32.mrf.mxu0
      %v1839 = vadd.f32 %v1593, %v1838
      %v1840 = vpop.f32.mrf.mxu0
      %v1841 = vadd.f32 %v1597, %v1840
      %1842 = vmatprep.mubr.bf16.mxu0 0
      %1843 = vmatmul.mubr.bf16.gmra.mxu0 %v1553
      %v1844 = vpop.f32.mrf.mxu0
      %v1845 = vadd.f32 %v1593, %v1844
      %v1846 = vpop.f32.mrf.mxu0
      %v1847 = vadd.f32 %v1597, %v1846
      %v1848 = vpop.f32.mrf.mxu0
      %v1849 = vadd.f32 %v1593, %v1848
      %v1850 = vpop.f32.mrf.mxu0
      %v1851 = vadd.f32 %v1597, %v1850
      %1852 = vmatprep.mubr.bf16.mxu0 0
      %1853 = vmatmul.mubr.bf16.gmra.mxu0 %v1554
      %v1854 = vpop.f32.mrf.mxu0
      %v1855 = vadd.f32 %v1593, %v1854
      %v1856 = vpop.f32.mrf.mxu0
      %v1857 = vadd.f32 %v1597, %v1856
      %v1858 = vpop.f32.mrf.mxu0
      %v1859 = vadd.f32 %v1593, %v1858
      %v1860 = vpop.f32.mrf.mxu0
      %v1861 = vadd.f32 %v1597, %v1860
      %1862 = vmatprep.mubr.bf16.mxu0 0
      %1863 = vmatmul.mubr.bf16.gmra.mxu0 %v1555
      %v1864 = vpop.f32.mrf.mxu0
      %v1865 = vadd.f32 %v1593, %v1864
      %v1866 = vpop.f32.mrf.mxu0
      %v1867 = vadd.f32 %v1597, %v1866
      %v1868 = vpop.f32.mrf.mxu0
      %v1869 = vadd.f32 %v1593, %v1868
      %v1870 = vpop.f32.mrf.mxu0
      %v1871 = vadd.f32 %v1597, %v1870
      %1872 = vmatprep.mubr.bf16.mxu0 0
      %1873 = vmatmul.mubr.bf16.gmra.mxu0 %v1556
      %v1874 = vpop.f32.mrf.mxu0
      %v1875 = vadd.f32 %v1593, %v1874
      %v1876 = vpop.f32.mrf.mxu0
      %v1877 = vadd.f32 %v1597, %v1876
      %v1878 = vpop.f32.mrf.mxu0
      %v1879 = vadd.f32 %v1593, %v1878
      %v1880 = vpop.f32.mrf.mxu0
      %v1881 = vadd.f32 %v1597, %v1880
      %1882 = vmatprep.mubr.bf16.mxu0 0
      %1883 = vmatmul.mubr.bf16.gmra.mxu0 %v1557
      %v1884 = vpop.f32.mrf.mxu0
      %v1885 = vadd.f32 %v1593, %v1884
      %v1886 = vpop.f32.mrf.mxu0
      %v1887 = vadd.f32 %v1597, %v1886
      %v1888 = vpop.f32.mrf.mxu0
      %v1889 = vadd.f32 %v1593, %v1888
      %v1890 = vpop.f32.mrf.mxu0
      %v1891 = vadd.f32 %v1597, %v1890
      %1892 = vmatprep.mubr.bf16.mxu0 0
      %1893 = vmatmul.mubr.bf16.gmra.mxu0 %v1558
      %v1894 = vpop.f32.mrf.mxu0
      %v1895 = vadd.f32 %v1593, %v1894
      %v1896 = vpop.f32.mrf.mxu0
      %v1897 = vadd.f32 %v1597, %v1896
      %v1898 = vpop.f32.mrf.mxu0
      %v1899 = vadd.f32 %v1593, %v1898
      %v1900 = vpop.f32.mrf.mxu0
      %v1901 = vadd.f32 %v1597, %v1900
      %1902 = vmatprep.mubr.bf16.mxu0 0
      %1903 = vmatmul.mubr.bf16.gmra.mxu0 %v1559
      %v1904 = vpop.f32.mrf.mxu0
      %v1905 = vadd.f32 %v1593, %v1904
      %v1906 = vpop.f32.mrf.mxu0
      %v1907 = vadd.f32 %v1597, %v1906
      %v1908 = vpop.f32.mrf.mxu0
      %v1909 = vadd.f32 %v1593, %v1908
      %v1910 = vpop.f32.mrf.mxu0
      %v1911 = vadd.f32 %v1597, %v1910
      %1912 = vmatprep.mubr.bf16.mxu0 0
      %1913 = vmatmul.mubr.bf16.gmra.mxu0 %v1560
      %v1914 = vpop.f32.mrf.mxu0
      %v1915 = vadd.f32 %v1593, %v1914
      %v1916 = vpop.f32.mrf.mxu0
      %v1917 = vadd.f32 %v1597, %v1916
      %v1918 = vpop.f32.mrf.mxu0
      %v1919 = vadd.f32 %v1593, %v1918
      %v1920 = vpop.f32.mrf.mxu0
      %v1921 = vadd.f32 %v1597, %v1920
      %1922 = vmatprep.mubr.bf16.mxu0 0
      %1923 = vmatmul.mubr.bf16.gmra.mxu0 %v1561
      %v1924 = vpop.f32.mrf.mxu0
      %v1925 = vadd.f32 %v1593, %v1924
      %v1926 = vpop.f32.mrf.mxu0
      %v1927 = vadd.f32 %v1597, %v1926
      %v1928 = vpop.f32.mrf.mxu0
      %v1929 = vadd.f32 %v1593, %v1928
      %v1930 = vpop.f32.mrf.mxu0
      %v1931 = vadd.f32 %v1597, %v1930
      %1932 = vmatprep.mubr.bf16.mxu0 0
      %1933 = vmatmul.mubr.bf16.gmra.mxu0 %v1562
      %v1934 = vpop.f32.mrf.mxu0
      %v1935 = vadd.f32 %v1593, %v1934
      %v1936 = vpop.f32.mrf.mxu0
      %v1937 = vadd.f32 %v1597, %v1936
      %v1938 = vpop.f32.mrf.mxu0
      %v1939 = vadd.f32 %v1593, %v1938
      %v1940 = vpop.f32.mrf.mxu0
      %v1941 = vadd.f32 %v1597, %v1940
      %1942 = vmatprep.mubr.bf16.mxu0 0
      %1943 = vmatmul.mubr.bf16.gmra.mxu0 %v1563
      %v1944 = vpop.f32.mrf.mxu0
      %v1945 = vadd.f32 %v1593, %v1944
      %v1946 = vpop.f32.mrf.mxu0
      %v1947 = vadd.f32 %v1597, %v1946
      %v1948 = vpop.f32.mrf.mxu0
      %v1949 = vadd.f32 %v1593, %v1948
      %v1950 = vpop.f32.mrf.mxu0
      %v1951 = vadd.f32 %v1597, %v1950
      %1952 = vmatprep.mubr.bf16.mxu0 0
      %1953 = vmatmul.mubr.bf16.gmra.mxu0 %v1564
      %v1954 = vpop.f32.mrf.mxu0
      %v1955 = vadd.f32 %v1593, %v1954
      %v1956 = vpop.f32.mrf.mxu0
      %v1957 = vadd.f32 %v1597, %v1956
      %v1958 = vpop.f32.mrf.mxu0
      %v1959 = vadd.f32 %v1593, %v1958
      %v1960 = vpop.f32.mrf.mxu0
      %v1961 = vadd.f32 %v1597, %v1960
      %1962 = vmatprep.mubr.bf16.mxu0 0
      %1963 = vmatmul.mubr.bf16.gmra.mxu0 %v1565
      %v1964 = vpop.f32.mrf.mxu0
      %v1965 = vadd.f32 %v1593, %v1964
      %v1966 = vpop.f32.mrf.mxu0
      %v1967 = vadd.f32 %v1597, %v1966
      %v1968 = vpop.f32.mrf.mxu0
      %v1969 = vadd.f32 %v1593, %v1968
      %v1970 = vpop.f32.mrf.mxu0
      %v1971 = vadd.f32 %v1597, %v1970
      %1972 = vmatprep.mubr.bf16.mxu0 0
      %1973 = vmatmul.mubr.bf16.gmra.mxu0 %v1566
      %v1974 = vpop.f32.mrf.mxu0
      %v1975 = vadd.f32 %v1593, %v1974
      %v1976 = vpop.f32.mrf.mxu0
      %v1977 = vadd.f32 %v1597, %v1976
      %v1978 = vpop.f32.mrf.mxu0
      %v1979 = vadd.f32 %v1593, %v1978
      %v1980 = vpop.f32.mrf.mxu0
      %v1981 = vadd.f32 %v1597, %v1980
      %1982 = vmatprep.mubr.bf16.mxu0 0
      %1983 = vmatmul.mubr.bf16.gmra.mxu0 %v1567
      %v1984 = vpop.f32.mrf.mxu0
      %v1985 = vadd.f32 %v1593, %v1984
      %v1986 = vpop.f32.mrf.mxu0
      %v1987 = vadd.f32 %v1597, %v1986
      %v1988 = vpop.f32.mrf.mxu0
      %v1989 = vadd.f32 %v1593, %v1988
      %v1990 = vpop.f32.mrf.mxu0
      %v1991 = vadd.f32 %v1597, %v1990
      %1992 = vmatprep.mubr.bf16.mxu0 0
      %1993 = vmatmul.mubr.bf16.gmra.mxu0 %v1568
      %v1994 = vpop.f32.mrf.mxu0
      %v1995 = vadd.f32 %v1593, %v1994
      %v1996 = vpop.f32.mrf.mxu0
      %v1997 = vadd.f32 %v1597, %v1996
      %v1998 = vpop.f32.mrf.mxu0
      %v1999 = vadd.f32 %v1593, %v1998
      %v2000 = vpop.f32.mrf.mxu0
      %v2001 = vadd.f32 %v1597, %v2000
      %2002 = vmatprep.mubr.bf16.mxu0 0
      %2003 = vmatmul.mubr.bf16.gmra.mxu0 %v1569
      %v2004 = vpop.f32.mrf.mxu0
      %v2005 = vadd.f32 %v1593, %v2004
      %v2006 = vpop.f32.mrf.mxu0
      %v2007 = vadd.f32 %v1597, %v2006
      %v2008 = vpop.f32.mrf.mxu0
      %v2009 = vadd.f32 %v1593, %v2008
      %v2010 = vpop.f32.mrf.mxu0
      %v2011 = vadd.f32 %v1597, %v2010
      %2012 = vmatprep.mubr.bf16.mxu0 0
      %2013 = vmatmul.mubr.bf16.gmra.mxu0 %v1570
      %v2014 = vpop.f32.mrf.mxu0
      %v2015 = vadd.f32 %v1593, %v2014
      %v2016 = vpop.f32.mrf.mxu0
      %v2017 = vadd.f32 %v1597, %v2016
      %v2018 = vpop.f32.mrf.mxu0
      %v2019 = vadd.f32 %v1593, %v2018
      %v2020 = vpop.f32.mrf.mxu0
      %v2021 = vadd.f32 %v1597, %v2020
      %2022 = vmatprep.mubr.bf16.mxu0 0
      %2023 = vmatmul.mubr.bf16.gmra.mxu0 %v1571
      %v2024 = vpop.f32.mrf.mxu0
      %v2025 = vadd.f32 %v1593, %v2024
      %v2026 = vpop.f32.mrf.mxu0
      %v2027 = vadd.f32 %v1597, %v2026
      %v2028 = vpop.f32.mrf.mxu0
      %v2029 = vadd.f32 %v1593, %v2028
      %v2030 = vpop.f32.mrf.mxu0
      %v2031 = vadd.f32 %v1597, %v2030
      %2032 = vdwg.mxu0
      %v2033 = vpack.c.bf16 %v1719, %v1715
      %v2034 = vpack.c.bf16 %v1721, %v1717
      %v2035 = vpack.c.bf16 %v1729, %v1725
      %v2036 = vpack.c.bf16 %v1731, %v1727
      %v2037 = vpack.c.bf16 %v1739, %v1735
      %v2038 = vpack.c.bf16 %v1741, %v1737
      %v2039 = vpack.c.bf16 %v1749, %v1745
      %v2040 = vpack.c.bf16 %v1751, %v1747
      %v2041 = vpack.c.bf16 %v1759, %v1755
      %v2042 = vpack.c.bf16 %v1761, %v1757
      %v2043 = vpack.c.bf16 %v1769, %v1765
      %v2044 = vpack.c.bf16 %v1771, %v1767
      %v2045 = vpack.c.bf16 %v1779, %v1775
      %v2046 = vpack.c.bf16 %v1781, %v1777
      %v2047 = vpack.c.bf16 %v1789, %v1785
      %v2048 = vpack.c.bf16 %v1791, %v1787
      %v2049 = vpack.c.bf16 %v1799, %v1795
      %v2050 = vpack.c.bf16 %v1801, %v1797
      %v2051 = vpack.c.bf16 %v1809, %v1805
      %v2052 = vpack.c.bf16 %v1811, %v1807
      %v2053 = vpack.c.bf16 %v1819, %v1815
      %v2054 = vpack.c.bf16 %v1821, %v1817
      %v2055 = vpack.c.bf16 %v1829, %v1825
      %v2056 = vpack.c.bf16 %v1831, %v1827
      %v2057 = vpack.c.bf16 %v1839, %v1835
      %v2058 = vpack.c.bf16 %v1841, %v1837
      %v2059 = vpack.c.bf16 %v1849, %v1845
      %v2060 = vpack.c.bf16 %v1851, %v1847
      %v2061 = vpack.c.bf16 %v1859, %v1855
      %v2062 = vpack.c.bf16 %v1861, %v1857
      %v2063 = vpack.c.bf16 %v1869, %v1865
      %v2064 = vpack.c.bf16 %v1871, %v1867
      %v2065 = vpack.c.bf16 %v1879, %v1875
      %v2066 = vpack.c.bf16 %v1881, %v1877
      %v2067 = vpack.c.bf16 %v1889, %v1885
      %v2068 = vpack.c.bf16 %v1891, %v1887
      %v2069 = vpack.c.bf16 %v1899, %v1895
      %v2070 = vpack.c.bf16 %v1901, %v1897
      %v2071 = vpack.c.bf16 %v1909, %v1905
      %v2072 = vpack.c.bf16 %v1911, %v1907
      %v2073 = vpack.c.bf16 %v1919, %v1915
      %v2074 = vpack.c.bf16 %v1921, %v1917
      %v2075 = vpack.c.bf16 %v1929, %v1925
      %v2076 = vpack.c.bf16 %v1931, %v1927
      %v2077 = vpack.c.bf16 %v1939, %v1935
      %v2078 = vpack.c.bf16 %v1941, %v1937
      %v2079 = vpack.c.bf16 %v1949, %v1945
      %v2080 = vpack.c.bf16 %v1951, %v1947
      %v2081 = vpack.c.bf16 %v1959, %v1955
      %v2082 = vpack.c.bf16 %v1961, %v1957
      %v2083 = vpack.c.bf16 %v1969, %v1965
      %v2084 = vpack.c.bf16 %v1971, %v1967
      %v2085 = vpack.c.bf16 %v1979, %v1975
      %v2086 = vpack.c.bf16 %v1981, %v1977
      %v2087 = vpack.c.bf16 %v1989, %v1985
      %v2088 = vpack.c.bf16 %v1991, %v1987
      %v2089 = vpack.c.bf16 %v1999, %v1995
      %v2090 = vpack.c.bf16 %v2001, %v1997
      %v2091 = vpack.c.bf16 %v2009, %v2005
      %v2092 = vpack.c.bf16 %v2011, %v2007
      %v2093 = vpack.c.bf16 %v2019, %v2015
      %v2094 = vpack.c.bf16 %v2021, %v2017
      %v2095 = vpack.c.bf16 %v2029, %v2025
      %v2096 = vpack.c.bf16 %v2031, %v2027
      %v2097 = vld [vmem:[%s7] sm:$0xff]
      %v2098 = vld [vmem:[%s7 + $0x8] sm:$0xff]
      %v2099 = vld [vmem:[%s7 + $0x10] sm:$0xff]
      %v2100 = vld [vmem:[%s7 + $0x18] sm:$0xff]
      %v2101 = vld [vmem:[%s7 + $0x20] sm:$0xff]
      %v2102 = vld [vmem:[%s7 + $0x28] sm:$0xff]
      %v2103 = vld [vmem:[%s7 + $0x30] sm:$0xff]
      %v2104 = vld [vmem:[%s7 + $0x38] sm:$0xff]
      %v2105 = vld [vmem:[%s7 + $0x40] sm:$0xff]
      %v2106 = vld [vmem:[%s7 + $0x48] sm:$0xff]
      %v2107 = vld [vmem:[%s7 + $0x50] sm:$0xff]
      %v2108 = vld [vmem:[%s7 + $0x58] sm:$0xff]
      %v2109 = vld [vmem:[%s7 + $0x60] sm:$0xff]
      %v2110 = vld [vmem:[%s7 + $0x68] sm:$0xff]
      %v2111 = vld [vmem:[%s7 + $0x70] sm:$0xff]
      %v2112 = vld [vmem:[%s7 + $0x78] sm:$0xff]
      %v2113 = vld [vmem:[%s7 + $0x80] sm:$0xff]
      %v2114 = vld [vmem:[%s7 + $0x88] sm:$0xff]
      %v2115 = vld [vmem:[%s7 + $0x90] sm:$0xff]
      %v2116 = vld [vmem:[%s7 + $0x98] sm:$0xff]
      %v2117 = vld [vmem:[%s7 + $0xa0] sm:$0xff]
      %v2118 = vld [vmem:[%s7 + $0xa8] sm:$0xff]
      %v2119 = vld [vmem:[%s7 + $0xb0] sm:$0xff]
      %v2120 = vld [vmem:[%s7 + $0xb8] sm:$0xff]
      %v2121 = vld [vmem:[%s7 + $0xc0] sm:$0xff]
      %v2122 = vld [vmem:[%s7 + $0xc8] sm:$0xff]
      %v2123 = vld [vmem:[%s7 + $0xd0] sm:$0xff]
      %v2124 = vld [vmem:[%s7 + $0xd8] sm:$0xff]
      %v2125 = vld [vmem:[%s7 + $0xe0] sm:$0xff]
      %v2126 = vld [vmem:[%s7 + $0xe8] sm:$0xff]
      %v2127 = vld [vmem:[%s7 + $0xf0] sm:$0xff]
      %v2128 = vld [vmem:[%s7 + $0xf8] sm:$0xff]
      %v2129 = vld [vmem:[%s7 + $0x100] sm:$0xff]
      %v2130 = vld [vmem:[%s7 + $0x108] sm:$0xff]
      %v2131 = vld [vmem:[%s7 + $0x110] sm:$0xff]
      %v2132 = vld [vmem:[%s7 + $0x118] sm:$0xff]
      %v2133 = vld [vmem:[%s7 + $0x120] sm:$0xff]
      %v2134 = vld [vmem:[%s7 + $0x128] sm:$0xff]
      %v2135 = vld [vmem:[%s7 + $0x130] sm:$0xff]
      %v2136 = vld [vmem:[%s7 + $0x138] sm:$0xff]
      %v2137 = vld [vmem:[%s7 + $0x140] sm:$0xff]
      %v2138 = vld [vmem:[%s7 + $0x148] sm:$0xff]
      %v2139 = vld [vmem:[%s7 + $0x150] sm:$0xff]
      %v2140 = vld [vmem:[%s7 + $0x158] sm:$0xff]
      %v2141 = vld [vmem:[%s7 + $0x160] sm:$0xff]
      %v2142 = vld [vmem:[%s7 + $0x168] sm:$0xff]
      %v2143 = vld [vmem:[%s7 + $0x170] sm:$0xff]
      %v2144 = vld [vmem:[%s7 + $0x178] sm:$0xff]
      %v2145 = vld [vmem:[%s7 + $0x180] sm:$0xff]
      %v2146 = vld [vmem:[%s7 + $0x188] sm:$0xff]
      %v2147 = vld [vmem:[%s7 + $0x190] sm:$0xff]
      %v2148 = vld [vmem:[%s7 + $0x198] sm:$0xff]
      %v2149 = vld [vmem:[%s7 + $0x1a0] sm:$0xff]
      %v2150 = vld [vmem:[%s7 + $0x1a8] sm:$0xff]
      %v2151 = vld [vmem:[%s7 + $0x1b0] sm:$0xff]
      %v2152 = vld [vmem:[%s7 + $0x1b8] sm:$0xff]
      %v2153 = vld [vmem:[%s7 + $0x1c0] sm:$0xff]
      %v2154 = vld [vmem:[%s7 + $0x1c8] sm:$0xff]
      %v2155 = vld [vmem:[%s7 + $0x1d0] sm:$0xff]
      %v2156 = vld [vmem:[%s7 + $0x1d8] sm:$0xff]
      %v2157 = vld [vmem:[%s7 + $0x1e0] sm:$0xff]
      %v2158 = vld [vmem:[%s7 + $0x1e8] sm:$0xff]
      %v2159 = vld [vmem:[%s7 + $0x1f0] sm:$0xff]
      %v2160 = vld [vmem:[%s7 + $0x1f8] sm:$0xff]
      %v2161 = vld [vmem:[%s8] sm:$0xf]
      %v2163 = vlaneseq
      %v2164 = vshrl.u32 %v2163, 7
      %v2165 = vsub.s32 0, %v2164
      %v2166 = vrot.slane %v2161, %v2165
      %v2167 = vlaneseq
      %v2168 = vshrl.u32 %v2167, 7
      %v2169 = vsub.s32 1, %v2168
      %v2170 = vrot.slane %v2161, %v2169
      %v2171 = vlaneseq
      %v2172 = vshrl.u32 %v2171, 7
      %v2173 = vsub.s32 2, %v2172
      %v2174 = vrot.slane %v2161, %v2173
      %v2175 = vlaneseq
      %v2176 = vshrl.u32 %v2175, 7
      %v2177 = vsub.s32 3, %v2176
      %v2178 = vrot.slane %v2161, %v2177
      %v2247 = vunpack.c.l.b16 %v2097
      %v2248 = vunpack.c.h.b16 %v2097
      %v2249 = vunpack.c.l.b16 %v2098
      %v2250 = vunpack.c.h.b16 %v2098
      %v2251 = vunpack.c.l.b16 %v2099
      %v2252 = vunpack.c.h.b16 %v2099
      %v2253 = vunpack.c.l.b16 %v2100
      %v2254 = vunpack.c.h.b16 %v2100
      %v2255 = vunpack.c.l.b16 %v2101
      %v2256 = vunpack.c.h.b16 %v2101
      %v2257 = vunpack.c.l.b16 %v2102
      %v2258 = vunpack.c.h.b16 %v2102
      %v2259 = vunpack.c.l.b16 %v2103
      %v2260 = vunpack.c.h.b16 %v2103
      %v2261 = vunpack.c.l.b16 %v2104
      %v2262 = vunpack.c.h.b16 %v2104
      %v2263 = vunpack.c.l.b16 %v2105
      %v2264 = vunpack.c.h.b16 %v2105
      %v2265 = vunpack.c.l.b16 %v2106
      %v2266 = vunpack.c.h.b16 %v2106
      %v2267 = vunpack.c.l.b16 %v2107
      %v2268 = vunpack.c.h.b16 %v2107
      %v2269 = vunpack.c.l.b16 %v2108
      %v2270 = vunpack.c.h.b16 %v2108
      %v2271 = vunpack.c.l.b16 %v2109
      %v2272 = vunpack.c.h.b16 %v2109
      %v2273 = vunpack.c.l.b16 %v2110
      %v2274 = vunpack.c.h.b16 %v2110
      %v2275 = vunpack.c.l.b16 %v2111
      %v2276 = vunpack.c.h.b16 %v2111
      %v2277 = vunpack.c.l.b16 %v2112
      %v2278 = vunpack.c.h.b16 %v2112
      %v2279 = vunpack.c.l.b16 %v2113
      %v2280 = vunpack.c.h.b16 %v2113
      %v2281 = vunpack.c.l.b16 %v2114
      %v2282 = vunpack.c.h.b16 %v2114
      %v2283 = vunpack.c.l.b16 %v2115
      %v2284 = vunpack.c.h.b16 %v2115
      %v2285 = vunpack.c.l.b16 %v2116
      %v2286 = vunpack.c.h.b16 %v2116
      %v2287 = vunpack.c.l.b16 %v2117
      %v2288 = vunpack.c.h.b16 %v2117
      %v2289 = vunpack.c.l.b16 %v2118
      %v2290 = vunpack.c.h.b16 %v2118
      %v2291 = vunpack.c.l.b16 %v2119
      %v2292 = vunpack.c.h.b16 %v2119
      %v2293 = vunpack.c.l.b16 %v2120
      %v2294 = vunpack.c.h.b16 %v2120
      %v2295 = vunpack.c.l.b16 %v2121
      %v2296 = vunpack.c.h.b16 %v2121
      %v2297 = vunpack.c.l.b16 %v2122
      %v2298 = vunpack.c.h.b16 %v2122
      %v2299 = vunpack.c.l.b16 %v2123
      %v2300 = vunpack.c.h.b16 %v2123
      %v2301 = vunpack.c.l.b16 %v2124
      %v2302 = vunpack.c.h.b16 %v2124
      %v2303 = vunpack.c.l.b16 %v2125
      %v2304 = vunpack.c.h.b16 %v2125
      %v2305 = vunpack.c.l.b16 %v2126
      %v2306 = vunpack.c.h.b16 %v2126
      %v2307 = vunpack.c.l.b16 %v2127
      %v2308 = vunpack.c.h.b16 %v2127
      %v2309 = vunpack.c.l.b16 %v2128
      %v2310 = vunpack.c.h.b16 %v2128
      %v2311 = vunpack.c.l.b16 %v2129
      %v2312 = vunpack.c.h.b16 %v2129
      %v2313 = vunpack.c.l.b16 %v2130
      %v2314 = vunpack.c.h.b16 %v2130
      %v2315 = vunpack.c.l.b16 %v2131
      %v2316 = vunpack.c.h.b16 %v2131
      %v2317 = vunpack.c.l.b16 %v2132
      %v2318 = vunpack.c.h.b16 %v2132
      %v2319 = vunpack.c.l.b16 %v2133
      %v2320 = vunpack.c.h.b16 %v2133
      %v2321 = vunpack.c.l.b16 %v2134
      %v2322 = vunpack.c.h.b16 %v2134
      %v2323 = vunpack.c.l.b16 %v2135
      %v2324 = vunpack.c.h.b16 %v2135
      %v2325 = vunpack.c.l.b16 %v2136
      %v2326 = vunpack.c.h.b16 %v2136
      %v2327 = vunpack.c.l.b16 %v2137
      %v2328 = vunpack.c.h.b16 %v2137
      %v2329 = vunpack.c.l.b16 %v2138
      %v2330 = vunpack.c.h.b16 %v2138
      %v2331 = vunpack.c.l.b16 %v2139
      %v2332 = vunpack.c.h.b16 %v2139
      %v2333 = vunpack.c.l.b16 %v2140
      %v2334 = vunpack.c.h.b16 %v2140
      %v2335 = vunpack.c.l.b16 %v2141
      %v2336 = vunpack.c.h.b16 %v2141
      %v2337 = vunpack.c.l.b16 %v2142
      %v2338 = vunpack.c.h.b16 %v2142
      %v2339 = vunpack.c.l.b16 %v2143
      %v2340 = vunpack.c.h.b16 %v2143
      %v2341 = vunpack.c.l.b16 %v2144
      %v2342 = vunpack.c.h.b16 %v2144
      %v2343 = vunpack.c.l.b16 %v2145
      %v2344 = vunpack.c.h.b16 %v2145
      %v2345 = vunpack.c.l.b16 %v2146
      %v2346 = vunpack.c.h.b16 %v2146
      %v2347 = vunpack.c.l.b16 %v2147
      %v2348 = vunpack.c.h.b16 %v2147
      %v2349 = vunpack.c.l.b16 %v2148
      %v2350 = vunpack.c.h.b16 %v2148
      %v2351 = vunpack.c.l.b16 %v2149
      %v2352 = vunpack.c.h.b16 %v2149
      %v2353 = vunpack.c.l.b16 %v2150
      %v2354 = vunpack.c.h.b16 %v2150
      %v2355 = vunpack.c.l.b16 %v2151
      %v2356 = vunpack.c.h.b16 %v2151
      %v2357 = vunpack.c.l.b16 %v2152
      %v2358 = vunpack.c.h.b16 %v2152
      %v2359 = vunpack.c.l.b16 %v2153
      %v2360 = vunpack.c.h.b16 %v2153
      %v2361 = vunpack.c.l.b16 %v2154
      %v2362 = vunpack.c.h.b16 %v2154
      %v2363 = vunpack.c.l.b16 %v2155
      %v2364 = vunpack.c.h.b16 %v2155
      %v2365 = vunpack.c.l.b16 %v2156
      %v2366 = vunpack.c.h.b16 %v2156
      %v2367 = vunpack.c.l.b16 %v2157
      %v2368 = vunpack.c.h.b16 %v2157
      %v2369 = vunpack.c.l.b16 %v2158
      %v2370 = vunpack.c.h.b16 %v2158
      %v2371 = vunpack.c.l.b16 %v2159
      %v2372 = vunpack.c.h.b16 %v2159
      %v2373 = vunpack.c.l.b16 %v2160
      %v2374 = vunpack.c.h.b16 %v2160
      %v2375 = vpack.c.b16 %v2251, %v2247
      %v2376 = vpack.c.b16 %v2252, %v2248
      %v2377 = vpack.c.b16 %v2253, %v2249
      %v2378 = vpack.c.b16 %v2254, %v2250
      %v2379 = vpack.c.b16 %v2259, %v2255
      %v2380 = vpack.c.b16 %v2260, %v2256
      %v2381 = vpack.c.b16 %v2261, %v2257
      %v2382 = vpack.c.b16 %v2262, %v2258
      %v2383 = vpack.c.b16 %v2267, %v2263
      %v2384 = vpack.c.b16 %v2268, %v2264
      %v2385 = vpack.c.b16 %v2269, %v2265
      %v2386 = vpack.c.b16 %v2270, %v2266
      %v2387 = vpack.c.b16 %v2275, %v2271
      %v2388 = vpack.c.b16 %v2276, %v2272
      %v2389 = vpack.c.b16 %v2277, %v2273
      %v2390 = vpack.c.b16 %v2278, %v2274
      %v2391 = vpack.c.b16 %v2283, %v2279
      %v2392 = vpack.c.b16 %v2284, %v2280
      %v2393 = vpack.c.b16 %v2285, %v2281
      %v2394 = vpack.c.b16 %v2286, %v2282
      %v2395 = vpack.c.b16 %v2291, %v2287
      %v2396 = vpack.c.b16 %v2292, %v2288
      %v2397 = vpack.c.b16 %v2293, %v2289
      %v2398 = vpack.c.b16 %v2294, %v2290
      %v2399 = vpack.c.b16 %v2299, %v2295
      %v2400 = vpack.c.b16 %v2300, %v2296
      %v2401 = vpack.c.b16 %v2301, %v2297
      %v2402 = vpack.c.b16 %v2302, %v2298
      %v2403 = vpack.c.b16 %v2307, %v2303
      %v2404 = vpack.c.b16 %v2308, %v2304
      %v2405 = vpack.c.b16 %v2309, %v2305
      %v2406 = vpack.c.b16 %v2310, %v2306
      %v2407 = vpack.c.b16 %v2315, %v2311
      %v2408 = vpack.c.b16 %v2316, %v2312
      %v2409 = vpack.c.b16 %v2317, %v2313
      %v2410 = vpack.c.b16 %v2318, %v2314
      %v2411 = vpack.c.b16 %v2323, %v2319
      %v2412 = vpack.c.b16 %v2324, %v2320
      %v2413 = vpack.c.b16 %v2325, %v2321
      %v2414 = vpack.c.b16 %v2326, %v2322
      %v2415 = vpack.c.b16 %v2331, %v2327
      %v2416 = vpack.c.b16 %v2332, %v2328
      %v2417 = vpack.c.b16 %v2333, %v2329
      %v2418 = vpack.c.b16 %v2334, %v2330
      %v2419 = vpack.c.b16 %v2339, %v2335
      %v2420 = vpack.c.b16 %v2340, %v2336
      %v2421 = vpack.c.b16 %v2341, %v2337
      %v2422 = vpack.c.b16 %v2342, %v2338
      %v2423 = vpack.c.b16 %v2347, %v2343
      %v2424 = vpack.c.b16 %v2348, %v2344
      %v2425 = vpack.c.b16 %v2349, %v2345
      %v2426 = vpack.c.b16 %v2350, %v2346
      %v2427 = vpack.c.b16 %v2355, %v2351
      %v2428 = vpack.c.b16 %v2356, %v2352
      %v2429 = vpack.c.b16 %v2357, %v2353
      %v2430 = vpack.c.b16 %v2358, %v2354
      %v2431 = vpack.c.b16 %v2363, %v2359
      %v2432 = vpack.c.b16 %v2364, %v2360
      %v2433 = vpack.c.b16 %v2365, %v2361
      %v2434 = vpack.c.b16 %v2366, %v2362
      %v2435 = vpack.c.b16 %v2371, %v2367
      %v2436 = vpack.c.b16 %v2372, %v2368
      %v2437 = vpack.c.b16 %v2373, %v2369
      %v2438 = vpack.c.b16 %v2374, %v2370
      %2503 = vmatprep.subr.bf16.mxu0 %v2404
      %2504 = vmatpush1.bf16.msra.mxu0 %v2403
      %2505 = vmatprep.subr.bf16.mxu0 %v2400
      %2506 = vmatpush1.bf16.msra.mxu0 %v2399
      %2507 = vmatprep.subr.bf16.mxu0 %v2396
      %2508 = vmatpush1.bf16.msra.mxu0 %v2395
      %2509 = vmatprep.subr.bf16.mxu0 %v2392
      %2510 = vmatpush1.bf16.msra.mxu0 %v2391
      %2511 = vmatprep.subr.bf16.mxu0 %v2388
      %2512 = vmatpush1.bf16.msra.mxu0 %v2387
      %2513 = vmatprep.subr.bf16.mxu0 %v2384
      %2514 = vmatpush1.bf16.msra.mxu0 %v2383
      %2515 = vmatprep.subr.bf16.mxu0 %v2380
      %2516 = vmatpush1.bf16.msra.mxu0 %v2379
      %2517 = vmatprep.subr.bf16.mxu0 %v2376
      %2518 = vmatpush1.bf16.msra.mxu0 %v2375
      %2519 = vmatprep.subr.bf16.mxu0 %v2436
      %2520 = vmatpush2.bf16.msra.mxu0 %v2435
      %2521 = vmatprep.subr.bf16.mxu0 %v2432
      %2522 = vmatpush2.bf16.msra.mxu0 %v2431
      %2523 = vmatprep.subr.bf16.mxu0 %v2428
      %2524 = vmatpush2.bf16.msra.mxu0 %v2427
      %2525 = vmatprep.subr.bf16.mxu0 %v2424
      %2526 = vmatpush2.bf16.msra.mxu0 %v2423
      %2527 = vmatprep.subr.bf16.mxu0 %v2420
      %2528 = vmatpush2.bf16.msra.mxu0 %v2419
      %2529 = vmatprep.subr.bf16.mxu0 %v2416
      %2530 = vmatpush2.bf16.msra.mxu0 %v2415
      %2531 = vmatprep.subr.bf16.mxu0 %v2412
      %2532 = vmatpush2.bf16.msra.mxu0 %v2411
      %2533 = vmatprep.subr.bf16.mxu0 %v2408
      %2534 = vmatpush2.bf16.msra.mxu0 %v2407
      %2535 = vmatprep.mubr.bf16.mxu0 %v2034
      %2536 = vmatmul.mubr.bf16.gmra.mxu0 %v2033
      %v2537 = vpop.f32.mrf.mxu0
      %v2538 = vadd.f32 %v2166, %v2537
      %v2539 = vpop.f32.mrf.mxu0
      %v2540 = vadd.f32 %v2170, %v2539
      %v2541 = vpop.f32.mrf.mxu0
      %v2542 = vadd.f32 %v2166, %v2541
      %v2543 = vpop.f32.mrf.mxu0
      %v2544 = vadd.f32 %v2170, %v2543
      %2545 = vmatprep.mubr.bf16.mxu0 %v2036
      %2546 = vmatmul.mubr.bf16.gmra.mxu0 %v2035
      %v2547 = vpop.f32.mrf.mxu0
      %v2548 = vadd.f32 %v2166, %v2547
      %v2549 = vpop.f32.mrf.mxu0
      %v2550 = vadd.f32 %v2170, %v2549
      %v2551 = vpop.f32.mrf.mxu0
      %v2552 = vadd.f32 %v2166, %v2551
      %v2553 = vpop.f32.mrf.mxu0
      %v2554 = vadd.f32 %v2170, %v2553
      %2555 = vmatprep.mubr.bf16.mxu0 %v2038
      %2556 = vmatmul.mubr.bf16.gmra.mxu0 %v2037
      %v2557 = vpop.f32.mrf.mxu0
      %v2558 = vadd.f32 %v2166, %v2557
      %v2559 = vpop.f32.mrf.mxu0
      %v2560 = vadd.f32 %v2170, %v2559
      %v2561 = vpop.f32.mrf.mxu0
      %v2562 = vadd.f32 %v2166, %v2561
      %v2563 = vpop.f32.mrf.mxu0
      %v2564 = vadd.f32 %v2170, %v2563
      %2565 = vmatprep.mubr.bf16.mxu0 %v2040
      %2566 = vmatmul.mubr.bf16.gmra.mxu0 %v2039
      %v2567 = vpop.f32.mrf.mxu0
      %v2568 = vadd.f32 %v2166, %v2567
      %v2569 = vpop.f32.mrf.mxu0
      %v2570 = vadd.f32 %v2170, %v2569
      %v2571 = vpop.f32.mrf.mxu0
      %v2572 = vadd.f32 %v2166, %v2571
      %v2573 = vpop.f32.mrf.mxu0
      %v2574 = vadd.f32 %v2170, %v2573
      %2575 = vmatprep.mubr.bf16.mxu0 %v2042
      %2576 = vmatmul.mubr.bf16.gmra.mxu0 %v2041
      %v2577 = vpop.f32.mrf.mxu0
      %v2578 = vadd.f32 %v2166, %v2577
      %v2579 = vpop.f32.mrf.mxu0
      %v2580 = vadd.f32 %v2170, %v2579
      %v2581 = vpop.f32.mrf.mxu0
      %v2582 = vadd.f32 %v2166, %v2581
      %v2583 = vpop.f32.mrf.mxu0
      %v2584 = vadd.f32 %v2170, %v2583
      %2585 = vmatprep.mubr.bf16.mxu0 %v2044
      %2586 = vmatmul.mubr.bf16.gmra.mxu0 %v2043
      %v2587 = vpop.f32.mrf.mxu0
      %v2588 = vadd.f32 %v2166, %v2587
      %v2589 = vpop.f32.mrf.mxu0
      %v2590 = vadd.f32 %v2170, %v2589
      %v2591 = vpop.f32.mrf.mxu0
      %v2592 = vadd.f32 %v2166, %v2591
      %v2593 = vpop.f32.mrf.mxu0
      %v2594 = vadd.f32 %v2170, %v2593
      %2595 = vmatprep.mubr.bf16.mxu0 %v2046
      %2596 = vmatmul.mubr.bf16.gmra.mxu0 %v2045
      %v2597 = vpop.f32.mrf.mxu0
      %v2598 = vadd.f32 %v2166, %v2597
      %v2599 = vpop.f32.mrf.mxu0
      %v2600 = vadd.f32 %v2170, %v2599
      %v2601 = vpop.f32.mrf.mxu0
      %v2602 = vadd.f32 %v2166, %v2601
      %v2603 = vpop.f32.mrf.mxu0
      %v2604 = vadd.f32 %v2170, %v2603
      %2605 = vmatprep.mubr.bf16.mxu0 %v2048
      %2606 = vmatmul.mubr.bf16.gmra.mxu0 %v2047
      %v2607 = vpop.f32.mrf.mxu0
      %v2608 = vadd.f32 %v2166, %v2607
      %v2609 = vpop.f32.mrf.mxu0
      %v2610 = vadd.f32 %v2170, %v2609
      %v2611 = vpop.f32.mrf.mxu0
      %v2612 = vadd.f32 %v2166, %v2611
      %v2613 = vpop.f32.mrf.mxu0
      %v2614 = vadd.f32 %v2170, %v2613
      %2615 = vmatprep.mubr.bf16.mxu0 %v2050
      %2616 = vmatmul.mubr.bf16.gmra.mxu0 %v2049
      %v2617 = vpop.f32.mrf.mxu0
      %v2618 = vadd.f32 %v2166, %v2617
      %v2619 = vpop.f32.mrf.mxu0
      %v2620 = vadd.f32 %v2170, %v2619
      %v2621 = vpop.f32.mrf.mxu0
      %v2622 = vadd.f32 %v2166, %v2621
      %v2623 = vpop.f32.mrf.mxu0
      %v2624 = vadd.f32 %v2170, %v2623
      %2625 = vmatprep.mubr.bf16.mxu0 %v2052
      %2626 = vmatmul.mubr.bf16.gmra.mxu0 %v2051
      %v2627 = vpop.f32.mrf.mxu0
      %v2628 = vadd.f32 %v2166, %v2627
      %v2629 = vpop.f32.mrf.mxu0
      %v2630 = vadd.f32 %v2170, %v2629
      %v2631 = vpop.f32.mrf.mxu0
      %v2632 = vadd.f32 %v2166, %v2631
      %v2633 = vpop.f32.mrf.mxu0
      %v2634 = vadd.f32 %v2170, %v2633
      %2635 = vmatprep.mubr.bf16.mxu0 %v2054
      %2636 = vmatmul.mubr.bf16.gmra.mxu0 %v2053
      %v2637 = vpop.f32.mrf.mxu0
      %v2638 = vadd.f32 %v2166, %v2637
      %v2639 = vpop.f32.mrf.mxu0
      %v2640 = vadd.f32 %v2170, %v2639
      %v2641 = vpop.f32.mrf.mxu0
      %v2642 = vadd.f32 %v2166, %v2641
      %v2643 = vpop.f32.mrf.mxu0
      %v2644 = vadd.f32 %v2170, %v2643
      %2645 = vmatprep.mubr.bf16.mxu0 %v2056
      %2646 = vmatmul.mubr.bf16.gmra.mxu0 %v2055
      %v2647 = vpop.f32.mrf.mxu0
      %v2648 = vadd.f32 %v2166, %v2647
      %v2649 = vpop.f32.mrf.mxu0
      %v2650 = vadd.f32 %v2170, %v2649
      %v2651 = vpop.f32.mrf.mxu0
      %v2652 = vadd.f32 %v2166, %v2651
      %v2653 = vpop.f32.mrf.mxu0
      %v2654 = vadd.f32 %v2170, %v2653
      %2655 = vmatprep.mubr.bf16.mxu0 %v2058
      %2656 = vmatmul.mubr.bf16.gmra.mxu0 %v2057
      %v2657 = vpop.f32.mrf.mxu0
      %v2658 = vadd.f32 %v2166, %v2657
      %v2659 = vpop.f32.mrf.mxu0
      %v2660 = vadd.f32 %v2170, %v2659
      %v2661 = vpop.f32.mrf.mxu0
      %v2662 = vadd.f32 %v2166, %v2661
      %v2663 = vpop.f32.mrf.mxu0
      %v2664 = vadd.f32 %v2170, %v2663
      %2665 = vmatprep.mubr.bf16.mxu0 %v2060
      %2666 = vmatmul.mubr.bf16.gmra.mxu0 %v2059
      %v2667 = vpop.f32.mrf.mxu0
      %v2668 = vadd.f32 %v2166, %v2667
      %v2669 = vpop.f32.mrf.mxu0
      %v2670 = vadd.f32 %v2170, %v2669
      %v2671 = vpop.f32.mrf.mxu0
      %v2672 = vadd.f32 %v2166, %v2671
      %v2673 = vpop.f32.mrf.mxu0
      %v2674 = vadd.f32 %v2170, %v2673
      %2675 = vmatprep.mubr.bf16.mxu0 %v2062
      %2676 = vmatmul.mubr.bf16.gmra.mxu0 %v2061
      %v2677 = vpop.f32.mrf.mxu0
      %v2678 = vadd.f32 %v2166, %v2677
      %v2679 = vpop.f32.mrf.mxu0
      %v2680 = vadd.f32 %v2170, %v2679
      %v2681 = vpop.f32.mrf.mxu0
      %v2682 = vadd.f32 %v2166, %v2681
      %v2683 = vpop.f32.mrf.mxu0
      %v2684 = vadd.f32 %v2170, %v2683
      %2685 = vmatprep.mubr.bf16.mxu0 %v2064
      %2686 = vmatmul.mubr.bf16.gmra.mxu0 %v2063
      %v2687 = vpop.f32.mrf.mxu0
      %v2688 = vadd.f32 %v2166, %v2687
      %v2689 = vpop.f32.mrf.mxu0
      %v2690 = vadd.f32 %v2170, %v2689
      %v2691 = vpop.f32.mrf.mxu0
      %v2692 = vadd.f32 %v2166, %v2691
      %v2693 = vpop.f32.mrf.mxu0
      %v2694 = vadd.f32 %v2170, %v2693
      %2695 = vmatprep.mubr.bf16.mxu0 %v2066
      %2696 = vmatmul.mubr.bf16.gmra.mxu0 %v2065
      %v2697 = vpop.f32.mrf.mxu0
      %v2698 = vadd.f32 %v2166, %v2697
      %v2699 = vpop.f32.mrf.mxu0
      %v2700 = vadd.f32 %v2170, %v2699
      %v2701 = vpop.f32.mrf.mxu0
      %v2702 = vadd.f32 %v2166, %v2701
      %v2703 = vpop.f32.mrf.mxu0
      %v2704 = vadd.f32 %v2170, %v2703
      %2705 = vmatprep.mubr.bf16.mxu0 %v2068
      %2706 = vmatmul.mubr.bf16.gmra.mxu0 %v2067
      %v2707 = vpop.f32.mrf.mxu0
      %v2708 = vadd.f32 %v2166, %v2707
      %v2709 = vpop.f32.mrf.mxu0
      %v2710 = vadd.f32 %v2170, %v2709
      %v2711 = vpop.f32.mrf.mxu0
      %v2712 = vadd.f32 %v2166, %v2711
      %v2713 = vpop.f32.mrf.mxu0
      %v2714 = vadd.f32 %v2170, %v2713
      %2715 = vmatprep.mubr.bf16.mxu0 %v2070
      %2716 = vmatmul.mubr.bf16.gmra.mxu0 %v2069
      %v2717 = vpop.f32.mrf.mxu0
      %v2718 = vadd.f32 %v2166, %v2717
      %v2719 = vpop.f32.mrf.mxu0
      %v2720 = vadd.f32 %v2170, %v2719
      %v2721 = vpop.f32.mrf.mxu0
      %v2722 = vadd.f32 %v2166, %v2721
      %v2723 = vpop.f32.mrf.mxu0
      %v2724 = vadd.f32 %v2170, %v2723
      %2725 = vmatprep.mubr.bf16.mxu0 %v2072
      %2726 = vmatmul.mubr.bf16.gmra.mxu0 %v2071
      %v2727 = vpop.f32.mrf.mxu0
      %v2728 = vadd.f32 %v2166, %v2727
      %v2729 = vpop.f32.mrf.mxu0
      %v2730 = vadd.f32 %v2170, %v2729
      %v2731 = vpop.f32.mrf.mxu0
      %v2732 = vadd.f32 %v2166, %v2731
      %v2733 = vpop.f32.mrf.mxu0
      %v2734 = vadd.f32 %v2170, %v2733
      %2735 = vmatprep.mubr.bf16.mxu0 %v2074
      %2736 = vmatmul.mubr.bf16.gmra.mxu0 %v2073
      %v2737 = vpop.f32.mrf.mxu0
      %v2738 = vadd.f32 %v2166, %v2737
      %v2739 = vpop.f32.mrf.mxu0
      %v2740 = vadd.f32 %v2170, %v2739
      %v2741 = vpop.f32.mrf.mxu0
      %v2742 = vadd.f32 %v2166, %v2741
      %v2743 = vpop.f32.mrf.mxu0
      %v2744 = vadd.f32 %v2170, %v2743
      %2745 = vmatprep.mubr.bf16.mxu0 %v2076
      %2746 = vmatmul.mubr.bf16.gmra.mxu0 %v2075
      %v2747 = vpop.f32.mrf.mxu0
      %v2748 = vadd.f32 %v2166, %v2747
      %v2749 = vpop.f32.mrf.mxu0
      %v2750 = vadd.f32 %v2170, %v2749
      %v2751 = vpop.f32.mrf.mxu0
      %v2752 = vadd.f32 %v2166, %v2751
      %v2753 = vpop.f32.mrf.mxu0
      %v2754 = vadd.f32 %v2170, %v2753
      %2755 = vmatprep.mubr.bf16.mxu0 %v2078
      %2756 = vmatmul.mubr.bf16.gmra.mxu0 %v2077
      %v2757 = vpop.f32.mrf.mxu0
      %v2758 = vadd.f32 %v2166, %v2757
      %v2759 = vpop.f32.mrf.mxu0
      %v2760 = vadd.f32 %v2170, %v2759
      %v2761 = vpop.f32.mrf.mxu0
      %v2762 = vadd.f32 %v2166, %v2761
      %v2763 = vpop.f32.mrf.mxu0
      %v2764 = vadd.f32 %v2170, %v2763
      %2765 = vmatprep.mubr.bf16.mxu0 %v2080
      %2766 = vmatmul.mubr.bf16.gmra.mxu0 %v2079
      %v2767 = vpop.f32.mrf.mxu0
      %v2768 = vadd.f32 %v2166, %v2767
      %v2769 = vpop.f32.mrf.mxu0
      %v2770 = vadd.f32 %v2170, %v2769
      %v2771 = vpop.f32.mrf.mxu0
      %v2772 = vadd.f32 %v2166, %v2771
      %v2773 = vpop.f32.mrf.mxu0
      %v2774 = vadd.f32 %v2170, %v2773
      %2775 = vmatprep.mubr.bf16.mxu0 %v2082
      %2776 = vmatmul.mubr.bf16.gmra.mxu0 %v2081
      %v2777 = vpop.f32.mrf.mxu0
      %v2778 = vadd.f32 %v2166, %v2777
      %v2779 = vpop.f32.mrf.mxu0
      %v2780 = vadd.f32 %v2170, %v2779
      %v2781 = vpop.f32.mrf.mxu0
      %v2782 = vadd.f32 %v2166, %v2781
      %v2783 = vpop.f32.mrf.mxu0
      %v2784 = vadd.f32 %v2170, %v2783
      %2785 = vmatprep.mubr.bf16.mxu0 %v2084
      %2786 = vmatmul.mubr.bf16.gmra.mxu0 %v2083
      %v2787 = vpop.f32.mrf.mxu0
      %v2788 = vadd.f32 %v2166, %v2787
      %v2789 = vpop.f32.mrf.mxu0
      %v2790 = vadd.f32 %v2170, %v2789
      %v2791 = vpop.f32.mrf.mxu0
      %v2792 = vadd.f32 %v2166, %v2791
      %v2793 = vpop.f32.mrf.mxu0
      %v2794 = vadd.f32 %v2170, %v2793
      %2795 = vmatprep.mubr.bf16.mxu0 %v2086
      %2796 = vmatmul.mubr.bf16.gmra.mxu0 %v2085
      %v2797 = vpop.f32.mrf.mxu0
      %v2798 = vadd.f32 %v2166, %v2797
      %v2799 = vpop.f32.mrf.mxu0
      %v2800 = vadd.f32 %v2170, %v2799
      %v2801 = vpop.f32.mrf.mxu0
      %v2802 = vadd.f32 %v2166, %v2801
      %v2803 = vpop.f32.mrf.mxu0
      %v2804 = vadd.f32 %v2170, %v2803
      %2805 = vmatprep.mubr.bf16.mxu0 %v2088
      %2806 = vmatmul.mubr.bf16.gmra.mxu0 %v2087
      %v2807 = vpop.f32.mrf.mxu0
      %v2808 = vadd.f32 %v2166, %v2807
      %v2809 = vpop.f32.mrf.mxu0
      %v2810 = vadd.f32 %v2170, %v2809
      %v2811 = vpop.f32.mrf.mxu0
      %v2812 = vadd.f32 %v2166, %v2811
      %v2813 = vpop.f32.mrf.mxu0
      %v2814 = vadd.f32 %v2170, %v2813
      %2815 = vmatprep.mubr.bf16.mxu0 %v2090
      %2816 = vmatmul.mubr.bf16.gmra.mxu0 %v2089
      %v2817 = vpop.f32.mrf.mxu0
      %v2818 = vadd.f32 %v2166, %v2817
      %v2819 = vpop.f32.mrf.mxu0
      %v2820 = vadd.f32 %v2170, %v2819
      %v2821 = vpop.f32.mrf.mxu0
      %v2822 = vadd.f32 %v2166, %v2821
      %v2823 = vpop.f32.mrf.mxu0
      %v2824 = vadd.f32 %v2170, %v2823
      %2825 = vmatprep.mubr.bf16.mxu0 %v2092
      %2826 = vmatmul.mubr.bf16.gmra.mxu0 %v2091
      %v2827 = vpop.f32.mrf.mxu0
      %v2828 = vadd.f32 %v2166, %v2827
      %v2829 = vpop.f32.mrf.mxu0
      %v2830 = vadd.f32 %v2170, %v2829
      %v2831 = vpop.f32.mrf.mxu0
      %v2832 = vadd.f32 %v2166, %v2831
      %v2833 = vpop.f32.mrf.mxu0
      %v2834 = vadd.f32 %v2170, %v2833
      %2835 = vmatprep.mubr.bf16.mxu0 %v2094
      %2836 = vmatmul.mubr.bf16.gmra.mxu0 %v2093
      %v2837 = vpop.f32.mrf.mxu0
      %v2838 = vadd.f32 %v2166, %v2837
      %v2839 = vpop.f32.mrf.mxu0
      %v2840 = vadd.f32 %v2170, %v2839
      %v2841 = vpop.f32.mrf.mxu0
      %v2842 = vadd.f32 %v2166, %v2841
      %v2843 = vpop.f32.mrf.mxu0
      %v2844 = vadd.f32 %v2170, %v2843
      %2845 = vmatprep.mubr.bf16.mxu0 %v2096
      %2846 = vmatmul.mubr.bf16.gmra.mxu0 %v2095
      %v2847 = vpop.f32.mrf.mxu0
      %v2848 = vadd.f32 %v2166, %v2847
      %v2849 = vpop.f32.mrf.mxu0
      %v2850 = vadd.f32 %v2170, %v2849
      %v2851 = vpop.f32.mrf.mxu0
      %v2852 = vadd.f32 %v2166, %v2851
      %v2853 = vpop.f32.mrf.mxu0
      %v2854 = vadd.f32 %v2170, %v2853
      %2855 = vdwg.mxu0
      %2856 = vmatprep.subr.bf16.mxu0 %v2406
      %2857 = vmatpush1.bf16.msra.mxu0 %v2405
      %2858 = vmatprep.subr.bf16.mxu0 %v2402
      %2859 = vmatpush1.bf16.msra.mxu0 %v2401
      %2860 = vmatprep.subr.bf16.mxu0 %v2398
      %2861 = vmatpush1.bf16.msra.mxu0 %v2397
      %2862 = vmatprep.subr.bf16.mxu0 %v2394
      %2863 = vmatpush1.bf16.msra.mxu0 %v2393
      %2864 = vmatprep.subr.bf16.mxu0 %v2390
      %2865 = vmatpush1.bf16.msra.mxu0 %v2389
      %2866 = vmatprep.subr.bf16.mxu0 %v2386
      %2867 = vmatpush1.bf16.msra.mxu0 %v2385
      %2868 = vmatprep.subr.bf16.mxu0 %v2382
      %2869 = vmatpush1.bf16.msra.mxu0 %v2381
      %2870 = vmatprep.subr.bf16.mxu0 %v2378
      %2871 = vmatpush1.bf16.msra.mxu0 %v2377
      %2872 = vmatprep.subr.bf16.mxu0 %v2438
      %2873 = vmatpush2.bf16.msra.mxu0 %v2437
      %2874 = vmatprep.subr.bf16.mxu0 %v2434
      %2875 = vmatpush2.bf16.msra.mxu0 %v2433
      %2876 = vmatprep.subr.bf16.mxu0 %v2430
      %2877 = vmatpush2.bf16.msra.mxu0 %v2429
      %2878 = vmatprep.subr.bf16.mxu0 %v2426
      %2879 = vmatpush2.bf16.msra.mxu0 %v2425
      %2880 = vmatprep.subr.bf16.mxu0 %v2422
      %2881 = vmatpush2.bf16.msra.mxu0 %v2421
      %2882 = vmatprep.subr.bf16.mxu0 %v2418
      %2883 = vmatpush2.bf16.msra.mxu0 %v2417
      %2884 = vmatprep.subr.bf16.mxu0 %v2414
      %2885 = vmatpush2.bf16.msra.mxu0 %v2413
      %2886 = vmatprep.subr.bf16.mxu0 %v2410
      %2887 = vmatpush2.bf16.msra.mxu0 %v2409
      %2888 = vmatprep.mubr.bf16.mxu0 %v2034
      %2889 = vmatmul.mubr.bf16.gmra.mxu0 %v2033
      %v2890 = vpop.f32.mrf.mxu0
      %v2891 = vadd.f32 %v2174, %v2890
      %v2892 = vpop.f32.mrf.mxu0
      %v2893 = vadd.f32 %v2178, %v2892
      %v2894 = vpop.f32.mrf.mxu0
      %v2895 = vadd.f32 %v2174, %v2894
      %v2896 = vpop.f32.mrf.mxu0
      %v2897 = vadd.f32 %v2178, %v2896
      %2898 = vmatprep.mubr.bf16.mxu0 %v2036
      %2899 = vmatmul.mubr.bf16.gmra.mxu0 %v2035
      %v2900 = vpop.f32.mrf.mxu0
      %v2901 = vadd.f32 %v2174, %v2900
      %v2902 = vpop.f32.mrf.mxu0
      %v2903 = vadd.f32 %v2178, %v2902
      %v2904 = vpop.f32.mrf.mxu0
      %v2905 = vadd.f32 %v2174, %v2904
      %v2906 = vpop.f32.mrf.mxu0
      %v2907 = vadd.f32 %v2178, %v2906
      %2908 = vmatprep.mubr.bf16.mxu0 %v2038
      %2909 = vmatmul.mubr.bf16.gmra.mxu0 %v2037
      %v2910 = vpop.f32.mrf.mxu0
      %v2911 = vadd.f32 %v2174, %v2910
      %v2912 = vpop.f32.mrf.mxu0
      %v2913 = vadd.f32 %v2178, %v2912
      %v2914 = vpop.f32.mrf.mxu0
      %v2915 = vadd.f32 %v2174, %v2914
      %v2916 = vpop.f32.mrf.mxu0
      %v2917 = vadd.f32 %v2178, %v2916
      %2918 = vmatprep.mubr.bf16.mxu0 %v2040
      %2919 = vmatmul.mubr.bf16.gmra.mxu0 %v2039
      %v2920 = vpop.f32.mrf.mxu0
      %v2921 = vadd.f32 %v2174, %v2920
      %v2922 = vpop.f32.mrf.mxu0
      %v2923 = vadd.f32 %v2178, %v2922
      %v2924 = vpop.f32.mrf.mxu0
      %v2925 = vadd.f32 %v2174, %v2924
      %v2926 = vpop.f32.mrf.mxu0
      %v2927 = vadd.f32 %v2178, %v2926
      %2928 = vmatprep.mubr.bf16.mxu0 %v2042
      %2929 = vmatmul.mubr.bf16.gmra.mxu0 %v2041
      %v2930 = vpop.f32.mrf.mxu0
      %v2931 = vadd.f32 %v2174, %v2930
      %v2932 = vpop.f32.mrf.mxu0
      %v2933 = vadd.f32 %v2178, %v2932
      %v2934 = vpop.f32.mrf.mxu0
      %v2935 = vadd.f32 %v2174, %v2934
      %v2936 = vpop.f32.mrf.mxu0
      %v2937 = vadd.f32 %v2178, %v2936
      %2938 = vmatprep.mubr.bf16.mxu0 %v2044
      %2939 = vmatmul.mubr.bf16.gmra.mxu0 %v2043
      %v2940 = vpop.f32.mrf.mxu0
      %v2941 = vadd.f32 %v2174, %v2940
      %v2942 = vpop.f32.mrf.mxu0
      %v2943 = vadd.f32 %v2178, %v2942
      %v2944 = vpop.f32.mrf.mxu0
      %v2945 = vadd.f32 %v2174, %v2944
      %v2946 = vpop.f32.mrf.mxu0
      %v2947 = vadd.f32 %v2178, %v2946
      %2948 = vmatprep.mubr.bf16.mxu0 %v2046
      %2949 = vmatmul.mubr.bf16.gmra.mxu0 %v2045
      %v2950 = vpop.f32.mrf.mxu0
      %v2951 = vadd.f32 %v2174, %v2950
      %v2952 = vpop.f32.mrf.mxu0
      %v2953 = vadd.f32 %v2178, %v2952
      %v2954 = vpop.f32.mrf.mxu0
      %v2955 = vadd.f32 %v2174, %v2954
      %v2956 = vpop.f32.mrf.mxu0
      %v2957 = vadd.f32 %v2178, %v2956
      %2958 = vmatprep.mubr.bf16.mxu0 %v2048
      %2959 = vmatmul.mubr.bf16.gmra.mxu0 %v2047
      %v2960 = vpop.f32.mrf.mxu0
      %v2961 = vadd.f32 %v2174, %v2960
      %v2962 = vpop.f32.mrf.mxu0
      %v2963 = vadd.f32 %v2178, %v2962
      %v2964 = vpop.f32.mrf.mxu0
      %v2965 = vadd.f32 %v2174, %v2964
      %v2966 = vpop.f32.mrf.mxu0
      %v2967 = vadd.f32 %v2178, %v2966
      %2968 = vmatprep.mubr.bf16.mxu0 %v2050
      %2969 = vmatmul.mubr.bf16.gmra.mxu0 %v2049
      %v2970 = vpop.f32.mrf.mxu0
      %v2971 = vadd.f32 %v2174, %v2970
      %v2972 = vpop.f32.mrf.mxu0
      %v2973 = vadd.f32 %v2178, %v2972
      %v2974 = vpop.f32.mrf.mxu0
      %v2975 = vadd.f32 %v2174, %v2974
      %v2976 = vpop.f32.mrf.mxu0
      %v2977 = vadd.f32 %v2178, %v2976
      %2978 = vmatprep.mubr.bf16.mxu0 %v2052
      %2979 = vmatmul.mubr.bf16.gmra.mxu0 %v2051
      %v2980 = vpop.f32.mrf.mxu0
      %v2981 = vadd.f32 %v2174, %v2980
      %v2982 = vpop.f32.mrf.mxu0
      %v2983 = vadd.f32 %v2178, %v2982
      %v2984 = vpop.f32.mrf.mxu0
      %v2985 = vadd.f32 %v2174, %v2984
      %v2986 = vpop.f32.mrf.mxu0
      %v2987 = vadd.f32 %v2178, %v2986
      %2988 = vmatprep.mubr.bf16.mxu0 %v2054
      %2989 = vmatmul.mubr.bf16.gmra.mxu0 %v2053
      %v2990 = vpop.f32.mrf.mxu0
      %v2991 = vadd.f32 %v2174, %v2990
      %v2992 = vpop.f32.mrf.mxu0
      %v2993 = vadd.f32 %v2178, %v2992
      %v2994 = vpop.f32.mrf.mxu0
      %v2995 = vadd.f32 %v2174, %v2994
      %v2996 = vpop.f32.mrf.mxu0
      %v2997 = vadd.f32 %v2178, %v2996
      %2998 = vmatprep.mubr.bf16.mxu0 %v2056
      %2999 = vmatmul.mubr.bf16.gmra.mxu0 %v2055
      %v3000 = vpop.f32.mrf.mxu0
      %v3001 = vadd.f32 %v2174, %v3000
      %v3002 = vpop.f32.mrf.mxu0
      %v3003 = vadd.f32 %v2178, %v3002
      %v3004 = vpop.f32.mrf.mxu0
      %v3005 = vadd.f32 %v2174, %v3004
      %v3006 = vpop.f32.mrf.mxu0
      %v3007 = vadd.f32 %v2178, %v3006
      %3008 = vmatprep.mubr.bf16.mxu0 %v2058
      %3009 = vmatmul.mubr.bf16.gmra.mxu0 %v2057
      %v3010 = vpop.f32.mrf.mxu0
      %v3011 = vadd.f32 %v2174, %v3010
      %v3012 = vpop.f32.mrf.mxu0
      %v3013 = vadd.f32 %v2178, %v3012
      %v3014 = vpop.f32.mrf.mxu0
      %v3015 = vadd.f32 %v2174, %v3014
      %v3016 = vpop.f32.mrf.mxu0
      %v3017 = vadd.f32 %v2178, %v3016
      %3018 = vmatprep.mubr.bf16.mxu0 %v2060
      %3019 = vmatmul.mubr.bf16.gmra.mxu0 %v2059
      %v3020 = vpop.f32.mrf.mxu0
      %v3021 = vadd.f32 %v2174, %v3020
      %v3022 = vpop.f32.mrf.mxu0
      %v3023 = vadd.f32 %v2178, %v3022
      %v3024 = vpop.f32.mrf.mxu0
      %v3025 = vadd.f32 %v2174, %v3024
      %v3026 = vpop.f32.mrf.mxu0
      %v3027 = vadd.f32 %v2178, %v3026
      %3028 = vmatprep.mubr.bf16.mxu0 %v2062
      %3029 = vmatmul.mubr.bf16.gmra.mxu0 %v2061
      %v3030 = vpop.f32.mrf.mxu0
      %v3031 = vadd.f32 %v2174, %v3030
      %v3032 = vpop.f32.mrf.mxu0
      %v3033 = vadd.f32 %v2178, %v3032
      %v3034 = vpop.f32.mrf.mxu0
      %v3035 = vadd.f32 %v2174, %v3034
      %v3036 = vpop.f32.mrf.mxu0
      %v3037 = vadd.f32 %v2178, %v3036
      %3038 = vmatprep.mubr.bf16.mxu0 %v2064
      %3039 = vmatmul.mubr.bf16.gmra.mxu0 %v2063
      %v3040 = vpop.f32.mrf.mxu0
      %v3041 = vadd.f32 %v2174, %v3040
      %v3042 = vpop.f32.mrf.mxu0
      %v3043 = vadd.f32 %v2178, %v3042
      %v3044 = vpop.f32.mrf.mxu0
      %v3045 = vadd.f32 %v2174, %v3044
      %v3046 = vpop.f32.mrf.mxu0
      %v3047 = vadd.f32 %v2178, %v3046
      %3048 = vmatprep.mubr.bf16.mxu0 %v2066
      %3049 = vmatmul.mubr.bf16.gmra.mxu0 %v2065
      %v3050 = vpop.f32.mrf.mxu0
      %v3051 = vadd.f32 %v2174, %v3050
      %v3052 = vpop.f32.mrf.mxu0
      %v3053 = vadd.f32 %v2178, %v3052
      %v3054 = vpop.f32.mrf.mxu0
      %v3055 = vadd.f32 %v2174, %v3054
      %v3056 = vpop.f32.mrf.mxu0
      %v3057 = vadd.f32 %v2178, %v3056
      %3058 = vmatprep.mubr.bf16.mxu0 %v2068
      %3059 = vmatmul.mubr.bf16.gmra.mxu0 %v2067
      %v3060 = vpop.f32.mrf.mxu0
      %v3061 = vadd.f32 %v2174, %v3060
      %v3062 = vpop.f32.mrf.mxu0
      %v3063 = vadd.f32 %v2178, %v3062
      %v3064 = vpop.f32.mrf.mxu0
      %v3065 = vadd.f32 %v2174, %v3064
      %v3066 = vpop.f32.mrf.mxu0
      %v3067 = vadd.f32 %v2178, %v3066
      %3068 = vmatprep.mubr.bf16.mxu0 %v2070
      %3069 = vmatmul.mubr.bf16.gmra.mxu0 %v2069
      %v3070 = vpop.f32.mrf.mxu0
      %v3071 = vadd.f32 %v2174, %v3070
      %v3072 = vpop.f32.mrf.mxu0
      %v3073 = vadd.f32 %v2178, %v3072
      %v3074 = vpop.f32.mrf.mxu0
      %v3075 = vadd.f32 %v2174, %v3074
      %v3076 = vpop.f32.mrf.mxu0
      %v3077 = vadd.f32 %v2178, %v3076
      %3078 = vmatprep.mubr.bf16.mxu0 %v2072
      %3079 = vmatmul.mubr.bf16.gmra.mxu0 %v2071
      %v3080 = vpop.f32.mrf.mxu0
      %v3081 = vadd.f32 %v2174, %v3080
      %v3082 = vpop.f32.mrf.mxu0
      %v3083 = vadd.f32 %v2178, %v3082
      %v3084 = vpop.f32.mrf.mxu0
      %v3085 = vadd.f32 %v2174, %v3084
      %v3086 = vpop.f32.mrf.mxu0
      %v3087 = vadd.f32 %v2178, %v3086
      %3088 = vmatprep.mubr.bf16.mxu0 %v2074
      %3089 = vmatmul.mubr.bf16.gmra.mxu0 %v2073
      %v3090 = vpop.f32.mrf.mxu0
      %v3091 = vadd.f32 %v2174, %v3090
      %v3092 = vpop.f32.mrf.mxu0
      %v3093 = vadd.f32 %v2178, %v3092
      %v3094 = vpop.f32.mrf.mxu0
      %v3095 = vadd.f32 %v2174, %v3094
      %v3096 = vpop.f32.mrf.mxu0
      %v3097 = vadd.f32 %v2178, %v3096
      %3098 = vmatprep.mubr.bf16.mxu0 %v2076
      %3099 = vmatmul.mubr.bf16.gmra.mxu0 %v2075
      %v3100 = vpop.f32.mrf.mxu0
      %v3101 = vadd.f32 %v2174, %v3100
      %v3102 = vpop.f32.mrf.mxu0
      %v3103 = vadd.f32 %v2178, %v3102
      %v3104 = vpop.f32.mrf.mxu0
      %v3105 = vadd.f32 %v2174, %v3104
      %v3106 = vpop.f32.mrf.mxu0
      %v3107 = vadd.f32 %v2178, %v3106
      %3108 = vmatprep.mubr.bf16.mxu0 %v2078
      %3109 = vmatmul.mubr.bf16.gmra.mxu0 %v2077
      %v3110 = vpop.f32.mrf.mxu0
      %v3111 = vadd.f32 %v2174, %v3110
      %v3112 = vpop.f32.mrf.mxu0
      %v3113 = vadd.f32 %v2178, %v3112
      %v3114 = vpop.f32.mrf.mxu0
      %v3115 = vadd.f32 %v2174, %v3114
      %v3116 = vpop.f32.mrf.mxu0
      %v3117 = vadd.f32 %v2178, %v3116
      %3118 = vmatprep.mubr.bf16.mxu0 %v2080
      %3119 = vmatmul.mubr.bf16.gmra.mxu0 %v2079
      %v3120 = vpop.f32.mrf.mxu0
      %v3121 = vadd.f32 %v2174, %v3120
      %v3122 = vpop.f32.mrf.mxu0
      %v3123 = vadd.f32 %v2178, %v3122
      %v3124 = vpop.f32.mrf.mxu0
      %v3125 = vadd.f32 %v2174, %v3124
      %v3126 = vpop.f32.mrf.mxu0
      %v3127 = vadd.f32 %v2178, %v3126
      %3128 = vmatprep.mubr.bf16.mxu0 %v2082
      %3129 = vmatmul.mubr.bf16.gmra.mxu0 %v2081
      %v3130 = vpop.f32.mrf.mxu0
      %v3131 = vadd.f32 %v2174, %v3130
      %v3132 = vpop.f32.mrf.mxu0
      %v3133 = vadd.f32 %v2178, %v3132
      %v3134 = vpop.f32.mrf.mxu0
      %v3135 = vadd.f32 %v2174, %v3134
      %v3136 = vpop.f32.mrf.mxu0
      %v3137 = vadd.f32 %v2178, %v3136
      %3138 = vmatprep.mubr.bf16.mxu0 %v2084
      %3139 = vmatmul.mubr.bf16.gmra.mxu0 %v2083
      %v3140 = vpop.f32.mrf.mxu0
      %v3141 = vadd.f32 %v2174, %v3140
      %v3142 = vpop.f32.mrf.mxu0
      %v3143 = vadd.f32 %v2178, %v3142
      %v3144 = vpop.f32.mrf.mxu0
      %v3145 = vadd.f32 %v2174, %v3144
      %v3146 = vpop.f32.mrf.mxu0
      %v3147 = vadd.f32 %v2178, %v3146
      %3148 = vmatprep.mubr.bf16.mxu0 %v2086
      %3149 = vmatmul.mubr.bf16.gmra.mxu0 %v2085
      %v3150 = vpop.f32.mrf.mxu0
      %v3151 = vadd.f32 %v2174, %v3150
      %v3152 = vpop.f32.mrf.mxu0
      %v3153 = vadd.f32 %v2178, %v3152
      %v3154 = vpop.f32.mrf.mxu0
      %v3155 = vadd.f32 %v2174, %v3154
      %v3156 = vpop.f32.mrf.mxu0
      %v3157 = vadd.f32 %v2178, %v3156
      %3158 = vmatprep.mubr.bf16.mxu0 %v2088
      %3159 = vmatmul.mubr.bf16.gmra.mxu0 %v2087
      %v3160 = vpop.f32.mrf.mxu0
      %v3161 = vadd.f32 %v2174, %v3160
      %v3162 = vpop.f32.mrf.mxu0
      %v3163 = vadd.f32 %v2178, %v3162
      %v3164 = vpop.f32.mrf.mxu0
      %v3165 = vadd.f32 %v2174, %v3164
      %v3166 = vpop.f32.mrf.mxu0
      %v3167 = vadd.f32 %v2178, %v3166
      %3168 = vmatprep.mubr.bf16.mxu0 %v2090
      %3169 = vmatmul.mubr.bf16.gmra.mxu0 %v2089
      %v3170 = vpop.f32.mrf.mxu0
      %v3171 = vadd.f32 %v2174, %v3170
      %v3172 = vpop.f32.mrf.mxu0
      %v3173 = vadd.f32 %v2178, %v3172
      %v3174 = vpop.f32.mrf.mxu0
      %v3175 = vadd.f32 %v2174, %v3174
      %v3176 = vpop.f32.mrf.mxu0
      %v3177 = vadd.f32 %v2178, %v3176
      %3178 = vmatprep.mubr.bf16.mxu0 %v2092
      %3179 = vmatmul.mubr.bf16.gmra.mxu0 %v2091
      %v3180 = vpop.f32.mrf.mxu0
      %v3181 = vadd.f32 %v2174, %v3180
      %v3182 = vpop.f32.mrf.mxu0
      %v3183 = vadd.f32 %v2178, %v3182
      %v3184 = vpop.f32.mrf.mxu0
      %v3185 = vadd.f32 %v2174, %v3184
      %v3186 = vpop.f32.mrf.mxu0
      %v3187 = vadd.f32 %v2178, %v3186
      %3188 = vmatprep.mubr.bf16.mxu0 %v2094
      %3189 = vmatmul.mubr.bf16.gmra.mxu0 %v2093
      %v3190 = vpop.f32.mrf.mxu0
      %v3191 = vadd.f32 %v2174, %v3190
      %v3192 = vpop.f32.mrf.mxu0
      %v3193 = vadd.f32 %v2178, %v3192
      %v3194 = vpop.f32.mrf.mxu0
      %v3195 = vadd.f32 %v2174, %v3194
      %v3196 = vpop.f32.mrf.mxu0
      %v3197 = vadd.f32 %v2178, %v3196
      %3198 = vmatprep.mubr.bf16.mxu0 %v2096
      %3199 = vmatmul.mubr.bf16.gmra.mxu0 %v2095
      %v3200 = vpop.f32.mrf.mxu0
      %v3201 = vadd.f32 %v2174, %v3200
      %v3202 = vpop.f32.mrf.mxu0
      %v3203 = vadd.f32 %v2178, %v3202
      %v3204 = vpop.f32.mrf.mxu0
      %v3205 = vadd.f32 %v2174, %v3204
      %v3206 = vpop.f32.mrf.mxu0
      %v3207 = vadd.f32 %v2178, %v3206
      %3208 = vdwg.mxu0
      %v3209 = vpack.c.bf16 %v2542, %v2538
      %v3210 = vpack.c.bf16 %v2544, %v2540
      %v3211 = vpack.c.bf16 %v2895, %v2891
      %v3212 = vpack.c.bf16 %v2897, %v2893
      %v3213 = vpack.c.bf16 %v2552, %v2548
      %v3214 = vpack.c.bf16 %v2554, %v2550
      %v3215 = vpack.c.bf16 %v2905, %v2901
      %v3216 = vpack.c.bf16 %v2907, %v2903
      %v3217 = vpack.c.bf16 %v2562, %v2558
      %v3218 = vpack.c.bf16 %v2564, %v2560
      %v3219 = vpack.c.bf16 %v2915, %v2911
      %v3220 = vpack.c.bf16 %v2917, %v2913
      %v3221 = vpack.c.bf16 %v2572, %v2568
      %v3222 = vpack.c.bf16 %v2574, %v2570
      %v3223 = vpack.c.bf16 %v2925, %v2921
      %v3224 = vpack.c.bf16 %v2927, %v2923
      %v3225 = vpack.c.bf16 %v2582, %v2578
      %v3226 = vpack.c.bf16 %v2584, %v2580
      %v3227 = vpack.c.bf16 %v2935, %v2931
      %v3228 = vpack.c.bf16 %v2937, %v2933
      %v3229 = vpack.c.bf16 %v2592, %v2588
      %v3230 = vpack.c.bf16 %v2594, %v2590
      %v3231 = vpack.c.bf16 %v2945, %v2941
      %v3232 = vpack.c.bf16 %v2947, %v2943
      %v3233 = vpack.c.bf16 %v2602, %v2598
      %v3234 = vpack.c.bf16 %v2604, %v2600
      %v3235 = vpack.c.bf16 %v2955, %v2951
      %v3236 = vpack.c.bf16 %v2957, %v2953
      %v3237 = vpack.c.bf16 %v2612, %v2608
      %v3238 = vpack.c.bf16 %v2614, %v2610
      %v3239 = vpack.c.bf16 %v2965, %v2961
      %v3240 = vpack.c.bf16 %v2967, %v2963
      %v3241 = vpack.c.bf16 %v2622, %v2618
      %v3242 = vpack.c.bf16 %v2624, %v2620
      %v3243 = vpack.c.bf16 %v2975, %v2971
      %v3244 = vpack.c.bf16 %v2977, %v2973
      %v3245 = vpack.c.bf16 %v2632, %v2628
      %v3246 = vpack.c.bf16 %v2634, %v2630
      %v3247 = vpack.c.bf16 %v2985, %v2981
      %v3248 = vpack.c.bf16 %v2987, %v2983
      %v3249 = vpack.c.bf16 %v2642, %v2638
      %v3250 = vpack.c.bf16 %v2644, %v2640
      %v3251 = vpack.c.bf16 %v2995, %v2991
      %v3252 = vpack.c.bf16 %v2997, %v2993
      %v3253 = vpack.c.bf16 %v2652, %v2648
      %v3254 = vpack.c.bf16 %v2654, %v2650
      %v3255 = vpack.c.bf16 %v3005, %v3001
      %v3256 = vpack.c.bf16 %v3007, %v3003
      %v3257 = vpack.c.bf16 %v2662, %v2658
      %v3258 = vpack.c.bf16 %v2664, %v2660
      %v3259 = vpack.c.bf16 %v3015, %v3011
      %v3260 = vpack.c.bf16 %v3017, %v3013
      %v3261 = vpack.c.bf16 %v2672, %v2668
      %v3262 = vpack.c.bf16 %v2674, %v2670
      %v3263 = vpack.c.bf16 %v3025, %v3021
      %v3264 = vpack.c.bf16 %v3027, %v3023
      %v3265 = vpack.c.bf16 %v2682, %v2678
      %v3266 = vpack.c.bf16 %v2684, %v2680
      %v3267 = vpack.c.bf16 %v3035, %v3031
      %v3268 = vpack.c.bf16 %v3037, %v3033
      %v3269 = vpack.c.bf16 %v2692, %v2688
      %v3270 = vpack.c.bf16 %v2694, %v2690
      %v3271 = vpack.c.bf16 %v3045, %v3041
      %v3272 = vpack.c.bf16 %v3047, %v3043
      %v3273 = vpack.c.bf16 %v2702, %v2698
      %v3274 = vpack.c.bf16 %v2704, %v2700
      %v3275 = vpack.c.bf16 %v3055, %v3051
      %v3276 = vpack.c.bf16 %v3057, %v3053
      %v3277 = vpack.c.bf16 %v2712, %v2708
      %v3278 = vpack.c.bf16 %v2714, %v2710
      %v3279 = vpack.c.bf16 %v3065, %v3061
      %v3280 = vpack.c.bf16 %v3067, %v3063
      %v3281 = vpack.c.bf16 %v2722, %v2718
      %v3282 = vpack.c.bf16 %v2724, %v2720
      %v3283 = vpack.c.bf16 %v3075, %v3071
      %v3284 = vpack.c.bf16 %v3077, %v3073
      %v3285 = vpack.c.bf16 %v2732, %v2728
      %v3286 = vpack.c.bf16 %v2734, %v2730
      %v3287 = vpack.c.bf16 %v3085, %v3081
      %v3288 = vpack.c.bf16 %v3087, %v3083
      %v3289 = vpack.c.bf16 %v2742, %v2738
      %v3290 = vpack.c.bf16 %v2744, %v2740
      %v3291 = vpack.c.bf16 %v3095, %v3091
      %v3292 = vpack.c.bf16 %v3097, %v3093
      %v3293 = vpack.c.bf16 %v2752, %v2748
      %v3294 = vpack.c.bf16 %v2754, %v2750
      %v3295 = vpack.c.bf16 %v3105, %v3101
      %v3296 = vpack.c.bf16 %v3107, %v3103
      %v3297 = vpack.c.bf16 %v2762, %v2758
      %v3298 = vpack.c.bf16 %v2764, %v2760
      %v3299 = vpack.c.bf16 %v3115, %v3111
      %v3300 = vpack.c.bf16 %v3117, %v3113
      %v3301 = vpack.c.bf16 %v2772, %v2768
      %v3302 = vpack.c.bf16 %v2774, %v2770
      %v3303 = vpack.c.bf16 %v3125, %v3121
      %v3304 = vpack.c.bf16 %v3127, %v3123
      %v3305 = vpack.c.bf16 %v2782, %v2778
      %v3306 = vpack.c.bf16 %v2784, %v2780
      %v3307 = vpack.c.bf16 %v3135, %v3131
      %v3308 = vpack.c.bf16 %v3137, %v3133
      %v3309 = vpack.c.bf16 %v2792, %v2788
      %v3310 = vpack.c.bf16 %v2794, %v2790
      %v3311 = vpack.c.bf16 %v3145, %v3141
      %v3312 = vpack.c.bf16 %v3147, %v3143
      %v3313 = vpack.c.bf16 %v2802, %v2798
      %v3314 = vpack.c.bf16 %v2804, %v2800
      %v3315 = vpack.c.bf16 %v3155, %v3151
      %v3316 = vpack.c.bf16 %v3157, %v3153
      %v3317 = vpack.c.bf16 %v2812, %v2808
      %v3318 = vpack.c.bf16 %v2814, %v2810
      %v3319 = vpack.c.bf16 %v3165, %v3161
      %v3320 = vpack.c.bf16 %v3167, %v3163
      %v3321 = vpack.c.bf16 %v2822, %v2818
      %v3322 = vpack.c.bf16 %v2824, %v2820
      %v3323 = vpack.c.bf16 %v3175, %v3171
      %v3324 = vpack.c.bf16 %v3177, %v3173
      %v3325 = vpack.c.bf16 %v2832, %v2828
      %v3326 = vpack.c.bf16 %v2834, %v2830
      %v3327 = vpack.c.bf16 %v3185, %v3181
      %v3328 = vpack.c.bf16 %v3187, %v3183
      %v3329 = vpack.c.bf16 %v2842, %v2838
      %v3330 = vpack.c.bf16 %v2844, %v2840
      %v3331 = vpack.c.bf16 %v3195, %v3191
      %v3332 = vpack.c.bf16 %v3197, %v3193
      %v3333 = vpack.c.bf16 %v2852, %v2848
      %v3334 = vpack.c.bf16 %v2854, %v2850
      %v3335 = vpack.c.bf16 %v3205, %v3201
      %v3336 = vpack.c.bf16 %v3207, %v3203
      %v3337 = vld [vmem:[%s9] sm:$0xff]
      %v3338 = vld [vmem:[%s9 + $0x8] sm:$0xff]
      %v3339 = vld [vmem:[%s9 + $0x10] sm:$0xff]
      %v3340 = vld [vmem:[%s9 + $0x18] sm:$0xff]
      %v3341 = vld [vmem:[%s9 + $0x20] sm:$0xff]
      %v3342 = vld [vmem:[%s9 + $0x28] sm:$0xff]
      %v3343 = vld [vmem:[%s9 + $0x30] sm:$0xff]
      %v3344 = vld [vmem:[%s9 + $0x38] sm:$0xff]
      %v3345 = vld [vmem:[%s9 + $0x40] sm:$0xff]
      %v3346 = vld [vmem:[%s9 + $0x48] sm:$0xff]
      %v3347 = vld [vmem:[%s9 + $0x50] sm:$0xff]
      %v3348 = vld [vmem:[%s9 + $0x58] sm:$0xff]
      %v3349 = vld [vmem:[%s9 + $0x60] sm:$0xff]
      %v3350 = vld [vmem:[%s9 + $0x68] sm:$0xff]
      %v3351 = vld [vmem:[%s9 + $0x70] sm:$0xff]
      %v3352 = vld [vmem:[%s9 + $0x78] sm:$0xff]
      %v3353 = vld [vmem:[%s9 + $0x80] sm:$0xff]
      %v3354 = vld [vmem:[%s9 + $0x88] sm:$0xff]
      %v3355 = vld [vmem:[%s9 + $0x90] sm:$0xff]
      %v3356 = vld [vmem:[%s9 + $0x98] sm:$0xff]
      %v3357 = vld [vmem:[%s9 + $0xa0] sm:$0xff]
      %v3358 = vld [vmem:[%s9 + $0xa8] sm:$0xff]
      %v3359 = vld [vmem:[%s9 + $0xb0] sm:$0xff]
      %v3360 = vld [vmem:[%s9 + $0xb8] sm:$0xff]
      %v3361 = vld [vmem:[%s9 + $0xc0] sm:$0xff]
      %v3362 = vld [vmem:[%s9 + $0xc8] sm:$0xff]
      %v3363 = vld [vmem:[%s9 + $0xd0] sm:$0xff]
      %v3364 = vld [vmem:[%s9 + $0xd8] sm:$0xff]
      %v3365 = vld [vmem:[%s9 + $0xe0] sm:$0xff]
      %v3366 = vld [vmem:[%s9 + $0xe8] sm:$0xff]
      %v3367 = vld [vmem:[%s9 + $0xf0] sm:$0xff]
      %v3368 = vld [vmem:[%s9 + $0xf8] sm:$0xff]
      %v3369 = vld [vmem:[%s9 + $0x100] sm:$0xff]
      %v3370 = vld [vmem:[%s9 + $0x108] sm:$0xff]
      %v3371 = vld [vmem:[%s9 + $0x110] sm:$0xff]
      %v3372 = vld [vmem:[%s9 + $0x118] sm:$0xff]
      %v3373 = vld [vmem:[%s9 + $0x120] sm:$0xff]
      %v3374 = vld [vmem:[%s9 + $0x128] sm:$0xff]
      %v3375 = vld [vmem:[%s9 + $0x130] sm:$0xff]
      %v3376 = vld [vmem:[%s9 + $0x138] sm:$0xff]
      %v3377 = vld [vmem:[%s9 + $0x140] sm:$0xff]
      %v3378 = vld [vmem:[%s9 + $0x148] sm:$0xff]
      %v3379 = vld [vmem:[%s9 + $0x150] sm:$0xff]
      %v3380 = vld [vmem:[%s9 + $0x158] sm:$0xff]
      %v3381 = vld [vmem:[%s9 + $0x160] sm:$0xff]
      %v3382 = vld [vmem:[%s9 + $0x168] sm:$0xff]
      %v3383 = vld [vmem:[%s9 + $0x170] sm:$0xff]
      %v3384 = vld [vmem:[%s9 + $0x178] sm:$0xff]
      %v3385 = vld [vmem:[%s9 + $0x180] sm:$0xff]
      %v3386 = vld [vmem:[%s9 + $0x188] sm:$0xff]
      %v3387 = vld [vmem:[%s9 + $0x190] sm:$0xff]
      %v3388 = vld [vmem:[%s9 + $0x198] sm:$0xff]
      %v3389 = vld [vmem:[%s9 + $0x1a0] sm:$0xff]
      %v3390 = vld [vmem:[%s9 + $0x1a8] sm:$0xff]
      %v3391 = vld [vmem:[%s9 + $0x1b0] sm:$0xff]
      %v3392 = vld [vmem:[%s9 + $0x1b8] sm:$0xff]
      %v3393 = vld [vmem:[%s9 + $0x1c0] sm:$0xff]
      %v3394 = vld [vmem:[%s9 + $0x1c8] sm:$0xff]
      %v3395 = vld [vmem:[%s9 + $0x1d0] sm:$0xff]
      %v3396 = vld [vmem:[%s9 + $0x1d8] sm:$0xff]
      %v3397 = vld [vmem:[%s9 + $0x1e0] sm:$0xff]
      %v3398 = vld [vmem:[%s9 + $0x1e8] sm:$0xff]
      %v3399 = vld [vmem:[%s9 + $0x1f0] sm:$0xff]
      %v3400 = vld [vmem:[%s9 + $0x1f8] sm:$0xff]
      %v3401 = vld [vmem:[%s9 + $0x200] sm:$0xff]
      %v3402 = vld [vmem:[%s9 + $0x208] sm:$0xff]
      %v3403 = vld [vmem:[%s9 + $0x210] sm:$0xff]
      %v3404 = vld [vmem:[%s9 + $0x218] sm:$0xff]
      %v3405 = vld [vmem:[%s9 + $0x220] sm:$0xff]
      %v3406 = vld [vmem:[%s9 + $0x228] sm:$0xff]
      %v3407 = vld [vmem:[%s9 + $0x230] sm:$0xff]
      %v3408 = vld [vmem:[%s9 + $0x238] sm:$0xff]
      %v3409 = vld [vmem:[%s9 + $0x240] sm:$0xff]
      %v3410 = vld [vmem:[%s9 + $0x248] sm:$0xff]
      %v3411 = vld [vmem:[%s9 + $0x250] sm:$0xff]
      %v3412 = vld [vmem:[%s9 + $0x258] sm:$0xff]
      %v3413 = vld [vmem:[%s9 + $0x260] sm:$0xff]
      %v3414 = vld [vmem:[%s9 + $0x268] sm:$0xff]
      %v3415 = vld [vmem:[%s9 + $0x270] sm:$0xff]
      %v3416 = vld [vmem:[%s9 + $0x278] sm:$0xff]
      %v3417 = vld [vmem:[%s9 + $0x280] sm:$0xff]
      %v3418 = vld [vmem:[%s9 + $0x288] sm:$0xff]
      %v3419 = vld [vmem:[%s9 + $0x290] sm:$0xff]
      %v3420 = vld [vmem:[%s9 + $0x298] sm:$0xff]
      %v3421 = vld [vmem:[%s9 + $0x2a0] sm:$0xff]
      %v3422 = vld [vmem:[%s9 + $0x2a8] sm:$0xff]
      %v3423 = vld [vmem:[%s9 + $0x2b0] sm:$0xff]
      %v3424 = vld [vmem:[%s9 + $0x2b8] sm:$0xff]
      %v3425 = vld [vmem:[%s9 + $0x2c0] sm:$0xff]
      %v3426 = vld [vmem:[%s9 + $0x2c8] sm:$0xff]
      %v3427 = vld [vmem:[%s9 + $0x2d0] sm:$0xff]
      %v3428 = vld [vmem:[%s9 + $0x2d8] sm:$0xff]
      %v3429 = vld [vmem:[%s9 + $0x2e0] sm:$0xff]
      %v3430 = vld [vmem:[%s9 + $0x2e8] sm:$0xff]
      %v3431 = vld [vmem:[%s9 + $0x2f0] sm:$0xff]
      %v3432 = vld [vmem:[%s9 + $0x2f8] sm:$0xff]
      %v3433 = vld [vmem:[%s9 + $0x300] sm:$0xff]
      %v3434 = vld [vmem:[%s9 + $0x308] sm:$0xff]
      %v3435 = vld [vmem:[%s9 + $0x310] sm:$0xff]
      %v3436 = vld [vmem:[%s9 + $0x318] sm:$0xff]
      %v3437 = vld [vmem:[%s9 + $0x320] sm:$0xff]
      %v3438 = vld [vmem:[%s9 + $0x328] sm:$0xff]
      %v3439 = vld [vmem:[%s9 + $0x330] sm:$0xff]
      %v3440 = vld [vmem:[%s9 + $0x338] sm:$0xff]
      %v3441 = vld [vmem:[%s9 + $0x340] sm:$0xff]
      %v3442 = vld [vmem:[%s9 + $0x348] sm:$0xff]
      %v3443 = vld [vmem:[%s9 + $0x350] sm:$0xff]
      %v3444 = vld [vmem:[%s9 + $0x358] sm:$0xff]
      %v3445 = vld [vmem:[%s9 + $0x360] sm:$0xff]
      %v3446 = vld [vmem:[%s9 + $0x368] sm:$0xff]
      %v3447 = vld [vmem:[%s9 + $0x370] sm:$0xff]
      %v3448 = vld [vmem:[%s9 + $0x378] sm:$0xff]
      %v3449 = vld [vmem:[%s9 + $0x380] sm:$0xff]
      %v3450 = vld [vmem:[%s9 + $0x388] sm:$0xff]
      %v3451 = vld [vmem:[%s9 + $0x390] sm:$0xff]
      %v3452 = vld [vmem:[%s9 + $0x398] sm:$0xff]
      %v3453 = vld [vmem:[%s9 + $0x3a0] sm:$0xff]
      %v3454 = vld [vmem:[%s9 + $0x3a8] sm:$0xff]
      %v3455 = vld [vmem:[%s9 + $0x3b0] sm:$0xff]
      %v3456 = vld [vmem:[%s9 + $0x3b8] sm:$0xff]
      %v3457 = vld [vmem:[%s9 + $0x3c0] sm:$0xff]
      %v3458 = vld [vmem:[%s9 + $0x3c8] sm:$0xff]
      %v3459 = vld [vmem:[%s9 + $0x3d0] sm:$0xff]
      %v3460 = vld [vmem:[%s9 + $0x3d8] sm:$0xff]
      %v3461 = vld [vmem:[%s9 + $0x3e0] sm:$0xff]
      %v3462 = vld [vmem:[%s9 + $0x3e8] sm:$0xff]
      %v3463 = vld [vmem:[%s9 + $0x3f0] sm:$0xff]
      %v3464 = vld [vmem:[%s9 + $0x3f8] sm:$0xff]
      %v3465 = vld [vmem:[%s10] sm:$0xff]
      %v3466 = vld [vmem:[%s10 + $0x8] sm:$0xff]
      %v3469 = vunpack.c.l.b16 %v3465
      %v3470 = vunpack.c.h.b16 %v3465
      %v3471 = vunpack.c.l.b16 %v3466
      %v3472 = vunpack.c.h.b16 %v3466
      %v3473 = vpack.c.b16 %v3469, %v3469
      %v3474 = vpack.c.b16 %v3470, %v3470
      %v3475 = vpack.c.b16 %v3471, %v3471
      %v3476 = vpack.c.b16 %v3472, %v3472
      %v3478 = vsel %vm855, %v3473, 0
      %v3481 = vsel %vm855, %v3474, 0
      %v3484 = vsel %vm855, %v3475, 0
      %v3487 = vsel %vm855, %v3476, 0
      %3489 = vmatprep.subr.bf16.mxu0 0
      %3490 = vmatpush1.bf16.msra.mxu0 0
      %3491 = vmatprep.subr.bf16.mxu0 0
      %3492 = vmatpush1.bf16.msra.mxu0 0
      %3493 = vmatprep.subr.bf16.mxu0 0
      %3494 = vmatpush1.bf16.msra.mxu0 0
      %3495 = vmatprep.subr.bf16.mxu0 0
      %3496 = vmatpush1.bf16.msra.mxu0 0
      %3497 = vmatprep.subr.bf16.mxu0 0
      %3498 = vmatpush1.bf16.msra.mxu0 0
      %3499 = vmatprep.subr.bf16.mxu0 0
      %3500 = vmatpush1.bf16.msra.mxu0 0
      %3501 = vmatprep.subr.bf16.mxu0 0
      %3502 = vmatpush1.bf16.msra.mxu0 0
      %3503 = vmatprep.subr.bf16.mxu0 %v3481
      %3504 = vmatpush1.bf16.msra.mxu0 %v3478
      %3505 = vmatprep.subr.bf16.mxu0 0
      %3506 = vmatpush2.bf16.msra.mxu0 0
      %3507 = vmatprep.subr.bf16.mxu0 0
      %3508 = vmatpush2.bf16.msra.mxu0 0
      %3509 = vmatprep.subr.bf16.mxu0 0
      %3510 = vmatpush2.bf16.msra.mxu0 0
      %3511 = vmatprep.subr.bf16.mxu0 0
      %3512 = vmatpush2.bf16.msra.mxu0 0
      %3513 = vmatprep.subr.bf16.mxu0 0
      %3514 = vmatpush2.bf16.msra.mxu0 0
      %3515 = vmatprep.subr.bf16.mxu0 0
      %3516 = vmatpush2.bf16.msra.mxu0 0
      %3517 = vmatprep.subr.bf16.mxu0 0
      %3518 = vmatpush2.bf16.msra.mxu0 0
      %3519 = vmatprep.subr.bf16.mxu0 0
      %3520 = vmatpush2.bf16.msra.mxu0 0
      %3521 = vmatprep.mubr.bf16.mxu0 0
      %3522 = vmatmul.mubr.bf16.gmra.mxu0 %v760
      %v3523 = vpop.f32.mrf.mxu0
      %v3524 = vadd.f32 0.0, %v3523
      %v3525 = vpop.f32.mrf.mxu0
      %v3526 = vadd.f32 0.0, %v3525
      %v3527 = vpop.f32.mrf.mxu0
      %v3528 = vadd.f32 0.0, %v3527
      %v3529 = vpop.f32.mrf.mxu0
      %v3530 = vadd.f32 0.0, %v3529
      %3531 = vmatprep.mubr.bf16.mxu0 0
      %3532 = vmatmul.mubr.bf16.gmra.mxu0 %v763
      %v3533 = vpop.f32.mrf.mxu0
      %v3534 = vadd.f32 0.0, %v3533
      %v3535 = vpop.f32.mrf.mxu0
      %v3536 = vadd.f32 0.0, %v3535
      %v3537 = vpop.f32.mrf.mxu0
      %v3538 = vadd.f32 0.0, %v3537
      %v3539 = vpop.f32.mrf.mxu0
      %v3540 = vadd.f32 0.0, %v3539
      %3541 = vmatprep.mubr.bf16.mxu0 0
      %3542 = vmatmul.mubr.bf16.gmra.mxu0 %v766
      %v3543 = vpop.f32.mrf.mxu0
      %v3544 = vadd.f32 0.0, %v3543
      %v3545 = vpop.f32.mrf.mxu0
      %v3546 = vadd.f32 0.0, %v3545
      %v3547 = vpop.f32.mrf.mxu0
      %v3548 = vadd.f32 0.0, %v3547
      %v3549 = vpop.f32.mrf.mxu0
      %v3550 = vadd.f32 0.0, %v3549
      %3551 = vmatprep.mubr.bf16.mxu0 0
      %3552 = vmatmul.mubr.bf16.gmra.mxu0 %v769
      %v3553 = vpop.f32.mrf.mxu0
      %v3554 = vadd.f32 0.0, %v3553
      %v3555 = vpop.f32.mrf.mxu0
      %v3556 = vadd.f32 0.0, %v3555
      %v3557 = vpop.f32.mrf.mxu0
      %v3558 = vadd.f32 0.0, %v3557
      %v3559 = vpop.f32.mrf.mxu0
      %v3560 = vadd.f32 0.0, %v3559
      %3561 = vmatprep.mubr.bf16.mxu0 0
      %3562 = vmatmul.mubr.bf16.gmra.mxu0 %v772
      %v3563 = vpop.f32.mrf.mxu0
      %v3564 = vadd.f32 0.0, %v3563
      %v3565 = vpop.f32.mrf.mxu0
      %v3566 = vadd.f32 0.0, %v3565
      %v3567 = vpop.f32.mrf.mxu0
      %v3568 = vadd.f32 0.0, %v3567
      %v3569 = vpop.f32.mrf.mxu0
      %v3570 = vadd.f32 0.0, %v3569
      %3571 = vmatprep.mubr.bf16.mxu0 0
      %3572 = vmatmul.mubr.bf16.gmra.mxu0 %v775
      %v3573 = vpop.f32.mrf.mxu0
      %v3574 = vadd.f32 0.0, %v3573
      %v3575 = vpop.f32.mrf.mxu0
      %v3576 = vadd.f32 0.0, %v3575
      %v3577 = vpop.f32.mrf.mxu0
      %v3578 = vadd.f32 0.0, %v3577
      %v3579 = vpop.f32.mrf.mxu0
      %v3580 = vadd.f32 0.0, %v3579
      %3581 = vmatprep.mubr.bf16.mxu0 0
      %3582 = vmatmul.mubr.bf16.gmra.mxu0 %v778
      %v3583 = vpop.f32.mrf.mxu0
      %v3584 = vadd.f32 0.0, %v3583
      %v3585 = vpop.f32.mrf.mxu0
      %v3586 = vadd.f32 0.0, %v3585
      %v3587 = vpop.f32.mrf.mxu0
      %v3588 = vadd.f32 0.0, %v3587
      %v3589 = vpop.f32.mrf.mxu0
      %v3590 = vadd.f32 0.0, %v3589
      %3591 = vmatprep.mubr.bf16.mxu0 0
      %3592 = vmatmul.mubr.bf16.gmra.mxu0 %v781
      %v3593 = vpop.f32.mrf.mxu0
      %v3594 = vadd.f32 0.0, %v3593
      %v3595 = vpop.f32.mrf.mxu0
      %v3596 = vadd.f32 0.0, %v3595
      %v3597 = vpop.f32.mrf.mxu0
      %v3598 = vadd.f32 0.0, %v3597
      %v3599 = vpop.f32.mrf.mxu0
      %v3600 = vadd.f32 0.0, %v3599
      %3601 = vmatprep.mubr.bf16.mxu0 0
      %3602 = vmatmul.mubr.bf16.gmra.mxu0 %v784
      %v3603 = vpop.f32.mrf.mxu0
      %v3604 = vadd.f32 0.0, %v3603
      %v3605 = vpop.f32.mrf.mxu0
      %v3606 = vadd.f32 0.0, %v3605
      %v3607 = vpop.f32.mrf.mxu0
      %v3608 = vadd.f32 0.0, %v3607
      %v3609 = vpop.f32.mrf.mxu0
      %v3610 = vadd.f32 0.0, %v3609
      %3611 = vmatprep.mubr.bf16.mxu0 0
      %3612 = vmatmul.mubr.bf16.gmra.mxu0 %v787
      %v3613 = vpop.f32.mrf.mxu0
      %v3614 = vadd.f32 0.0, %v3613
      %v3615 = vpop.f32.mrf.mxu0
      %v3616 = vadd.f32 0.0, %v3615
      %v3617 = vpop.f32.mrf.mxu0
      %v3618 = vadd.f32 0.0, %v3617
      %v3619 = vpop.f32.mrf.mxu0
      %v3620 = vadd.f32 0.0, %v3619
      %3621 = vmatprep.mubr.bf16.mxu0 0
      %3622 = vmatmul.mubr.bf16.gmra.mxu0 %v790
      %v3623 = vpop.f32.mrf.mxu0
      %v3624 = vadd.f32 0.0, %v3623
      %v3625 = vpop.f32.mrf.mxu0
      %v3626 = vadd.f32 0.0, %v3625
      %v3627 = vpop.f32.mrf.mxu0
      %v3628 = vadd.f32 0.0, %v3627
      %v3629 = vpop.f32.mrf.mxu0
      %v3630 = vadd.f32 0.0, %v3629
      %3631 = vmatprep.mubr.bf16.mxu0 0
      %3632 = vmatmul.mubr.bf16.gmra.mxu0 %v793
      %v3633 = vpop.f32.mrf.mxu0
      %v3634 = vadd.f32 0.0, %v3633
      %v3635 = vpop.f32.mrf.mxu0
      %v3636 = vadd.f32 0.0, %v3635
      %v3637 = vpop.f32.mrf.mxu0
      %v3638 = vadd.f32 0.0, %v3637
      %v3639 = vpop.f32.mrf.mxu0
      %v3640 = vadd.f32 0.0, %v3639
      %3641 = vmatprep.mubr.bf16.mxu0 0
      %3642 = vmatmul.mubr.bf16.gmra.mxu0 %v796
      %v3643 = vpop.f32.mrf.mxu0
      %v3644 = vadd.f32 0.0, %v3643
      %v3645 = vpop.f32.mrf.mxu0
      %v3646 = vadd.f32 0.0, %v3645
      %v3647 = vpop.f32.mrf.mxu0
      %v3648 = vadd.f32 0.0, %v3647
      %v3649 = vpop.f32.mrf.mxu0
      %v3650 = vadd.f32 0.0, %v3649
      %3651 = vmatprep.mubr.bf16.mxu0 0
      %3652 = vmatmul.mubr.bf16.gmra.mxu0 %v799
      %v3653 = vpop.f32.mrf.mxu0
      %v3654 = vadd.f32 0.0, %v3653
      %v3655 = vpop.f32.mrf.mxu0
      %v3656 = vadd.f32 0.0, %v3655
      %v3657 = vpop.f32.mrf.mxu0
      %v3658 = vadd.f32 0.0, %v3657
      %v3659 = vpop.f32.mrf.mxu0
      %v3660 = vadd.f32 0.0, %v3659
      %3661 = vmatprep.mubr.bf16.mxu0 0
      %3662 = vmatmul.mubr.bf16.gmra.mxu0 %v802
      %v3663 = vpop.f32.mrf.mxu0
      %v3664 = vadd.f32 0.0, %v3663
      %v3665 = vpop.f32.mrf.mxu0
      %v3666 = vadd.f32 0.0, %v3665
      %v3667 = vpop.f32.mrf.mxu0
      %v3668 = vadd.f32 0.0, %v3667
      %v3669 = vpop.f32.mrf.mxu0
      %v3670 = vadd.f32 0.0, %v3669
      %3671 = vmatprep.mubr.bf16.mxu0 0
      %3672 = vmatmul.mubr.bf16.gmra.mxu0 %v805
      %v3673 = vpop.f32.mrf.mxu0
      %v3674 = vadd.f32 0.0, %v3673
      %v3675 = vpop.f32.mrf.mxu0
      %v3676 = vadd.f32 0.0, %v3675
      %v3677 = vpop.f32.mrf.mxu0
      %v3678 = vadd.f32 0.0, %v3677
      %v3679 = vpop.f32.mrf.mxu0
      %v3680 = vadd.f32 0.0, %v3679
      %3681 = vmatprep.mubr.bf16.mxu0 0
      %3682 = vmatmul.mubr.bf16.gmra.mxu0 %v808
      %v3683 = vpop.f32.mrf.mxu0
      %v3684 = vadd.f32 0.0, %v3683
      %v3685 = vpop.f32.mrf.mxu0
      %v3686 = vadd.f32 0.0, %v3685
      %v3687 = vpop.f32.mrf.mxu0
      %v3688 = vadd.f32 0.0, %v3687
      %v3689 = vpop.f32.mrf.mxu0
      %v3690 = vadd.f32 0.0, %v3689
      %3691 = vmatprep.mubr.bf16.mxu0 0
      %3692 = vmatmul.mubr.bf16.gmra.mxu0 %v811
      %v3693 = vpop.f32.mrf.mxu0
      %v3694 = vadd.f32 0.0, %v3693
      %v3695 = vpop.f32.mrf.mxu0
      %v3696 = vadd.f32 0.0, %v3695
      %v3697 = vpop.f32.mrf.mxu0
      %v3698 = vadd.f32 0.0, %v3697
      %v3699 = vpop.f32.mrf.mxu0
      %v3700 = vadd.f32 0.0, %v3699
      %3701 = vmatprep.mubr.bf16.mxu0 0
      %3702 = vmatmul.mubr.bf16.gmra.mxu0 %v814
      %v3703 = vpop.f32.mrf.mxu0
      %v3704 = vadd.f32 0.0, %v3703
      %v3705 = vpop.f32.mrf.mxu0
      %v3706 = vadd.f32 0.0, %v3705
      %v3707 = vpop.f32.mrf.mxu0
      %v3708 = vadd.f32 0.0, %v3707
      %v3709 = vpop.f32.mrf.mxu0
      %v3710 = vadd.f32 0.0, %v3709
      %3711 = vmatprep.mubr.bf16.mxu0 0
      %3712 = vmatmul.mubr.bf16.gmra.mxu0 %v817
      %v3713 = vpop.f32.mrf.mxu0
      %v3714 = vadd.f32 0.0, %v3713
      %v3715 = vpop.f32.mrf.mxu0
      %v3716 = vadd.f32 0.0, %v3715
      %v3717 = vpop.f32.mrf.mxu0
      %v3718 = vadd.f32 0.0, %v3717
      %v3719 = vpop.f32.mrf.mxu0
      %v3720 = vadd.f32 0.0, %v3719
      %3721 = vmatprep.mubr.bf16.mxu0 0
      %3722 = vmatmul.mubr.bf16.gmra.mxu0 %v820
      %v3723 = vpop.f32.mrf.mxu0
      %v3724 = vadd.f32 0.0, %v3723
      %v3725 = vpop.f32.mrf.mxu0
      %v3726 = vadd.f32 0.0, %v3725
      %v3727 = vpop.f32.mrf.mxu0
      %v3728 = vadd.f32 0.0, %v3727
      %v3729 = vpop.f32.mrf.mxu0
      %v3730 = vadd.f32 0.0, %v3729
      %3731 = vmatprep.mubr.bf16.mxu0 0
      %3732 = vmatmul.mubr.bf16.gmra.mxu0 %v823
      %v3733 = vpop.f32.mrf.mxu0
      %v3734 = vadd.f32 0.0, %v3733
      %v3735 = vpop.f32.mrf.mxu0
      %v3736 = vadd.f32 0.0, %v3735
      %v3737 = vpop.f32.mrf.mxu0
      %v3738 = vadd.f32 0.0, %v3737
      %v3739 = vpop.f32.mrf.mxu0
      %v3740 = vadd.f32 0.0, %v3739
      %3741 = vmatprep.mubr.bf16.mxu0 0
      %3742 = vmatmul.mubr.bf16.gmra.mxu0 %v826
      %v3743 = vpop.f32.mrf.mxu0
      %v3744 = vadd.f32 0.0, %v3743
      %v3745 = vpop.f32.mrf.mxu0
      %v3746 = vadd.f32 0.0, %v3745
      %v3747 = vpop.f32.mrf.mxu0
      %v3748 = vadd.f32 0.0, %v3747
      %v3749 = vpop.f32.mrf.mxu0
      %v3750 = vadd.f32 0.0, %v3749
      %3751 = vmatprep.mubr.bf16.mxu0 0
      %3752 = vmatmul.mubr.bf16.gmra.mxu0 %v829
      %v3753 = vpop.f32.mrf.mxu0
      %v3754 = vadd.f32 0.0, %v3753
      %v3755 = vpop.f32.mrf.mxu0
      %v3756 = vadd.f32 0.0, %v3755
      %v3757 = vpop.f32.mrf.mxu0
      %v3758 = vadd.f32 0.0, %v3757
      %v3759 = vpop.f32.mrf.mxu0
      %v3760 = vadd.f32 0.0, %v3759
      %3761 = vmatprep.mubr.bf16.mxu0 0
      %3762 = vmatmul.mubr.bf16.gmra.mxu0 %v832
      %v3763 = vpop.f32.mrf.mxu0
      %v3764 = vadd.f32 0.0, %v3763
      %v3765 = vpop.f32.mrf.mxu0
      %v3766 = vadd.f32 0.0, %v3765
      %v3767 = vpop.f32.mrf.mxu0
      %v3768 = vadd.f32 0.0, %v3767
      %v3769 = vpop.f32.mrf.mxu0
      %v3770 = vadd.f32 0.0, %v3769
      %3771 = vmatprep.mubr.bf16.mxu0 0
      %3772 = vmatmul.mubr.bf16.gmra.mxu0 %v835
      %v3773 = vpop.f32.mrf.mxu0
      %v3774 = vadd.f32 0.0, %v3773
      %v3775 = vpop.f32.mrf.mxu0
      %v3776 = vadd.f32 0.0, %v3775
      %v3777 = vpop.f32.mrf.mxu0
      %v3778 = vadd.f32 0.0, %v3777
      %v3779 = vpop.f32.mrf.mxu0
      %v3780 = vadd.f32 0.0, %v3779
      %3781 = vmatprep.mubr.bf16.mxu0 0
      %3782 = vmatmul.mubr.bf16.gmra.mxu0 %v838
      %v3783 = vpop.f32.mrf.mxu0
      %v3784 = vadd.f32 0.0, %v3783
      %v3785 = vpop.f32.mrf.mxu0
      %v3786 = vadd.f32 0.0, %v3785
      %v3787 = vpop.f32.mrf.mxu0
      %v3788 = vadd.f32 0.0, %v3787
      %v3789 = vpop.f32.mrf.mxu0
      %v3790 = vadd.f32 0.0, %v3789
      %3791 = vmatprep.mubr.bf16.mxu0 0
      %3792 = vmatmul.mubr.bf16.gmra.mxu0 %v841
      %v3793 = vpop.f32.mrf.mxu0
      %v3794 = vadd.f32 0.0, %v3793
      %v3795 = vpop.f32.mrf.mxu0
      %v3796 = vadd.f32 0.0, %v3795
      %v3797 = vpop.f32.mrf.mxu0
      %v3798 = vadd.f32 0.0, %v3797
      %v3799 = vpop.f32.mrf.mxu0
      %v3800 = vadd.f32 0.0, %v3799
      %3801 = vmatprep.mubr.bf16.mxu0 0
      %3802 = vmatmul.mubr.bf16.gmra.mxu0 %v844
      %v3803 = vpop.f32.mrf.mxu0
      %v3804 = vadd.f32 0.0, %v3803
      %v3805 = vpop.f32.mrf.mxu0
      %v3806 = vadd.f32 0.0, %v3805
      %v3807 = vpop.f32.mrf.mxu0
      %v3808 = vadd.f32 0.0, %v3807
      %v3809 = vpop.f32.mrf.mxu0
      %v3810 = vadd.f32 0.0, %v3809
      %3811 = vmatprep.mubr.bf16.mxu0 0
      %3812 = vmatmul.mubr.bf16.gmra.mxu0 %v847
      %v3813 = vpop.f32.mrf.mxu0
      %v3814 = vadd.f32 0.0, %v3813
      %v3815 = vpop.f32.mrf.mxu0
      %v3816 = vadd.f32 0.0, %v3815
      %v3817 = vpop.f32.mrf.mxu0
      %v3818 = vadd.f32 0.0, %v3817
      %v3819 = vpop.f32.mrf.mxu0
      %v3820 = vadd.f32 0.0, %v3819
      %3821 = vmatprep.mubr.bf16.mxu0 0
      %3822 = vmatmul.mubr.bf16.gmra.mxu0 %v850
      %v3823 = vpop.f32.mrf.mxu0
      %v3824 = vadd.f32 0.0, %v3823
      %v3825 = vpop.f32.mrf.mxu0
      %v3826 = vadd.f32 0.0, %v3825
      %v3827 = vpop.f32.mrf.mxu0
      %v3828 = vadd.f32 0.0, %v3827
      %v3829 = vpop.f32.mrf.mxu0
      %v3830 = vadd.f32 0.0, %v3829
      %3831 = vmatprep.mubr.bf16.mxu0 0
      %3832 = vmatmul.mubr.bf16.gmra.mxu0 %v853
      %v3833 = vpop.f32.mrf.mxu0
      %v3834 = vadd.f32 0.0, %v3833
      %v3835 = vpop.f32.mrf.mxu0
      %v3836 = vadd.f32 0.0, %v3835
      %v3837 = vpop.f32.mrf.mxu0
      %v3838 = vadd.f32 0.0, %v3837
      %v3839 = vpop.f32.mrf.mxu0
      %v3840 = vadd.f32 0.0, %v3839
      %3841 = vdwg.mxu0
      %3842 = vmatprep.subr.bf16.mxu0 0
      %3843 = vmatpush1.bf16.msra.mxu0 0
      %3844 = vmatprep.subr.bf16.mxu0 0
      %3845 = vmatpush1.bf16.msra.mxu0 0
      %3846 = vmatprep.subr.bf16.mxu0 0
      %3847 = vmatpush1.bf16.msra.mxu0 0
      %3848 = vmatprep.subr.bf16.mxu0 0
      %3849 = vmatpush1.bf16.msra.mxu0 0
      %3850 = vmatprep.subr.bf16.mxu0 0
      %3851 = vmatpush1.bf16.msra.mxu0 0
      %3852 = vmatprep.subr.bf16.mxu0 0
      %3853 = vmatpush1.bf16.msra.mxu0 0
      %3854 = vmatprep.subr.bf16.mxu0 0
      %3855 = vmatpush1.bf16.msra.mxu0 0
      %3856 = vmatprep.subr.bf16.mxu0 %v3487
      %3857 = vmatpush1.bf16.msra.mxu0 %v3484
      %3858 = vmatprep.subr.bf16.mxu0 0
      %3859 = vmatpush2.bf16.msra.mxu0 0
      %3860 = vmatprep.subr.bf16.mxu0 0
      %3861 = vmatpush2.bf16.msra.mxu0 0
      %3862 = vmatprep.subr.bf16.mxu0 0
      %3863 = vmatpush2.bf16.msra.mxu0 0
      %3864 = vmatprep.subr.bf16.mxu0 0
      %3865 = vmatpush2.bf16.msra.mxu0 0
      %3866 = vmatprep.subr.bf16.mxu0 0
      %3867 = vmatpush2.bf16.msra.mxu0 0
      %3868 = vmatprep.subr.bf16.mxu0 0
      %3869 = vmatpush2.bf16.msra.mxu0 0
      %3870 = vmatprep.subr.bf16.mxu0 0
      %3871 = vmatpush2.bf16.msra.mxu0 0
      %3872 = vmatprep.subr.bf16.mxu0 0
      %3873 = vmatpush2.bf16.msra.mxu0 0
      %3874 = vmatprep.mubr.bf16.mxu0 0
      %3875 = vmatmul.mubr.bf16.gmra.mxu0 %v760
      %v3876 = vpop.f32.mrf.mxu0
      %v3877 = vadd.f32 0.0, %v3876
      %v3878 = vpop.f32.mrf.mxu0
      %v3879 = vadd.f32 0.0, %v3878
      %v3880 = vpop.f32.mrf.mxu0
      %v3881 = vadd.f32 0.0, %v3880
      %v3882 = vpop.f32.mrf.mxu0
      %v3883 = vadd.f32 0.0, %v3882
      %3884 = vmatprep.mubr.bf16.mxu0 0
      %3885 = vmatmul.mubr.bf16.gmra.mxu0 %v763
      %v3886 = vpop.f32.mrf.mxu0
      %v3887 = vadd.f32 0.0, %v3886
      %v3888 = vpop.f32.mrf.mxu0
      %v3889 = vadd.f32 0.0, %v3888
      %v3890 = vpop.f32.mrf.mxu0
      %v3891 = vadd.f32 0.0, %v3890
      %v3892 = vpop.f32.mrf.mxu0
      %v3893 = vadd.f32 0.0, %v3892
      %3894 = vmatprep.mubr.bf16.mxu0 0
      %3895 = vmatmul.mubr.bf16.gmra.mxu0 %v766
      %v3896 = vpop.f32.mrf.mxu0
      %v3897 = vadd.f32 0.0, %v3896
      %v3898 = vpop.f32.mrf.mxu0
      %v3899 = vadd.f32 0.0, %v3898
      %v3900 = vpop.f32.mrf.mxu0
      %v3901 = vadd.f32 0.0, %v3900
      %v3902 = vpop.f32.mrf.mxu0
      %v3903 = vadd.f32 0.0, %v3902
      %3904 = vmatprep.mubr.bf16.mxu0 0
      %3905 = vmatmul.mubr.bf16.gmra.mxu0 %v769
      %v3906 = vpop.f32.mrf.mxu0
      %v3907 = vadd.f32 0.0, %v3906
      %v3908 = vpop.f32.mrf.mxu0
      %v3909 = vadd.f32 0.0, %v3908
      %v3910 = vpop.f32.mrf.mxu0
      %v3911 = vadd.f32 0.0, %v3910
      %v3912 = vpop.f32.mrf.mxu0
      %v3913 = vadd.f32 0.0, %v3912
      %3914 = vmatprep.mubr.bf16.mxu0 0
      %3915 = vmatmul.mubr.bf16.gmra.mxu0 %v772
      %v3916 = vpop.f32.mrf.mxu0
      %v3917 = vadd.f32 0.0, %v3916
      %v3918 = vpop.f32.mrf.mxu0
      %v3919 = vadd.f32 0.0, %v3918
      %v3920 = vpop.f32.mrf.mxu0
      %v3921 = vadd.f32 0.0, %v3920
      %v3922 = vpop.f32.mrf.mxu0
      %v3923 = vadd.f32 0.0, %v3922
      %3924 = vmatprep.mubr.bf16.mxu0 0
      %3925 = vmatmul.mubr.bf16.gmra.mxu0 %v775
      %v3926 = vpop.f32.mrf.mxu0
      %v3927 = vadd.f32 0.0, %v3926
      %v3928 = vpop.f32.mrf.mxu0
      %v3929 = vadd.f32 0.0, %v3928
      %v3930 = vpop.f32.mrf.mxu0
      %v3931 = vadd.f32 0.0, %v3930
      %v3932 = vpop.f32.mrf.mxu0
      %v3933 = vadd.f32 0.0, %v3932
      %3934 = vmatprep.mubr.bf16.mxu0 0
      %3935 = vmatmul.mubr.bf16.gmra.mxu0 %v778
      %v3936 = vpop.f32.mrf.mxu0
      %v3937 = vadd.f32 0.0, %v3936
      %v3938 = vpop.f32.mrf.mxu0
      %v3939 = vadd.f32 0.0, %v3938
      %v3940 = vpop.f32.mrf.mxu0
      %v3941 = vadd.f32 0.0, %v3940
      %v3942 = vpop.f32.mrf.mxu0
      %v3943 = vadd.f32 0.0, %v3942
      %3944 = vmatprep.mubr.bf16.mxu0 0
      %3945 = vmatmul.mubr.bf16.gmra.mxu0 %v781
      %v3946 = vpop.f32.mrf.mxu0
      %v3947 = vadd.f32 0.0, %v3946
      %v3948 = vpop.f32.mrf.mxu0
      %v3949 = vadd.f32 0.0, %v3948
      %v3950 = vpop.f32.mrf.mxu0
      %v3951 = vadd.f32 0.0, %v3950
      %v3952 = vpop.f32.mrf.mxu0
      %v3953 = vadd.f32 0.0, %v3952
      %3954 = vmatprep.mubr.bf16.mxu0 0
      %3955 = vmatmul.mubr.bf16.gmra.mxu0 %v784
      %v3956 = vpop.f32.mrf.mxu0
      %v3957 = vadd.f32 0.0, %v3956
      %v3958 = vpop.f32.mrf.mxu0
      %v3959 = vadd.f32 0.0, %v3958
      %v3960 = vpop.f32.mrf.mxu0
      %v3961 = vadd.f32 0.0, %v3960
      %v3962 = vpop.f32.mrf.mxu0
      %v3963 = vadd.f32 0.0, %v3962
      %3964 = vmatprep.mubr.bf16.mxu0 0
      %3965 = vmatmul.mubr.bf16.gmra.mxu0 %v787
      %v3966 = vpop.f32.mrf.mxu0
      %v3967 = vadd.f32 0.0, %v3966
      %v3968 = vpop.f32.mrf.mxu0
      %v3969 = vadd.f32 0.0, %v3968
      %v3970 = vpop.f32.mrf.mxu0
      %v3971 = vadd.f32 0.0, %v3970
      %v3972 = vpop.f32.mrf.mxu0
      %v3973 = vadd.f32 0.0, %v3972
      %3974 = vmatprep.mubr.bf16.mxu0 0
      %3975 = vmatmul.mubr.bf16.gmra.mxu0 %v790
      %v3976 = vpop.f32.mrf.mxu0
      %v3977 = vadd.f32 0.0, %v3976
      %v3978 = vpop.f32.mrf.mxu0
      %v3979 = vadd.f32 0.0, %v3978
      %v3980 = vpop.f32.mrf.mxu0
      %v3981 = vadd.f32 0.0, %v3980
      %v3982 = vpop.f32.mrf.mxu0
      %v3983 = vadd.f32 0.0, %v3982
      %3984 = vmatprep.mubr.bf16.mxu0 0
      %3985 = vmatmul.mubr.bf16.gmra.mxu0 %v793
      %v3986 = vpop.f32.mrf.mxu0
      %v3987 = vadd.f32 0.0, %v3986
      %v3988 = vpop.f32.mrf.mxu0
      %v3989 = vadd.f32 0.0, %v3988
      %v3990 = vpop.f32.mrf.mxu0
      %v3991 = vadd.f32 0.0, %v3990
      %v3992 = vpop.f32.mrf.mxu0
      %v3993 = vadd.f32 0.0, %v3992
      %3994 = vmatprep.mubr.bf16.mxu0 0
      %3995 = vmatmul.mubr.bf16.gmra.mxu0 %v796
      %v3996 = vpop.f32.mrf.mxu0
      %v3997 = vadd.f32 0.0, %v3996
      %v3998 = vpop.f32.mrf.mxu0
      %v3999 = vadd.f32 0.0, %v3998
      %v4000 = vpop.f32.mrf.mxu0
      %v4001 = vadd.f32 0.0, %v4000
      %v4002 = vpop.f32.mrf.mxu0
      %v4003 = vadd.f32 0.0, %v4002
      %4004 = vmatprep.mubr.bf16.mxu0 0
      %4005 = vmatmul.mubr.bf16.gmra.mxu0 %v799
      %v4006 = vpop.f32.mrf.mxu0
      %v4007 = vadd.f32 0.0, %v4006
      %v4008 = vpop.f32.mrf.mxu0
      %v4009 = vadd.f32 0.0, %v4008
      %v4010 = vpop.f32.mrf.mxu0
      %v4011 = vadd.f32 0.0, %v4010
      %v4012 = vpop.f32.mrf.mxu0
      %v4013 = vadd.f32 0.0, %v4012
      %4014 = vmatprep.mubr.bf16.mxu0 0
      %4015 = vmatmul.mubr.bf16.gmra.mxu0 %v802
      %v4016 = vpop.f32.mrf.mxu0
      %v4017 = vadd.f32 0.0, %v4016
      %v4018 = vpop.f32.mrf.mxu0
      %v4019 = vadd.f32 0.0, %v4018
      %v4020 = vpop.f32.mrf.mxu0
      %v4021 = vadd.f32 0.0, %v4020
      %v4022 = vpop.f32.mrf.mxu0
      %v4023 = vadd.f32 0.0, %v4022
      %4024 = vmatprep.mubr.bf16.mxu0 0
      %4025 = vmatmul.mubr.bf16.gmra.mxu0 %v805
      %v4026 = vpop.f32.mrf.mxu0
      %v4027 = vadd.f32 0.0, %v4026
      %v4028 = vpop.f32.mrf.mxu0
      %v4029 = vadd.f32 0.0, %v4028
      %v4030 = vpop.f32.mrf.mxu0
      %v4031 = vadd.f32 0.0, %v4030
      %v4032 = vpop.f32.mrf.mxu0
      %v4033 = vadd.f32 0.0, %v4032
      %4034 = vmatprep.mubr.bf16.mxu0 0
      %4035 = vmatmul.mubr.bf16.gmra.mxu0 %v808
      %v4036 = vpop.f32.mrf.mxu0
      %v4037 = vadd.f32 0.0, %v4036
      %v4038 = vpop.f32.mrf.mxu0
      %v4039 = vadd.f32 0.0, %v4038
      %v4040 = vpop.f32.mrf.mxu0
      %v4041 = vadd.f32 0.0, %v4040
      %v4042 = vpop.f32.mrf.mxu0
      %v4043 = vadd.f32 0.0, %v4042
      %4044 = vmatprep.mubr.bf16.mxu0 0
      %4045 = vmatmul.mubr.bf16.gmra.mxu0 %v811
      %v4046 = vpop.f32.mrf.mxu0
      %v4047 = vadd.f32 0.0, %v4046
      %v4048 = vpop.f32.mrf.mxu0
      %v4049 = vadd.f32 0.0, %v4048
      %v4050 = vpop.f32.mrf.mxu0
      %v4051 = vadd.f32 0.0, %v4050
      %v4052 = vpop.f32.mrf.mxu0
      %v4053 = vadd.f32 0.0, %v4052
      %4054 = vmatprep.mubr.bf16.mxu0 0
      %4055 = vmatmul.mubr.bf16.gmra.mxu0 %v814
      %v4056 = vpop.f32.mrf.mxu0
      %v4057 = vadd.f32 0.0, %v4056
      %v4058 = vpop.f32.mrf.mxu0
      %v4059 = vadd.f32 0.0, %v4058
      %v4060 = vpop.f32.mrf.mxu0
      %v4061 = vadd.f32 0.0, %v4060
      %v4062 = vpop.f32.mrf.mxu0
      %v4063 = vadd.f32 0.0, %v4062
      %4064 = vmatprep.mubr.bf16.mxu0 0
      %4065 = vmatmul.mubr.bf16.gmra.mxu0 %v817
      %v4066 = vpop.f32.mrf.mxu0
      %v4067 = vadd.f32 0.0, %v4066
      %v4068 = vpop.f32.mrf.mxu0
      %v4069 = vadd.f32 0.0, %v4068
      %v4070 = vpop.f32.mrf.mxu0
      %v4071 = vadd.f32 0.0, %v4070
      %v4072 = vpop.f32.mrf.mxu0
      %v4073 = vadd.f32 0.0, %v4072
      %4074 = vmatprep.mubr.bf16.mxu0 0
      %4075 = vmatmul.mubr.bf16.gmra.mxu0 %v820
      %v4076 = vpop.f32.mrf.mxu0
      %v4077 = vadd.f32 0.0, %v4076
      %v4078 = vpop.f32.mrf.mxu0
      %v4079 = vadd.f32 0.0, %v4078
      %v4080 = vpop.f32.mrf.mxu0
      %v4081 = vadd.f32 0.0, %v4080
      %v4082 = vpop.f32.mrf.mxu0
      %v4083 = vadd.f32 0.0, %v4082
      %4084 = vmatprep.mubr.bf16.mxu0 0
      %4085 = vmatmul.mubr.bf16.gmra.mxu0 %v823
      %v4086 = vpop.f32.mrf.mxu0
      %v4087 = vadd.f32 0.0, %v4086
      %v4088 = vpop.f32.mrf.mxu0
      %v4089 = vadd.f32 0.0, %v4088
      %v4090 = vpop.f32.mrf.mxu0
      %v4091 = vadd.f32 0.0, %v4090
      %v4092 = vpop.f32.mrf.mxu0
      %v4093 = vadd.f32 0.0, %v4092
      %4094 = vmatprep.mubr.bf16.mxu0 0
      %4095 = vmatmul.mubr.bf16.gmra.mxu0 %v826
      %v4096 = vpop.f32.mrf.mxu0
      %v4097 = vadd.f32 0.0, %v4096
      %v4098 = vpop.f32.mrf.mxu0
      %v4099 = vadd.f32 0.0, %v4098
      %v4100 = vpop.f32.mrf.mxu0
      %v4101 = vadd.f32 0.0, %v4100
      %v4102 = vpop.f32.mrf.mxu0
      %v4103 = vadd.f32 0.0, %v4102
      %4104 = vmatprep.mubr.bf16.mxu0 0
      %4105 = vmatmul.mubr.bf16.gmra.mxu0 %v829
      %v4106 = vpop.f32.mrf.mxu0
      %v4107 = vadd.f32 0.0, %v4106
      %v4108 = vpop.f32.mrf.mxu0
      %v4109 = vadd.f32 0.0, %v4108
      %v4110 = vpop.f32.mrf.mxu0
      %v4111 = vadd.f32 0.0, %v4110
      %v4112 = vpop.f32.mrf.mxu0
      %v4113 = vadd.f32 0.0, %v4112
      %4114 = vmatprep.mubr.bf16.mxu0 0
      %4115 = vmatmul.mubr.bf16.gmra.mxu0 %v832
      %v4116 = vpop.f32.mrf.mxu0
      %v4117 = vadd.f32 0.0, %v4116
      %v4118 = vpop.f32.mrf.mxu0
      %v4119 = vadd.f32 0.0, %v4118
      %v4120 = vpop.f32.mrf.mxu0
      %v4121 = vadd.f32 0.0, %v4120
      %v4122 = vpop.f32.mrf.mxu0
      %v4123 = vadd.f32 0.0, %v4122
      %4124 = vmatprep.mubr.bf16.mxu0 0
      %4125 = vmatmul.mubr.bf16.gmra.mxu0 %v835
      %v4126 = vpop.f32.mrf.mxu0
      %v4127 = vadd.f32 0.0, %v4126
      %v4128 = vpop.f32.mrf.mxu0
      %v4129 = vadd.f32 0.0, %v4128
      %v4130 = vpop.f32.mrf.mxu0
      %v4131 = vadd.f32 0.0, %v4130
      %v4132 = vpop.f32.mrf.mxu0
      %v4133 = vadd.f32 0.0, %v4132
      %4134 = vmatprep.mubr.bf16.mxu0 0
      %4135 = vmatmul.mubr.bf16.gmra.mxu0 %v838
      %v4136 = vpop.f32.mrf.mxu0
      %v4137 = vadd.f32 0.0, %v4136
      %v4138 = vpop.f32.mrf.mxu0
      %v4139 = vadd.f32 0.0, %v4138
      %v4140 = vpop.f32.mrf.mxu0
      %v4141 = vadd.f32 0.0, %v4140
      %v4142 = vpop.f32.mrf.mxu0
      %v4143 = vadd.f32 0.0, %v4142
      %4144 = vmatprep.mubr.bf16.mxu0 0
      %4145 = vmatmul.mubr.bf16.gmra.mxu0 %v841
      %v4146 = vpop.f32.mrf.mxu0
      %v4147 = vadd.f32 0.0, %v4146
      %v4148 = vpop.f32.mrf.mxu0
      %v4149 = vadd.f32 0.0, %v4148
      %v4150 = vpop.f32.mrf.mxu0
      %v4151 = vadd.f32 0.0, %v4150
      %v4152 = vpop.f32.mrf.mxu0
      %v4153 = vadd.f32 0.0, %v4152
      %4154 = vmatprep.mubr.bf16.mxu0 0
      %4155 = vmatmul.mubr.bf16.gmra.mxu0 %v844
      %v4156 = vpop.f32.mrf.mxu0
      %v4157 = vadd.f32 0.0, %v4156
      %v4158 = vpop.f32.mrf.mxu0
      %v4159 = vadd.f32 0.0, %v4158
      %v4160 = vpop.f32.mrf.mxu0
      %v4161 = vadd.f32 0.0, %v4160
      %v4162 = vpop.f32.mrf.mxu0
      %v4163 = vadd.f32 0.0, %v4162
      %4164 = vmatprep.mubr.bf16.mxu0 0
      %4165 = vmatmul.mubr.bf16.gmra.mxu0 %v847
      %v4166 = vpop.f32.mrf.mxu0
      %v4167 = vadd.f32 0.0, %v4166
      %v4168 = vpop.f32.mrf.mxu0
      %v4169 = vadd.f32 0.0, %v4168
      %v4170 = vpop.f32.mrf.mxu0
      %v4171 = vadd.f32 0.0, %v4170
      %v4172 = vpop.f32.mrf.mxu0
      %v4173 = vadd.f32 0.0, %v4172
      %4174 = vmatprep.mubr.bf16.mxu0 0
      %4175 = vmatmul.mubr.bf16.gmra.mxu0 %v850
      %v4176 = vpop.f32.mrf.mxu0
      %v4177 = vadd.f32 0.0, %v4176
      %v4178 = vpop.f32.mrf.mxu0
      %v4179 = vadd.f32 0.0, %v4178
      %v4180 = vpop.f32.mrf.mxu0
      %v4181 = vadd.f32 0.0, %v4180
      %v4182 = vpop.f32.mrf.mxu0
      %v4183 = vadd.f32 0.0, %v4182
      %4184 = vmatprep.mubr.bf16.mxu0 0
      %4185 = vmatmul.mubr.bf16.gmra.mxu0 %v853
      %v4186 = vpop.f32.mrf.mxu0
      %v4187 = vadd.f32 0.0, %v4186
      %v4188 = vpop.f32.mrf.mxu0
      %v4189 = vadd.f32 0.0, %v4188
      %v4190 = vpop.f32.mrf.mxu0
      %v4191 = vadd.f32 0.0, %v4190
      %v4192 = vpop.f32.mrf.mxu0
      %v4193 = vadd.f32 0.0, %v4192
      %4194 = vdwg.mxu0
      %v4323 = vunpack.c.l.b16 %v3337
      %v4324 = vunpack.c.h.b16 %v3337
      %v4325 = vunpack.c.l.b16 %v3338
      %v4326 = vunpack.c.h.b16 %v3338
      %v4327 = vunpack.c.l.b16 %v3339
      %v4328 = vunpack.c.h.b16 %v3339
      %v4329 = vunpack.c.l.b16 %v3340
      %v4330 = vunpack.c.h.b16 %v3340
      %v4331 = vunpack.c.l.b16 %v3341
      %v4332 = vunpack.c.h.b16 %v3341
      %v4333 = vunpack.c.l.b16 %v3342
      %v4334 = vunpack.c.h.b16 %v3342
      %v4335 = vunpack.c.l.b16 %v3343
      %v4336 = vunpack.c.h.b16 %v3343
      %v4337 = vunpack.c.l.b16 %v3344
      %v4338 = vunpack.c.h.b16 %v3344
      %v4339 = vunpack.c.l.b16 %v3345
      %v4340 = vunpack.c.h.b16 %v3345
      %v4341 = vunpack.c.l.b16 %v3346
      %v4342 = vunpack.c.h.b16 %v3346
      %v4343 = vunpack.c.l.b16 %v3347
      %v4344 = vunpack.c.h.b16 %v3347
      %v4345 = vunpack.c.l.b16 %v3348
      %v4346 = vunpack.c.h.b16 %v3348
      %v4347 = vunpack.c.l.b16 %v3349
      %v4348 = vunpack.c.h.b16 %v3349
      %v4349 = vunpack.c.l.b16 %v3350
      %v4350 = vunpack.c.h.b16 %v3350
      %v4351 = vunpack.c.l.b16 %v3351
      %v4352 = vunpack.c.h.b16 %v3351
      %v4353 = vunpack.c.l.b16 %v3352
      %v4354 = vunpack.c.h.b16 %v3352
      %v4355 = vunpack.c.l.b16 %v3353
      %v4356 = vunpack.c.h.b16 %v3353
      %v4357 = vunpack.c.l.b16 %v3354
      %v4358 = vunpack.c.h.b16 %v3354
      %v4359 = vunpack.c.l.b16 %v3355
      %v4360 = vunpack.c.h.b16 %v3355
      %v4361 = vunpack.c.l.b16 %v3356
      %v4362 = vunpack.c.h.b16 %v3356
      %v4363 = vunpack.c.l.b16 %v3357
      %v4364 = vunpack.c.h.b16 %v3357
      %v4365 = vunpack.c.l.b16 %v3358
      %v4366 = vunpack.c.h.b16 %v3358
      %v4367 = vunpack.c.l.b16 %v3359
      %v4368 = vunpack.c.h.b16 %v3359
      %v4369 = vunpack.c.l.b16 %v3360
      %v4370 = vunpack.c.h.b16 %v3360
      %v4371 = vunpack.c.l.b16 %v3361
      %v4372 = vunpack.c.h.b16 %v3361
      %v4373 = vunpack.c.l.b16 %v3362
      %v4374 = vunpack.c.h.b16 %v3362
      %v4375 = vunpack.c.l.b16 %v3363
      %v4376 = vunpack.c.h.b16 %v3363
      %v4377 = vunpack.c.l.b16 %v3364
      %v4378 = vunpack.c.h.b16 %v3364
      %v4379 = vunpack.c.l.b16 %v3365
      %v4380 = vunpack.c.h.b16 %v3365
      %v4381 = vunpack.c.l.b16 %v3366
      %v4382 = vunpack.c.h.b16 %v3366
      %v4383 = vunpack.c.l.b16 %v3367
      %v4384 = vunpack.c.h.b16 %v3367
      %v4385 = vunpack.c.l.b16 %v3368
      %v4386 = vunpack.c.h.b16 %v3368
      %v4387 = vunpack.c.l.b16 %v3369
      %v4388 = vunpack.c.h.b16 %v3369
      %v4389 = vunpack.c.l.b16 %v3370
      %v4390 = vunpack.c.h.b16 %v3370
      %v4391 = vunpack.c.l.b16 %v3371
      %v4392 = vunpack.c.h.b16 %v3371
      %v4393 = vunpack.c.l.b16 %v3372
      %v4394 = vunpack.c.h.b16 %v3372
      %v4395 = vunpack.c.l.b16 %v3373
      %v4396 = vunpack.c.h.b16 %v3373
      %v4397 = vunpack.c.l.b16 %v3374
      %v4398 = vunpack.c.h.b16 %v3374
      %v4399 = vunpack.c.l.b16 %v3375
      %v4400 = vunpack.c.h.b16 %v3375
      %v4401 = vunpack.c.l.b16 %v3376
      %v4402 = vunpack.c.h.b16 %v3376
      %v4403 = vunpack.c.l.b16 %v3377
      %v4404 = vunpack.c.h.b16 %v3377
      %v4405 = vunpack.c.l.b16 %v3378
      %v4406 = vunpack.c.h.b16 %v3378
      %v4407 = vunpack.c.l.b16 %v3379
      %v4408 = vunpack.c.h.b16 %v3379
      %v4409 = vunpack.c.l.b16 %v3380
      %v4410 = vunpack.c.h.b16 %v3380
      %v4411 = vunpack.c.l.b16 %v3381
      %v4412 = vunpack.c.h.b16 %v3381
      %v4413 = vunpack.c.l.b16 %v3382
      %v4414 = vunpack.c.h.b16 %v3382
      %v4415 = vunpack.c.l.b16 %v3383
      %v4416 = vunpack.c.h.b16 %v3383
      %v4417 = vunpack.c.l.b16 %v3384
      %v4418 = vunpack.c.h.b16 %v3384
      %v4419 = vunpack.c.l.b16 %v3385
      %v4420 = vunpack.c.h.b16 %v3385
      %v4421 = vunpack.c.l.b16 %v3386
      %v4422 = vunpack.c.h.b16 %v3386
      %v4423 = vunpack.c.l.b16 %v3387
      %v4424 = vunpack.c.h.b16 %v3387
      %v4425 = vunpack.c.l.b16 %v3388
      %v4426 = vunpack.c.h.b16 %v3388
      %v4427 = vunpack.c.l.b16 %v3389
      %v4428 = vunpack.c.h.b16 %v3389
      %v4429 = vunpack.c.l.b16 %v3390
      %v4430 = vunpack.c.h.b16 %v3390
      %v4431 = vunpack.c.l.b16 %v3391
      %v4432 = vunpack.c.h.b16 %v3391
      %v4433 = vunpack.c.l.b16 %v3392
      %v4434 = vunpack.c.h.b16 %v3392
      %v4435 = vunpack.c.l.b16 %v3393
      %v4436 = vunpack.c.h.b16 %v3393
      %v4437 = vunpack.c.l.b16 %v3394
      %v4438 = vunpack.c.h.b16 %v3394
      %v4439 = vunpack.c.l.b16 %v3395
      %v4440 = vunpack.c.h.b16 %v3395
      %v4441 = vunpack.c.l.b16 %v3396
      %v4442 = vunpack.c.h.b16 %v3396
      %v4443 = vunpack.c.l.b16 %v3397
      %v4444 = vunpack.c.h.b16 %v3397
      %v4445 = vunpack.c.l.b16 %v3398
      %v4446 = vunpack.c.h.b16 %v3398
      %v4447 = vunpack.c.l.b16 %v3399
      %v4448 = vunpack.c.h.b16 %v3399
      %v4449 = vunpack.c.l.b16 %v3400
      %v4450 = vunpack.c.h.b16 %v3400
      %v4451 = vunpack.c.l.b16 %v3401
      %v4452 = vunpack.c.h.b16 %v3401
      %v4453 = vunpack.c.l.b16 %v3402
      %v4454 = vunpack.c.h.b16 %v3402
      %v4455 = vunpack.c.l.b16 %v3403
      %v4456 = vunpack.c.h.b16 %v3403
      %v4457 = vunpack.c.l.b16 %v3404
      %v4458 = vunpack.c.h.b16 %v3404
      %v4459 = vunpack.c.l.b16 %v3405
      %v4460 = vunpack.c.h.b16 %v3405
      %v4461 = vunpack.c.l.b16 %v3406
      %v4462 = vunpack.c.h.b16 %v3406
      %v4463 = vunpack.c.l.b16 %v3407
      %v4464 = vunpack.c.h.b16 %v3407
      %v4465 = vunpack.c.l.b16 %v3408
      %v4466 = vunpack.c.h.b16 %v3408
      %v4467 = vunpack.c.l.b16 %v3409
      %v4468 = vunpack.c.h.b16 %v3409
      %v4469 = vunpack.c.l.b16 %v3410
      %v4470 = vunpack.c.h.b16 %v3410
      %v4471 = vunpack.c.l.b16 %v3411
      %v4472 = vunpack.c.h.b16 %v3411
      %v4473 = vunpack.c.l.b16 %v3412
      %v4474 = vunpack.c.h.b16 %v3412
      %v4475 = vunpack.c.l.b16 %v3413
      %v4476 = vunpack.c.h.b16 %v3413
      %v4477 = vunpack.c.l.b16 %v3414
      %v4478 = vunpack.c.h.b16 %v3414
      %v4479 = vunpack.c.l.b16 %v3415
      %v4480 = vunpack.c.h.b16 %v3415
      %v4481 = vunpack.c.l.b16 %v3416
      %v4482 = vunpack.c.h.b16 %v3416
      %v4483 = vunpack.c.l.b16 %v3417
      %v4484 = vunpack.c.h.b16 %v3417
      %v4485 = vunpack.c.l.b16 %v3418
      %v4486 = vunpack.c.h.b16 %v3418
      %v4487 = vunpack.c.l.b16 %v3419
      %v4488 = vunpack.c.h.b16 %v3419
      %v4489 = vunpack.c.l.b16 %v3420
      %v4490 = vunpack.c.h.b16 %v3420
      %v4491 = vunpack.c.l.b16 %v3421
      %v4492 = vunpack.c.h.b16 %v3421
      %v4493 = vunpack.c.l.b16 %v3422
      %v4494 = vunpack.c.h.b16 %v3422
      %v4495 = vunpack.c.l.b16 %v3423
      %v4496 = vunpack.c.h.b16 %v3423
      %v4497 = vunpack.c.l.b16 %v3424
      %v4498 = vunpack.c.h.b16 %v3424
      %v4499 = vunpack.c.l.b16 %v3425
      %v4500 = vunpack.c.h.b16 %v3425
      %v4501 = vunpack.c.l.b16 %v3426
      %v4502 = vunpack.c.h.b16 %v3426
      %v4503 = vunpack.c.l.b16 %v3427
      %v4504 = vunpack.c.h.b16 %v3427
      %v4505 = vunpack.c.l.b16 %v3428
      %v4506 = vunpack.c.h.b16 %v3428
      %v4507 = vunpack.c.l.b16 %v3429
      %v4508 = vunpack.c.h.b16 %v3429
      %v4509 = vunpack.c.l.b16 %v3430
      %v4510 = vunpack.c.h.b16 %v3430
      %v4511 = vunpack.c.l.b16 %v3431
      %v4512 = vunpack.c.h.b16 %v3431
      %v4513 = vunpack.c.l.b16 %v3432
      %v4514 = vunpack.c.h.b16 %v3432
      %v4515 = vunpack.c.l.b16 %v3433
      %v4516 = vunpack.c.h.b16 %v3433
      %v4517 = vunpack.c.l.b16 %v3434
      %v4518 = vunpack.c.h.b16 %v3434
      %v4519 = vunpack.c.l.b16 %v3435
      %v4520 = vunpack.c.h.b16 %v3435
      %v4521 = vunpack.c.l.b16 %v3436
      %v4522 = vunpack.c.h.b16 %v3436
      %v4523 = vunpack.c.l.b16 %v3437
      %v4524 = vunpack.c.h.b16 %v3437
      %v4525 = vunpack.c.l.b16 %v3438
      %v4526 = vunpack.c.h.b16 %v3438
      %v4527 = vunpack.c.l.b16 %v3439
      %v4528 = vunpack.c.h.b16 %v3439
      %v4529 = vunpack.c.l.b16 %v3440
      %v4530 = vunpack.c.h.b16 %v3440
      %v4531 = vunpack.c.l.b16 %v3441
      %v4532 = vunpack.c.h.b16 %v3441
      %v4533 = vunpack.c.l.b16 %v3442
      %v4534 = vunpack.c.h.b16 %v3442
      %v4535 = vunpack.c.l.b16 %v3443
      %v4536 = vunpack.c.h.b16 %v3443
      %v4537 = vunpack.c.l.b16 %v3444
      %v4538 = vunpack.c.h.b16 %v3444
      %v4539 = vunpack.c.l.b16 %v3445
      %v4540 = vunpack.c.h.b16 %v3445
      %v4541 = vunpack.c.l.b16 %v3446
      %v4542 = vunpack.c.h.b16 %v3446
      %v4543 = vunpack.c.l.b16 %v3447
      %v4544 = vunpack.c.h.b16 %v3447
      %v4545 = vunpack.c.l.b16 %v3448
      %v4546 = vunpack.c.h.b16 %v3448
      %v4547 = vunpack.c.l.b16 %v3449
      %v4548 = vunpack.c.h.b16 %v3449
      %v4549 = vunpack.c.l.b16 %v3450
      %v4550 = vunpack.c.h.b16 %v3450
      %v4551 = vunpack.c.l.b16 %v3451
      %v4552 = vunpack.c.h.b16 %v3451
      %v4553 = vunpack.c.l.b16 %v3452
      %v4554 = vunpack.c.h.b16 %v3452
      %v4555 = vunpack.c.l.b16 %v3453
      %v4556 = vunpack.c.h.b16 %v3453
      %v4557 = vunpack.c.l.b16 %v3454
      %v4558 = vunpack.c.h.b16 %v3454
      %v4559 = vunpack.c.l.b16 %v3455
      %v4560 = vunpack.c.h.b16 %v3455
      %v4561 = vunpack.c.l.b16 %v3456
      %v4562 = vunpack.c.h.b16 %v3456
      %v4563 = vunpack.c.l.b16 %v3457
      %v4564 = vunpack.c.h.b16 %v3457
      %v4565 = vunpack.c.l.b16 %v3458
      %v4566 = vunpack.c.h.b16 %v3458
      %v4567 = vunpack.c.l.b16 %v3459
      %v4568 = vunpack.c.h.b16 %v3459
      %v4569 = vunpack.c.l.b16 %v3460
      %v4570 = vunpack.c.h.b16 %v3460
      %v4571 = vunpack.c.l.b16 %v3461
      %v4572 = vunpack.c.h.b16 %v3461
      %v4573 = vunpack.c.l.b16 %v3462
      %v4574 = vunpack.c.h.b16 %v3462
      %v4575 = vunpack.c.l.b16 %v3463
      %v4576 = vunpack.c.h.b16 %v3463
      %v4577 = vunpack.c.l.b16 %v3464
      %v4578 = vunpack.c.h.b16 %v3464
      %v4579 = vpack.c.b16 %v4327, %v4323
      %v4580 = vpack.c.b16 %v4328, %v4324
      %v4581 = vpack.c.b16 %v4329, %v4325
      %v4582 = vpack.c.b16 %v4330, %v4326
      %v4583 = vpack.c.b16 %v4335, %v4331
      %v4584 = vpack.c.b16 %v4336, %v4332
      %v4585 = vpack.c.b16 %v4337, %v4333
      %v4586 = vpack.c.b16 %v4338, %v4334
      %v4587 = vpack.c.b16 %v4343, %v4339
      %v4588 = vpack.c.b16 %v4344, %v4340
      %v4589 = vpack.c.b16 %v4345, %v4341
      %v4590 = vpack.c.b16 %v4346, %v4342
      %v4591 = vpack.c.b16 %v4351, %v4347
      %v4592 = vpack.c.b16 %v4352, %v4348
      %v4593 = vpack.c.b16 %v4353, %v4349
      %v4594 = vpack.c.b16 %v4354, %v4350
      %v4595 = vpack.c.b16 %v4359, %v4355
      %v4596 = vpack.c.b16 %v4360, %v4356
      %v4597 = vpack.c.b16 %v4361, %v4357
      %v4598 = vpack.c.b16 %v4362, %v4358
      %v4599 = vpack.c.b16 %v4367, %v4363
      %v4600 = vpack.c.b16 %v4368, %v4364
      %v4601 = vpack.c.b16 %v4369, %v4365
      %v4602 = vpack.c.b16 %v4370, %v4366
      %v4603 = vpack.c.b16 %v4375, %v4371
      %v4604 = vpack.c.b16 %v4376, %v4372
      %v4605 = vpack.c.b16 %v4377, %v4373
      %v4606 = vpack.c.b16 %v4378, %v4374
      %v4607 = vpack.c.b16 %v4383, %v4379
      %v4608 = vpack.c.b16 %v4384, %v4380
      %v4609 = vpack.c.b16 %v4385, %v4381
      %v4610 = vpack.c.b16 %v4386, %v4382
      %v4611 = vpack.c.b16 %v4391, %v4387
      %v4612 = vpack.c.b16 %v4392, %v4388
      %v4613 = vpack.c.b16 %v4393, %v4389
      %v4614 = vpack.c.b16 %v4394, %v4390
      %v4615 = vpack.c.b16 %v4399, %v4395
      %v4616 = vpack.c.b16 %v4400, %v4396
      %v4617 = vpack.c.b16 %v4401, %v4397
      %v4618 = vpack.c.b16 %v4402, %v4398
      %v4619 = vpack.c.b16 %v4407, %v4403
      %v4620 = vpack.c.b16 %v4408, %v4404
      %v4621 = vpack.c.b16 %v4409, %v4405
      %v4622 = vpack.c.b16 %v4410, %v4406
      %v4623 = vpack.c.b16 %v4415, %v4411
      %v4624 = vpack.c.b16 %v4416, %v4412
      %v4625 = vpack.c.b16 %v4417, %v4413
      %v4626 = vpack.c.b16 %v4418, %v4414
      %v4627 = vpack.c.b16 %v4423, %v4419
      %v4628 = vpack.c.b16 %v4424, %v4420
      %v4629 = vpack.c.b16 %v4425, %v4421
      %v4630 = vpack.c.b16 %v4426, %v4422
      %v4631 = vpack.c.b16 %v4431, %v4427
      %v4632 = vpack.c.b16 %v4432, %v4428
      %v4633 = vpack.c.b16 %v4433, %v4429
      %v4634 = vpack.c.b16 %v4434, %v4430
      %v4635 = vpack.c.b16 %v4439, %v4435
      %v4636 = vpack.c.b16 %v4440, %v4436
      %v4637 = vpack.c.b16 %v4441, %v4437
      %v4638 = vpack.c.b16 %v4442, %v4438
      %v4639 = vpack.c.b16 %v4447, %v4443
      %v4640 = vpack.c.b16 %v4448, %v4444
      %v4641 = vpack.c.b16 %v4449, %v4445
      %v4642 = vpack.c.b16 %v4450, %v4446
      %v4643 = vpack.c.b16 %v4455, %v4451
      %v4644 = vpack.c.b16 %v4456, %v4452
      %v4645 = vpack.c.b16 %v4457, %v4453
      %v4646 = vpack.c.b16 %v4458, %v4454
      %v4647 = vpack.c.b16 %v4463, %v4459
      %v4648 = vpack.c.b16 %v4464, %v4460
      %v4649 = vpack.c.b16 %v4465, %v4461
      %v4650 = vpack.c.b16 %v4466, %v4462
      %v4651 = vpack.c.b16 %v4471, %v4467
      %v4652 = vpack.c.b16 %v4472, %v4468
      %v4653 = vpack.c.b16 %v4473, %v4469
      %v4654 = vpack.c.b16 %v4474, %v4470
      %v4655 = vpack.c.b16 %v4479, %v4475
      %v4656 = vpack.c.b16 %v4480, %v4476
      %v4657 = vpack.c.b16 %v4481, %v4477
      %v4658 = vpack.c.b16 %v4482, %v4478
      %v4659 = vpack.c.b16 %v4487, %v4483
      %v4660 = vpack.c.b16 %v4488, %v4484
      %v4661 = vpack.c.b16 %v4489, %v4485
      %v4662 = vpack.c.b16 %v4490, %v4486
      %v4663 = vpack.c.b16 %v4495, %v4491
      %v4664 = vpack.c.b16 %v4496, %v4492
      %v4665 = vpack.c.b16 %v4497, %v4493
      %v4666 = vpack.c.b16 %v4498, %v4494
      %v4667 = vpack.c.b16 %v4503, %v4499
      %v4668 = vpack.c.b16 %v4504, %v4500
      %v4669 = vpack.c.b16 %v4505, %v4501
      %v4670 = vpack.c.b16 %v4506, %v4502
      %v4671 = vpack.c.b16 %v4511, %v4507
      %v4672 = vpack.c.b16 %v4512, %v4508
      %v4673 = vpack.c.b16 %v4513, %v4509
      %v4674 = vpack.c.b16 %v4514, %v4510
      %v4675 = vpack.c.b16 %v4519, %v4515
      %v4676 = vpack.c.b16 %v4520, %v4516
      %v4677 = vpack.c.b16 %v4521, %v4517
      %v4678 = vpack.c.b16 %v4522, %v4518
      %v4679 = vpack.c.b16 %v4527, %v4523
      %v4680 = vpack.c.b16 %v4528, %v4524
      %v4681 = vpack.c.b16 %v4529, %v4525
      %v4682 = vpack.c.b16 %v4530, %v4526
      %v4683 = vpack.c.b16 %v4535, %v4531
      %v4684 = vpack.c.b16 %v4536, %v4532
      %v4685 = vpack.c.b16 %v4537, %v4533
      %v4686 = vpack.c.b16 %v4538, %v4534
      %v4687 = vpack.c.b16 %v4543, %v4539
      %v4688 = vpack.c.b16 %v4544, %v4540
      %v4689 = vpack.c.b16 %v4545, %v4541
      %v4690 = vpack.c.b16 %v4546, %v4542
      %v4691 = vpack.c.b16 %v4551, %v4547
      %v4692 = vpack.c.b16 %v4552, %v4548
      %v4693 = vpack.c.b16 %v4553, %v4549
      %v4694 = vpack.c.b16 %v4554, %v4550
      %v4695 = vpack.c.b16 %v4559, %v4555
      %v4696 = vpack.c.b16 %v4560, %v4556
      %v4697 = vpack.c.b16 %v4561, %v4557
      %v4698 = vpack.c.b16 %v4562, %v4558
      %v4699 = vpack.c.b16 %v4567, %v4563
      %v4700 = vpack.c.b16 %v4568, %v4564
      %v4701 = vpack.c.b16 %v4569, %v4565
      %v4702 = vpack.c.b16 %v4570, %v4566
      %v4703 = vpack.c.b16 %v4575, %v4571
      %v4704 = vpack.c.b16 %v4576, %v4572
      %v4705 = vpack.c.b16 %v4577, %v4573
      %v4706 = vpack.c.b16 %v4578, %v4574
      %4835 = vmatprep.subr.bf16.mxu0 %v4608
      %4836 = vmatpush1.bf16.msra.mxu0 %v4607
      %4837 = vmatprep.subr.bf16.mxu0 %v4604
      %4838 = vmatpush1.bf16.msra.mxu0 %v4603
      %4839 = vmatprep.subr.bf16.mxu0 %v4600
      %4840 = vmatpush1.bf16.msra.mxu0 %v4599
      %4841 = vmatprep.subr.bf16.mxu0 %v4596
      %4842 = vmatpush1.bf16.msra.mxu0 %v4595
      %4843 = vmatprep.subr.bf16.mxu0 %v4592
      %4844 = vmatpush1.bf16.msra.mxu0 %v4591
      %4845 = vmatprep.subr.bf16.mxu0 %v4588
      %4846 = vmatpush1.bf16.msra.mxu0 %v4587
      %4847 = vmatprep.subr.bf16.mxu0 %v4584
      %4848 = vmatpush1.bf16.msra.mxu0 %v4583
      %4849 = vmatprep.subr.bf16.mxu0 %v4580
      %4850 = vmatpush1.bf16.msra.mxu0 %v4579
      %4851 = vmatprep.subr.bf16.mxu0 %v4640
      %4852 = vmatpush2.bf16.msra.mxu0 %v4639
      %4853 = vmatprep.subr.bf16.mxu0 %v4636
      %4854 = vmatpush2.bf16.msra.mxu0 %v4635
      %4855 = vmatprep.subr.bf16.mxu0 %v4632
      %4856 = vmatpush2.bf16.msra.mxu0 %v4631
      %4857 = vmatprep.subr.bf16.mxu0 %v4628
      %4858 = vmatpush2.bf16.msra.mxu0 %v4627
      %4859 = vmatprep.subr.bf16.mxu0 %v4624
      %4860 = vmatpush2.bf16.msra.mxu0 %v4623
      %4861 = vmatprep.subr.bf16.mxu0 %v4620
      %4862 = vmatpush2.bf16.msra.mxu0 %v4619
      %4863 = vmatprep.subr.bf16.mxu0 %v4616
      %4864 = vmatpush2.bf16.msra.mxu0 %v4615
      %4865 = vmatprep.subr.bf16.mxu0 %v4612
      %4866 = vmatpush2.bf16.msra.mxu0 %v4611
      %4867 = vmatprep.mubr.bf16.mxu0 %v3210
      %4868 = vmatmul.mubr.bf16.gmra.mxu0 %v3209
      %v4869 = vpop.f32.mrf.mxu0
      %v4870 = vadd.f32 %v3524, %v4869
      %v4871 = vpop.f32.mrf.mxu0
      %v4872 = vadd.f32 %v3526, %v4871
      %v4873 = vpop.f32.mrf.mxu0
      %v4874 = vadd.f32 %v3528, %v4873
      %v4875 = vpop.f32.mrf.mxu0
      %v4876 = vadd.f32 %v3530, %v4875
      %4877 = vmatprep.mubr.bf16.mxu0 %v3214
      %4878 = vmatmul.mubr.bf16.gmra.mxu0 %v3213
      %v4879 = vpop.f32.mrf.mxu0
      %v4880 = vadd.f32 %v3534, %v4879
      %v4881 = vpop.f32.mrf.mxu0
      %v4882 = vadd.f32 %v3536, %v4881
      %v4883 = vpop.f32.mrf.mxu0
      %v4884 = vadd.f32 %v3538, %v4883
      %v4885 = vpop.f32.mrf.mxu0
      %v4886 = vadd.f32 %v3540, %v4885
      %4887 = vmatprep.mubr.bf16.mxu0 %v3218
      %4888 = vmatmul.mubr.bf16.gmra.mxu0 %v3217
      %v4889 = vpop.f32.mrf.mxu0
      %v4890 = vadd.f32 %v3544, %v4889
      %v4891 = vpop.f32.mrf.mxu0
      %v4892 = vadd.f32 %v3546, %v4891
      %v4893 = vpop.f32.mrf.mxu0
      %v4894 = vadd.f32 %v3548, %v4893
      %v4895 = vpop.f32.mrf.mxu0
      %v4896 = vadd.f32 %v3550, %v4895
      %4897 = vmatprep.mubr.bf16.mxu0 %v3222
      %4898 = vmatmul.mubr.bf16.gmra.mxu0 %v3221
      %v4899 = vpop.f32.mrf.mxu0
      %v4900 = vadd.f32 %v3554, %v4899
      %v4901 = vpop.f32.mrf.mxu0
      %v4902 = vadd.f32 %v3556, %v4901
      %v4903 = vpop.f32.mrf.mxu0
      %v4904 = vadd.f32 %v3558, %v4903
      %v4905 = vpop.f32.mrf.mxu0
      %v4906 = vadd.f32 %v3560, %v4905
      %4907 = vmatprep.mubr.bf16.mxu0 %v3226
      %4908 = vmatmul.mubr.bf16.gmra.mxu0 %v3225
      %v4909 = vpop.f32.mrf.mxu0
      %v4910 = vadd.f32 %v3564, %v4909
      %v4911 = vpop.f32.mrf.mxu0
      %v4912 = vadd.f32 %v3566, %v4911
      %v4913 = vpop.f32.mrf.mxu0
      %v4914 = vadd.f32 %v3568, %v4913
      %v4915 = vpop.f32.mrf.mxu0
      %v4916 = vadd.f32 %v3570, %v4915
      %4917 = vmatprep.mubr.bf16.mxu0 %v3230
      %4918 = vmatmul.mubr.bf16.gmra.mxu0 %v3229
      %v4919 = vpop.f32.mrf.mxu0
      %v4920 = vadd.f32 %v3574, %v4919
      %v4921 = vpop.f32.mrf.mxu0
      %v4922 = vadd.f32 %v3576, %v4921
      %v4923 = vpop.f32.mrf.mxu0
      %v4924 = vadd.f32 %v3578, %v4923
      %v4925 = vpop.f32.mrf.mxu0
      %v4926 = vadd.f32 %v3580, %v4925
      %4927 = vmatprep.mubr.bf16.mxu0 %v3234
      %4928 = vmatmul.mubr.bf16.gmra.mxu0 %v3233
      %v4929 = vpop.f32.mrf.mxu0
      %v4930 = vadd.f32 %v3584, %v4929
      %v4931 = vpop.f32.mrf.mxu0
      %v4932 = vadd.f32 %v3586, %v4931
      %v4933 = vpop.f32.mrf.mxu0
      %v4934 = vadd.f32 %v3588, %v4933
      %v4935 = vpop.f32.mrf.mxu0
      %v4936 = vadd.f32 %v3590, %v4935
      %4937 = vmatprep.mubr.bf16.mxu0 %v3238
      %4938 = vmatmul.mubr.bf16.gmra.mxu0 %v3237
      %v4939 = vpop.f32.mrf.mxu0
      %v4940 = vadd.f32 %v3594, %v4939
      %v4941 = vpop.f32.mrf.mxu0
      %v4942 = vadd.f32 %v3596, %v4941
      %v4943 = vpop.f32.mrf.mxu0
      %v4944 = vadd.f32 %v3598, %v4943
      %v4945 = vpop.f32.mrf.mxu0
      %v4946 = vadd.f32 %v3600, %v4945
      %4947 = vmatprep.mubr.bf16.mxu0 %v3242
      %4948 = vmatmul.mubr.bf16.gmra.mxu0 %v3241
      %v4949 = vpop.f32.mrf.mxu0
      %v4950 = vadd.f32 %v3604, %v4949
      %v4951 = vpop.f32.mrf.mxu0
      %v4952 = vadd.f32 %v3606, %v4951
      %v4953 = vpop.f32.mrf.mxu0
      %v4954 = vadd.f32 %v3608, %v4953
      %v4955 = vpop.f32.mrf.mxu0
      %v4956 = vadd.f32 %v3610, %v4955
      %4957 = vmatprep.mubr.bf16.mxu0 %v3246
      %4958 = vmatmul.mubr.bf16.gmra.mxu0 %v3245
      %v4959 = vpop.f32.mrf.mxu0
      %v4960 = vadd.f32 %v3614, %v4959
      %v4961 = vpop.f32.mrf.mxu0
      %v4962 = vadd.f32 %v3616, %v4961
      %v4963 = vpop.f32.mrf.mxu0
      %v4964 = vadd.f32 %v3618, %v4963
      %v4965 = vpop.f32.mrf.mxu0
      %v4966 = vadd.f32 %v3620, %v4965
      %4967 = vmatprep.mubr.bf16.mxu0 %v3250
      %4968 = vmatmul.mubr.bf16.gmra.mxu0 %v3249
      %v4969 = vpop.f32.mrf.mxu0
      %v4970 = vadd.f32 %v3624, %v4969
      %v4971 = vpop.f32.mrf.mxu0
      %v4972 = vadd.f32 %v3626, %v4971
      %v4973 = vpop.f32.mrf.mxu0
      %v4974 = vadd.f32 %v3628, %v4973
      %v4975 = vpop.f32.mrf.mxu0
      %v4976 = vadd.f32 %v3630, %v4975
      %4977 = vmatprep.mubr.bf16.mxu0 %v3254
      %4978 = vmatmul.mubr.bf16.gmra.mxu0 %v3253
      %v4979 = vpop.f32.mrf.mxu0
      %v4980 = vadd.f32 %v3634, %v4979
      %v4981 = vpop.f32.mrf.mxu0
      %v4982 = vadd.f32 %v3636, %v4981
      %v4983 = vpop.f32.mrf.mxu0
      %v4984 = vadd.f32 %v3638, %v4983
      %v4985 = vpop.f32.mrf.mxu0
      %v4986 = vadd.f32 %v3640, %v4985
      %4987 = vmatprep.mubr.bf16.mxu0 %v3258
      %4988 = vmatmul.mubr.bf16.gmra.mxu0 %v3257
      %v4989 = vpop.f32.mrf.mxu0
      %v4990 = vadd.f32 %v3644, %v4989
      %v4991 = vpop.f32.mrf.mxu0
      %v4992 = vadd.f32 %v3646, %v4991
      %v4993 = vpop.f32.mrf.mxu0
      %v4994 = vadd.f32 %v3648, %v4993
      %v4995 = vpop.f32.mrf.mxu0
      %v4996 = vadd.f32 %v3650, %v4995
      %4997 = vmatprep.mubr.bf16.mxu0 %v3262
      %4998 = vmatmul.mubr.bf16.gmra.mxu0 %v3261
      %v4999 = vpop.f32.mrf.mxu0
      %v5000 = vadd.f32 %v3654, %v4999
      %v5001 = vpop.f32.mrf.mxu0
      %v5002 = vadd.f32 %v3656, %v5001
      %v5003 = vpop.f32.mrf.mxu0
      %v5004 = vadd.f32 %v3658, %v5003
      %v5005 = vpop.f32.mrf.mxu0
      %v5006 = vadd.f32 %v3660, %v5005
      %5007 = vmatprep.mubr.bf16.mxu0 %v3266
      %5008 = vmatmul.mubr.bf16.gmra.mxu0 %v3265
      %v5009 = vpop.f32.mrf.mxu0
      %v5010 = vadd.f32 %v3664, %v5009
      %v5011 = vpop.f32.mrf.mxu0
      %v5012 = vadd.f32 %v3666, %v5011
      %v5013 = vpop.f32.mrf.mxu0
      %v5014 = vadd.f32 %v3668, %v5013
      %v5015 = vpop.f32.mrf.mxu0
      %v5016 = vadd.f32 %v3670, %v5015
      %5017 = vmatprep.mubr.bf16.mxu0 %v3270
      %5018 = vmatmul.mubr.bf16.gmra.mxu0 %v3269
      %v5019 = vpop.f32.mrf.mxu0
      %v5020 = vadd.f32 %v3674, %v5019
      %v5021 = vpop.f32.mrf.mxu0
      %v5022 = vadd.f32 %v3676, %v5021
      %v5023 = vpop.f32.mrf.mxu0
      %v5024 = vadd.f32 %v3678, %v5023
      %v5025 = vpop.f32.mrf.mxu0
      %v5026 = vadd.f32 %v3680, %v5025
      %5027 = vmatprep.mubr.bf16.mxu0 %v3274
      %5028 = vmatmul.mubr.bf16.gmra.mxu0 %v3273
      %v5029 = vpop.f32.mrf.mxu0
      %v5030 = vadd.f32 %v3684, %v5029
      %v5031 = vpop.f32.mrf.mxu0
      %v5032 = vadd.f32 %v3686, %v5031
      %v5033 = vpop.f32.mrf.mxu0
      %v5034 = vadd.f32 %v3688, %v5033
      %v5035 = vpop.f32.mrf.mxu0
      %v5036 = vadd.f32 %v3690, %v5035
      %5037 = vmatprep.mubr.bf16.mxu0 %v3278
      %5038 = vmatmul.mubr.bf16.gmra.mxu0 %v3277
      %v5039 = vpop.f32.mrf.mxu0
      %v5040 = vadd.f32 %v3694, %v5039
      %v5041 = vpop.f32.mrf.mxu0
      %v5042 = vadd.f32 %v3696, %v5041
      %v5043 = vpop.f32.mrf.mxu0
      %v5044 = vadd.f32 %v3698, %v5043
      %v5045 = vpop.f32.mrf.mxu0
      %v5046 = vadd.f32 %v3700, %v5045
      %5047 = vmatprep.mubr.bf16.mxu0 %v3282
      %5048 = vmatmul.mubr.bf16.gmra.mxu0 %v3281
      %v5049 = vpop.f32.mrf.mxu0
      %v5050 = vadd.f32 %v3704, %v5049
      %v5051 = vpop.f32.mrf.mxu0
      %v5052 = vadd.f32 %v3706, %v5051
      %v5053 = vpop.f32.mrf.mxu0
      %v5054 = vadd.f32 %v3708, %v5053
      %v5055 = vpop.f32.mrf.mxu0
      %v5056 = vadd.f32 %v3710, %v5055
      %5057 = vmatprep.mubr.bf16.mxu0 %v3286
      %5058 = vmatmul.mubr.bf16.gmra.mxu0 %v3285
      %v5059 = vpop.f32.mrf.mxu0
      %v5060 = vadd.f32 %v3714, %v5059
      %v5061 = vpop.f32.mrf.mxu0
      %v5062 = vadd.f32 %v3716, %v5061
      %v5063 = vpop.f32.mrf.mxu0
      %v5064 = vadd.f32 %v3718, %v5063
      %v5065 = vpop.f32.mrf.mxu0
      %v5066 = vadd.f32 %v3720, %v5065
      %5067 = vmatprep.mubr.bf16.mxu0 %v3290
      %5068 = vmatmul.mubr.bf16.gmra.mxu0 %v3289
      %v5069 = vpop.f32.mrf.mxu0
      %v5070 = vadd.f32 %v3724, %v5069
      %v5071 = vpop.f32.mrf.mxu0
      %v5072 = vadd.f32 %v3726, %v5071
      %v5073 = vpop.f32.mrf.mxu0
      %v5074 = vadd.f32 %v3728, %v5073
      %v5075 = vpop.f32.mrf.mxu0
      %v5076 = vadd.f32 %v3730, %v5075
      %5077 = vmatprep.mubr.bf16.mxu0 %v3294
      %5078 = vmatmul.mubr.bf16.gmra.mxu0 %v3293
      %v5079 = vpop.f32.mrf.mxu0
      %v5080 = vadd.f32 %v3734, %v5079
      %v5081 = vpop.f32.mrf.mxu0
      %v5082 = vadd.f32 %v3736, %v5081
      %v5083 = vpop.f32.mrf.mxu0
      %v5084 = vadd.f32 %v3738, %v5083
      %v5085 = vpop.f32.mrf.mxu0
      %v5086 = vadd.f32 %v3740, %v5085
      %5087 = vmatprep.mubr.bf16.mxu0 %v3298
      %5088 = vmatmul.mubr.bf16.gmra.mxu0 %v3297
      %v5089 = vpop.f32.mrf.mxu0
      %v5090 = vadd.f32 %v3744, %v5089
      %v5091 = vpop.f32.mrf.mxu0
      %v5092 = vadd.f32 %v3746, %v5091
      %v5093 = vpop.f32.mrf.mxu0
      %v5094 = vadd.f32 %v3748, %v5093
      %v5095 = vpop.f32.mrf.mxu0
      %v5096 = vadd.f32 %v3750, %v5095
      %5097 = vmatprep.mubr.bf16.mxu0 %v3302
      %5098 = vmatmul.mubr.bf16.gmra.mxu0 %v3301
      %v5099 = vpop.f32.mrf.mxu0
      %v5100 = vadd.f32 %v3754, %v5099
      %v5101 = vpop.f32.mrf.mxu0
      %v5102 = vadd.f32 %v3756, %v5101
      %v5103 = vpop.f32.mrf.mxu0
      %v5104 = vadd.f32 %v3758, %v5103
      %v5105 = vpop.f32.mrf.mxu0
      %v5106 = vadd.f32 %v3760, %v5105
      %5107 = vmatprep.mubr.bf16.mxu0 %v3306
      %5108 = vmatmul.mubr.bf16.gmra.mxu0 %v3305
      %v5109 = vpop.f32.mrf.mxu0
      %v5110 = vadd.f32 %v3764, %v5109
      %v5111 = vpop.f32.mrf.mxu0
      %v5112 = vadd.f32 %v3766, %v5111
      %v5113 = vpop.f32.mrf.mxu0
      %v5114 = vadd.f32 %v3768, %v5113
      %v5115 = vpop.f32.mrf.mxu0
      %v5116 = vadd.f32 %v3770, %v5115
      %5117 = vmatprep.mubr.bf16.mxu0 %v3310
      %5118 = vmatmul.mubr.bf16.gmra.mxu0 %v3309
      %v5119 = vpop.f32.mrf.mxu0
      %v5120 = vadd.f32 %v3774, %v5119
      %v5121 = vpop.f32.mrf.mxu0
      %v5122 = vadd.f32 %v3776, %v5121
      %v5123 = vpop.f32.mrf.mxu0
      %v5124 = vadd.f32 %v3778, %v5123
      %v5125 = vpop.f32.mrf.mxu0
      %v5126 = vadd.f32 %v3780, %v5125
      %5127 = vmatprep.mubr.bf16.mxu0 %v3314
      %5128 = vmatmul.mubr.bf16.gmra.mxu0 %v3313
      %v5129 = vpop.f32.mrf.mxu0
      %v5130 = vadd.f32 %v3784, %v5129
      %v5131 = vpop.f32.mrf.mxu0
      %v5132 = vadd.f32 %v3786, %v5131
      %v5133 = vpop.f32.mrf.mxu0
      %v5134 = vadd.f32 %v3788, %v5133
      %v5135 = vpop.f32.mrf.mxu0
      %v5136 = vadd.f32 %v3790, %v5135
      %5137 = vmatprep.mubr.bf16.mxu0 %v3318
      %5138 = vmatmul.mubr.bf16.gmra.mxu0 %v3317
      %v5139 = vpop.f32.mrf.mxu0
      %v5140 = vadd.f32 %v3794, %v5139
      %v5141 = vpop.f32.mrf.mxu0
      %v5142 = vadd.f32 %v3796, %v5141
      %v5143 = vpop.f32.mrf.mxu0
      %v5144 = vadd.f32 %v3798, %v5143
      %v5145 = vpop.f32.mrf.mxu0
      %v5146 = vadd.f32 %v3800, %v5145
      %5147 = vmatprep.mubr.bf16.mxu0 %v3322
      %5148 = vmatmul.mubr.bf16.gmra.mxu0 %v3321
      %v5149 = vpop.f32.mrf.mxu0
      %v5150 = vadd.f32 %v3804, %v5149
      %v5151 = vpop.f32.mrf.mxu0
      %v5152 = vadd.f32 %v3806, %v5151
      %v5153 = vpop.f32.mrf.mxu0
      %v5154 = vadd.f32 %v3808, %v5153
      %v5155 = vpop.f32.mrf.mxu0
      %v5156 = vadd.f32 %v3810, %v5155
      %5157 = vmatprep.mubr.bf16.mxu0 %v3326
      %5158 = vmatmul.mubr.bf16.gmra.mxu0 %v3325
      %v5159 = vpop.f32.mrf.mxu0
      %v5160 = vadd.f32 %v3814, %v5159
      %v5161 = vpop.f32.mrf.mxu0
      %v5162 = vadd.f32 %v3816, %v5161
      %v5163 = vpop.f32.mrf.mxu0
      %v5164 = vadd.f32 %v3818, %v5163
      %v5165 = vpop.f32.mrf.mxu0
      %v5166 = vadd.f32 %v3820, %v5165
      %5167 = vmatprep.mubr.bf16.mxu0 %v3330
      %5168 = vmatmul.mubr.bf16.gmra.mxu0 %v3329
      %v5169 = vpop.f32.mrf.mxu0
      %v5170 = vadd.f32 %v3824, %v5169
      %v5171 = vpop.f32.mrf.mxu0
      %v5172 = vadd.f32 %v3826, %v5171
      %v5173 = vpop.f32.mrf.mxu0
      %v5174 = vadd.f32 %v3828, %v5173
      %v5175 = vpop.f32.mrf.mxu0
      %v5176 = vadd.f32 %v3830, %v5175
      %5177 = vmatprep.mubr.bf16.mxu0 %v3334
      %5178 = vmatmul.mubr.bf16.gmra.mxu0 %v3333
      %v5179 = vpop.f32.mrf.mxu0
      %v5180 = vadd.f32 %v3834, %v5179
      %v5181 = vpop.f32.mrf.mxu0
      %v5182 = vadd.f32 %v3836, %v5181
      %v5183 = vpop.f32.mrf.mxu0
      %v5184 = vadd.f32 %v3838, %v5183
      %v5185 = vpop.f32.mrf.mxu0
      %v5186 = vadd.f32 %v3840, %v5185
      %5187 = vdwg.mxu0
      %5188 = vmatprep.subr.bf16.mxu0 %v4672
      %5189 = vmatpush1.bf16.msra.mxu0 %v4671
      %5190 = vmatprep.subr.bf16.mxu0 %v4668
      %5191 = vmatpush1.bf16.msra.mxu0 %v4667
      %5192 = vmatprep.subr.bf16.mxu0 %v4664
      %5193 = vmatpush1.bf16.msra.mxu0 %v4663
      %5194 = vmatprep.subr.bf16.mxu0 %v4660
      %5195 = vmatpush1.bf16.msra.mxu0 %v4659
      %5196 = vmatprep.subr.bf16.mxu0 %v4656
      %5197 = vmatpush1.bf16.msra.mxu0 %v4655
      %5198 = vmatprep.subr.bf16.mxu0 %v4652
      %5199 = vmatpush1.bf16.msra.mxu0 %v4651
      %5200 = vmatprep.subr.bf16.mxu0 %v4648
      %5201 = vmatpush1.bf16.msra.mxu0 %v4647
      %5202 = vmatprep.subr.bf16.mxu0 %v4644
      %5203 = vmatpush1.bf16.msra.mxu0 %v4643
      %5204 = vmatprep.subr.bf16.mxu0 %v4704
      %5205 = vmatpush2.bf16.msra.mxu0 %v4703
      %5206 = vmatprep.subr.bf16.mxu0 %v4700
      %5207 = vmatpush2.bf16.msra.mxu0 %v4699
      %5208 = vmatprep.subr.bf16.mxu0 %v4696
      %5209 = vmatpush2.bf16.msra.mxu0 %v4695
      %5210 = vmatprep.subr.bf16.mxu0 %v4692
      %5211 = vmatpush2.bf16.msra.mxu0 %v4691
      %5212 = vmatprep.subr.bf16.mxu0 %v4688
      %5213 = vmatpush2.bf16.msra.mxu0 %v4687
      %5214 = vmatprep.subr.bf16.mxu0 %v4684
      %5215 = vmatpush2.bf16.msra.mxu0 %v4683
      %5216 = vmatprep.subr.bf16.mxu0 %v4680
      %5217 = vmatpush2.bf16.msra.mxu0 %v4679
      %5218 = vmatprep.subr.bf16.mxu0 %v4676
      %5219 = vmatpush2.bf16.msra.mxu0 %v4675
      %5220 = vmatprep.mubr.bf16.mxu0 %v3212
      %5221 = vmatmul.mubr.bf16.gmra.mxu0 %v3211
      %v5222 = vpop.f32.mrf.mxu0
      %v5223 = vadd.f32 %v4870, %v5222
      %v5224 = vpop.f32.mrf.mxu0
      %v5225 = vadd.f32 %v4872, %v5224
      %v5226 = vpop.f32.mrf.mxu0
      %v5227 = vadd.f32 %v4874, %v5226
      %v5228 = vpop.f32.mrf.mxu0
      %v5229 = vadd.f32 %v4876, %v5228
      %5230 = vmatprep.mubr.bf16.mxu0 %v3216
      %5231 = vmatmul.mubr.bf16.gmra.mxu0 %v3215
      %v5232 = vpop.f32.mrf.mxu0
      %v5233 = vadd.f32 %v4880, %v5232
      %v5234 = vpop.f32.mrf.mxu0
      %v5235 = vadd.f32 %v4882, %v5234
      %v5236 = vpop.f32.mrf.mxu0
      %v5237 = vadd.f32 %v4884, %v5236
      %v5238 = vpop.f32.mrf.mxu0
      %v5239 = vadd.f32 %v4886, %v5238
      %5240 = vmatprep.mubr.bf16.mxu0 %v3220
      %5241 = vmatmul.mubr.bf16.gmra.mxu0 %v3219
      %v5242 = vpop.f32.mrf.mxu0
      %v5243 = vadd.f32 %v4890, %v5242
      %v5244 = vpop.f32.mrf.mxu0
      %v5245 = vadd.f32 %v4892, %v5244
      %v5246 = vpop.f32.mrf.mxu0
      %v5247 = vadd.f32 %v4894, %v5246
      %v5248 = vpop.f32.mrf.mxu0
      %v5249 = vadd.f32 %v4896, %v5248
      %5250 = vmatprep.mubr.bf16.mxu0 %v3224
      %5251 = vmatmul.mubr.bf16.gmra.mxu0 %v3223
      %v5252 = vpop.f32.mrf.mxu0
      %v5253 = vadd.f32 %v4900, %v5252
      %v5254 = vpop.f32.mrf.mxu0
      %v5255 = vadd.f32 %v4902, %v5254
      %v5256 = vpop.f32.mrf.mxu0
      %v5257 = vadd.f32 %v4904, %v5256
      %v5258 = vpop.f32.mrf.mxu0
      %v5259 = vadd.f32 %v4906, %v5258
      %5260 = vmatprep.mubr.bf16.mxu0 %v3228
      %5261 = vmatmul.mubr.bf16.gmra.mxu0 %v3227
      %v5262 = vpop.f32.mrf.mxu0
      %v5263 = vadd.f32 %v4910, %v5262
      %v5264 = vpop.f32.mrf.mxu0
      %v5265 = vadd.f32 %v4912, %v5264
      %v5266 = vpop.f32.mrf.mxu0
      %v5267 = vadd.f32 %v4914, %v5266
      %v5268 = vpop.f32.mrf.mxu0
      %v5269 = vadd.f32 %v4916, %v5268
      %5270 = vmatprep.mubr.bf16.mxu0 %v3232
      %5271 = vmatmul.mubr.bf16.gmra.mxu0 %v3231
      %v5272 = vpop.f32.mrf.mxu0
      %v5273 = vadd.f32 %v4920, %v5272
      %v5274 = vpop.f32.mrf.mxu0
      %v5275 = vadd.f32 %v4922, %v5274
      %v5276 = vpop.f32.mrf.mxu0
      %v5277 = vadd.f32 %v4924, %v5276
      %v5278 = vpop.f32.mrf.mxu0
      %v5279 = vadd.f32 %v4926, %v5278
      %5280 = vmatprep.mubr.bf16.mxu0 %v3236
      %5281 = vmatmul.mubr.bf16.gmra.mxu0 %v3235
      %v5282 = vpop.f32.mrf.mxu0
      %v5283 = vadd.f32 %v4930, %v5282
      %v5284 = vpop.f32.mrf.mxu0
      %v5285 = vadd.f32 %v4932, %v5284
      %v5286 = vpop.f32.mrf.mxu0
      %v5287 = vadd.f32 %v4934, %v5286
      %v5288 = vpop.f32.mrf.mxu0
      %v5289 = vadd.f32 %v4936, %v5288
      %5290 = vmatprep.mubr.bf16.mxu0 %v3240
      %5291 = vmatmul.mubr.bf16.gmra.mxu0 %v3239
      %v5292 = vpop.f32.mrf.mxu0
      %v5293 = vadd.f32 %v4940, %v5292
      %v5294 = vpop.f32.mrf.mxu0
      %v5295 = vadd.f32 %v4942, %v5294
      %v5296 = vpop.f32.mrf.mxu0
      %v5297 = vadd.f32 %v4944, %v5296
      %v5298 = vpop.f32.mrf.mxu0
      %v5299 = vadd.f32 %v4946, %v5298
      %5300 = vmatprep.mubr.bf16.mxu0 %v3244
      %5301 = vmatmul.mubr.bf16.gmra.mxu0 %v3243
      %v5302 = vpop.f32.mrf.mxu0
      %v5303 = vadd.f32 %v4950, %v5302
      %v5304 = vpop.f32.mrf.mxu0
      %v5305 = vadd.f32 %v4952, %v5304
      %v5306 = vpop.f32.mrf.mxu0
      %v5307 = vadd.f32 %v4954, %v5306
      %v5308 = vpop.f32.mrf.mxu0
      %v5309 = vadd.f32 %v4956, %v5308
      %5310 = vmatprep.mubr.bf16.mxu0 %v3248
      %5311 = vmatmul.mubr.bf16.gmra.mxu0 %v3247
      %v5312 = vpop.f32.mrf.mxu0
      %v5313 = vadd.f32 %v4960, %v5312
      %v5314 = vpop.f32.mrf.mxu0
      %v5315 = vadd.f32 %v4962, %v5314
      %v5316 = vpop.f32.mrf.mxu0
      %v5317 = vadd.f32 %v4964, %v5316
      %v5318 = vpop.f32.mrf.mxu0
      %v5319 = vadd.f32 %v4966, %v5318
      %5320 = vmatprep.mubr.bf16.mxu0 %v3252
      %5321 = vmatmul.mubr.bf16.gmra.mxu0 %v3251
      %v5322 = vpop.f32.mrf.mxu0
      %v5323 = vadd.f32 %v4970, %v5322
      %v5324 = vpop.f32.mrf.mxu0
      %v5325 = vadd.f32 %v4972, %v5324
      %v5326 = vpop.f32.mrf.mxu0
      %v5327 = vadd.f32 %v4974, %v5326
      %v5328 = vpop.f32.mrf.mxu0
      %v5329 = vadd.f32 %v4976, %v5328
      %5330 = vmatprep.mubr.bf16.mxu0 %v3256
      %5331 = vmatmul.mubr.bf16.gmra.mxu0 %v3255
      %v5332 = vpop.f32.mrf.mxu0
      %v5333 = vadd.f32 %v4980, %v5332
      %v5334 = vpop.f32.mrf.mxu0
      %v5335 = vadd.f32 %v4982, %v5334
      %v5336 = vpop.f32.mrf.mxu0
      %v5337 = vadd.f32 %v4984, %v5336
      %v5338 = vpop.f32.mrf.mxu0
      %v5339 = vadd.f32 %v4986, %v5338
      %5340 = vmatprep.mubr.bf16.mxu0 %v3260
      %5341 = vmatmul.mubr.bf16.gmra.mxu0 %v3259
      %v5342 = vpop.f32.mrf.mxu0
      %v5343 = vadd.f32 %v4990, %v5342
      %v5344 = vpop.f32.mrf.mxu0
      %v5345 = vadd.f32 %v4992, %v5344
      %v5346 = vpop.f32.mrf.mxu0
      %v5347 = vadd.f32 %v4994, %v5346
      %v5348 = vpop.f32.mrf.mxu0
      %v5349 = vadd.f32 %v4996, %v5348
      %5350 = vmatprep.mubr.bf16.mxu0 %v3264
      %5351 = vmatmul.mubr.bf16.gmra.mxu0 %v3263
      %v5352 = vpop.f32.mrf.mxu0
      %v5353 = vadd.f32 %v5000, %v5352
      %v5354 = vpop.f32.mrf.mxu0
      %v5355 = vadd.f32 %v5002, %v5354
      %v5356 = vpop.f32.mrf.mxu0
      %v5357 = vadd.f32 %v5004, %v5356
      %v5358 = vpop.f32.mrf.mxu0
      %v5359 = vadd.f32 %v5006, %v5358
      %5360 = vmatprep.mubr.bf16.mxu0 %v3268
      %5361 = vmatmul.mubr.bf16.gmra.mxu0 %v3267
      %v5362 = vpop.f32.mrf.mxu0
      %v5363 = vadd.f32 %v5010, %v5362
      %v5364 = vpop.f32.mrf.mxu0
      %v5365 = vadd.f32 %v5012, %v5364
      %v5366 = vpop.f32.mrf.mxu0
      %v5367 = vadd.f32 %v5014, %v5366
      %v5368 = vpop.f32.mrf.mxu0
      %v5369 = vadd.f32 %v5016, %v5368
      %5370 = vmatprep.mubr.bf16.mxu0 %v3272
      %5371 = vmatmul.mubr.bf16.gmra.mxu0 %v3271
      %v5372 = vpop.f32.mrf.mxu0
      %v5373 = vadd.f32 %v5020, %v5372
      %v5374 = vpop.f32.mrf.mxu0
      %v5375 = vadd.f32 %v5022, %v5374
      %v5376 = vpop.f32.mrf.mxu0
      %v5377 = vadd.f32 %v5024, %v5376
      %v5378 = vpop.f32.mrf.mxu0
      %v5379 = vadd.f32 %v5026, %v5378
      %5380 = vmatprep.mubr.bf16.mxu0 %v3276
      %5381 = vmatmul.mubr.bf16.gmra.mxu0 %v3275
      %v5382 = vpop.f32.mrf.mxu0
      %v5383 = vadd.f32 %v5030, %v5382
      %v5384 = vpop.f32.mrf.mxu0
      %v5385 = vadd.f32 %v5032, %v5384
      %v5386 = vpop.f32.mrf.mxu0
      %v5387 = vadd.f32 %v5034, %v5386
      %v5388 = vpop.f32.mrf.mxu0
      %v5389 = vadd.f32 %v5036, %v5388
      %5390 = vmatprep.mubr.bf16.mxu0 %v3280
      %5391 = vmatmul.mubr.bf16.gmra.mxu0 %v3279
      %v5392 = vpop.f32.mrf.mxu0
      %v5393 = vadd.f32 %v5040, %v5392
      %v5394 = vpop.f32.mrf.mxu0
      %v5395 = vadd.f32 %v5042, %v5394
      %v5396 = vpop.f32.mrf.mxu0
      %v5397 = vadd.f32 %v5044, %v5396
      %v5398 = vpop.f32.mrf.mxu0
      %v5399 = vadd.f32 %v5046, %v5398
      %5400 = vmatprep.mubr.bf16.mxu0 %v3284
      %5401 = vmatmul.mubr.bf16.gmra.mxu0 %v3283
      %v5402 = vpop.f32.mrf.mxu0
      %v5403 = vadd.f32 %v5050, %v5402
      %v5404 = vpop.f32.mrf.mxu0
      %v5405 = vadd.f32 %v5052, %v5404
      %v5406 = vpop.f32.mrf.mxu0
      %v5407 = vadd.f32 %v5054, %v5406
      %v5408 = vpop.f32.mrf.mxu0
      %v5409 = vadd.f32 %v5056, %v5408
      %5410 = vmatprep.mubr.bf16.mxu0 %v3288
      %5411 = vmatmul.mubr.bf16.gmra.mxu0 %v3287
      %v5412 = vpop.f32.mrf.mxu0
      %v5413 = vadd.f32 %v5060, %v5412
      %v5414 = vpop.f32.mrf.mxu0
      %v5415 = vadd.f32 %v5062, %v5414
      %v5416 = vpop.f32.mrf.mxu0
      %v5417 = vadd.f32 %v5064, %v5416
      %v5418 = vpop.f32.mrf.mxu0
      %v5419 = vadd.f32 %v5066, %v5418
      %5420 = vmatprep.mubr.bf16.mxu0 %v3292
      %5421 = vmatmul.mubr.bf16.gmra.mxu0 %v3291
      %v5422 = vpop.f32.mrf.mxu0
      %v5423 = vadd.f32 %v5070, %v5422
      %v5424 = vpop.f32.mrf.mxu0
      %v5425 = vadd.f32 %v5072, %v5424
      %v5426 = vpop.f32.mrf.mxu0
      %v5427 = vadd.f32 %v5074, %v5426
      %v5428 = vpop.f32.mrf.mxu0
      %v5429 = vadd.f32 %v5076, %v5428
      %5430 = vmatprep.mubr.bf16.mxu0 %v3296
      %5431 = vmatmul.mubr.bf16.gmra.mxu0 %v3295
      %v5432 = vpop.f32.mrf.mxu0
      %v5433 = vadd.f32 %v5080, %v5432
      %v5434 = vpop.f32.mrf.mxu0
      %v5435 = vadd.f32 %v5082, %v5434
      %v5436 = vpop.f32.mrf.mxu0
      %v5437 = vadd.f32 %v5084, %v5436
      %v5438 = vpop.f32.mrf.mxu0
      %v5439 = vadd.f32 %v5086, %v5438
      %5440 = vmatprep.mubr.bf16.mxu0 %v3300
      %5441 = vmatmul.mubr.bf16.gmra.mxu0 %v3299
      %v5442 = vpop.f32.mrf.mxu0
      %v5443 = vadd.f32 %v5090, %v5442
      %v5444 = vpop.f32.mrf.mxu0
      %v5445 = vadd.f32 %v5092, %v5444
      %v5446 = vpop.f32.mrf.mxu0
      %v5447 = vadd.f32 %v5094, %v5446
      %v5448 = vpop.f32.mrf.mxu0
      %v5449 = vadd.f32 %v5096, %v5448
      %5450 = vmatprep.mubr.bf16.mxu0 %v3304
      %5451 = vmatmul.mubr.bf16.gmra.mxu0 %v3303
      %v5452 = vpop.f32.mrf.mxu0
      %v5453 = vadd.f32 %v5100, %v5452
      %v5454 = vpop.f32.mrf.mxu0
      %v5455 = vadd.f32 %v5102, %v5454
      %v5456 = vpop.f32.mrf.mxu0
      %v5457 = vadd.f32 %v5104, %v5456
      %v5458 = vpop.f32.mrf.mxu0
      %v5459 = vadd.f32 %v5106, %v5458
      %5460 = vmatprep.mubr.bf16.mxu0 %v3308
      %5461 = vmatmul.mubr.bf16.gmra.mxu0 %v3307
      %v5462 = vpop.f32.mrf.mxu0
      %v5463 = vadd.f32 %v5110, %v5462
      %v5464 = vpop.f32.mrf.mxu0
      %v5465 = vadd.f32 %v5112, %v5464
      %v5466 = vpop.f32.mrf.mxu0
      %v5467 = vadd.f32 %v5114, %v5466
      %v5468 = vpop.f32.mrf.mxu0
      %v5469 = vadd.f32 %v5116, %v5468
      %5470 = vmatprep.mubr.bf16.mxu0 %v3312
      %5471 = vmatmul.mubr.bf16.gmra.mxu0 %v3311
      %v5472 = vpop.f32.mrf.mxu0
      %v5473 = vadd.f32 %v5120, %v5472
      %v5474 = vpop.f32.mrf.mxu0
      %v5475 = vadd.f32 %v5122, %v5474
      %v5476 = vpop.f32.mrf.mxu0
      %v5477 = vadd.f32 %v5124, %v5476
      %v5478 = vpop.f32.mrf.mxu0
      %v5479 = vadd.f32 %v5126, %v5478
      %5480 = vmatprep.mubr.bf16.mxu0 %v3316
      %5481 = vmatmul.mubr.bf16.gmra.mxu0 %v3315
      %v5482 = vpop.f32.mrf.mxu0
      %v5483 = vadd.f32 %v5130, %v5482
      %v5484 = vpop.f32.mrf.mxu0
      %v5485 = vadd.f32 %v5132, %v5484
      %v5486 = vpop.f32.mrf.mxu0
      %v5487 = vadd.f32 %v5134, %v5486
      %v5488 = vpop.f32.mrf.mxu0
      %v5489 = vadd.f32 %v5136, %v5488
      %5490 = vmatprep.mubr.bf16.mxu0 %v3320
      %5491 = vmatmul.mubr.bf16.gmra.mxu0 %v3319
      %v5492 = vpop.f32.mrf.mxu0
      %v5493 = vadd.f32 %v5140, %v5492
      %v5494 = vpop.f32.mrf.mxu0
      %v5495 = vadd.f32 %v5142, %v5494
      %v5496 = vpop.f32.mrf.mxu0
      %v5497 = vadd.f32 %v5144, %v5496
      %v5498 = vpop.f32.mrf.mxu0
      %v5499 = vadd.f32 %v5146, %v5498
      %5500 = vmatprep.mubr.bf16.mxu0 %v3324
      %5501 = vmatmul.mubr.bf16.gmra.mxu0 %v3323
      %v5502 = vpop.f32.mrf.mxu0
      %v5503 = vadd.f32 %v5150, %v5502
      %v5504 = vpop.f32.mrf.mxu0
      %v5505 = vadd.f32 %v5152, %v5504
      %v5506 = vpop.f32.mrf.mxu0
      %v5507 = vadd.f32 %v5154, %v5506
      %v5508 = vpop.f32.mrf.mxu0
      %v5509 = vadd.f32 %v5156, %v5508
      %5510 = vmatprep.mubr.bf16.mxu0 %v3328
      %5511 = vmatmul.mubr.bf16.gmra.mxu0 %v3327
      %v5512 = vpop.f32.mrf.mxu0
      %v5513 = vadd.f32 %v5160, %v5512
      %v5514 = vpop.f32.mrf.mxu0
      %v5515 = vadd.f32 %v5162, %v5514
      %v5516 = vpop.f32.mrf.mxu0
      %v5517 = vadd.f32 %v5164, %v5516
      %v5518 = vpop.f32.mrf.mxu0
      %v5519 = vadd.f32 %v5166, %v5518
      %5520 = vmatprep.mubr.bf16.mxu0 %v3332
      %5521 = vmatmul.mubr.bf16.gmra.mxu0 %v3331
      %v5522 = vpop.f32.mrf.mxu0
      %v5523 = vadd.f32 %v5170, %v5522
      %v5524 = vpop.f32.mrf.mxu0
      %v5525 = vadd.f32 %v5172, %v5524
      %v5526 = vpop.f32.mrf.mxu0
      %v5527 = vadd.f32 %v5174, %v5526
      %v5528 = vpop.f32.mrf.mxu0
      %v5529 = vadd.f32 %v5176, %v5528
      %5530 = vmatprep.mubr.bf16.mxu0 %v3336
      %5531 = vmatmul.mubr.bf16.gmra.mxu0 %v3335
      %v5532 = vpop.f32.mrf.mxu0
      %v5533 = vadd.f32 %v5180, %v5532
      %v5534 = vpop.f32.mrf.mxu0
      %v5535 = vadd.f32 %v5182, %v5534
      %v5536 = vpop.f32.mrf.mxu0
      %v5537 = vadd.f32 %v5184, %v5536
      %v5538 = vpop.f32.mrf.mxu0
      %v5539 = vadd.f32 %v5186, %v5538
      %5540 = vdwg.mxu0
      %5541 = vmatprep.subr.bf16.mxu0 %v4610
      %5542 = vmatpush1.bf16.msra.mxu0 %v4609
      %5543 = vmatprep.subr.bf16.mxu0 %v4606
      %5544 = vmatpush1.bf16.msra.mxu0 %v4605
      %5545 = vmatprep.subr.bf16.mxu0 %v4602
      %5546 = vmatpush1.bf16.msra.mxu0 %v4601
      %5547 = vmatprep.subr.bf16.mxu0 %v4598
      %5548 = vmatpush1.bf16.msra.mxu0 %v4597
      %5549 = vmatprep.subr.bf16.mxu0 %v4594
      %5550 = vmatpush1.bf16.msra.mxu0 %v4593
      %5551 = vmatprep.subr.bf16.mxu0 %v4590
      %5552 = vmatpush1.bf16.msra.mxu0 %v4589
      %5553 = vmatprep.subr.bf16.mxu0 %v4586
      %5554 = vmatpush1.bf16.msra.mxu0 %v4585
      %5555 = vmatprep.subr.bf16.mxu0 %v4582
      %5556 = vmatpush1.bf16.msra.mxu0 %v4581
      %5557 = vmatprep.subr.bf16.mxu0 %v4642
      %5558 = vmatpush2.bf16.msra.mxu0 %v4641
      %5559 = vmatprep.subr.bf16.mxu0 %v4638
      %5560 = vmatpush2.bf16.msra.mxu0 %v4637
      %5561 = vmatprep.subr.bf16.mxu0 %v4634
      %5562 = vmatpush2.bf16.msra.mxu0 %v4633
      %5563 = vmatprep.subr.bf16.mxu0 %v4630
      %5564 = vmatpush2.bf16.msra.mxu0 %v4629
      %5565 = vmatprep.subr.bf16.mxu0 %v4626
      %5566 = vmatpush2.bf16.msra.mxu0 %v4625
      %5567 = vmatprep.subr.bf16.mxu0 %v4622
      %5568 = vmatpush2.bf16.msra.mxu0 %v4621
      %5569 = vmatprep.subr.bf16.mxu0 %v4618
      %5570 = vmatpush2.bf16.msra.mxu0 %v4617
      %5571 = vmatprep.subr.bf16.mxu0 %v4614
      %5572 = vmatpush2.bf16.msra.mxu0 %v4613
      %5573 = vmatprep.mubr.bf16.mxu0 %v3210
      %5574 = vmatmul.mubr.bf16.gmra.mxu0 %v3209
      %v5575 = vpop.f32.mrf.mxu0
      %v5576 = vadd.f32 %v3877, %v5575
      %v5577 = vpop.f32.mrf.mxu0
      %v5578 = vadd.f32 %v3879, %v5577
      %v5579 = vpop.f32.mrf.mxu0
      %v5580 = vadd.f32 %v3881, %v5579
      %v5581 = vpop.f32.mrf.mxu0
      %v5582 = vadd.f32 %v3883, %v5581
      %5583 = vmatprep.mubr.bf16.mxu0 %v3214
      %5584 = vmatmul.mubr.bf16.gmra.mxu0 %v3213
      %v5585 = vpop.f32.mrf.mxu0
      %v5586 = vadd.f32 %v3887, %v5585
      %v5587 = vpop.f32.mrf.mxu0
      %v5588 = vadd.f32 %v3889, %v5587
      %v5589 = vpop.f32.mrf.mxu0
      %v5590 = vadd.f32 %v3891, %v5589
      %v5591 = vpop.f32.mrf.mxu0
      %v5592 = vadd.f32 %v3893, %v5591
      %5593 = vmatprep.mubr.bf16.mxu0 %v3218
      %5594 = vmatmul.mubr.bf16.gmra.mxu0 %v3217
      %v5595 = vpop.f32.mrf.mxu0
      %v5596 = vadd.f32 %v3897, %v5595
      %v5597 = vpop.f32.mrf.mxu0
      %v5598 = vadd.f32 %v3899, %v5597
      %v5599 = vpop.f32.mrf.mxu0
      %v5600 = vadd.f32 %v3901, %v5599
      %v5601 = vpop.f32.mrf.mxu0
      %v5602 = vadd.f32 %v3903, %v5601
      %5603 = vmatprep.mubr.bf16.mxu0 %v3222
      %5604 = vmatmul.mubr.bf16.gmra.mxu0 %v3221
      %v5605 = vpop.f32.mrf.mxu0
      %v5606 = vadd.f32 %v3907, %v5605
      %v5607 = vpop.f32.mrf.mxu0
      %v5608 = vadd.f32 %v3909, %v5607
      %v5609 = vpop.f32.mrf.mxu0
      %v5610 = vadd.f32 %v3911, %v5609
      %v5611 = vpop.f32.mrf.mxu0
      %v5612 = vadd.f32 %v3913, %v5611
      %5613 = vmatprep.mubr.bf16.mxu0 %v3226
      %5614 = vmatmul.mubr.bf16.gmra.mxu0 %v3225
      %v5615 = vpop.f32.mrf.mxu0
      %v5616 = vadd.f32 %v3917, %v5615
      %v5617 = vpop.f32.mrf.mxu0
      %v5618 = vadd.f32 %v3919, %v5617
      %v5619 = vpop.f32.mrf.mxu0
      %v5620 = vadd.f32 %v3921, %v5619
      %v5621 = vpop.f32.mrf.mxu0
      %v5622 = vadd.f32 %v3923, %v5621
      %5623 = vmatprep.mubr.bf16.mxu0 %v3230
      %5624 = vmatmul.mubr.bf16.gmra.mxu0 %v3229
      %v5625 = vpop.f32.mrf.mxu0
      %v5626 = vadd.f32 %v3927, %v5625
      %v5627 = vpop.f32.mrf.mxu0
      %v5628 = vadd.f32 %v3929, %v5627
      %v5629 = vpop.f32.mrf.mxu0
      %v5630 = vadd.f32 %v3931, %v5629
      %v5631 = vpop.f32.mrf.mxu0
      %v5632 = vadd.f32 %v3933, %v5631
      %5633 = vmatprep.mubr.bf16.mxu0 %v3234
      %5634 = vmatmul.mubr.bf16.gmra.mxu0 %v3233
      %v5635 = vpop.f32.mrf.mxu0
      %v5636 = vadd.f32 %v3937, %v5635
      %v5637 = vpop.f32.mrf.mxu0
      %v5638 = vadd.f32 %v3939, %v5637
      %v5639 = vpop.f32.mrf.mxu0
      %v5640 = vadd.f32 %v3941, %v5639
      %v5641 = vpop.f32.mrf.mxu0
      %v5642 = vadd.f32 %v3943, %v5641
      %5643 = vmatprep.mubr.bf16.mxu0 %v3238
      %5644 = vmatmul.mubr.bf16.gmra.mxu0 %v3237
      %v5645 = vpop.f32.mrf.mxu0
      %v5646 = vadd.f32 %v3947, %v5645
      %v5647 = vpop.f32.mrf.mxu0
      %v5648 = vadd.f32 %v3949, %v5647
      %v5649 = vpop.f32.mrf.mxu0
      %v5650 = vadd.f32 %v3951, %v5649
      %v5651 = vpop.f32.mrf.mxu0
      %v5652 = vadd.f32 %v3953, %v5651
      %5653 = vmatprep.mubr.bf16.mxu0 %v3242
      %5654 = vmatmul.mubr.bf16.gmra.mxu0 %v3241
      %v5655 = vpop.f32.mrf.mxu0
      %v5656 = vadd.f32 %v3957, %v5655
      %v5657 = vpop.f32.mrf.mxu0
      %v5658 = vadd.f32 %v3959, %v5657
      %v5659 = vpop.f32.mrf.mxu0
      %v5660 = vadd.f32 %v3961, %v5659
      %v5661 = vpop.f32.mrf.mxu0
      %v5662 = vadd.f32 %v3963, %v5661
      %5663 = vmatprep.mubr.bf16.mxu0 %v3246
      %5664 = vmatmul.mubr.bf16.gmra.mxu0 %v3245
      %v5665 = vpop.f32.mrf.mxu0
      %v5666 = vadd.f32 %v3967, %v5665
      %v5667 = vpop.f32.mrf.mxu0
      %v5668 = vadd.f32 %v3969, %v5667
      %v5669 = vpop.f32.mrf.mxu0
      %v5670 = vadd.f32 %v3971, %v5669
      %v5671 = vpop.f32.mrf.mxu0
      %v5672 = vadd.f32 %v3973, %v5671
      %5673 = vmatprep.mubr.bf16.mxu0 %v3250
      %5674 = vmatmul.mubr.bf16.gmra.mxu0 %v3249
      %v5675 = vpop.f32.mrf.mxu0
      %v5676 = vadd.f32 %v3977, %v5675
      %v5677 = vpop.f32.mrf.mxu0
      %v5678 = vadd.f32 %v3979, %v5677
      %v5679 = vpop.f32.mrf.mxu0
      %v5680 = vadd.f32 %v3981, %v5679
      %v5681 = vpop.f32.mrf.mxu0
      %v5682 = vadd.f32 %v3983, %v5681
      %5683 = vmatprep.mubr.bf16.mxu0 %v3254
      %5684 = vmatmul.mubr.bf16.gmra.mxu0 %v3253
      %v5685 = vpop.f32.mrf.mxu0
      %v5686 = vadd.f32 %v3987, %v5685
      %v5687 = vpop.f32.mrf.mxu0
      %v5688 = vadd.f32 %v3989, %v5687
      %v5689 = vpop.f32.mrf.mxu0
      %v5690 = vadd.f32 %v3991, %v5689
      %v5691 = vpop.f32.mrf.mxu0
      %v5692 = vadd.f32 %v3993, %v5691
      %5693 = vmatprep.mubr.bf16.mxu0 %v3258
      %5694 = vmatmul.mubr.bf16.gmra.mxu0 %v3257
      %v5695 = vpop.f32.mrf.mxu0
      %v5696 = vadd.f32 %v3997, %v5695
      %v5697 = vpop.f32.mrf.mxu0
      %v5698 = vadd.f32 %v3999, %v5697
      %v5699 = vpop.f32.mrf.mxu0
      %v5700 = vadd.f32 %v4001, %v5699
      %v5701 = vpop.f32.mrf.mxu0
      %v5702 = vadd.f32 %v4003, %v5701
      %5703 = vmatprep.mubr.bf16.mxu0 %v3262
      %5704 = vmatmul.mubr.bf16.gmra.mxu0 %v3261
      %v5705 = vpop.f32.mrf.mxu0
      %v5706 = vadd.f32 %v4007, %v5705
      %v5707 = vpop.f32.mrf.mxu0
      %v5708 = vadd.f32 %v4009, %v5707
      %v5709 = vpop.f32.mrf.mxu0
      %v5710 = vadd.f32 %v4011, %v5709
      %v5711 = vpop.f32.mrf.mxu0
      %v5712 = vadd.f32 %v4013, %v5711
      %5713 = vmatprep.mubr.bf16.mxu0 %v3266
      %5714 = vmatmul.mubr.bf16.gmra.mxu0 %v3265
      %v5715 = vpop.f32.mrf.mxu0
      %v5716 = vadd.f32 %v4017, %v5715
      %v5717 = vpop.f32.mrf.mxu0
      %v5718 = vadd.f32 %v4019, %v5717
      %v5719 = vpop.f32.mrf.mxu0
      %v5720 = vadd.f32 %v4021, %v5719
      %v5721 = vpop.f32.mrf.mxu0
      %v5722 = vadd.f32 %v4023, %v5721
      %5723 = vmatprep.mubr.bf16.mxu0 %v3270
      %5724 = vmatmul.mubr.bf16.gmra.mxu0 %v3269
      %v5725 = vpop.f32.mrf.mxu0
      %v5726 = vadd.f32 %v4027, %v5725
      %v5727 = vpop.f32.mrf.mxu0
      %v5728 = vadd.f32 %v4029, %v5727
      %v5729 = vpop.f32.mrf.mxu0
      %v5730 = vadd.f32 %v4031, %v5729
      %v5731 = vpop.f32.mrf.mxu0
      %v5732 = vadd.f32 %v4033, %v5731
      %5733 = vmatprep.mubr.bf16.mxu0 %v3274
      %5734 = vmatmul.mubr.bf16.gmra.mxu0 %v3273
      %v5735 = vpop.f32.mrf.mxu0
      %v5736 = vadd.f32 %v4037, %v5735
      %v5737 = vpop.f32.mrf.mxu0
      %v5738 = vadd.f32 %v4039, %v5737
      %v5739 = vpop.f32.mrf.mxu0
      %v5740 = vadd.f32 %v4041, %v5739
      %v5741 = vpop.f32.mrf.mxu0
      %v5742 = vadd.f32 %v4043, %v5741
      %5743 = vmatprep.mubr.bf16.mxu0 %v3278
      %5744 = vmatmul.mubr.bf16.gmra.mxu0 %v3277
      %v5745 = vpop.f32.mrf.mxu0
      %v5746 = vadd.f32 %v4047, %v5745
      %v5747 = vpop.f32.mrf.mxu0
      %v5748 = vadd.f32 %v4049, %v5747
      %v5749 = vpop.f32.mrf.mxu0
      %v5750 = vadd.f32 %v4051, %v5749
      %v5751 = vpop.f32.mrf.mxu0
      %v5752 = vadd.f32 %v4053, %v5751
      %5753 = vmatprep.mubr.bf16.mxu0 %v3282
      %5754 = vmatmul.mubr.bf16.gmra.mxu0 %v3281
      %v5755 = vpop.f32.mrf.mxu0
      %v5756 = vadd.f32 %v4057, %v5755
      %v5757 = vpop.f32.mrf.mxu0
      %v5758 = vadd.f32 %v4059, %v5757
      %v5759 = vpop.f32.mrf.mxu0
      %v5760 = vadd.f32 %v4061, %v5759
      %v5761 = vpop.f32.mrf.mxu0
      %v5762 = vadd.f32 %v4063, %v5761
      %5763 = vmatprep.mubr.bf16.mxu0 %v3286
      %5764 = vmatmul.mubr.bf16.gmra.mxu0 %v3285
      %v5765 = vpop.f32.mrf.mxu0
      %v5766 = vadd.f32 %v4067, %v5765
      %v5767 = vpop.f32.mrf.mxu0
      %v5768 = vadd.f32 %v4069, %v5767
      %v5769 = vpop.f32.mrf.mxu0
      %v5770 = vadd.f32 %v4071, %v5769
      %v5771 = vpop.f32.mrf.mxu0
      %v5772 = vadd.f32 %v4073, %v5771
      %5773 = vmatprep.mubr.bf16.mxu0 %v3290
      %5774 = vmatmul.mubr.bf16.gmra.mxu0 %v3289
      %v5775 = vpop.f32.mrf.mxu0
      %v5776 = vadd.f32 %v4077, %v5775
      %v5777 = vpop.f32.mrf.mxu0
      %v5778 = vadd.f32 %v4079, %v5777
      %v5779 = vpop.f32.mrf.mxu0
      %v5780 = vadd.f32 %v4081, %v5779
      %v5781 = vpop.f32.mrf.mxu0
      %v5782 = vadd.f32 %v4083, %v5781
      %5783 = vmatprep.mubr.bf16.mxu0 %v3294
      %5784 = vmatmul.mubr.bf16.gmra.mxu0 %v3293
      %v5785 = vpop.f32.mrf.mxu0
      %v5786 = vadd.f32 %v4087, %v5785
      %v5787 = vpop.f32.mrf.mxu0
      %v5788 = vadd.f32 %v4089, %v5787
      %v5789 = vpop.f32.mrf.mxu0
      %v5790 = vadd.f32 %v4091, %v5789
      %v5791 = vpop.f32.mrf.mxu0
      %v5792 = vadd.f32 %v4093, %v5791
      %5793 = vmatprep.mubr.bf16.mxu0 %v3298
      %5794 = vmatmul.mubr.bf16.gmra.mxu0 %v3297
      %v5795 = vpop.f32.mrf.mxu0
      %v5796 = vadd.f32 %v4097, %v5795
      %v5797 = vpop.f32.mrf.mxu0
      %v5798 = vadd.f32 %v4099, %v5797
      %v5799 = vpop.f32.mrf.mxu0
      %v5800 = vadd.f32 %v4101, %v5799
      %v5801 = vpop.f32.mrf.mxu0
      %v5802 = vadd.f32 %v4103, %v5801
      %5803 = vmatprep.mubr.bf16.mxu0 %v3302
      %5804 = vmatmul.mubr.bf16.gmra.mxu0 %v3301
      %v5805 = vpop.f32.mrf.mxu0
      %v5806 = vadd.f32 %v4107, %v5805
      %v5807 = vpop.f32.mrf.mxu0
      %v5808 = vadd.f32 %v4109, %v5807
      %v5809 = vpop.f32.mrf.mxu0
      %v5810 = vadd.f32 %v4111, %v5809
      %v5811 = vpop.f32.mrf.mxu0
      %v5812 = vadd.f32 %v4113, %v5811
      %5813 = vmatprep.mubr.bf16.mxu0 %v3306
      %5814 = vmatmul.mubr.bf16.gmra.mxu0 %v3305
      %v5815 = vpop.f32.mrf.mxu0
      %v5816 = vadd.f32 %v4117, %v5815
      %v5817 = vpop.f32.mrf.mxu0
      %v5818 = vadd.f32 %v4119, %v5817
      %v5819 = vpop.f32.mrf.mxu0
      %v5820 = vadd.f32 %v4121, %v5819
      %v5821 = vpop.f32.mrf.mxu0
      %v5822 = vadd.f32 %v4123, %v5821
      %5823 = vmatprep.mubr.bf16.mxu0 %v3310
      %5824 = vmatmul.mubr.bf16.gmra.mxu0 %v3309
      %v5825 = vpop.f32.mrf.mxu0
      %v5826 = vadd.f32 %v4127, %v5825
      %v5827 = vpop.f32.mrf.mxu0
      %v5828 = vadd.f32 %v4129, %v5827
      %v5829 = vpop.f32.mrf.mxu0
      %v5830 = vadd.f32 %v4131, %v5829
      %v5831 = vpop.f32.mrf.mxu0
      %v5832 = vadd.f32 %v4133, %v5831
      %5833 = vmatprep.mubr.bf16.mxu0 %v3314
      %5834 = vmatmul.mubr.bf16.gmra.mxu0 %v3313
      %v5835 = vpop.f32.mrf.mxu0
      %v5836 = vadd.f32 %v4137, %v5835
      %v5837 = vpop.f32.mrf.mxu0
      %v5838 = vadd.f32 %v4139, %v5837
      %v5839 = vpop.f32.mrf.mxu0
      %v5840 = vadd.f32 %v4141, %v5839
      %v5841 = vpop.f32.mrf.mxu0
      %v5842 = vadd.f32 %v4143, %v5841
      %5843 = vmatprep.mubr.bf16.mxu0 %v3318
      %5844 = vmatmul.mubr.bf16.gmra.mxu0 %v3317
      %v5845 = vpop.f32.mrf.mxu0
      %v5846 = vadd.f32 %v4147, %v5845
      %v5847 = vpop.f32.mrf.mxu0
      %v5848 = vadd.f32 %v4149, %v5847
      %v5849 = vpop.f32.mrf.mxu0
      %v5850 = vadd.f32 %v4151, %v5849
      %v5851 = vpop.f32.mrf.mxu0
      %v5852 = vadd.f32 %v4153, %v5851
      %5853 = vmatprep.mubr.bf16.mxu0 %v3322
      %5854 = vmatmul.mubr.bf16.gmra.mxu0 %v3321
      %v5855 = vpop.f32.mrf.mxu0
      %v5856 = vadd.f32 %v4157, %v5855
      %v5857 = vpop.f32.mrf.mxu0
      %v5858 = vadd.f32 %v4159, %v5857
      %v5859 = vpop.f32.mrf.mxu0
      %v5860 = vadd.f32 %v4161, %v5859
      %v5861 = vpop.f32.mrf.mxu0
      %v5862 = vadd.f32 %v4163, %v5861
      %5863 = vmatprep.mubr.bf16.mxu0 %v3326
      %5864 = vmatmul.mubr.bf16.gmra.mxu0 %v3325
      %v5865 = vpop.f32.mrf.mxu0
      %v5866 = vadd.f32 %v4167, %v5865
      %v5867 = vpop.f32.mrf.mxu0
      %v5868 = vadd.f32 %v4169, %v5867
      %v5869 = vpop.f32.mrf.mxu0
      %v5870 = vadd.f32 %v4171, %v5869
      %v5871 = vpop.f32.mrf.mxu0
      %v5872 = vadd.f32 %v4173, %v5871
      %5873 = vmatprep.mubr.bf16.mxu0 %v3330
      %5874 = vmatmul.mubr.bf16.gmra.mxu0 %v3329
      %v5875 = vpop.f32.mrf.mxu0
      %v5876 = vadd.f32 %v4177, %v5875
      %v5877 = vpop.f32.mrf.mxu0
      %v5878 = vadd.f32 %v4179, %v5877
      %v5879 = vpop.f32.mrf.mxu0
      %v5880 = vadd.f32 %v4181, %v5879
      %v5881 = vpop.f32.mrf.mxu0
      %v5882 = vadd.f32 %v4183, %v5881
      %5883 = vmatprep.mubr.bf16.mxu0 %v3334
      %5884 = vmatmul.mubr.bf16.gmra.mxu0 %v3333
      %v5885 = vpop.f32.mrf.mxu0
      %v5886 = vadd.f32 %v4187, %v5885
      %v5887 = vpop.f32.mrf.mxu0
      %v5888 = vadd.f32 %v4189, %v5887
      %v5889 = vpop.f32.mrf.mxu0
      %v5890 = vadd.f32 %v4191, %v5889
      %v5891 = vpop.f32.mrf.mxu0
      %v5892 = vadd.f32 %v4193, %v5891
      %5893 = vdwg.mxu0
      %5894 = vmatprep.subr.bf16.mxu0 %v4674
      %5895 = vmatpush1.bf16.msra.mxu0 %v4673
      %5896 = vmatprep.subr.bf16.mxu0 %v4670
      %5897 = vmatpush1.bf16.msra.mxu0 %v4669
      %5898 = vmatprep.subr.bf16.mxu0 %v4666
      %5899 = vmatpush1.bf16.msra.mxu0 %v4665
      %5900 = vmatprep.subr.bf16.mxu0 %v4662
      %5901 = vmatpush1.bf16.msra.mxu0 %v4661
      %5902 = vmatprep.subr.bf16.mxu0 %v4658
      %5903 = vmatpush1.bf16.msra.mxu0 %v4657
      %5904 = vmatprep.subr.bf16.mxu0 %v4654
      %5905 = vmatpush1.bf16.msra.mxu0 %v4653
      %5906 = vmatprep.subr.bf16.mxu0 %v4650
      %5907 = vmatpush1.bf16.msra.mxu0 %v4649
      %5908 = vmatprep.subr.bf16.mxu0 %v4646
      %5909 = vmatpush1.bf16.msra.mxu0 %v4645
      %5910 = vmatprep.subr.bf16.mxu0 %v4706
      %5911 = vmatpush2.bf16.msra.mxu0 %v4705
      %5912 = vmatprep.subr.bf16.mxu0 %v4702
      %5913 = vmatpush2.bf16.msra.mxu0 %v4701
      %5914 = vmatprep.subr.bf16.mxu0 %v4698
      %5915 = vmatpush2.bf16.msra.mxu0 %v4697
      %5916 = vmatprep.subr.bf16.mxu0 %v4694
      %5917 = vmatpush2.bf16.msra.mxu0 %v4693
      %5918 = vmatprep.subr.bf16.mxu0 %v4690
      %5919 = vmatpush2.bf16.msra.mxu0 %v4689
      %5920 = vmatprep.subr.bf16.mxu0 %v4686
      %5921 = vmatpush2.bf16.msra.mxu0 %v4685
      %5922 = vmatprep.subr.bf16.mxu0 %v4682
      %5923 = vmatpush2.bf16.msra.mxu0 %v4681
      %5924 = vmatprep.subr.bf16.mxu0 %v4678
      %5925 = vmatpush2.bf16.msra.mxu0 %v4677
      %5926 = vmatprep.mubr.bf16.mxu0 %v3212
      %5927 = vmatmul.mubr.bf16.gmra.mxu0 %v3211
      %v5928 = vpop.f32.mrf.mxu0
      %v5929 = vadd.f32 %v5576, %v5928
      %v5930 = vpop.f32.mrf.mxu0
      %v5931 = vadd.f32 %v5578, %v5930
      %v5932 = vpop.f32.mrf.mxu0
      %v5933 = vadd.f32 %v5580, %v5932
      %v5934 = vpop.f32.mrf.mxu0
      %v5935 = vadd.f32 %v5582, %v5934
      %5936 = vmatprep.mubr.bf16.mxu0 %v3216
      %5937 = vmatmul.mubr.bf16.gmra.mxu0 %v3215
      %v5938 = vpop.f32.mrf.mxu0
      %v5939 = vadd.f32 %v5586, %v5938
      %v5940 = vpop.f32.mrf.mxu0
      %v5941 = vadd.f32 %v5588, %v5940
      %v5942 = vpop.f32.mrf.mxu0
      %v5943 = vadd.f32 %v5590, %v5942
      %v5944 = vpop.f32.mrf.mxu0
      %v5945 = vadd.f32 %v5592, %v5944
      %5946 = vmatprep.mubr.bf16.mxu0 %v3220
      %5947 = vmatmul.mubr.bf16.gmra.mxu0 %v3219
      %v5948 = vpop.f32.mrf.mxu0
      %v5949 = vadd.f32 %v5596, %v5948
      %v5950 = vpop.f32.mrf.mxu0
      %v5951 = vadd.f32 %v5598, %v5950
      %v5952 = vpop.f32.mrf.mxu0
      %v5953 = vadd.f32 %v5600, %v5952
      %v5954 = vpop.f32.mrf.mxu0
      %v5955 = vadd.f32 %v5602, %v5954
      %5956 = vmatprep.mubr.bf16.mxu0 %v3224
      %5957 = vmatmul.mubr.bf16.gmra.mxu0 %v3223
      %v5958 = vpop.f32.mrf.mxu0
      %v5959 = vadd.f32 %v5606, %v5958
      %v5960 = vpop.f32.mrf.mxu0
      %v5961 = vadd.f32 %v5608, %v5960
      %v5962 = vpop.f32.mrf.mxu0
      %v5963 = vadd.f32 %v5610, %v5962
      %v5964 = vpop.f32.mrf.mxu0
      %v5965 = vadd.f32 %v5612, %v5964
      %5966 = vmatprep.mubr.bf16.mxu0 %v3228
      %5967 = vmatmul.mubr.bf16.gmra.mxu0 %v3227
      %v5968 = vpop.f32.mrf.mxu0
      %v5969 = vadd.f32 %v5616, %v5968
      %v5970 = vpop.f32.mrf.mxu0
      %v5971 = vadd.f32 %v5618, %v5970
      %v5972 = vpop.f32.mrf.mxu0
      %v5973 = vadd.f32 %v5620, %v5972
      %v5974 = vpop.f32.mrf.mxu0
      %v5975 = vadd.f32 %v5622, %v5974
      %5976 = vmatprep.mubr.bf16.mxu0 %v3232
      %5977 = vmatmul.mubr.bf16.gmra.mxu0 %v3231
      %v5978 = vpop.f32.mrf.mxu0
      %v5979 = vadd.f32 %v5626, %v5978
      %v5980 = vpop.f32.mrf.mxu0
      %v5981 = vadd.f32 %v5628, %v5980
      %v5982 = vpop.f32.mrf.mxu0
      %v5983 = vadd.f32 %v5630, %v5982
      %v5984 = vpop.f32.mrf.mxu0
      %v5985 = vadd.f32 %v5632, %v5984
      %5986 = vmatprep.mubr.bf16.mxu0 %v3236
      %5987 = vmatmul.mubr.bf16.gmra.mxu0 %v3235
      %v5988 = vpop.f32.mrf.mxu0
      %v5989 = vadd.f32 %v5636, %v5988
      %v5990 = vpop.f32.mrf.mxu0
      %v5991 = vadd.f32 %v5638, %v5990
      %v5992 = vpop.f32.mrf.mxu0
      %v5993 = vadd.f32 %v5640, %v5992
      %v5994 = vpop.f32.mrf.mxu0
      %v5995 = vadd.f32 %v5642, %v5994
      %5996 = vmatprep.mubr.bf16.mxu0 %v3240
      %5997 = vmatmul.mubr.bf16.gmra.mxu0 %v3239
      %v5998 = vpop.f32.mrf.mxu0
      %v5999 = vadd.f32 %v5646, %v5998
      %v6000 = vpop.f32.mrf.mxu0
      %v6001 = vadd.f32 %v5648, %v6000
      %v6002 = vpop.f32.mrf.mxu0
      %v6003 = vadd.f32 %v5650, %v6002
      %v6004 = vpop.f32.mrf.mxu0
      %v6005 = vadd.f32 %v5652, %v6004
      %6006 = vmatprep.mubr.bf16.mxu0 %v3244
      %6007 = vmatmul.mubr.bf16.gmra.mxu0 %v3243
      %v6008 = vpop.f32.mrf.mxu0
      %v6009 = vadd.f32 %v5656, %v6008
      %v6010 = vpop.f32.mrf.mxu0
      %v6011 = vadd.f32 %v5658, %v6010
      %v6012 = vpop.f32.mrf.mxu0
      %v6013 = vadd.f32 %v5660, %v6012
      %v6014 = vpop.f32.mrf.mxu0
      %v6015 = vadd.f32 %v5662, %v6014
      %6016 = vmatprep.mubr.bf16.mxu0 %v3248
      %6017 = vmatmul.mubr.bf16.gmra.mxu0 %v3247
      %v6018 = vpop.f32.mrf.mxu0
      %v6019 = vadd.f32 %v5666, %v6018
      %v6020 = vpop.f32.mrf.mxu0
      %v6021 = vadd.f32 %v5668, %v6020
      %v6022 = vpop.f32.mrf.mxu0
      %v6023 = vadd.f32 %v5670, %v6022
      %v6024 = vpop.f32.mrf.mxu0
      %v6025 = vadd.f32 %v5672, %v6024
      %6026 = vmatprep.mubr.bf16.mxu0 %v3252
      %6027 = vmatmul.mubr.bf16.gmra.mxu0 %v3251
      %v6028 = vpop.f32.mrf.mxu0
      %v6029 = vadd.f32 %v5676, %v6028
      %v6030 = vpop.f32.mrf.mxu0
      %v6031 = vadd.f32 %v5678, %v6030
      %v6032 = vpop.f32.mrf.mxu0
      %v6033 = vadd.f32 %v5680, %v6032
      %v6034 = vpop.f32.mrf.mxu0
      %v6035 = vadd.f32 %v5682, %v6034
      %6036 = vmatprep.mubr.bf16.mxu0 %v3256
      %6037 = vmatmul.mubr.bf16.gmra.mxu0 %v3255
      %v6038 = vpop.f32.mrf.mxu0
      %v6039 = vadd.f32 %v5686, %v6038
      %v6040 = vpop.f32.mrf.mxu0
      %v6041 = vadd.f32 %v5688, %v6040
      %v6042 = vpop.f32.mrf.mxu0
      %v6043 = vadd.f32 %v5690, %v6042
      %v6044 = vpop.f32.mrf.mxu0
      %v6045 = vadd.f32 %v5692, %v6044
      %6046 = vmatprep.mubr.bf16.mxu0 %v3260
      %6047 = vmatmul.mubr.bf16.gmra.mxu0 %v3259
      %v6048 = vpop.f32.mrf.mxu0
      %v6049 = vadd.f32 %v5696, %v6048
      %v6050 = vpop.f32.mrf.mxu0
      %v6051 = vadd.f32 %v5698, %v6050
      %v6052 = vpop.f32.mrf.mxu0
      %v6053 = vadd.f32 %v5700, %v6052
      %v6054 = vpop.f32.mrf.mxu0
      %v6055 = vadd.f32 %v5702, %v6054
      %6056 = vmatprep.mubr.bf16.mxu0 %v3264
      %6057 = vmatmul.mubr.bf16.gmra.mxu0 %v3263
      %v6058 = vpop.f32.mrf.mxu0
      %v6059 = vadd.f32 %v5706, %v6058
      %v6060 = vpop.f32.mrf.mxu0
      %v6061 = vadd.f32 %v5708, %v6060
      %v6062 = vpop.f32.mrf.mxu0
      %v6063 = vadd.f32 %v5710, %v6062
      %v6064 = vpop.f32.mrf.mxu0
      %v6065 = vadd.f32 %v5712, %v6064
      %6066 = vmatprep.mubr.bf16.mxu0 %v3268
      %6067 = vmatmul.mubr.bf16.gmra.mxu0 %v3267
      %v6068 = vpop.f32.mrf.mxu0
      %v6069 = vadd.f32 %v5716, %v6068
      %v6070 = vpop.f32.mrf.mxu0
      %v6071 = vadd.f32 %v5718, %v6070
      %v6072 = vpop.f32.mrf.mxu0
      %v6073 = vadd.f32 %v5720, %v6072
      %v6074 = vpop.f32.mrf.mxu0
      %v6075 = vadd.f32 %v5722, %v6074
      %6076 = vmatprep.mubr.bf16.mxu0 %v3272
      %6077 = vmatmul.mubr.bf16.gmra.mxu0 %v3271
      %v6078 = vpop.f32.mrf.mxu0
      %v6079 = vadd.f32 %v5726, %v6078
      %v6080 = vpop.f32.mrf.mxu0
      %v6081 = vadd.f32 %v5728, %v6080
      %v6082 = vpop.f32.mrf.mxu0
      %v6083 = vadd.f32 %v5730, %v6082
      %v6084 = vpop.f32.mrf.mxu0
      %v6085 = vadd.f32 %v5732, %v6084
      %6086 = vmatprep.mubr.bf16.mxu0 %v3276
      %6087 = vmatmul.mubr.bf16.gmra.mxu0 %v3275
      %v6088 = vpop.f32.mrf.mxu0
      %v6089 = vadd.f32 %v5736, %v6088
      %v6090 = vpop.f32.mrf.mxu0
      %v6091 = vadd.f32 %v5738, %v6090
      %v6092 = vpop.f32.mrf.mxu0
      %v6093 = vadd.f32 %v5740, %v6092
      %v6094 = vpop.f32.mrf.mxu0
      %v6095 = vadd.f32 %v5742, %v6094
      %6096 = vmatprep.mubr.bf16.mxu0 %v3280
      %6097 = vmatmul.mubr.bf16.gmra.mxu0 %v3279
      %v6098 = vpop.f32.mrf.mxu0
      %v6099 = vadd.f32 %v5746, %v6098
      %v6100 = vpop.f32.mrf.mxu0
      %v6101 = vadd.f32 %v5748, %v6100
      %v6102 = vpop.f32.mrf.mxu0
      %v6103 = vadd.f32 %v5750, %v6102
      %v6104 = vpop.f32.mrf.mxu0
      %v6105 = vadd.f32 %v5752, %v6104
      %6106 = vmatprep.mubr.bf16.mxu0 %v3284
      %6107 = vmatmul.mubr.bf16.gmra.mxu0 %v3283
      %v6108 = vpop.f32.mrf.mxu0
      %v6109 = vadd.f32 %v5756, %v6108
      %v6110 = vpop.f32.mrf.mxu0
      %v6111 = vadd.f32 %v5758, %v6110
      %v6112 = vpop.f32.mrf.mxu0
      %v6113 = vadd.f32 %v5760, %v6112
      %v6114 = vpop.f32.mrf.mxu0
      %v6115 = vadd.f32 %v5762, %v6114
      %6116 = vmatprep.mubr.bf16.mxu0 %v3288
      %6117 = vmatmul.mubr.bf16.gmra.mxu0 %v3287
      %v6118 = vpop.f32.mrf.mxu0
      %v6119 = vadd.f32 %v5766, %v6118
      %v6120 = vpop.f32.mrf.mxu0
      %v6121 = vadd.f32 %v5768, %v6120
      %v6122 = vpop.f32.mrf.mxu0
      %v6123 = vadd.f32 %v5770, %v6122
      %v6124 = vpop.f32.mrf.mxu0
      %v6125 = vadd.f32 %v5772, %v6124
      %6126 = vmatprep.mubr.bf16.mxu0 %v3292
      %6127 = vmatmul.mubr.bf16.gmra.mxu0 %v3291
      %v6128 = vpop.f32.mrf.mxu0
      %v6129 = vadd.f32 %v5776, %v6128
      %v6130 = vpop.f32.mrf.mxu0
      %v6131 = vadd.f32 %v5778, %v6130
      %v6132 = vpop.f32.mrf.mxu0
      %v6133 = vadd.f32 %v5780, %v6132
      %v6134 = vpop.f32.mrf.mxu0
      %v6135 = vadd.f32 %v5782, %v6134
      %6136 = vmatprep.mubr.bf16.mxu0 %v3296
      %6137 = vmatmul.mubr.bf16.gmra.mxu0 %v3295
      %v6138 = vpop.f32.mrf.mxu0
      %v6139 = vadd.f32 %v5786, %v6138
      %v6140 = vpop.f32.mrf.mxu0
      %v6141 = vadd.f32 %v5788, %v6140
      %v6142 = vpop.f32.mrf.mxu0
      %v6143 = vadd.f32 %v5790, %v6142
      %v6144 = vpop.f32.mrf.mxu0
      %v6145 = vadd.f32 %v5792, %v6144
      %6146 = vmatprep.mubr.bf16.mxu0 %v3300
      %6147 = vmatmul.mubr.bf16.gmra.mxu0 %v3299
      %v6148 = vpop.f32.mrf.mxu0
      %v6149 = vadd.f32 %v5796, %v6148
      %v6150 = vpop.f32.mrf.mxu0
      %v6151 = vadd.f32 %v5798, %v6150
      %v6152 = vpop.f32.mrf.mxu0
      %v6153 = vadd.f32 %v5800, %v6152
      %v6154 = vpop.f32.mrf.mxu0
      %v6155 = vadd.f32 %v5802, %v6154
      %6156 = vmatprep.mubr.bf16.mxu0 %v3304
      %6157 = vmatmul.mubr.bf16.gmra.mxu0 %v3303
      %v6158 = vpop.f32.mrf.mxu0
      %v6159 = vadd.f32 %v5806, %v6158
      %v6160 = vpop.f32.mrf.mxu0
      %v6161 = vadd.f32 %v5808, %v6160
      %v6162 = vpop.f32.mrf.mxu0
      %v6163 = vadd.f32 %v5810, %v6162
      %v6164 = vpop.f32.mrf.mxu0
      %v6165 = vadd.f32 %v5812, %v6164
      %6166 = vmatprep.mubr.bf16.mxu0 %v3308
      %6167 = vmatmul.mubr.bf16.gmra.mxu0 %v3307
      %v6168 = vpop.f32.mrf.mxu0
      %v6169 = vadd.f32 %v5816, %v6168
      %v6170 = vpop.f32.mrf.mxu0
      %v6171 = vadd.f32 %v5818, %v6170
      %v6172 = vpop.f32.mrf.mxu0
      %v6173 = vadd.f32 %v5820, %v6172
      %v6174 = vpop.f32.mrf.mxu0
      %v6175 = vadd.f32 %v5822, %v6174
      %6176 = vmatprep.mubr.bf16.mxu0 %v3312
      %6177 = vmatmul.mubr.bf16.gmra.mxu0 %v3311
      %v6178 = vpop.f32.mrf.mxu0
      %v6179 = vadd.f32 %v5826, %v6178
      %v6180 = vpop.f32.mrf.mxu0
      %v6181 = vadd.f32 %v5828, %v6180
      %v6182 = vpop.f32.mrf.mxu0
      %v6183 = vadd.f32 %v5830, %v6182
      %v6184 = vpop.f32.mrf.mxu0
      %v6185 = vadd.f32 %v5832, %v6184
      %6186 = vmatprep.mubr.bf16.mxu0 %v3316
      %6187 = vmatmul.mubr.bf16.gmra.mxu0 %v3315
      %v6188 = vpop.f32.mrf.mxu0
      %v6189 = vadd.f32 %v5836, %v6188
      %v6190 = vpop.f32.mrf.mxu0
      %v6191 = vadd.f32 %v5838, %v6190
      %v6192 = vpop.f32.mrf.mxu0
      %v6193 = vadd.f32 %v5840, %v6192
      %v6194 = vpop.f32.mrf.mxu0
      %v6195 = vadd.f32 %v5842, %v6194
      %6196 = vmatprep.mubr.bf16.mxu0 %v3320
      %6197 = vmatmul.mubr.bf16.gmra.mxu0 %v3319
      %v6198 = vpop.f32.mrf.mxu0
      %v6199 = vadd.f32 %v5846, %v6198
      %v6200 = vpop.f32.mrf.mxu0
      %v6201 = vadd.f32 %v5848, %v6200
      %v6202 = vpop.f32.mrf.mxu0
      %v6203 = vadd.f32 %v5850, %v6202
      %v6204 = vpop.f32.mrf.mxu0
      %v6205 = vadd.f32 %v5852, %v6204
      %6206 = vmatprep.mubr.bf16.mxu0 %v3324
      %6207 = vmatmul.mubr.bf16.gmra.mxu0 %v3323
      %v6208 = vpop.f32.mrf.mxu0
      %v6209 = vadd.f32 %v5856, %v6208
      %v6210 = vpop.f32.mrf.mxu0
      %v6211 = vadd.f32 %v5858, %v6210
      %v6212 = vpop.f32.mrf.mxu0
      %v6213 = vadd.f32 %v5860, %v6212
      %v6214 = vpop.f32.mrf.mxu0
      %v6215 = vadd.f32 %v5862, %v6214
      %6216 = vmatprep.mubr.bf16.mxu0 %v3328
      %6217 = vmatmul.mubr.bf16.gmra.mxu0 %v3327
      %v6218 = vpop.f32.mrf.mxu0
      %v6219 = vadd.f32 %v5866, %v6218
      %v6220 = vpop.f32.mrf.mxu0
      %v6221 = vadd.f32 %v5868, %v6220
      %v6222 = vpop.f32.mrf.mxu0
      %v6223 = vadd.f32 %v5870, %v6222
      %v6224 = vpop.f32.mrf.mxu0
      %v6225 = vadd.f32 %v5872, %v6224
      %6226 = vmatprep.mubr.bf16.mxu0 %v3332
      %6227 = vmatmul.mubr.bf16.gmra.mxu0 %v3331
      %v6228 = vpop.f32.mrf.mxu0
      %v6229 = vadd.f32 %v5876, %v6228
      %v6230 = vpop.f32.mrf.mxu0
      %v6231 = vadd.f32 %v5878, %v6230
      %v6232 = vpop.f32.mrf.mxu0
      %v6233 = vadd.f32 %v5880, %v6232
      %v6234 = vpop.f32.mrf.mxu0
      %v6235 = vadd.f32 %v5882, %v6234
      %6236 = vmatprep.mubr.bf16.mxu0 %v3336
      %6237 = vmatmul.mubr.bf16.gmra.mxu0 %v3335
      %v6238 = vpop.f32.mrf.mxu0
      %v6239 = vadd.f32 %v5886, %v6238
      %v6240 = vpop.f32.mrf.mxu0
      %v6241 = vadd.f32 %v5888, %v6240
      %v6242 = vpop.f32.mrf.mxu0
      %v6243 = vadd.f32 %v5890, %v6242
      %v6244 = vpop.f32.mrf.mxu0
      %v6245 = vadd.f32 %v5892, %v6244
      %6246 = vdwg.mxu0
      %v6247 = vld [vmem:[%s11] sm:$0xf]
      %v6249 = vlaneseq
      %v6250 = vshrl.u32 %v6249, 7
      %v6251 = vsub.s32 0, %v6250
      %v6252 = vrot.slane %v6247, %v6251
      %v6253 = vlaneseq
      %v6254 = vshrl.u32 %v6253, 7
      %v6255 = vsub.s32 1, %v6254
      %v6256 = vrot.slane %v6247, %v6255
      %v6257 = vlaneseq
      %v6258 = vshrl.u32 %v6257, 7
      %v6259 = vsub.s32 2, %v6258
      %v6260 = vrot.slane %v6247, %v6259
      %v6261 = vlaneseq
      %v6262 = vshrl.u32 %v6261, 7
      %v6263 = vsub.s32 3, %v6262
      %v6264 = vrot.slane %v6247, %v6263
      %v6269 = vadd.f32 %v5223, %v6252
      %v6270 = vadd.f32 %v5225, %v6256
      %v6271 = vadd.f32 %v5929, %v6260
      %v6272 = vadd.f32 %v5931, %v6264
      %v6273 = vadd.f32 %v5227, %v6252
      %v6274 = vadd.f32 %v5229, %v6256
      %v6275 = vadd.f32 %v5933, %v6260
      %v6276 = vadd.f32 %v5935, %v6264
      %v6277 = vadd.f32 %v5233, %v6252
      %v6278 = vadd.f32 %v5235, %v6256
      %v6279 = vadd.f32 %v5939, %v6260
      %v6280 = vadd.f32 %v5941, %v6264
      %v6281 = vadd.f32 %v5237, %v6252
      %v6282 = vadd.f32 %v5239, %v6256
      %v6283 = vadd.f32 %v5943, %v6260
      %v6284 = vadd.f32 %v5945, %v6264
      %v6285 = vadd.f32 %v5243, %v6252
      %v6286 = vadd.f32 %v5245, %v6256
      %v6287 = vadd.f32 %v5949, %v6260
      %v6288 = vadd.f32 %v5951, %v6264
      %v6289 = vadd.f32 %v5247, %v6252
      %v6290 = vadd.f32 %v5249, %v6256
      %v6291 = vadd.f32 %v5953, %v6260
      %v6292 = vadd.f32 %v5955, %v6264
      %v6293 = vadd.f32 %v5253, %v6252
      %v6294 = vadd.f32 %v5255, %v6256
      %v6295 = vadd.f32 %v5959, %v6260
      %v6296 = vadd.f32 %v5961, %v6264
      %v6297 = vadd.f32 %v5257, %v6252
      %v6298 = vadd.f32 %v5259, %v6256
      %v6299 = vadd.f32 %v5963, %v6260
      %v6300 = vadd.f32 %v5965, %v6264
      %v6301 = vadd.f32 %v5263, %v6252
      %v6302 = vadd.f32 %v5265, %v6256
      %v6303 = vadd.f32 %v5969, %v6260
      %v6304 = vadd.f32 %v5971, %v6264
      %v6305 = vadd.f32 %v5267, %v6252
      %v6306 = vadd.f32 %v5269, %v6256
      %v6307 = vadd.f32 %v5973, %v6260
      %v6308 = vadd.f32 %v5975, %v6264
      %v6309 = vadd.f32 %v5273, %v6252
      %v6310 = vadd.f32 %v5275, %v6256
      %v6311 = vadd.f32 %v5979, %v6260
      %v6312 = vadd.f32 %v5981, %v6264
      %v6313 = vadd.f32 %v5277, %v6252
      %v6314 = vadd.f32 %v5279, %v6256
      %v6315 = vadd.f32 %v5983, %v6260
      %v6316 = vadd.f32 %v5985, %v6264
      %v6317 = vadd.f32 %v5283, %v6252
      %v6318 = vadd.f32 %v5285, %v6256
      %v6319 = vadd.f32 %v5989, %v6260
      %v6320 = vadd.f32 %v5991, %v6264
      %v6321 = vadd.f32 %v5287, %v6252
      %v6322 = vadd.f32 %v5289, %v6256
      %v6323 = vadd.f32 %v5993, %v6260
      %v6324 = vadd.f32 %v5995, %v6264
      %v6325 = vadd.f32 %v5293, %v6252
      %v6326 = vadd.f32 %v5295, %v6256
      %v6327 = vadd.f32 %v5999, %v6260
      %v6328 = vadd.f32 %v6001, %v6264
      %v6329 = vadd.f32 %v5297, %v6252
      %v6330 = vadd.f32 %v5299, %v6256
      %v6331 = vadd.f32 %v6003, %v6260
      %v6332 = vadd.f32 %v6005, %v6264
      %v6333 = vadd.f32 %v5303, %v6252
      %v6334 = vadd.f32 %v5305, %v6256
      %v6335 = vadd.f32 %v6009, %v6260
      %v6336 = vadd.f32 %v6011, %v6264
      %v6337 = vadd.f32 %v5307, %v6252
      %v6338 = vadd.f32 %v5309, %v6256
      %v6339 = vadd.f32 %v6013, %v6260
      %v6340 = vadd.f32 %v6015, %v6264
      %v6341 = vadd.f32 %v5313, %v6252
      %v6342 = vadd.f32 %v5315, %v6256
      %v6343 = vadd.f32 %v6019, %v6260
      %v6344 = vadd.f32 %v6021, %v6264
      %v6345 = vadd.f32 %v5317, %v6252
      %v6346 = vadd.f32 %v5319, %v6256
      %v6347 = vadd.f32 %v6023, %v6260
      %v6348 = vadd.f32 %v6025, %v6264
      %v6349 = vadd.f32 %v5323, %v6252
      %v6350 = vadd.f32 %v5325, %v6256
      %v6351 = vadd.f32 %v6029, %v6260
      %v6352 = vadd.f32 %v6031, %v6264
      %v6353 = vadd.f32 %v5327, %v6252
      %v6354 = vadd.f32 %v5329, %v6256
      %v6355 = vadd.f32 %v6033, %v6260
      %v6356 = vadd.f32 %v6035, %v6264
      %v6357 = vadd.f32 %v5333, %v6252
      %v6358 = vadd.f32 %v5335, %v6256
      %v6359 = vadd.f32 %v6039, %v6260
      %v6360 = vadd.f32 %v6041, %v6264
      %v6361 = vadd.f32 %v5337, %v6252
      %v6362 = vadd.f32 %v5339, %v6256
      %v6363 = vadd.f32 %v6043, %v6260
      %v6364 = vadd.f32 %v6045, %v6264
      %v6365 = vadd.f32 %v5343, %v6252
      %v6366 = vadd.f32 %v5345, %v6256
      %v6367 = vadd.f32 %v6049, %v6260
      %v6368 = vadd.f32 %v6051, %v6264
      %v6369 = vadd.f32 %v5347, %v6252
      %v6370 = vadd.f32 %v5349, %v6256
      %v6371 = vadd.f32 %v6053, %v6260
      %v6372 = vadd.f32 %v6055, %v6264
      %v6373 = vadd.f32 %v5353, %v6252
      %v6374 = vadd.f32 %v5355, %v6256
      %v6375 = vadd.f32 %v6059, %v6260
      %v6376 = vadd.f32 %v6061, %v6264
      %v6377 = vadd.f32 %v5357, %v6252
      %v6378 = vadd.f32 %v5359, %v6256
      %v6379 = vadd.f32 %v6063, %v6260
      %v6380 = vadd.f32 %v6065, %v6264
      %v6381 = vadd.f32 %v5363, %v6252
      %v6382 = vadd.f32 %v5365, %v6256
      %v6383 = vadd.f32 %v6069, %v6260
      %v6384 = vadd.f32 %v6071, %v6264
      %v6385 = vadd.f32 %v5367, %v6252
      %v6386 = vadd.f32 %v5369, %v6256
      %v6387 = vadd.f32 %v6073, %v6260
      %v6388 = vadd.f32 %v6075, %v6264
      %v6389 = vadd.f32 %v5373, %v6252
      %v6390 = vadd.f32 %v5375, %v6256
      %v6391 = vadd.f32 %v6079, %v6260
      %v6392 = vadd.f32 %v6081, %v6264
      %v6393 = vadd.f32 %v5377, %v6252
      %v6394 = vadd.f32 %v5379, %v6256
      %v6395 = vadd.f32 %v6083, %v6260
      %v6396 = vadd.f32 %v6085, %v6264
      %v6397 = vadd.f32 %v5383, %v6252
      %v6398 = vadd.f32 %v5385, %v6256
      %v6399 = vadd.f32 %v6089, %v6260
      %v6400 = vadd.f32 %v6091, %v6264
      %v6401 = vadd.f32 %v5387, %v6252
      %v6402 = vadd.f32 %v5389, %v6256
      %v6403 = vadd.f32 %v6093, %v6260
      %v6404 = vadd.f32 %v6095, %v6264
      %v6405 = vadd.f32 %v5393, %v6252
      %v6406 = vadd.f32 %v5395, %v6256
      %v6407 = vadd.f32 %v6099, %v6260
      %v6408 = vadd.f32 %v6101, %v6264
      %v6409 = vadd.f32 %v5397, %v6252
      %v6410 = vadd.f32 %v5399, %v6256
      %v6411 = vadd.f32 %v6103, %v6260
      %v6412 = vadd.f32 %v6105, %v6264
      %v6413 = vadd.f32 %v5403, %v6252
      %v6414 = vadd.f32 %v5405, %v6256
      %v6415 = vadd.f32 %v6109, %v6260
      %v6416 = vadd.f32 %v6111, %v6264
      %v6417 = vadd.f32 %v5407, %v6252
      %v6418 = vadd.f32 %v5409, %v6256
      %v6419 = vadd.f32 %v6113, %v6260
      %v6420 = vadd.f32 %v6115, %v6264
      %v6421 = vadd.f32 %v5413, %v6252
      %v6422 = vadd.f32 %v5415, %v6256
      %v6423 = vadd.f32 %v6119, %v6260
      %v6424 = vadd.f32 %v6121, %v6264
      %v6425 = vadd.f32 %v5417, %v6252
      %v6426 = vadd.f32 %v5419, %v6256
      %v6427 = vadd.f32 %v6123, %v6260
      %v6428 = vadd.f32 %v6125, %v6264
      %v6429 = vadd.f32 %v5423, %v6252
      %v6430 = vadd.f32 %v5425, %v6256
      %v6431 = vadd.f32 %v6129, %v6260
      %v6432 = vadd.f32 %v6131, %v6264
      %v6433 = vadd.f32 %v5427, %v6252
      %v6434 = vadd.f32 %v5429, %v6256
      %v6435 = vadd.f32 %v6133, %v6260
      %v6436 = vadd.f32 %v6135, %v6264
      %v6437 = vadd.f32 %v5433, %v6252
      %v6438 = vadd.f32 %v5435, %v6256
      %v6439 = vadd.f32 %v6139, %v6260
      %v6440 = vadd.f32 %v6141, %v6264
      %v6441 = vadd.f32 %v5437, %v6252
      %v6442 = vadd.f32 %v5439, %v6256
      %v6443 = vadd.f32 %v6143, %v6260
      %v6444 = vadd.f32 %v6145, %v6264
      %v6445 = vadd.f32 %v5443, %v6252
      %v6446 = vadd.f32 %v5445, %v6256
      %v6447 = vadd.f32 %v6149, %v6260
      %v6448 = vadd.f32 %v6151, %v6264
      %v6449 = vadd.f32 %v5447, %v6252
      %v6450 = vadd.f32 %v5449, %v6256
      %v6451 = vadd.f32 %v6153, %v6260
      %v6452 = vadd.f32 %v6155, %v6264
      %v6453 = vadd.f32 %v5453, %v6252
      %v6454 = vadd.f32 %v5455, %v6256
      %v6455 = vadd.f32 %v6159, %v6260
      %v6456 = vadd.f32 %v6161, %v6264
      %v6457 = vadd.f32 %v5457, %v6252
      %v6458 = vadd.f32 %v5459, %v6256
      %v6459 = vadd.f32 %v6163, %v6260
      %v6460 = vadd.f32 %v6165, %v6264
      %v6461 = vadd.f32 %v5463, %v6252
      %v6462 = vadd.f32 %v5465, %v6256
      %v6463 = vadd.f32 %v6169, %v6260
      %v6464 = vadd.f32 %v6171, %v6264
      %v6465 = vadd.f32 %v5467, %v6252
      %v6466 = vadd.f32 %v5469, %v6256
      %v6467 = vadd.f32 %v6173, %v6260
      %v6468 = vadd.f32 %v6175, %v6264
      %v6469 = vadd.f32 %v5473, %v6252
      %v6470 = vadd.f32 %v5475, %v6256
      %v6471 = vadd.f32 %v6179, %v6260
      %v6472 = vadd.f32 %v6181, %v6264
      %v6473 = vadd.f32 %v5477, %v6252
      %v6474 = vadd.f32 %v5479, %v6256
      %v6475 = vadd.f32 %v6183, %v6260
      %v6476 = vadd.f32 %v6185, %v6264
      %v6477 = vadd.f32 %v5483, %v6252
      %v6478 = vadd.f32 %v5485, %v6256
      %v6479 = vadd.f32 %v6189, %v6260
      %v6480 = vadd.f32 %v6191, %v6264
      %v6481 = vadd.f32 %v5487, %v6252
      %v6482 = vadd.f32 %v5489, %v6256
      %v6483 = vadd.f32 %v6193, %v6260
      %v6484 = vadd.f32 %v6195, %v6264
      %v6485 = vadd.f32 %v5493, %v6252
      %v6486 = vadd.f32 %v5495, %v6256
      %v6487 = vadd.f32 %v6199, %v6260
      %v6488 = vadd.f32 %v6201, %v6264
      %v6489 = vadd.f32 %v5497, %v6252
      %v6490 = vadd.f32 %v5499, %v6256
      %v6491 = vadd.f32 %v6203, %v6260
      %v6492 = vadd.f32 %v6205, %v6264
      %v6493 = vadd.f32 %v5503, %v6252
      %v6494 = vadd.f32 %v5505, %v6256
      %v6495 = vadd.f32 %v6209, %v6260
      %v6496 = vadd.f32 %v6211, %v6264
      %v6497 = vadd.f32 %v5507, %v6252
      %v6498 = vadd.f32 %v5509, %v6256
      %v6499 = vadd.f32 %v6213, %v6260
      %v6500 = vadd.f32 %v6215, %v6264
      %v6501 = vadd.f32 %v5513, %v6252
      %v6502 = vadd.f32 %v5515, %v6256
      %v6503 = vadd.f32 %v6219, %v6260
      %v6504 = vadd.f32 %v6221, %v6264
      %v6505 = vadd.f32 %v5517, %v6252
      %v6506 = vadd.f32 %v5519, %v6256
      %v6507 = vadd.f32 %v6223, %v6260
      %v6508 = vadd.f32 %v6225, %v6264
      %v6509 = vadd.f32 %v5523, %v6252
      %v6510 = vadd.f32 %v5525, %v6256
      %v6511 = vadd.f32 %v6229, %v6260
      %v6512 = vadd.f32 %v6231, %v6264
      %v6513 = vadd.f32 %v5527, %v6252
      %v6514 = vadd.f32 %v5529, %v6256
      %v6515 = vadd.f32 %v6233, %v6260
      %v6516 = vadd.f32 %v6235, %v6264
      %v6517 = vadd.f32 %v5533, %v6252
      %v6518 = vadd.f32 %v5535, %v6256
      %v6519 = vadd.f32 %v6239, %v6260
      %v6520 = vadd.f32 %v6241, %v6264
      %v6521 = vadd.f32 %v5537, %v6252
      %v6522 = vadd.f32 %v5539, %v6256
      %v6523 = vadd.f32 %v6243, %v6260
      %v6524 = vadd.f32 %v6245, %v6264
      %v6525 = vpack.c.bf16 %v6273, %v6269
      %v6526 = vpack.c.bf16 %v6274, %v6270
      %v6527 = vpack.c.bf16 %v6275, %v6271
      %v6528 = vpack.c.bf16 %v6276, %v6272
      %v6529 = vpack.c.bf16 %v6281, %v6277
      %v6530 = vpack.c.bf16 %v6282, %v6278
      %v6531 = vpack.c.bf16 %v6283, %v6279
      %v6532 = vpack.c.bf16 %v6284, %v6280
      %v6533 = vpack.c.bf16 %v6289, %v6285
      %v6534 = vpack.c.bf16 %v6290, %v6286
      %v6535 = vpack.c.bf16 %v6291, %v6287
      %v6536 = vpack.c.bf16 %v6292, %v6288
      %v6537 = vpack.c.bf16 %v6297, %v6293
      %v6538 = vpack.c.bf16 %v6298, %v6294
      %v6539 = vpack.c.bf16 %v6299, %v6295
      %v6540 = vpack.c.bf16 %v6300, %v6296
      %v6541 = vpack.c.bf16 %v6305, %v6301
      %v6542 = vpack.c.bf16 %v6306, %v6302
      %v6543 = vpack.c.bf16 %v6307, %v6303
      %v6544 = vpack.c.bf16 %v6308, %v6304
      %v6545 = vpack.c.bf16 %v6313, %v6309
      %v6546 = vpack.c.bf16 %v6314, %v6310
      %v6547 = vpack.c.bf16 %v6315, %v6311
      %v6548 = vpack.c.bf16 %v6316, %v6312
      %v6549 = vpack.c.bf16 %v6321, %v6317
      %v6550 = vpack.c.bf16 %v6322, %v6318
      %v6551 = vpack.c.bf16 %v6323, %v6319
      %v6552 = vpack.c.bf16 %v6324, %v6320
      %v6553 = vpack.c.bf16 %v6329, %v6325
      %v6554 = vpack.c.bf16 %v6330, %v6326
      %v6555 = vpack.c.bf16 %v6331, %v6327
      %v6556 = vpack.c.bf16 %v6332, %v6328
      %v6557 = vpack.c.bf16 %v6337, %v6333
      %v6558 = vpack.c.bf16 %v6338, %v6334
      %v6559 = vpack.c.bf16 %v6339, %v6335
      %v6560 = vpack.c.bf16 %v6340, %v6336
      %v6561 = vpack.c.bf16 %v6345, %v6341
      %v6562 = vpack.c.bf16 %v6346, %v6342
      %v6563 = vpack.c.bf16 %v6347, %v6343
      %v6564 = vpack.c.bf16 %v6348, %v6344
      %v6565 = vpack.c.bf16 %v6353, %v6349
      %v6566 = vpack.c.bf16 %v6354, %v6350
      %v6567 = vpack.c.bf16 %v6355, %v6351
      %v6568 = vpack.c.bf16 %v6356, %v6352
      %v6569 = vpack.c.bf16 %v6361, %v6357
      %v6570 = vpack.c.bf16 %v6362, %v6358
      %v6571 = vpack.c.bf16 %v6363, %v6359
      %v6572 = vpack.c.bf16 %v6364, %v6360
      %v6573 = vpack.c.bf16 %v6369, %v6365
      %v6574 = vpack.c.bf16 %v6370, %v6366
      %v6575 = vpack.c.bf16 %v6371, %v6367
      %v6576 = vpack.c.bf16 %v6372, %v6368
      %v6577 = vpack.c.bf16 %v6377, %v6373
      %v6578 = vpack.c.bf16 %v6378, %v6374
      %v6579 = vpack.c.bf16 %v6379, %v6375
      %v6580 = vpack.c.bf16 %v6380, %v6376
      %v6581 = vpack.c.bf16 %v6385, %v6381
      %v6582 = vpack.c.bf16 %v6386, %v6382
      %v6583 = vpack.c.bf16 %v6387, %v6383
      %v6584 = vpack.c.bf16 %v6388, %v6384
      %v6585 = vpack.c.bf16 %v6393, %v6389
      %v6586 = vpack.c.bf16 %v6394, %v6390
      %v6587 = vpack.c.bf16 %v6395, %v6391
      %v6588 = vpack.c.bf16 %v6396, %v6392
      %v6589 = vpack.c.bf16 %v6401, %v6397
      %v6590 = vpack.c.bf16 %v6402, %v6398
      %v6591 = vpack.c.bf16 %v6403, %v6399
      %v6592 = vpack.c.bf16 %v6404, %v6400
      %v6593 = vpack.c.bf16 %v6409, %v6405
      %v6594 = vpack.c.bf16 %v6410, %v6406
      %v6595 = vpack.c.bf16 %v6411, %v6407
      %v6596 = vpack.c.bf16 %v6412, %v6408
      %v6597 = vpack.c.bf16 %v6417, %v6413
      %v6598 = vpack.c.bf16 %v6418, %v6414
      %v6599 = vpack.c.bf16 %v6419, %v6415
      %v6600 = vpack.c.bf16 %v6420, %v6416
      %v6601 = vpack.c.bf16 %v6425, %v6421
      %v6602 = vpack.c.bf16 %v6426, %v6422
      %v6603 = vpack.c.bf16 %v6427, %v6423
      %v6604 = vpack.c.bf16 %v6428, %v6424
      %v6605 = vpack.c.bf16 %v6433, %v6429
      %v6606 = vpack.c.bf16 %v6434, %v6430
      %v6607 = vpack.c.bf16 %v6435, %v6431
      %v6608 = vpack.c.bf16 %v6436, %v6432
      %v6609 = vpack.c.bf16 %v6441, %v6437
      %v6610 = vpack.c.bf16 %v6442, %v6438
      %v6611 = vpack.c.bf16 %v6443, %v6439
      %v6612 = vpack.c.bf16 %v6444, %v6440
      %v6613 = vpack.c.bf16 %v6449, %v6445
      %v6614 = vpack.c.bf16 %v6450, %v6446
      %v6615 = vpack.c.bf16 %v6451, %v6447
      %v6616 = vpack.c.bf16 %v6452, %v6448
      %v6617 = vpack.c.bf16 %v6457, %v6453
      %v6618 = vpack.c.bf16 %v6458, %v6454
      %v6619 = vpack.c.bf16 %v6459, %v6455
      %v6620 = vpack.c.bf16 %v6460, %v6456
      %v6621 = vpack.c.bf16 %v6465, %v6461
      %v6622 = vpack.c.bf16 %v6466, %v6462
      %v6623 = vpack.c.bf16 %v6467, %v6463
      %v6624 = vpack.c.bf16 %v6468, %v6464
      %v6625 = vpack.c.bf16 %v6473, %v6469
      %v6626 = vpack.c.bf16 %v6474, %v6470
      %v6627 = vpack.c.bf16 %v6475, %v6471
      %v6628 = vpack.c.bf16 %v6476, %v6472
      %v6629 = vpack.c.bf16 %v6481, %v6477
      %v6630 = vpack.c.bf16 %v6482, %v6478
      %v6631 = vpack.c.bf16 %v6483, %v6479
      %v6632 = vpack.c.bf16 %v6484, %v6480
      %v6633 = vpack.c.bf16 %v6489, %v6485
      %v6634 = vpack.c.bf16 %v6490, %v6486
      %v6635 = vpack.c.bf16 %v6491, %v6487
      %v6636 = vpack.c.bf16 %v6492, %v6488
      %v6637 = vpack.c.bf16 %v6497, %v6493
      %v6638 = vpack.c.bf16 %v6498, %v6494
      %v6639 = vpack.c.bf16 %v6499, %v6495
      %v6640 = vpack.c.bf16 %v6500, %v6496
      %v6641 = vpack.c.bf16 %v6505, %v6501
      %v6642 = vpack.c.bf16 %v6506, %v6502
      %v6643 = vpack.c.bf16 %v6507, %v6503
      %v6644 = vpack.c.bf16 %v6508, %v6504
      %v6645 = vpack.c.bf16 %v6513, %v6509
      %v6646 = vpack.c.bf16 %v6514, %v6510
      %v6647 = vpack.c.bf16 %v6515, %v6511
      %v6648 = vpack.c.bf16 %v6516, %v6512
      %v6649 = vpack.c.bf16 %v6521, %v6517
      %v6650 = vpack.c.bf16 %v6522, %v6518
      %v6651 = vpack.c.bf16 %v6523, %v6519
      %v6652 = vpack.c.bf16 %v6524, %v6520
      %v6653 = vld [vmem:[%s12] sm:$0xff]
      %v6654 = vld [vmem:[%s12 + $0x8] sm:$0xff]
      %v6655 = vld [vmem:[%s12 + $0x10] sm:$0xff]
      %v6656 = vld [vmem:[%s12 + $0x18] sm:$0xff]
      %v6657 = vld [vmem:[%s12 + $0x20] sm:$0xff]
      %v6658 = vld [vmem:[%s12 + $0x28] sm:$0xff]
      %v6659 = vld [vmem:[%s12 + $0x30] sm:$0xff]
      %v6660 = vld [vmem:[%s12 + $0x38] sm:$0xff]
      %v6661 = vld [vmem:[%s12 + $0x40] sm:$0xff]
      %v6662 = vld [vmem:[%s12 + $0x48] sm:$0xff]
      %v6663 = vld [vmem:[%s12 + $0x50] sm:$0xff]
      %v6664 = vld [vmem:[%s12 + $0x58] sm:$0xff]
      %v6665 = vld [vmem:[%s12 + $0x60] sm:$0xff]
      %v6666 = vld [vmem:[%s12 + $0x68] sm:$0xff]
      %v6667 = vld [vmem:[%s12 + $0x70] sm:$0xff]
      %v6668 = vld [vmem:[%s12 + $0x78] sm:$0xff]
      %v6669 = vld [vmem:[%s12 + $0x80] sm:$0xff]
      %v6670 = vld [vmem:[%s12 + $0x88] sm:$0xff]
      %v6671 = vld [vmem:[%s12 + $0x90] sm:$0xff]
      %v6672 = vld [vmem:[%s12 + $0x98] sm:$0xff]
      %v6673 = vld [vmem:[%s12 + $0xa0] sm:$0xff]
      %v6674 = vld [vmem:[%s12 + $0xa8] sm:$0xff]
      %v6675 = vld [vmem:[%s12 + $0xb0] sm:$0xff]
      %v6676 = vld [vmem:[%s12 + $0xb8] sm:$0xff]
      %v6677 = vld [vmem:[%s12 + $0xc0] sm:$0xff]
      %v6678 = vld [vmem:[%s12 + $0xc8] sm:$0xff]
      %v6679 = vld [vmem:[%s12 + $0xd0] sm:$0xff]
      %v6680 = vld [vmem:[%s12 + $0xd8] sm:$0xff]
      %v6681 = vld [vmem:[%s12 + $0xe0] sm:$0xff]
      %v6682 = vld [vmem:[%s12 + $0xe8] sm:$0xff]
      %v6683 = vld [vmem:[%s12 + $0xf0] sm:$0xff]
      %v6684 = vld [vmem:[%s12 + $0xf8] sm:$0xff]
      %v6685 = vld [vmem:[%s12 + $0x100] sm:$0xff]
      %v6686 = vld [vmem:[%s12 + $0x108] sm:$0xff]
      %v6687 = vld [vmem:[%s12 + $0x110] sm:$0xff]
      %v6688 = vld [vmem:[%s12 + $0x118] sm:$0xff]
      %v6689 = vld [vmem:[%s12 + $0x120] sm:$0xff]
      %v6690 = vld [vmem:[%s12 + $0x128] sm:$0xff]
      %v6691 = vld [vmem:[%s12 + $0x130] sm:$0xff]
      %v6692 = vld [vmem:[%s12 + $0x138] sm:$0xff]
      %v6693 = vld [vmem:[%s12 + $0x140] sm:$0xff]
      %v6694 = vld [vmem:[%s12 + $0x148] sm:$0xff]
      %v6695 = vld [vmem:[%s12 + $0x150] sm:$0xff]
      %v6696 = vld [vmem:[%s12 + $0x158] sm:$0xff]
      %v6697 = vld [vmem:[%s12 + $0x160] sm:$0xff]
      %v6698 = vld [vmem:[%s12 + $0x168] sm:$0xff]
      %v6699 = vld [vmem:[%s12 + $0x170] sm:$0xff]
      %v6700 = vld [vmem:[%s12 + $0x178] sm:$0xff]
      %v6701 = vld [vmem:[%s12 + $0x180] sm:$0xff]
      %v6702 = vld [vmem:[%s12 + $0x188] sm:$0xff]
      %v6703 = vld [vmem:[%s12 + $0x190] sm:$0xff]
      %v6704 = vld [vmem:[%s12 + $0x198] sm:$0xff]
      %v6705 = vld [vmem:[%s12 + $0x1a0] sm:$0xff]
      %v6706 = vld [vmem:[%s12 + $0x1a8] sm:$0xff]
      %v6707 = vld [vmem:[%s12 + $0x1b0] sm:$0xff]
      %v6708 = vld [vmem:[%s12 + $0x1b8] sm:$0xff]
      %v6709 = vld [vmem:[%s12 + $0x1c0] sm:$0xff]
      %v6710 = vld [vmem:[%s12 + $0x1c8] sm:$0xff]
      %v6711 = vld [vmem:[%s12 + $0x1d0] sm:$0xff]
      %v6712 = vld [vmem:[%s12 + $0x1d8] sm:$0xff]
      %v6713 = vld [vmem:[%s12 + $0x1e0] sm:$0xff]
      %v6714 = vld [vmem:[%s12 + $0x1e8] sm:$0xff]
      %v6715 = vld [vmem:[%s12 + $0x1f0] sm:$0xff]
      %v6716 = vld [vmem:[%s12 + $0x1f8] sm:$0xff]
      %v6717 = vld [vmem:[%s13] sm:$0x3]
      %v6719 = vlaneseq
      %v6720 = vshrl.u32 %v6719, 7
      %v6721 = vsub.s32 0, %v6720
      %v6722 = vrot.slane %v6717, %v6721
      %v6723 = vlaneseq
      %v6724 = vshrl.u32 %v6723, 7
      %v6725 = vsub.s32 1, %v6724
      %v6726 = vrot.slane %v6717, %v6725
      %v6793 = vunpack.c.l.b16 %v6653
      %v6794 = vunpack.c.h.b16 %v6653
      %v6795 = vunpack.c.l.b16 %v6654
      %v6796 = vunpack.c.h.b16 %v6654
      %v6797 = vunpack.c.l.b16 %v6655
      %v6798 = vunpack.c.h.b16 %v6655
      %v6799 = vunpack.c.l.b16 %v6656
      %v6800 = vunpack.c.h.b16 %v6656
      %v6801 = vunpack.c.l.b16 %v6657
      %v6802 = vunpack.c.h.b16 %v6657
      %v6803 = vunpack.c.l.b16 %v6658
      %v6804 = vunpack.c.h.b16 %v6658
      %v6805 = vunpack.c.l.b16 %v6659
      %v6806 = vunpack.c.h.b16 %v6659
      %v6807 = vunpack.c.l.b16 %v6660
      %v6808 = vunpack.c.h.b16 %v6660
      %v6809 = vunpack.c.l.b16 %v6661
      %v6810 = vunpack.c.h.b16 %v6661
      %v6811 = vunpack.c.l.b16 %v6662
      %v6812 = vunpack.c.h.b16 %v6662
      %v6813 = vunpack.c.l.b16 %v6663
      %v6814 = vunpack.c.h.b16 %v6663
      %v6815 = vunpack.c.l.b16 %v6664
      %v6816 = vunpack.c.h.b16 %v6664
      %v6817 = vunpack.c.l.b16 %v6665
      %v6818 = vunpack.c.h.b16 %v6665
      %v6819 = vunpack.c.l.b16 %v6666
      %v6820 = vunpack.c.h.b16 %v6666
      %v6821 = vunpack.c.l.b16 %v6667
      %v6822 = vunpack.c.h.b16 %v6667
      %v6823 = vunpack.c.l.b16 %v6668
      %v6824 = vunpack.c.h.b16 %v6668
      %v6825 = vunpack.c.l.b16 %v6669
      %v6826 = vunpack.c.h.b16 %v6669
      %v6827 = vunpack.c.l.b16 %v6670
      %v6828 = vunpack.c.h.b16 %v6670
      %v6829 = vunpack.c.l.b16 %v6671
      %v6830 = vunpack.c.h.b16 %v6671
      %v6831 = vunpack.c.l.b16 %v6672
      %v6832 = vunpack.c.h.b16 %v6672
      %v6833 = vunpack.c.l.b16 %v6673
      %v6834 = vunpack.c.h.b16 %v6673
      %v6835 = vunpack.c.l.b16 %v6674
      %v6836 = vunpack.c.h.b16 %v6674
      %v6837 = vunpack.c.l.b16 %v6675
      %v6838 = vunpack.c.h.b16 %v6675
      %v6839 = vunpack.c.l.b16 %v6676
      %v6840 = vunpack.c.h.b16 %v6676
      %v6841 = vunpack.c.l.b16 %v6677
      %v6842 = vunpack.c.h.b16 %v6677
      %v6843 = vunpack.c.l.b16 %v6678
      %v6844 = vunpack.c.h.b16 %v6678
      %v6845 = vunpack.c.l.b16 %v6679
      %v6846 = vunpack.c.h.b16 %v6679
      %v6847 = vunpack.c.l.b16 %v6680
      %v6848 = vunpack.c.h.b16 %v6680
      %v6849 = vunpack.c.l.b16 %v6681
      %v6850 = vunpack.c.h.b16 %v6681
      %v6851 = vunpack.c.l.b16 %v6682
      %v6852 = vunpack.c.h.b16 %v6682
      %v6853 = vunpack.c.l.b16 %v6683
      %v6854 = vunpack.c.h.b16 %v6683
      %v6855 = vunpack.c.l.b16 %v6684
      %v6856 = vunpack.c.h.b16 %v6684
      %v6857 = vunpack.c.l.b16 %v6685
      %v6858 = vunpack.c.h.b16 %v6685
      %v6859 = vunpack.c.l.b16 %v6686
      %v6860 = vunpack.c.h.b16 %v6686
      %v6861 = vunpack.c.l.b16 %v6687
      %v6862 = vunpack.c.h.b16 %v6687
      %v6863 = vunpack.c.l.b16 %v6688
      %v6864 = vunpack.c.h.b16 %v6688
      %v6865 = vunpack.c.l.b16 %v6689
      %v6866 = vunpack.c.h.b16 %v6689
      %v6867 = vunpack.c.l.b16 %v6690
      %v6868 = vunpack.c.h.b16 %v6690
      %v6869 = vunpack.c.l.b16 %v6691
      %v6870 = vunpack.c.h.b16 %v6691
      %v6871 = vunpack.c.l.b16 %v6692
      %v6872 = vunpack.c.h.b16 %v6692
      %v6873 = vunpack.c.l.b16 %v6693
      %v6874 = vunpack.c.h.b16 %v6693
      %v6875 = vunpack.c.l.b16 %v6694
      %v6876 = vunpack.c.h.b16 %v6694
      %v6877 = vunpack.c.l.b16 %v6695
      %v6878 = vunpack.c.h.b16 %v6695
      %v6879 = vunpack.c.l.b16 %v6696
      %v6880 = vunpack.c.h.b16 %v6696
      %v6881 = vunpack.c.l.b16 %v6697
      %v6882 = vunpack.c.h.b16 %v6697
      %v6883 = vunpack.c.l.b16 %v6698
      %v6884 = vunpack.c.h.b16 %v6698
      %v6885 = vunpack.c.l.b16 %v6699
      %v6886 = vunpack.c.h.b16 %v6699
      %v6887 = vunpack.c.l.b16 %v6700
      %v6888 = vunpack.c.h.b16 %v6700
      %v6889 = vunpack.c.l.b16 %v6701
      %v6890 = vunpack.c.h.b16 %v6701
      %v6891 = vunpack.c.l.b16 %v6702
      %v6892 = vunpack.c.h.b16 %v6702
      %v6893 = vunpack.c.l.b16 %v6703
      %v6894 = vunpack.c.h.b16 %v6703
      %v6895 = vunpack.c.l.b16 %v6704
      %v6896 = vunpack.c.h.b16 %v6704
      %v6897 = vunpack.c.l.b16 %v6705
      %v6898 = vunpack.c.h.b16 %v6705
      %v6899 = vunpack.c.l.b16 %v6706
      %v6900 = vunpack.c.h.b16 %v6706
      %v6901 = vunpack.c.l.b16 %v6707
      %v6902 = vunpack.c.h.b16 %v6707
      %v6903 = vunpack.c.l.b16 %v6708
      %v6904 = vunpack.c.h.b16 %v6708
      %v6905 = vunpack.c.l.b16 %v6709
      %v6906 = vunpack.c.h.b16 %v6709
      %v6907 = vunpack.c.l.b16 %v6710
      %v6908 = vunpack.c.h.b16 %v6710
      %v6909 = vunpack.c.l.b16 %v6711
      %v6910 = vunpack.c.h.b16 %v6711
      %v6911 = vunpack.c.l.b16 %v6712
      %v6912 = vunpack.c.h.b16 %v6712
      %v6913 = vunpack.c.l.b16 %v6713
      %v6914 = vunpack.c.h.b16 %v6713
      %v6915 = vunpack.c.l.b16 %v6714
      %v6916 = vunpack.c.h.b16 %v6714
      %v6917 = vunpack.c.l.b16 %v6715
      %v6918 = vunpack.c.h.b16 %v6715
      %v6919 = vunpack.c.l.b16 %v6716
      %v6920 = vunpack.c.h.b16 %v6716
      %v6921 = vpack.c.b16 %v6795, %v6793
      %v6922 = vpack.c.b16 %v6796, %v6794
      %v6923 = vpack.c.b16 %v6799, %v6797
      %v6924 = vpack.c.b16 %v6800, %v6798
      %v6925 = vpack.c.b16 %v6803, %v6801
      %v6926 = vpack.c.b16 %v6804, %v6802
      %v6927 = vpack.c.b16 %v6807, %v6805
      %v6928 = vpack.c.b16 %v6808, %v6806
      %v6929 = vpack.c.b16 %v6811, %v6809
      %v6930 = vpack.c.b16 %v6812, %v6810
      %v6931 = vpack.c.b16 %v6815, %v6813
      %v6932 = vpack.c.b16 %v6816, %v6814
      %v6933 = vpack.c.b16 %v6819, %v6817
      %v6934 = vpack.c.b16 %v6820, %v6818
      %v6935 = vpack.c.b16 %v6823, %v6821
      %v6936 = vpack.c.b16 %v6824, %v6822
      %v6937 = vpack.c.b16 %v6827, %v6825
      %v6938 = vpack.c.b16 %v6828, %v6826
      %v6939 = vpack.c.b16 %v6831, %v6829
      %v6940 = vpack.c.b16 %v6832, %v6830
      %v6941 = vpack.c.b16 %v6835, %v6833
      %v6942 = vpack.c.b16 %v6836, %v6834
      %v6943 = vpack.c.b16 %v6839, %v6837
      %v6944 = vpack.c.b16 %v6840, %v6838
      %v6945 = vpack.c.b16 %v6843, %v6841
      %v6946 = vpack.c.b16 %v6844, %v6842
      %v6947 = vpack.c.b16 %v6847, %v6845
      %v6948 = vpack.c.b16 %v6848, %v6846
      %v6949 = vpack.c.b16 %v6851, %v6849
      %v6950 = vpack.c.b16 %v6852, %v6850
      %v6951 = vpack.c.b16 %v6855, %v6853
      %v6952 = vpack.c.b16 %v6856, %v6854
      %v6953 = vpack.c.b16 %v6859, %v6857
      %v6954 = vpack.c.b16 %v6860, %v6858
      %v6955 = vpack.c.b16 %v6863, %v6861
      %v6956 = vpack.c.b16 %v6864, %v6862
      %v6957 = vpack.c.b16 %v6867, %v6865
      %v6958 = vpack.c.b16 %v6868, %v6866
      %v6959 = vpack.c.b16 %v6871, %v6869
      %v6960 = vpack.c.b16 %v6872, %v6870
      %v6961 = vpack.c.b16 %v6875, %v6873
      %v6962 = vpack.c.b16 %v6876, %v6874
      %v6963 = vpack.c.b16 %v6879, %v6877
      %v6964 = vpack.c.b16 %v6880, %v6878
      %v6965 = vpack.c.b16 %v6883, %v6881
      %v6966 = vpack.c.b16 %v6884, %v6882
      %v6967 = vpack.c.b16 %v6887, %v6885
      %v6968 = vpack.c.b16 %v6888, %v6886
      %v6969 = vpack.c.b16 %v6891, %v6889
      %v6970 = vpack.c.b16 %v6892, %v6890
      %v6971 = vpack.c.b16 %v6895, %v6893
      %v6972 = vpack.c.b16 %v6896, %v6894
      %v6973 = vpack.c.b16 %v6899, %v6897
      %v6974 = vpack.c.b16 %v6900, %v6898
      %v6975 = vpack.c.b16 %v6903, %v6901
      %v6976 = vpack.c.b16 %v6904, %v6902
      %v6977 = vpack.c.b16 %v6907, %v6905
      %v6978 = vpack.c.b16 %v6908, %v6906
      %v6979 = vpack.c.b16 %v6911, %v6909
      %v6980 = vpack.c.b16 %v6912, %v6910
      %v6981 = vpack.c.b16 %v6915, %v6913
      %v6982 = vpack.c.b16 %v6916, %v6914
      %v6983 = vpack.c.b16 %v6919, %v6917
      %v6984 = vpack.c.b16 %v6920, %v6918
      %7049 = vmatprep.subr.bf16.mxu0 %v6936
      %7050 = vmatpush1.bf16.msra.mxu0 %v6935
      %7051 = vmatprep.subr.bf16.mxu0 %v6934
      %7052 = vmatpush1.bf16.msra.mxu0 %v6933
      %7053 = vmatprep.subr.bf16.mxu0 %v6932
      %7054 = vmatpush1.bf16.msra.mxu0 %v6931
      %7055 = vmatprep.subr.bf16.mxu0 %v6930
      %7056 = vmatpush1.bf16.msra.mxu0 %v6929
      %7057 = vmatprep.subr.bf16.mxu0 %v6928
      %7058 = vmatpush1.bf16.msra.mxu0 %v6927
      %7059 = vmatprep.subr.bf16.mxu0 %v6926
      %7060 = vmatpush1.bf16.msra.mxu0 %v6925
      %7061 = vmatprep.subr.bf16.mxu0 %v6924
      %7062 = vmatpush1.bf16.msra.mxu0 %v6923
      %7063 = vmatprep.subr.bf16.mxu0 %v6922
      %7064 = vmatpush1.bf16.msra.mxu0 %v6921
      %7065 = vmatprep.subr.bf16.mxu0 %v6952
      %7066 = vmatpush2.bf16.msra.mxu0 %v6951
      %7067 = vmatprep.subr.bf16.mxu0 %v6950
      %7068 = vmatpush2.bf16.msra.mxu0 %v6949
      %7069 = vmatprep.subr.bf16.mxu0 %v6948
      %7070 = vmatpush2.bf16.msra.mxu0 %v6947
      %7071 = vmatprep.subr.bf16.mxu0 %v6946
      %7072 = vmatpush2.bf16.msra.mxu0 %v6945
      %7073 = vmatprep.subr.bf16.mxu0 %v6944
      %7074 = vmatpush2.bf16.msra.mxu0 %v6943
      %7075 = vmatprep.subr.bf16.mxu0 %v6942
      %7076 = vmatpush2.bf16.msra.mxu0 %v6941
      %7077 = vmatprep.subr.bf16.mxu0 %v6940
      %7078 = vmatpush2.bf16.msra.mxu0 %v6939
      %7079 = vmatprep.subr.bf16.mxu0 %v6938
      %7080 = vmatpush2.bf16.msra.mxu0 %v6937
      %7081 = vmatprep.mubr.bf16.mxu0 %v6526
      %7082 = vmatmul.mubr.bf16.gmra.mxu0 %v6525
      %v7083 = vpop.f32.mrf.mxu0
      %v7084 = vadd.f32 %v6722, %v7083
      %v7085 = vpop.f32.mrf.mxu0
      %v7086 = vadd.f32 %v6726, %v7085
      %v7087 = vpop.f32.mrf.mxu0
      %v7088 = vadd.f32 %v6722, %v7087
      %v7089 = vpop.f32.mrf.mxu0
      %v7090 = vadd.f32 %v6726, %v7089
      %7091 = vmatprep.mubr.bf16.mxu0 %v6530
      %7092 = vmatmul.mubr.bf16.gmra.mxu0 %v6529
      %v7093 = vpop.f32.mrf.mxu0
      %v7094 = vadd.f32 %v6722, %v7093
      %v7095 = vpop.f32.mrf.mxu0
      %v7096 = vadd.f32 %v6726, %v7095
      %v7097 = vpop.f32.mrf.mxu0
      %v7098 = vadd.f32 %v6722, %v7097
      %v7099 = vpop.f32.mrf.mxu0
      %v7100 = vadd.f32 %v6726, %v7099
      %7101 = vmatprep.mubr.bf16.mxu0 %v6534
      %7102 = vmatmul.mubr.bf16.gmra.mxu0 %v6533
      %v7103 = vpop.f32.mrf.mxu0
      %v7104 = vadd.f32 %v6722, %v7103
      %v7105 = vpop.f32.mrf.mxu0
      %v7106 = vadd.f32 %v6726, %v7105
      %v7107 = vpop.f32.mrf.mxu0
      %v7108 = vadd.f32 %v6722, %v7107
      %v7109 = vpop.f32.mrf.mxu0
      %v7110 = vadd.f32 %v6726, %v7109
      %7111 = vmatprep.mubr.bf16.mxu0 %v6538
      %7112 = vmatmul.mubr.bf16.gmra.mxu0 %v6537
      %v7113 = vpop.f32.mrf.mxu0
      %v7114 = vadd.f32 %v6722, %v7113
      %v7115 = vpop.f32.mrf.mxu0
      %v7116 = vadd.f32 %v6726, %v7115
      %v7117 = vpop.f32.mrf.mxu0
      %v7118 = vadd.f32 %v6722, %v7117
      %v7119 = vpop.f32.mrf.mxu0
      %v7120 = vadd.f32 %v6726, %v7119
      %7121 = vmatprep.mubr.bf16.mxu0 %v6542
      %7122 = vmatmul.mubr.bf16.gmra.mxu0 %v6541
      %v7123 = vpop.f32.mrf.mxu0
      %v7124 = vadd.f32 %v6722, %v7123
      %v7125 = vpop.f32.mrf.mxu0
      %v7126 = vadd.f32 %v6726, %v7125
      %v7127 = vpop.f32.mrf.mxu0
      %v7128 = vadd.f32 %v6722, %v7127
      %v7129 = vpop.f32.mrf.mxu0
      %v7130 = vadd.f32 %v6726, %v7129
      %7131 = vmatprep.mubr.bf16.mxu0 %v6546
      %7132 = vmatmul.mubr.bf16.gmra.mxu0 %v6545
      %v7133 = vpop.f32.mrf.mxu0
      %v7134 = vadd.f32 %v6722, %v7133
      %v7135 = vpop.f32.mrf.mxu0
      %v7136 = vadd.f32 %v6726, %v7135
      %v7137 = vpop.f32.mrf.mxu0
      %v7138 = vadd.f32 %v6722, %v7137
      %v7139 = vpop.f32.mrf.mxu0
      %v7140 = vadd.f32 %v6726, %v7139
      %7141 = vmatprep.mubr.bf16.mxu0 %v6550
      %7142 = vmatmul.mubr.bf16.gmra.mxu0 %v6549
      %v7143 = vpop.f32.mrf.mxu0
      %v7144 = vadd.f32 %v6722, %v7143
      %v7145 = vpop.f32.mrf.mxu0
      %v7146 = vadd.f32 %v6726, %v7145
      %v7147 = vpop.f32.mrf.mxu0
      %v7148 = vadd.f32 %v6722, %v7147
      %v7149 = vpop.f32.mrf.mxu0
      %v7150 = vadd.f32 %v6726, %v7149
      %7151 = vmatprep.mubr.bf16.mxu0 %v6554
      %7152 = vmatmul.mubr.bf16.gmra.mxu0 %v6553
      %v7153 = vpop.f32.mrf.mxu0
      %v7154 = vadd.f32 %v6722, %v7153
      %v7155 = vpop.f32.mrf.mxu0
      %v7156 = vadd.f32 %v6726, %v7155
      %v7157 = vpop.f32.mrf.mxu0
      %v7158 = vadd.f32 %v6722, %v7157
      %v7159 = vpop.f32.mrf.mxu0
      %v7160 = vadd.f32 %v6726, %v7159
      %7161 = vmatprep.mubr.bf16.mxu0 %v6558
      %7162 = vmatmul.mubr.bf16.gmra.mxu0 %v6557
      %v7163 = vpop.f32.mrf.mxu0
      %v7164 = vadd.f32 %v6722, %v7163
      %v7165 = vpop.f32.mrf.mxu0
      %v7166 = vadd.f32 %v6726, %v7165
      %v7167 = vpop.f32.mrf.mxu0
      %v7168 = vadd.f32 %v6722, %v7167
      %v7169 = vpop.f32.mrf.mxu0
      %v7170 = vadd.f32 %v6726, %v7169
      %7171 = vmatprep.mubr.bf16.mxu0 %v6562
      %7172 = vmatmul.mubr.bf16.gmra.mxu0 %v6561
      %v7173 = vpop.f32.mrf.mxu0
      %v7174 = vadd.f32 %v6722, %v7173
      %v7175 = vpop.f32.mrf.mxu0
      %v7176 = vadd.f32 %v6726, %v7175
      %v7177 = vpop.f32.mrf.mxu0
      %v7178 = vadd.f32 %v6722, %v7177
      %v7179 = vpop.f32.mrf.mxu0
      %v7180 = vadd.f32 %v6726, %v7179
      %7181 = vmatprep.mubr.bf16.mxu0 %v6566
      %7182 = vmatmul.mubr.bf16.gmra.mxu0 %v6565
      %v7183 = vpop.f32.mrf.mxu0
      %v7184 = vadd.f32 %v6722, %v7183
      %v7185 = vpop.f32.mrf.mxu0
      %v7186 = vadd.f32 %v6726, %v7185
      %v7187 = vpop.f32.mrf.mxu0
      %v7188 = vadd.f32 %v6722, %v7187
      %v7189 = vpop.f32.mrf.mxu0
      %v7190 = vadd.f32 %v6726, %v7189
      %7191 = vmatprep.mubr.bf16.mxu0 %v6570
      %7192 = vmatmul.mubr.bf16.gmra.mxu0 %v6569
      %v7193 = vpop.f32.mrf.mxu0
      %v7194 = vadd.f32 %v6722, %v7193
      %v7195 = vpop.f32.mrf.mxu0
      %v7196 = vadd.f32 %v6726, %v7195
      %v7197 = vpop.f32.mrf.mxu0
      %v7198 = vadd.f32 %v6722, %v7197
      %v7199 = vpop.f32.mrf.mxu0
      %v7200 = vadd.f32 %v6726, %v7199
      %7201 = vmatprep.mubr.bf16.mxu0 %v6574
      %7202 = vmatmul.mubr.bf16.gmra.mxu0 %v6573
      %v7203 = vpop.f32.mrf.mxu0
      %v7204 = vadd.f32 %v6722, %v7203
      %v7205 = vpop.f32.mrf.mxu0
      %v7206 = vadd.f32 %v6726, %v7205
      %v7207 = vpop.f32.mrf.mxu0
      %v7208 = vadd.f32 %v6722, %v7207
      %v7209 = vpop.f32.mrf.mxu0
      %v7210 = vadd.f32 %v6726, %v7209
      %7211 = vmatprep.mubr.bf16.mxu0 %v6578
      %7212 = vmatmul.mubr.bf16.gmra.mxu0 %v6577
      %v7213 = vpop.f32.mrf.mxu0
      %v7214 = vadd.f32 %v6722, %v7213
      %v7215 = vpop.f32.mrf.mxu0
      %v7216 = vadd.f32 %v6726, %v7215
      %v7217 = vpop.f32.mrf.mxu0
      %v7218 = vadd.f32 %v6722, %v7217
      %v7219 = vpop.f32.mrf.mxu0
      %v7220 = vadd.f32 %v6726, %v7219
      %7221 = vmatprep.mubr.bf16.mxu0 %v6582
      %7222 = vmatmul.mubr.bf16.gmra.mxu0 %v6581
      %v7223 = vpop.f32.mrf.mxu0
      %v7224 = vadd.f32 %v6722, %v7223
      %v7225 = vpop.f32.mrf.mxu0
      %v7226 = vadd.f32 %v6726, %v7225
      %v7227 = vpop.f32.mrf.mxu0
      %v7228 = vadd.f32 %v6722, %v7227
      %v7229 = vpop.f32.mrf.mxu0
      %v7230 = vadd.f32 %v6726, %v7229
      %7231 = vmatprep.mubr.bf16.mxu0 %v6586
      %7232 = vmatmul.mubr.bf16.gmra.mxu0 %v6585
      %v7233 = vpop.f32.mrf.mxu0
      %v7234 = vadd.f32 %v6722, %v7233
      %v7235 = vpop.f32.mrf.mxu0
      %v7236 = vadd.f32 %v6726, %v7235
      %v7237 = vpop.f32.mrf.mxu0
      %v7238 = vadd.f32 %v6722, %v7237
      %v7239 = vpop.f32.mrf.mxu0
      %v7240 = vadd.f32 %v6726, %v7239
      %7241 = vmatprep.mubr.bf16.mxu0 %v6590
      %7242 = vmatmul.mubr.bf16.gmra.mxu0 %v6589
      %v7243 = vpop.f32.mrf.mxu0
      %v7244 = vadd.f32 %v6722, %v7243
      %v7245 = vpop.f32.mrf.mxu0
      %v7246 = vadd.f32 %v6726, %v7245
      %v7247 = vpop.f32.mrf.mxu0
      %v7248 = vadd.f32 %v6722, %v7247
      %v7249 = vpop.f32.mrf.mxu0
      %v7250 = vadd.f32 %v6726, %v7249
      %7251 = vmatprep.mubr.bf16.mxu0 %v6594
      %7252 = vmatmul.mubr.bf16.gmra.mxu0 %v6593
      %v7253 = vpop.f32.mrf.mxu0
      %v7254 = vadd.f32 %v6722, %v7253
      %v7255 = vpop.f32.mrf.mxu0
      %v7256 = vadd.f32 %v6726, %v7255
      %v7257 = vpop.f32.mrf.mxu0
      %v7258 = vadd.f32 %v6722, %v7257
      %v7259 = vpop.f32.mrf.mxu0
      %v7260 = vadd.f32 %v6726, %v7259
      %7261 = vmatprep.mubr.bf16.mxu0 %v6598
      %7262 = vmatmul.mubr.bf16.gmra.mxu0 %v6597
      %v7263 = vpop.f32.mrf.mxu0
      %v7264 = vadd.f32 %v6722, %v7263
      %v7265 = vpop.f32.mrf.mxu0
      %v7266 = vadd.f32 %v6726, %v7265
      %v7267 = vpop.f32.mrf.mxu0
      %v7268 = vadd.f32 %v6722, %v7267
      %v7269 = vpop.f32.mrf.mxu0
      %v7270 = vadd.f32 %v6726, %v7269
      %7271 = vmatprep.mubr.bf16.mxu0 %v6602
      %7272 = vmatmul.mubr.bf16.gmra.mxu0 %v6601
      %v7273 = vpop.f32.mrf.mxu0
      %v7274 = vadd.f32 %v6722, %v7273
      %v7275 = vpop.f32.mrf.mxu0
      %v7276 = vadd.f32 %v6726, %v7275
      %v7277 = vpop.f32.mrf.mxu0
      %v7278 = vadd.f32 %v6722, %v7277
      %v7279 = vpop.f32.mrf.mxu0
      %v7280 = vadd.f32 %v6726, %v7279
      %7281 = vmatprep.mubr.bf16.mxu0 %v6606
      %7282 = vmatmul.mubr.bf16.gmra.mxu0 %v6605
      %v7283 = vpop.f32.mrf.mxu0
      %v7284 = vadd.f32 %v6722, %v7283
      %v7285 = vpop.f32.mrf.mxu0
      %v7286 = vadd.f32 %v6726, %v7285
      %v7287 = vpop.f32.mrf.mxu0
      %v7288 = vadd.f32 %v6722, %v7287
      %v7289 = vpop.f32.mrf.mxu0
      %v7290 = vadd.f32 %v6726, %v7289
      %7291 = vmatprep.mubr.bf16.mxu0 %v6610
      %7292 = vmatmul.mubr.bf16.gmra.mxu0 %v6609
      %v7293 = vpop.f32.mrf.mxu0
      %v7294 = vadd.f32 %v6722, %v7293
      %v7295 = vpop.f32.mrf.mxu0
      %v7296 = vadd.f32 %v6726, %v7295
      %v7297 = vpop.f32.mrf.mxu0
      %v7298 = vadd.f32 %v6722, %v7297
      %v7299 = vpop.f32.mrf.mxu0
      %v7300 = vadd.f32 %v6726, %v7299
      %7301 = vmatprep.mubr.bf16.mxu0 %v6614
      %7302 = vmatmul.mubr.bf16.gmra.mxu0 %v6613
      %v7303 = vpop.f32.mrf.mxu0
      %v7304 = vadd.f32 %v6722, %v7303
      %v7305 = vpop.f32.mrf.mxu0
      %v7306 = vadd.f32 %v6726, %v7305
      %v7307 = vpop.f32.mrf.mxu0
      %v7308 = vadd.f32 %v6722, %v7307
      %v7309 = vpop.f32.mrf.mxu0
      %v7310 = vadd.f32 %v6726, %v7309
      %7311 = vmatprep.mubr.bf16.mxu0 %v6618
      %7312 = vmatmul.mubr.bf16.gmra.mxu0 %v6617
      %v7313 = vpop.f32.mrf.mxu0
      %v7314 = vadd.f32 %v6722, %v7313
      %v7315 = vpop.f32.mrf.mxu0
      %v7316 = vadd.f32 %v6726, %v7315
      %v7317 = vpop.f32.mrf.mxu0
      %v7318 = vadd.f32 %v6722, %v7317
      %v7319 = vpop.f32.mrf.mxu0
      %v7320 = vadd.f32 %v6726, %v7319
      %7321 = vmatprep.mubr.bf16.mxu0 %v6622
      %7322 = vmatmul.mubr.bf16.gmra.mxu0 %v6621
      %v7323 = vpop.f32.mrf.mxu0
      %v7324 = vadd.f32 %v6722, %v7323
      %v7325 = vpop.f32.mrf.mxu0
      %v7326 = vadd.f32 %v6726, %v7325
      %v7327 = vpop.f32.mrf.mxu0
      %v7328 = vadd.f32 %v6722, %v7327
      %v7329 = vpop.f32.mrf.mxu0
      %v7330 = vadd.f32 %v6726, %v7329
      %7331 = vmatprep.mubr.bf16.mxu0 %v6626
      %7332 = vmatmul.mubr.bf16.gmra.mxu0 %v6625
      %v7333 = vpop.f32.mrf.mxu0
      %v7334 = vadd.f32 %v6722, %v7333
      %v7335 = vpop.f32.mrf.mxu0
      %v7336 = vadd.f32 %v6726, %v7335
      %v7337 = vpop.f32.mrf.mxu0
      %v7338 = vadd.f32 %v6722, %v7337
      %v7339 = vpop.f32.mrf.mxu0
      %v7340 = vadd.f32 %v6726, %v7339
      %7341 = vmatprep.mubr.bf16.mxu0 %v6630
      %7342 = vmatmul.mubr.bf16.gmra.mxu0 %v6629
      %v7343 = vpop.f32.mrf.mxu0
      %v7344 = vadd.f32 %v6722, %v7343
      %v7345 = vpop.f32.mrf.mxu0
      %v7346 = vadd.f32 %v6726, %v7345
      %v7347 = vpop.f32.mrf.mxu0
      %v7348 = vadd.f32 %v6722, %v7347
      %v7349 = vpop.f32.mrf.mxu0
      %v7350 = vadd.f32 %v6726, %v7349
      %7351 = vmatprep.mubr.bf16.mxu0 %v6634
      %7352 = vmatmul.mubr.bf16.gmra.mxu0 %v6633
      %v7353 = vpop.f32.mrf.mxu0
      %v7354 = vadd.f32 %v6722, %v7353
      %v7355 = vpop.f32.mrf.mxu0
      %v7356 = vadd.f32 %v6726, %v7355
      %v7357 = vpop.f32.mrf.mxu0
      %v7358 = vadd.f32 %v6722, %v7357
      %v7359 = vpop.f32.mrf.mxu0
      %v7360 = vadd.f32 %v6726, %v7359
      %7361 = vmatprep.mubr.bf16.mxu0 %v6638
      %7362 = vmatmul.mubr.bf16.gmra.mxu0 %v6637
      %v7363 = vpop.f32.mrf.mxu0
      %v7364 = vadd.f32 %v6722, %v7363
      %v7365 = vpop.f32.mrf.mxu0
      %v7366 = vadd.f32 %v6726, %v7365
      %v7367 = vpop.f32.mrf.mxu0
      %v7368 = vadd.f32 %v6722, %v7367
      %v7369 = vpop.f32.mrf.mxu0
      %v7370 = vadd.f32 %v6726, %v7369
      %7371 = vmatprep.mubr.bf16.mxu0 %v6642
      %7372 = vmatmul.mubr.bf16.gmra.mxu0 %v6641
      %v7373 = vpop.f32.mrf.mxu0
      %v7374 = vadd.f32 %v6722, %v7373
      %v7375 = vpop.f32.mrf.mxu0
      %v7376 = vadd.f32 %v6726, %v7375
      %v7377 = vpop.f32.mrf.mxu0
      %v7378 = vadd.f32 %v6722, %v7377
      %v7379 = vpop.f32.mrf.mxu0
      %v7380 = vadd.f32 %v6726, %v7379
      %7381 = vmatprep.mubr.bf16.mxu0 %v6646
      %7382 = vmatmul.mubr.bf16.gmra.mxu0 %v6645
      %v7383 = vpop.f32.mrf.mxu0
      %v7384 = vadd.f32 %v6722, %v7383
      %v7385 = vpop.f32.mrf.mxu0
      %v7386 = vadd.f32 %v6726, %v7385
      %v7387 = vpop.f32.mrf.mxu0
      %v7388 = vadd.f32 %v6722, %v7387
      %v7389 = vpop.f32.mrf.mxu0
      %v7390 = vadd.f32 %v6726, %v7389
      %7391 = vmatprep.mubr.bf16.mxu0 %v6650
      %7392 = vmatmul.mubr.bf16.gmra.mxu0 %v6649
      %v7393 = vpop.f32.mrf.mxu0
      %v7394 = vadd.f32 %v6722, %v7393
      %v7395 = vpop.f32.mrf.mxu0
      %v7396 = vadd.f32 %v6726, %v7395
      %v7397 = vpop.f32.mrf.mxu0
      %v7398 = vadd.f32 %v6722, %v7397
      %v7399 = vpop.f32.mrf.mxu0
      %v7400 = vadd.f32 %v6726, %v7399
      %7401 = vdwg.mxu0
      %7402 = vmatprep.subr.bf16.mxu0 %v6968
      %7403 = vmatpush1.bf16.msra.mxu0 %v6967
      %7404 = vmatprep.subr.bf16.mxu0 %v6966
      %7405 = vmatpush1.bf16.msra.mxu0 %v6965
      %7406 = vmatprep.subr.bf16.mxu0 %v6964
      %7407 = vmatpush1.bf16.msra.mxu0 %v6963
      %7408 = vmatprep.subr.bf16.mxu0 %v6962
      %7409 = vmatpush1.bf16.msra.mxu0 %v6961
      %7410 = vmatprep.subr.bf16.mxu0 %v6960
      %7411 = vmatpush1.bf16.msra.mxu0 %v6959
      %7412 = vmatprep.subr.bf16.mxu0 %v6958
      %7413 = vmatpush1.bf16.msra.mxu0 %v6957
      %7414 = vmatprep.subr.bf16.mxu0 %v6956
      %7415 = vmatpush1.bf16.msra.mxu0 %v6955
      %7416 = vmatprep.subr.bf16.mxu0 %v6954
      %7417 = vmatpush1.bf16.msra.mxu0 %v6953
      %7418 = vmatprep.subr.bf16.mxu0 %v6984
      %7419 = vmatpush2.bf16.msra.mxu0 %v6983
      %7420 = vmatprep.subr.bf16.mxu0 %v6982
      %7421 = vmatpush2.bf16.msra.mxu0 %v6981
      %7422 = vmatprep.subr.bf16.mxu0 %v6980
      %7423 = vmatpush2.bf16.msra.mxu0 %v6979
      %7424 = vmatprep.subr.bf16.mxu0 %v6978
      %7425 = vmatpush2.bf16.msra.mxu0 %v6977
      %7426 = vmatprep.subr.bf16.mxu0 %v6976
      %7427 = vmatpush2.bf16.msra.mxu0 %v6975
      %7428 = vmatprep.subr.bf16.mxu0 %v6974
      %7429 = vmatpush2.bf16.msra.mxu0 %v6973
      %7430 = vmatprep.subr.bf16.mxu0 %v6972
      %7431 = vmatpush2.bf16.msra.mxu0 %v6971
      %7432 = vmatprep.subr.bf16.mxu0 %v6970
      %7433 = vmatpush2.bf16.msra.mxu0 %v6969
      %7434 = vmatprep.mubr.bf16.mxu0 %v6528
      %7435 = vmatmul.mubr.bf16.gmra.mxu0 %v6527
      %v7436 = vpop.f32.mrf.mxu0
      %v7437 = vadd.f32 %v7084, %v7436
      %v7438 = vpop.f32.mrf.mxu0
      %v7439 = vadd.f32 %v7086, %v7438
      %v7440 = vpop.f32.mrf.mxu0
      %v7441 = vadd.f32 %v7088, %v7440
      %v7442 = vpop.f32.mrf.mxu0
      %v7443 = vadd.f32 %v7090, %v7442
      %7444 = vmatprep.mubr.bf16.mxu0 %v6532
      %7445 = vmatmul.mubr.bf16.gmra.mxu0 %v6531
      %v7446 = vpop.f32.mrf.mxu0
      %v7447 = vadd.f32 %v7094, %v7446
      %v7448 = vpop.f32.mrf.mxu0
      %v7449 = vadd.f32 %v7096, %v7448
      %v7450 = vpop.f32.mrf.mxu0
      %v7451 = vadd.f32 %v7098, %v7450
      %v7452 = vpop.f32.mrf.mxu0
      %v7453 = vadd.f32 %v7100, %v7452
      %7454 = vmatprep.mubr.bf16.mxu0 %v6536
      %7455 = vmatmul.mubr.bf16.gmra.mxu0 %v6535
      %v7456 = vpop.f32.mrf.mxu0
      %v7457 = vadd.f32 %v7104, %v7456
      %v7458 = vpop.f32.mrf.mxu0
      %v7459 = vadd.f32 %v7106, %v7458
      %v7460 = vpop.f32.mrf.mxu0
      %v7461 = vadd.f32 %v7108, %v7460
      %v7462 = vpop.f32.mrf.mxu0
      %v7463 = vadd.f32 %v7110, %v7462
      %7464 = vmatprep.mubr.bf16.mxu0 %v6540
      %7465 = vmatmul.mubr.bf16.gmra.mxu0 %v6539
      %v7466 = vpop.f32.mrf.mxu0
      %v7467 = vadd.f32 %v7114, %v7466
      %v7468 = vpop.f32.mrf.mxu0
      %v7469 = vadd.f32 %v7116, %v7468
      %v7470 = vpop.f32.mrf.mxu0
      %v7471 = vadd.f32 %v7118, %v7470
      %v7472 = vpop.f32.mrf.mxu0
      %v7473 = vadd.f32 %v7120, %v7472
      %7474 = vmatprep.mubr.bf16.mxu0 %v6544
      %7475 = vmatmul.mubr.bf16.gmra.mxu0 %v6543
      %v7476 = vpop.f32.mrf.mxu0
      %v7477 = vadd.f32 %v7124, %v7476
      %v7478 = vpop.f32.mrf.mxu0
      %v7479 = vadd.f32 %v7126, %v7478
      %v7480 = vpop.f32.mrf.mxu0
      %v7481 = vadd.f32 %v7128, %v7480
      %v7482 = vpop.f32.mrf.mxu0
      %v7483 = vadd.f32 %v7130, %v7482
      %7484 = vmatprep.mubr.bf16.mxu0 %v6548
      %7485 = vmatmul.mubr.bf16.gmra.mxu0 %v6547
      %v7486 = vpop.f32.mrf.mxu0
      %v7487 = vadd.f32 %v7134, %v7486
      %v7488 = vpop.f32.mrf.mxu0
      %v7489 = vadd.f32 %v7136, %v7488
      %v7490 = vpop.f32.mrf.mxu0
      %v7491 = vadd.f32 %v7138, %v7490
      %v7492 = vpop.f32.mrf.mxu0
      %v7493 = vadd.f32 %v7140, %v7492
      %7494 = vmatprep.mubr.bf16.mxu0 %v6552
      %7495 = vmatmul.mubr.bf16.gmra.mxu0 %v6551
      %v7496 = vpop.f32.mrf.mxu0
      %v7497 = vadd.f32 %v7144, %v7496
      %v7498 = vpop.f32.mrf.mxu0
      %v7499 = vadd.f32 %v7146, %v7498
      %v7500 = vpop.f32.mrf.mxu0
      %v7501 = vadd.f32 %v7148, %v7500
      %v7502 = vpop.f32.mrf.mxu0
      %v7503 = vadd.f32 %v7150, %v7502
      %7504 = vmatprep.mubr.bf16.mxu0 %v6556
      %7505 = vmatmul.mubr.bf16.gmra.mxu0 %v6555
      %v7506 = vpop.f32.mrf.mxu0
      %v7507 = vadd.f32 %v7154, %v7506
      %v7508 = vpop.f32.mrf.mxu0
      %v7509 = vadd.f32 %v7156, %v7508
      %v7510 = vpop.f32.mrf.mxu0
      %v7511 = vadd.f32 %v7158, %v7510
      %v7512 = vpop.f32.mrf.mxu0
      %v7513 = vadd.f32 %v7160, %v7512
      %7514 = vmatprep.mubr.bf16.mxu0 %v6560
      %7515 = vmatmul.mubr.bf16.gmra.mxu0 %v6559
      %v7516 = vpop.f32.mrf.mxu0
      %v7517 = vadd.f32 %v7164, %v7516
      %v7518 = vpop.f32.mrf.mxu0
      %v7519 = vadd.f32 %v7166, %v7518
      %v7520 = vpop.f32.mrf.mxu0
      %v7521 = vadd.f32 %v7168, %v7520
      %v7522 = vpop.f32.mrf.mxu0
      %v7523 = vadd.f32 %v7170, %v7522
      %7524 = vmatprep.mubr.bf16.mxu0 %v6564
      %7525 = vmatmul.mubr.bf16.gmra.mxu0 %v6563
      %v7526 = vpop.f32.mrf.mxu0
      %v7527 = vadd.f32 %v7174, %v7526
      %v7528 = vpop.f32.mrf.mxu0
      %v7529 = vadd.f32 %v7176, %v7528
      %v7530 = vpop.f32.mrf.mxu0
      %v7531 = vadd.f32 %v7178, %v7530
      %v7532 = vpop.f32.mrf.mxu0
      %v7533 = vadd.f32 %v7180, %v7532
      %7534 = vmatprep.mubr.bf16.mxu0 %v6568
      %7535 = vmatmul.mubr.bf16.gmra.mxu0 %v6567
      %v7536 = vpop.f32.mrf.mxu0
      %v7537 = vadd.f32 %v7184, %v7536
      %v7538 = vpop.f32.mrf.mxu0
      %v7539 = vadd.f32 %v7186, %v7538
      %v7540 = vpop.f32.mrf.mxu0
      %v7541 = vadd.f32 %v7188, %v7540
      %v7542 = vpop.f32.mrf.mxu0
      %v7543 = vadd.f32 %v7190, %v7542
      %7544 = vmatprep.mubr.bf16.mxu0 %v6572
      %7545 = vmatmul.mubr.bf16.gmra.mxu0 %v6571
      %v7546 = vpop.f32.mrf.mxu0
      %v7547 = vadd.f32 %v7194, %v7546
      %v7548 = vpop.f32.mrf.mxu0
      %v7549 = vadd.f32 %v7196, %v7548
      %v7550 = vpop.f32.mrf.mxu0
      %v7551 = vadd.f32 %v7198, %v7550
      %v7552 = vpop.f32.mrf.mxu0
      %v7553 = vadd.f32 %v7200, %v7552
      %7554 = vmatprep.mubr.bf16.mxu0 %v6576
      %7555 = vmatmul.mubr.bf16.gmra.mxu0 %v6575
      %v7556 = vpop.f32.mrf.mxu0
      %v7557 = vadd.f32 %v7204, %v7556
      %v7558 = vpop.f32.mrf.mxu0
      %v7559 = vadd.f32 %v7206, %v7558
      %v7560 = vpop.f32.mrf.mxu0
      %v7561 = vadd.f32 %v7208, %v7560
      %v7562 = vpop.f32.mrf.mxu0
      %v7563 = vadd.f32 %v7210, %v7562
      %7564 = vmatprep.mubr.bf16.mxu0 %v6580
      %7565 = vmatmul.mubr.bf16.gmra.mxu0 %v6579
      %v7566 = vpop.f32.mrf.mxu0
      %v7567 = vadd.f32 %v7214, %v7566
      %v7568 = vpop.f32.mrf.mxu0
      %v7569 = vadd.f32 %v7216, %v7568
      %v7570 = vpop.f32.mrf.mxu0
      %v7571 = vadd.f32 %v7218, %v7570
      %v7572 = vpop.f32.mrf.mxu0
      %v7573 = vadd.f32 %v7220, %v7572
      %7574 = vmatprep.mubr.bf16.mxu0 %v6584
      %7575 = vmatmul.mubr.bf16.gmra.mxu0 %v6583
      %v7576 = vpop.f32.mrf.mxu0
      %v7577 = vadd.f32 %v7224, %v7576
      %v7578 = vpop.f32.mrf.mxu0
      %v7579 = vadd.f32 %v7226, %v7578
      %v7580 = vpop.f32.mrf.mxu0
      %v7581 = vadd.f32 %v7228, %v7580
      %v7582 = vpop.f32.mrf.mxu0
      %v7583 = vadd.f32 %v7230, %v7582
      %7584 = vmatprep.mubr.bf16.mxu0 %v6588
      %7585 = vmatmul.mubr.bf16.gmra.mxu0 %v6587
      %v7586 = vpop.f32.mrf.mxu0
      %v7587 = vadd.f32 %v7234, %v7586
      %v7588 = vpop.f32.mrf.mxu0
      %v7589 = vadd.f32 %v7236, %v7588
      %v7590 = vpop.f32.mrf.mxu0
      %v7591 = vadd.f32 %v7238, %v7590
      %v7592 = vpop.f32.mrf.mxu0
      %v7593 = vadd.f32 %v7240, %v7592
      %7594 = vmatprep.mubr.bf16.mxu0 %v6592
      %7595 = vmatmul.mubr.bf16.gmra.mxu0 %v6591
      %v7596 = vpop.f32.mrf.mxu0
      %v7597 = vadd.f32 %v7244, %v7596
      %v7598 = vpop.f32.mrf.mxu0
      %v7599 = vadd.f32 %v7246, %v7598
      %v7600 = vpop.f32.mrf.mxu0
      %v7601 = vadd.f32 %v7248, %v7600
      %v7602 = vpop.f32.mrf.mxu0
      %v7603 = vadd.f32 %v7250, %v7602
      %7604 = vmatprep.mubr.bf16.mxu0 %v6596
      %7605 = vmatmul.mubr.bf16.gmra.mxu0 %v6595
      %v7606 = vpop.f32.mrf.mxu0
      %v7607 = vadd.f32 %v7254, %v7606
      %v7608 = vpop.f32.mrf.mxu0
      %v7609 = vadd.f32 %v7256, %v7608
      %v7610 = vpop.f32.mrf.mxu0
      %v7611 = vadd.f32 %v7258, %v7610
      %v7612 = vpop.f32.mrf.mxu0
      %v7613 = vadd.f32 %v7260, %v7612
      %7614 = vmatprep.mubr.bf16.mxu0 %v6600
      %7615 = vmatmul.mubr.bf16.gmra.mxu0 %v6599
      %v7616 = vpop.f32.mrf.mxu0
      %v7617 = vadd.f32 %v7264, %v7616
      %v7618 = vpop.f32.mrf.mxu0
      %v7619 = vadd.f32 %v7266, %v7618
      %v7620 = vpop.f32.mrf.mxu0
      %v7621 = vadd.f32 %v7268, %v7620
      %v7622 = vpop.f32.mrf.mxu0
      %v7623 = vadd.f32 %v7270, %v7622
      %7624 = vmatprep.mubr.bf16.mxu0 %v6604
      %7625 = vmatmul.mubr.bf16.gmra.mxu0 %v6603
      %v7626 = vpop.f32.mrf.mxu0
      %v7627 = vadd.f32 %v7274, %v7626
      %v7628 = vpop.f32.mrf.mxu0
      %v7629 = vadd.f32 %v7276, %v7628
      %v7630 = vpop.f32.mrf.mxu0
      %v7631 = vadd.f32 %v7278, %v7630
      %v7632 = vpop.f32.mrf.mxu0
      %v7633 = vadd.f32 %v7280, %v7632
      %7634 = vmatprep.mubr.bf16.mxu0 %v6608
      %7635 = vmatmul.mubr.bf16.gmra.mxu0 %v6607
      %v7636 = vpop.f32.mrf.mxu0
      %v7637 = vadd.f32 %v7284, %v7636
      %v7638 = vpop.f32.mrf.mxu0
      %v7639 = vadd.f32 %v7286, %v7638
      %v7640 = vpop.f32.mrf.mxu0
      %v7641 = vadd.f32 %v7288, %v7640
      %v7642 = vpop.f32.mrf.mxu0
      %v7643 = vadd.f32 %v7290, %v7642
      %7644 = vmatprep.mubr.bf16.mxu0 %v6612
      %7645 = vmatmul.mubr.bf16.gmra.mxu0 %v6611
      %v7646 = vpop.f32.mrf.mxu0
      %v7647 = vadd.f32 %v7294, %v7646
      %v7648 = vpop.f32.mrf.mxu0
      %v7649 = vadd.f32 %v7296, %v7648
      %v7650 = vpop.f32.mrf.mxu0
      %v7651 = vadd.f32 %v7298, %v7650
      %v7652 = vpop.f32.mrf.mxu0
      %v7653 = vadd.f32 %v7300, %v7652
      %7654 = vmatprep.mubr.bf16.mxu0 %v6616
      %7655 = vmatmul.mubr.bf16.gmra.mxu0 %v6615
      %v7656 = vpop.f32.mrf.mxu0
      %v7657 = vadd.f32 %v7304, %v7656
      %v7658 = vpop.f32.mrf.mxu0
      %v7659 = vadd.f32 %v7306, %v7658
      %v7660 = vpop.f32.mrf.mxu0
      %v7661 = vadd.f32 %v7308, %v7660
      %v7662 = vpop.f32.mrf.mxu0
      %v7663 = vadd.f32 %v7310, %v7662
      %7664 = vmatprep.mubr.bf16.mxu0 %v6620
      %7665 = vmatmul.mubr.bf16.gmra.mxu0 %v6619
      %v7666 = vpop.f32.mrf.mxu0
      %v7667 = vadd.f32 %v7314, %v7666
      %v7668 = vpop.f32.mrf.mxu0
      %v7669 = vadd.f32 %v7316, %v7668
      %v7670 = vpop.f32.mrf.mxu0
      %v7671 = vadd.f32 %v7318, %v7670
      %v7672 = vpop.f32.mrf.mxu0
      %v7673 = vadd.f32 %v7320, %v7672
      %7674 = vmatprep.mubr.bf16.mxu0 %v6624
      %7675 = vmatmul.mubr.bf16.gmra.mxu0 %v6623
      %v7676 = vpop.f32.mrf.mxu0
      %v7677 = vadd.f32 %v7324, %v7676
      %v7678 = vpop.f32.mrf.mxu0
      %v7679 = vadd.f32 %v7326, %v7678
      %v7680 = vpop.f32.mrf.mxu0
      %v7681 = vadd.f32 %v7328, %v7680
      %v7682 = vpop.f32.mrf.mxu0
      %v7683 = vadd.f32 %v7330, %v7682
      %7684 = vmatprep.mubr.bf16.mxu0 %v6628
      %7685 = vmatmul.mubr.bf16.gmra.mxu0 %v6627
      %v7686 = vpop.f32.mrf.mxu0
      %v7687 = vadd.f32 %v7334, %v7686
      %v7688 = vpop.f32.mrf.mxu0
      %v7689 = vadd.f32 %v7336, %v7688
      %v7690 = vpop.f32.mrf.mxu0
      %v7691 = vadd.f32 %v7338, %v7690
      %v7692 = vpop.f32.mrf.mxu0
      %v7693 = vadd.f32 %v7340, %v7692
      %7694 = vmatprep.mubr.bf16.mxu0 %v6632
      %7695 = vmatmul.mubr.bf16.gmra.mxu0 %v6631
      %v7696 = vpop.f32.mrf.mxu0
      %v7697 = vadd.f32 %v7344, %v7696
      %v7698 = vpop.f32.mrf.mxu0
      %v7699 = vadd.f32 %v7346, %v7698
      %v7700 = vpop.f32.mrf.mxu0
      %v7701 = vadd.f32 %v7348, %v7700
      %v7702 = vpop.f32.mrf.mxu0
      %v7703 = vadd.f32 %v7350, %v7702
      %7704 = vmatprep.mubr.bf16.mxu0 %v6636
      %7705 = vmatmul.mubr.bf16.gmra.mxu0 %v6635
      %v7706 = vpop.f32.mrf.mxu0
      %v7707 = vadd.f32 %v7354, %v7706
      %v7708 = vpop.f32.mrf.mxu0
      %v7709 = vadd.f32 %v7356, %v7708
      %v7710 = vpop.f32.mrf.mxu0
      %v7711 = vadd.f32 %v7358, %v7710
      %v7712 = vpop.f32.mrf.mxu0
      %v7713 = vadd.f32 %v7360, %v7712
      %7714 = vmatprep.mubr.bf16.mxu0 %v6640
      %7715 = vmatmul.mubr.bf16.gmra.mxu0 %v6639
      %v7716 = vpop.f32.mrf.mxu0
      %v7717 = vadd.f32 %v7364, %v7716
      %v7718 = vpop.f32.mrf.mxu0
      %v7719 = vadd.f32 %v7366, %v7718
      %v7720 = vpop.f32.mrf.mxu0
      %v7721 = vadd.f32 %v7368, %v7720
      %v7722 = vpop.f32.mrf.mxu0
      %v7723 = vadd.f32 %v7370, %v7722
      %7724 = vmatprep.mubr.bf16.mxu0 %v6644
      %7725 = vmatmul.mubr.bf16.gmra.mxu0 %v6643
      %v7726 = vpop.f32.mrf.mxu0
      %v7727 = vadd.f32 %v7374, %v7726
      %v7728 = vpop.f32.mrf.mxu0
      %v7729 = vadd.f32 %v7376, %v7728
      %v7730 = vpop.f32.mrf.mxu0
      %v7731 = vadd.f32 %v7378, %v7730
      %v7732 = vpop.f32.mrf.mxu0
      %v7733 = vadd.f32 %v7380, %v7732
      %7734 = vmatprep.mubr.bf16.mxu0 %v6648
      %7735 = vmatmul.mubr.bf16.gmra.mxu0 %v6647
      %v7736 = vpop.f32.mrf.mxu0
      %v7737 = vadd.f32 %v7384, %v7736
      %v7738 = vpop.f32.mrf.mxu0
      %v7739 = vadd.f32 %v7386, %v7738
      %v7740 = vpop.f32.mrf.mxu0
      %v7741 = vadd.f32 %v7388, %v7740
      %v7742 = vpop.f32.mrf.mxu0
      %v7743 = vadd.f32 %v7390, %v7742
      %7744 = vmatprep.mubr.bf16.mxu0 %v6652
      %7745 = vmatmul.mubr.bf16.gmra.mxu0 %v6651
      %v7746 = vpop.f32.mrf.mxu0
      %v7747 = vadd.f32 %v7394, %v7746
      %v7748 = vpop.f32.mrf.mxu0
      %v7749 = vadd.f32 %v7396, %v7748
      %v7750 = vpop.f32.mrf.mxu0
      %v7751 = vadd.f32 %v7398, %v7750
      %v7752 = vpop.f32.mrf.mxu0
      %v7753 = vadd.f32 %v7400, %v7752
      %7754 = vdwg.mxu0
      %v7755 = vpack.c.bf16 %v7441, %v7437
      %v7756 = vpack.c.bf16 %v7443, %v7439
      %v7757 = vpack.c.bf16 %v7451, %v7447
      %v7758 = vpack.c.bf16 %v7453, %v7449
      %v7759 = vpack.c.bf16 %v7461, %v7457
      %v7760 = vpack.c.bf16 %v7463, %v7459
      %v7761 = vpack.c.bf16 %v7471, %v7467
      %v7762 = vpack.c.bf16 %v7473, %v7469
      %v7763 = vpack.c.bf16 %v7481, %v7477
      %v7764 = vpack.c.bf16 %v7483, %v7479
      %v7765 = vpack.c.bf16 %v7491, %v7487
      %v7766 = vpack.c.bf16 %v7493, %v7489
      %v7767 = vpack.c.bf16 %v7501, %v7497
      %v7768 = vpack.c.bf16 %v7503, %v7499
      %v7769 = vpack.c.bf16 %v7511, %v7507
      %v7770 = vpack.c.bf16 %v7513, %v7509
      %v7771 = vpack.c.bf16 %v7521, %v7517
      %v7772 = vpack.c.bf16 %v7523, %v7519
      %v7773 = vpack.c.bf16 %v7531, %v7527
      %v7774 = vpack.c.bf16 %v7533, %v7529
      %v7775 = vpack.c.bf16 %v7541, %v7537
      %v7776 = vpack.c.bf16 %v7543, %v7539
      %v7777 = vpack.c.bf16 %v7551, %v7547
      %v7778 = vpack.c.bf16 %v7553, %v7549
      %v7779 = vpack.c.bf16 %v7561, %v7557
      %v7780 = vpack.c.bf16 %v7563, %v7559
      %v7781 = vpack.c.bf16 %v7571, %v7567
      %v7782 = vpack.c.bf16 %v7573, %v7569
      %v7783 = vpack.c.bf16 %v7581, %v7577
      %v7784 = vpack.c.bf16 %v7583, %v7579
      %v7785 = vpack.c.bf16 %v7591, %v7587
      %v7786 = vpack.c.bf16 %v7593, %v7589
      %v7787 = vpack.c.bf16 %v7601, %v7597
      %v7788 = vpack.c.bf16 %v7603, %v7599
      %v7789 = vpack.c.bf16 %v7611, %v7607
      %v7790 = vpack.c.bf16 %v7613, %v7609
      %v7791 = vpack.c.bf16 %v7621, %v7617
      %v7792 = vpack.c.bf16 %v7623, %v7619
      %v7793 = vpack.c.bf16 %v7631, %v7627
      %v7794 = vpack.c.bf16 %v7633, %v7629
      %v7795 = vpack.c.bf16 %v7641, %v7637
      %v7796 = vpack.c.bf16 %v7643, %v7639
      %v7797 = vpack.c.bf16 %v7651, %v7647
      %v7798 = vpack.c.bf16 %v7653, %v7649
      %v7799 = vpack.c.bf16 %v7661, %v7657
      %v7800 = vpack.c.bf16 %v7663, %v7659
      %v7801 = vpack.c.bf16 %v7671, %v7667
      %v7802 = vpack.c.bf16 %v7673, %v7669
      %v7803 = vpack.c.bf16 %v7681, %v7677
      %v7804 = vpack.c.bf16 %v7683, %v7679
      %v7805 = vpack.c.bf16 %v7691, %v7687
      %v7806 = vpack.c.bf16 %v7693, %v7689
      %v7807 = vpack.c.bf16 %v7701, %v7697
      %v7808 = vpack.c.bf16 %v7703, %v7699
      %v7809 = vpack.c.bf16 %v7711, %v7707
      %v7810 = vpack.c.bf16 %v7713, %v7709
      %v7811 = vpack.c.bf16 %v7721, %v7717
      %v7812 = vpack.c.bf16 %v7723, %v7719
      %v7813 = vpack.c.bf16 %v7731, %v7727
      %v7814 = vpack.c.bf16 %v7733, %v7729
      %v7815 = vpack.c.bf16 %v7741, %v7737
      %v7816 = vpack.c.bf16 %v7743, %v7739
      %v7817 = vpack.c.bf16 %v7751, %v7747
      %v7818 = vpack.c.bf16 %v7753, %v7749
      %v7819 = vld [vmem:[%s14] sm:$0xf]
      %v7820 = vld [vmem:[%s14 + $0x4] sm:$0xf]
      %v7821 = vld [vmem:[%s14 + $0x8] sm:$0xf]
      %v7822 = vld [vmem:[%s14 + $0xc] sm:$0xf]
      %v7823 = vld [vmem:[%s14 + $0x10] sm:$0xf]
      %v7824 = vld [vmem:[%s14 + $0x14] sm:$0xf]
      %v7825 = vld [vmem:[%s14 + $0x18] sm:$0xf]
      %v7826 = vld [vmem:[%s14 + $0x1c] sm:$0xf]
      %v7827 = vld [vmem:[%s14 + $0x20] sm:$0xf]
      %v7828 = vld [vmem:[%s14 + $0x24] sm:$0xf]
      %v7829 = vld [vmem:[%s14 + $0x28] sm:$0xf]
      %v7830 = vld [vmem:[%s14 + $0x2c] sm:$0xf]
      %v7831 = vld [vmem:[%s14 + $0x30] sm:$0xf]
      %v7832 = vld [vmem:[%s14 + $0x34] sm:$0xf]
      %v7833 = vld [vmem:[%s14 + $0x38] sm:$0xf]
      %v7834 = vld [vmem:[%s14 + $0x3c] sm:$0xf]
      %v7835 = vld [vmem:[%s14 + $0x40] sm:$0xf]
      %v7836 = vld [vmem:[%s14 + $0x44] sm:$0xf]
      %v7837 = vld [vmem:[%s14 + $0x48] sm:$0xf]
      %v7838 = vld [vmem:[%s14 + $0x4c] sm:$0xf]
      %v7839 = vld [vmem:[%s14 + $0x50] sm:$0xf]
      %v7840 = vld [vmem:[%s14 + $0x54] sm:$0xf]
      %v7841 = vld [vmem:[%s14 + $0x58] sm:$0xf]
      %v7842 = vld [vmem:[%s14 + $0x5c] sm:$0xf]
      %v7843 = vld [vmem:[%s14 + $0x60] sm:$0xf]
      %v7844 = vld [vmem:[%s14 + $0x64] sm:$0xf]
      %v7845 = vld [vmem:[%s14 + $0x68] sm:$0xf]
      %v7846 = vld [vmem:[%s14 + $0x6c] sm:$0xf]
      %v7847 = vld [vmem:[%s14 + $0x70] sm:$0xf]
      %v7848 = vld [vmem:[%s14 + $0x74] sm:$0xf]
      %v7849 = vld [vmem:[%s14 + $0x78] sm:$0xf]
      %v7850 = vld [vmem:[%s14 + $0x7c] sm:$0xf]
      %v7851 = vld [vmem:[%s15] sm:$0x1]
      %v7853 = vlaneseq
      %v7854 = vshrl.u32 %v7853, 7
      %v7855 = vsub.s32 0, %v7854
      %v7856 = vrot.slane %v7851, %v7855
      %v7890 = vunpack.c.l.b16 %v7819
      %v7891 = vunpack.c.l.b16 %v7820
      %v7892 = vunpack.c.l.b16 %v7821
      %v7893 = vunpack.c.l.b16 %v7822
      %v7894 = vunpack.c.l.b16 %v7823
      %v7895 = vunpack.c.l.b16 %v7824
      %v7896 = vunpack.c.l.b16 %v7825
      %v7897 = vunpack.c.l.b16 %v7826
      %v7898 = vunpack.c.l.b16 %v7827
      %v7899 = vunpack.c.l.b16 %v7828
      %v7900 = vunpack.c.l.b16 %v7829
      %v7901 = vunpack.c.l.b16 %v7830
      %v7902 = vunpack.c.l.b16 %v7831
      %v7903 = vunpack.c.l.b16 %v7832
      %v7904 = vunpack.c.l.b16 %v7833
      %v7905 = vunpack.c.l.b16 %v7834
      %v7906 = vunpack.c.l.b16 %v7835
      %v7907 = vunpack.c.l.b16 %v7836
      %v7908 = vunpack.c.l.b16 %v7837
      %v7909 = vunpack.c.l.b16 %v7838
      %v7910 = vunpack.c.l.b16 %v7839
      %v7911 = vunpack.c.l.b16 %v7840
      %v7912 = vunpack.c.l.b16 %v7841
      %v7913 = vunpack.c.l.b16 %v7842
      %v7914 = vunpack.c.l.b16 %v7843
      %v7915 = vunpack.c.l.b16 %v7844
      %v7916 = vunpack.c.l.b16 %v7845
      %v7917 = vunpack.c.l.b16 %v7846
      %v7918 = vunpack.c.l.b16 %v7847
      %v7919 = vunpack.c.l.b16 %v7848
      %v7920 = vunpack.c.l.b16 %v7849
      %v7921 = vunpack.c.l.b16 %v7850
      %v7922 = vpack.c.b16 %v7891, %v7890
      %v7923 = vpack.c.b16 %v7893, %v7892
      %v7924 = vpack.c.b16 %v7895, %v7894
      %v7925 = vpack.c.b16 %v7897, %v7896
      %v7926 = vpack.c.b16 %v7899, %v7898
      %v7927 = vpack.c.b16 %v7901, %v7900
      %v7928 = vpack.c.b16 %v7903, %v7902
      %v7929 = vpack.c.b16 %v7905, %v7904
      %v7930 = vpack.c.b16 %v7907, %v7906
      %v7931 = vpack.c.b16 %v7909, %v7908
      %v7932 = vpack.c.b16 %v7911, %v7910
      %v7933 = vpack.c.b16 %v7913, %v7912
      %v7934 = vpack.c.b16 %v7915, %v7914
      %v7935 = vpack.c.b16 %v7917, %v7916
      %v7936 = vpack.c.b16 %v7919, %v7918
      %v7937 = vpack.c.b16 %v7921, %v7920
      %7954 = vmatprep.subr.bf16.mxu0 0
      %7955 = vmatpush1.bf16.msra.mxu0 %v7929
      %7956 = vmatprep.subr.bf16.mxu0 0
      %7957 = vmatpush1.bf16.msra.mxu0 %v7928
      %7958 = vmatprep.subr.bf16.mxu0 0
      %7959 = vmatpush1.bf16.msra.mxu0 %v7927
      %7960 = vmatprep.subr.bf16.mxu0 0
      %7961 = vmatpush1.bf16.msra.mxu0 %v7926
      %7962 = vmatprep.subr.bf16.mxu0 0
      %7963 = vmatpush1.bf16.msra.mxu0 %v7925
      %7964 = vmatprep.subr.bf16.mxu0 0
      %7965 = vmatpush1.bf16.msra.mxu0 %v7924
      %7966 = vmatprep.subr.bf16.mxu0 0
      %7967 = vmatpush1.bf16.msra.mxu0 %v7923
      %7968 = vmatprep.subr.bf16.mxu0 0
      %7969 = vmatpush1.bf16.msra.mxu0 %v7922
      %7970 = vmatprep.subr.bf16.mxu0 0
      %7971 = vmatpush2.bf16.msra.mxu0 %v7937
      %7972 = vmatprep.subr.bf16.mxu0 0
      %7973 = vmatpush2.bf16.msra.mxu0 %v7936
      %7974 = vmatprep.subr.bf16.mxu0 0
      %7975 = vmatpush2.bf16.msra.mxu0 %v7935
      %7976 = vmatprep.subr.bf16.mxu0 0
      %7977 = vmatpush2.bf16.msra.mxu0 %v7934
      %7978 = vmatprep.subr.bf16.mxu0 0
      %7979 = vmatpush2.bf16.msra.mxu0 %v7933
      %7980 = vmatprep.subr.bf16.mxu0 0
      %7981 = vmatpush2.bf16.msra.mxu0 %v7932
      %7982 = vmatprep.subr.bf16.mxu0 0
      %7983 = vmatpush2.bf16.msra.mxu0 %v7931
      %7984 = vmatprep.subr.bf16.mxu0 0
      %7985 = vmatpush2.bf16.msra.mxu0 %v7930
      %7986 = vmatprep.mubr.bf16.mxu0 %v7756
      %7987 = vmatmul.mubr.bf16.gmra.mxu0 %v7755
      %v7988 = vpop.f32.mrf.mxu0
      %v7989 = vadd.f32 %v7856, %v7988
      %v7990 = vpop.f32.mrf.mxu0
      %v7991 = vpop.f32.mrf.mxu0
      %v7992 = vadd.f32 %v7856, %v7991
      %v7993 = vpop.f32.mrf.mxu0
      %7994 = vmatprep.mubr.bf16.mxu0 %v7758
      %7995 = vmatmul.mubr.bf16.gmra.mxu0 %v7757
      %v7996 = vpop.f32.mrf.mxu0
      %v7997 = vadd.f32 %v7856, %v7996
      %v7998 = vpop.f32.mrf.mxu0
      %v7999 = vpop.f32.mrf.mxu0
      %v8000 = vadd.f32 %v7856, %v7999
      %v8001 = vpop.f32.mrf.mxu0
      %8002 = vmatprep.mubr.bf16.mxu0 %v7760
      %8003 = vmatmul.mubr.bf16.gmra.mxu0 %v7759
      %v8004 = vpop.f32.mrf.mxu0
      %v8005 = vadd.f32 %v7856, %v8004
      %v8006 = vpop.f32.mrf.mxu0
      %v8007 = vpop.f32.mrf.mxu0
      %v8008 = vadd.f32 %v7856, %v8007
      %v8009 = vpop.f32.mrf.mxu0
      %8010 = vmatprep.mubr.bf16.mxu0 %v7762
      %8011 = vmatmul.mubr.bf16.gmra.mxu0 %v7761
      %v8012 = vpop.f32.mrf.mxu0
      %v8013 = vadd.f32 %v7856, %v8012
      %v8014 = vpop.f32.mrf.mxu0
      %v8015 = vpop.f32.mrf.mxu0
      %v8016 = vadd.f32 %v7856, %v8015
      %v8017 = vpop.f32.mrf.mxu0
      %8018 = vmatprep.mubr.bf16.mxu0 %v7764
      %8019 = vmatmul.mubr.bf16.gmra.mxu0 %v7763
      %v8020 = vpop.f32.mrf.mxu0
      %v8021 = vadd.f32 %v7856, %v8020
      %v8022 = vpop.f32.mrf.mxu0
      %v8023 = vpop.f32.mrf.mxu0
      %v8024 = vadd.f32 %v7856, %v8023
      %v8025 = vpop.f32.mrf.mxu0
      %8026 = vmatprep.mubr.bf16.mxu0 %v7766
      %8027 = vmatmul.mubr.bf16.gmra.mxu0 %v7765
      %v8028 = vpop.f32.mrf.mxu0
      %v8029 = vadd.f32 %v7856, %v8028
      %v8030 = vpop.f32.mrf.mxu0
      %v8031 = vpop.f32.mrf.mxu0
      %v8032 = vadd.f32 %v7856, %v8031
      %v8033 = vpop.f32.mrf.mxu0
      %8034 = vmatprep.mubr.bf16.mxu0 %v7768
      %8035 = vmatmul.mubr.bf16.gmra.mxu0 %v7767
      %v8036 = vpop.f32.mrf.mxu0
      %v8037 = vadd.f32 %v7856, %v8036
      %v8038 = vpop.f32.mrf.mxu0
      %v8039 = vpop.f32.mrf.mxu0
      %v8040 = vadd.f32 %v7856, %v8039
      %v8041 = vpop.f32.mrf.mxu0
      %8042 = vmatprep.mubr.bf16.mxu0 %v7770
      %8043 = vmatmul.mubr.bf16.gmra.mxu0 %v7769
      %v8044 = vpop.f32.mrf.mxu0
      %v8045 = vadd.f32 %v7856, %v8044
      %v8046 = vpop.f32.mrf.mxu0
      %v8047 = vpop.f32.mrf.mxu0
      %v8048 = vadd.f32 %v7856, %v8047
      %v8049 = vpop.f32.mrf.mxu0
      %8050 = vmatprep.mubr.bf16.mxu0 %v7772
      %8051 = vmatmul.mubr.bf16.gmra.mxu0 %v7771
      %v8052 = vpop.f32.mrf.mxu0
      %v8053 = vadd.f32 %v7856, %v8052
      %v8054 = vpop.f32.mrf.mxu0
      %v8055 = vpop.f32.mrf.mxu0
      %v8056 = vadd.f32 %v7856, %v8055
      %v8057 = vpop.f32.mrf.mxu0
      %8058 = vmatprep.mubr.bf16.mxu0 %v7774
      %8059 = vmatmul.mubr.bf16.gmra.mxu0 %v7773
      %v8060 = vpop.f32.mrf.mxu0
      %v8061 = vadd.f32 %v7856, %v8060
      %v8062 = vpop.f32.mrf.mxu0
      %v8063 = vpop.f32.mrf.mxu0
      %v8064 = vadd.f32 %v7856, %v8063
      %v8065 = vpop.f32.mrf.mxu0
      %8066 = vmatprep.mubr.bf16.mxu0 %v7776
      %8067 = vmatmul.mubr.bf16.gmra.mxu0 %v7775
      %v8068 = vpop.f32.mrf.mxu0
      %v8069 = vadd.f32 %v7856, %v8068
      %v8070 = vpop.f32.mrf.mxu0
      %v8071 = vpop.f32.mrf.mxu0
      %v8072 = vadd.f32 %v7856, %v8071
      %v8073 = vpop.f32.mrf.mxu0
      %8074 = vmatprep.mubr.bf16.mxu0 %v7778
      %8075 = vmatmul.mubr.bf16.gmra.mxu0 %v7777
      %v8076 = vpop.f32.mrf.mxu0
      %v8077 = vadd.f32 %v7856, %v8076
      %v8078 = vpop.f32.mrf.mxu0
      %v8079 = vpop.f32.mrf.mxu0
      %v8080 = vadd.f32 %v7856, %v8079
      %v8081 = vpop.f32.mrf.mxu0
      %8082 = vmatprep.mubr.bf16.mxu0 %v7780
      %8083 = vmatmul.mubr.bf16.gmra.mxu0 %v7779
      %v8084 = vpop.f32.mrf.mxu0
      %v8085 = vadd.f32 %v7856, %v8084
      %v8086 = vpop.f32.mrf.mxu0
      %v8087 = vpop.f32.mrf.mxu0
      %v8088 = vadd.f32 %v7856, %v8087
      %v8089 = vpop.f32.mrf.mxu0
      %8090 = vmatprep.mubr.bf16.mxu0 %v7782
      %8091 = vmatmul.mubr.bf16.gmra.mxu0 %v7781
      %v8092 = vpop.f32.mrf.mxu0
      %v8093 = vadd.f32 %v7856, %v8092
      %v8094 = vpop.f32.mrf.mxu0
      %v8095 = vpop.f32.mrf.mxu0
      %v8096 = vadd.f32 %v7856, %v8095
      %v8097 = vpop.f32.mrf.mxu0
      %8098 = vmatprep.mubr.bf16.mxu0 %v7784
      %8099 = vmatmul.mubr.bf16.gmra.mxu0 %v7783
      %v8100 = vpop.f32.mrf.mxu0
      %v8101 = vadd.f32 %v7856, %v8100
      %v8102 = vpop.f32.mrf.mxu0
      %v8103 = vpop.f32.mrf.mxu0
      %v8104 = vadd.f32 %v7856, %v8103
      %v8105 = vpop.f32.mrf.mxu0
      %8106 = vmatprep.mubr.bf16.mxu0 %v7786
      %8107 = vmatmul.mubr.bf16.gmra.mxu0 %v7785
      %v8108 = vpop.f32.mrf.mxu0
      %v8109 = vadd.f32 %v7856, %v8108
      %v8110 = vpop.f32.mrf.mxu0
      %v8111 = vpop.f32.mrf.mxu0
      %v8112 = vadd.f32 %v7856, %v8111
      %v8113 = vpop.f32.mrf.mxu0
      %8114 = vmatprep.mubr.bf16.mxu0 %v7788
      %8115 = vmatmul.mubr.bf16.gmra.mxu0 %v7787
      %v8116 = vpop.f32.mrf.mxu0
      %v8117 = vadd.f32 %v7856, %v8116
      %v8118 = vpop.f32.mrf.mxu0
      %v8119 = vpop.f32.mrf.mxu0
      %v8120 = vadd.f32 %v7856, %v8119
      %v8121 = vpop.f32.mrf.mxu0
      %8122 = vmatprep.mubr.bf16.mxu0 %v7790
      %8123 = vmatmul.mubr.bf16.gmra.mxu0 %v7789
      %v8124 = vpop.f32.mrf.mxu0
      %v8125 = vadd.f32 %v7856, %v8124
      %v8126 = vpop.f32.mrf.mxu0
      %v8127 = vpop.f32.mrf.mxu0
      %v8128 = vadd.f32 %v7856, %v8127
      %v8129 = vpop.f32.mrf.mxu0
      %8130 = vmatprep.mubr.bf16.mxu0 %v7792
      %8131 = vmatmul.mubr.bf16.gmra.mxu0 %v7791
      %v8132 = vpop.f32.mrf.mxu0
      %v8133 = vadd.f32 %v7856, %v8132
      %v8134 = vpop.f32.mrf.mxu0
      %v8135 = vpop.f32.mrf.mxu0
      %v8136 = vadd.f32 %v7856, %v8135
      %v8137 = vpop.f32.mrf.mxu0
      %8138 = vmatprep.mubr.bf16.mxu0 %v7794
      %8139 = vmatmul.mubr.bf16.gmra.mxu0 %v7793
      %v8140 = vpop.f32.mrf.mxu0
      %v8141 = vadd.f32 %v7856, %v8140
      %v8142 = vpop.f32.mrf.mxu0
      %v8143 = vpop.f32.mrf.mxu0
      %v8144 = vadd.f32 %v7856, %v8143
      %v8145 = vpop.f32.mrf.mxu0
      %8146 = vmatprep.mubr.bf16.mxu0 %v7796
      %8147 = vmatmul.mubr.bf16.gmra.mxu0 %v7795
      %v8148 = vpop.f32.mrf.mxu0
      %v8149 = vadd.f32 %v7856, %v8148
      %v8150 = vpop.f32.mrf.mxu0
      %v8151 = vpop.f32.mrf.mxu0
      %v8152 = vadd.f32 %v7856, %v8151
      %v8153 = vpop.f32.mrf.mxu0
      %8154 = vmatprep.mubr.bf16.mxu0 %v7798
      %8155 = vmatmul.mubr.bf16.gmra.mxu0 %v7797
      %v8156 = vpop.f32.mrf.mxu0
      %v8157 = vadd.f32 %v7856, %v8156
      %v8158 = vpop.f32.mrf.mxu0
      %v8159 = vpop.f32.mrf.mxu0
      %v8160 = vadd.f32 %v7856, %v8159
      %v8161 = vpop.f32.mrf.mxu0
      %8162 = vmatprep.mubr.bf16.mxu0 %v7800
      %8163 = vmatmul.mubr.bf16.gmra.mxu0 %v7799
      %v8164 = vpop.f32.mrf.mxu0
      %v8165 = vadd.f32 %v7856, %v8164
      %v8166 = vpop.f32.mrf.mxu0
      %v8167 = vpop.f32.mrf.mxu0
      %v8168 = vadd.f32 %v7856, %v8167
      %v8169 = vpop.f32.mrf.mxu0
      %8170 = vmatprep.mubr.bf16.mxu0 %v7802
      %8171 = vmatmul.mubr.bf16.gmra.mxu0 %v7801
      %v8172 = vpop.f32.mrf.mxu0
      %v8173 = vadd.f32 %v7856, %v8172
      %v8174 = vpop.f32.mrf.mxu0
      %v8175 = vpop.f32.mrf.mxu0
      %v8176 = vadd.f32 %v7856, %v8175
      %v8177 = vpop.f32.mrf.mxu0
      %8178 = vmatprep.mubr.bf16.mxu0 %v7804
      %8179 = vmatmul.mubr.bf16.gmra.mxu0 %v7803
      %v8180 = vpop.f32.mrf.mxu0
      %v8181 = vadd.f32 %v7856, %v8180
      %v8182 = vpop.f32.mrf.mxu0
      %v8183 = vpop.f32.mrf.mxu0
      %v8184 = vadd.f32 %v7856, %v8183
      %v8185 = vpop.f32.mrf.mxu0
      %8186 = vmatprep.mubr.bf16.mxu0 %v7806
      %8187 = vmatmul.mubr.bf16.gmra.mxu0 %v7805
      %v8188 = vpop.f32.mrf.mxu0
      %v8189 = vadd.f32 %v7856, %v8188
      %v8190 = vpop.f32.mrf.mxu0
      %v8191 = vpop.f32.mrf.mxu0
      %v8192 = vadd.f32 %v7856, %v8191
      %v8193 = vpop.f32.mrf.mxu0
      %8194 = vmatprep.mubr.bf16.mxu0 %v7808
      %8195 = vmatmul.mubr.bf16.gmra.mxu0 %v7807
      %v8196 = vpop.f32.mrf.mxu0
      %v8197 = vadd.f32 %v7856, %v8196
      %v8198 = vpop.f32.mrf.mxu0
      %v8199 = vpop.f32.mrf.mxu0
      %v8200 = vadd.f32 %v7856, %v8199
      %v8201 = vpop.f32.mrf.mxu0
      %8202 = vmatprep.mubr.bf16.mxu0 %v7810
      %8203 = vmatmul.mubr.bf16.gmra.mxu0 %v7809
      %v8204 = vpop.f32.mrf.mxu0
      %v8205 = vadd.f32 %v7856, %v8204
      %v8206 = vpop.f32.mrf.mxu0
      %v8207 = vpop.f32.mrf.mxu0
      %v8208 = vadd.f32 %v7856, %v8207
      %v8209 = vpop.f32.mrf.mxu0
      %8210 = vmatprep.mubr.bf16.mxu0 %v7812
      %8211 = vmatmul.mubr.bf16.gmra.mxu0 %v7811
      %v8212 = vpop.f32.mrf.mxu0
      %v8213 = vadd.f32 %v7856, %v8212
      %v8214 = vpop.f32.mrf.mxu0
      %v8215 = vpop.f32.mrf.mxu0
      %v8216 = vadd.f32 %v7856, %v8215
      %v8217 = vpop.f32.mrf.mxu0
      %8218 = vmatprep.mubr.bf16.mxu0 %v7814
      %8219 = vmatmul.mubr.bf16.gmra.mxu0 %v7813
      %v8220 = vpop.f32.mrf.mxu0
      %v8221 = vadd.f32 %v7856, %v8220
      %v8222 = vpop.f32.mrf.mxu0
      %v8223 = vpop.f32.mrf.mxu0
      %v8224 = vadd.f32 %v7856, %v8223
      %v8225 = vpop.f32.mrf.mxu0
      %8226 = vmatprep.mubr.bf16.mxu0 %v7816
      %8227 = vmatmul.mubr.bf16.gmra.mxu0 %v7815
      %v8228 = vpop.f32.mrf.mxu0
      %v8229 = vadd.f32 %v7856, %v8228
      %v8230 = vpop.f32.mrf.mxu0
      %v8231 = vpop.f32.mrf.mxu0
      %v8232 = vadd.f32 %v7856, %v8231
      %v8233 = vpop.f32.mrf.mxu0
      %8234 = vmatprep.mubr.bf16.mxu0 %v7818
      %8235 = vmatmul.mubr.bf16.gmra.mxu0 %v7817
      %v8236 = vpop.f32.mrf.mxu0
      %v8237 = vadd.f32 %v7856, %v8236
      %v8238 = vpop.f32.mrf.mxu0
      %v8239 = vpop.f32.mrf.mxu0
      %v8240 = vadd.f32 %v7856, %v8239
      %v8241 = vpop.f32.mrf.mxu0
      %8242 = vdwg.mxu0
      %8243 = vst [vmem:[%s523] sm:$0xff] %v7989
      %8244 = vst [vmem:[%s523 + $0x8] sm:$0xff] %v7992
      %8245 = vst [vmem:[%s523 + $0x10] sm:$0xff] %v7997
      %8246 = vst [vmem:[%s523 + $0x18] sm:$0xff] %v8000
      %8247 = vst [vmem:[%s523 + $0x20] sm:$0xff] %v8005
      %8248 = vst [vmem:[%s523 + $0x28] sm:$0xff] %v8008
      %8249 = vst [vmem:[%s523 + $0x30] sm:$0xff] %v8013
      %8250 = vst [vmem:[%s523 + $0x38] sm:$0xff] %v8016
      %8251 = vst [vmem:[%s523 + $0x40] sm:$0xff] %v8021
      %8252 = vst [vmem:[%s523 + $0x48] sm:$0xff] %v8024
      %8253 = vst [vmem:[%s523 + $0x50] sm:$0xff] %v8029
      %8254 = vst [vmem:[%s523 + $0x58] sm:$0xff] %v8032
      %8255 = vst [vmem:[%s523 + $0x60] sm:$0xff] %v8037
      %8256 = vst [vmem:[%s523 + $0x68] sm:$0xff] %v8040
      %8257 = vst [vmem:[%s523 + $0x70] sm:$0xff] %v8045
      %8258 = vst [vmem:[%s523 + $0x78] sm:$0xff] %v8048
      %8259 = vst [vmem:[%s523 + $0x80] sm:$0xff] %v8053
      %8260 = vst [vmem:[%s523 + $0x88] sm:$0xff] %v8056
      %8261 = vst [vmem:[%s523 + $0x90] sm:$0xff] %v8061
      %8262 = vst [vmem:[%s523 + $0x98] sm:$0xff] %v8064
      %8263 = vst [vmem:[%s523 + $0xa0] sm:$0xff] %v8069
      %8264 = vst [vmem:[%s523 + $0xa8] sm:$0xff] %v8072
      %8265 = vst [vmem:[%s523 + $0xb0] sm:$0xff] %v8077
      %8266 = vst [vmem:[%s523 + $0xb8] sm:$0xff] %v8080
      %8267 = vst [vmem:[%s523 + $0xc0] sm:$0xff] %v8085
      %8268 = vst [vmem:[%s523 + $0xc8] sm:$0xff] %v8088
      %8269 = vst [vmem:[%s523 + $0xd0] sm:$0xff] %v8093
      %8270 = vst [vmem:[%s523 + $0xd8] sm:$0xff] %v8096
      %8271 = vst [vmem:[%s523 + $0xe0] sm:$0xff] %v8101
      %8272 = vst [vmem:[%s523 + $0xe8] sm:$0xff] %v8104
      %8273 = vst [vmem:[%s523 + $0xf0] sm:$0xff] %v8109
      %8274 = vst [vmem:[%s523 + $0xf8] sm:$0xff] %v8112
      %8275 = vst [vmem:[%s523 + $0x100] sm:$0xff] %v8117
      %8276 = vst [vmem:[%s523 + $0x108] sm:$0xff] %v8120
      %8277 = vst [vmem:[%s523 + $0x110] sm:$0xff] %v8125
      %8278 = vst [vmem:[%s523 + $0x118] sm:$0xff] %v8128
      %8279 = vst [vmem:[%s523 + $0x120] sm:$0xff] %v8133
      %8280 = vst [vmem:[%s523 + $0x128] sm:$0xff] %v8136
      %8281 = vst [vmem:[%s523 + $0x130] sm:$0xff] %v8141
      %8282 = vst [vmem:[%s523 + $0x138] sm:$0xff] %v8144
      %8283 = vst [vmem:[%s523 + $0x140] sm:$0xff] %v8149
      %8284 = vst [vmem:[%s523 + $0x148] sm:$0xff] %v8152
      %8285 = vst [vmem:[%s523 + $0x150] sm:$0xff] %v8157
      %8286 = vst [vmem:[%s523 + $0x158] sm:$0xff] %v8160
      %8287 = vst [vmem:[%s523 + $0x160] sm:$0xff] %v8165
      %8288 = vst [vmem:[%s523 + $0x168] sm:$0xff] %v8168
      %8289 = vst [vmem:[%s523 + $0x170] sm:$0xff] %v8173
      %8290 = vst [vmem:[%s523 + $0x178] sm:$0xff] %v8176
      %8291 = vst [vmem:[%s523 + $0x180] sm:$0xff] %v8181
      %8292 = vst [vmem:[%s523 + $0x188] sm:$0xff] %v8184
      %8293 = vst [vmem:[%s523 + $0x190] sm:$0xff] %v8189
      %8294 = vst [vmem:[%s523 + $0x198] sm:$0xff] %v8192
      %8295 = vst [vmem:[%s523 + $0x1a0] sm:$0xff] %v8197
      %8296 = vst [vmem:[%s523 + $0x1a8] sm:$0xff] %v8200
      %8297 = vst [vmem:[%s523 + $0x1b0] sm:$0xff] %v8205
      %8298 = vst [vmem:[%s523 + $0x1b8] sm:$0xff] %v8208
      %8299 = vst [vmem:[%s523 + $0x1c0] sm:$0xff] %v8213
      %8300 = vst [vmem:[%s523 + $0x1c8] sm:$0xff] %v8216
      %8301 = vst [vmem:[%s523 + $0x1d0] sm:$0xff] %v8221
      %8302 = vst [vmem:[%s523 + $0x1d8] sm:$0xff] %v8224
      %8303 = vst [vmem:[%s523 + $0x1e0] sm:$0xff] %v8229
      %8304 = vst [vmem:[%s523 + $0x1e8] sm:$0xff] %v8232
      %8305 = vst [vmem:[%s523 + $0x1f0] sm:$0xff] %v8237
      %8306 = vst [vmem:[%s523 + $0x1f8] sm:$0xff] %v8240
      %s8307 = smul.u32 64, %s27
      %p8308 = scmp.lt.s32.totalorder %s8307, 127
      %s8309 = scalar_select %p8308, %s8307, 127
      %s8310 = smul.addr %s8309, 8
      %s8311 = scalar_lea.vmem %s16, %s8310
      // Predicated region
      $region85: #{box_estimator_forward.1} parent=83 // pred_check
        %p8312 = pneg %p386
      $region86: #{box_estimator_forward.1} parent=83 // pred_check_branch
        %8314 = sbr.rel (%p8312) target = $region88
      $region87: #{box_estimator_forward.1} parent=83 // pred_region
        %s8315 = smul.u32 64, %s27
      $region88: #{box_estimator_forward.1} parent=83 // pred_fallthru
        _
    $region84: #{box_estimator_forward.1} parent=5 // pred_fallthru
      _
    %p8316 = scmp.le.s32.totalorder 2, %s22
    // Predicated region
    $region89: #{box_estimator_forward.1} parent=5 // pred_check
      %p8317 = pneg %p8316
    $region90: #{box_estimator_forward.1} parent=5 // pred_check_branch
      %8319 = sbr.rel (%p8317) target = $region92
    $region91: #{box_estimator_forward.1} parent=5 // pred_region
      %s8320 = ssub.s32 %s22, 2
      // Predicated region
      $region93: #{box_estimator_forward.1} parent=91 // pred_check
        %p8321 = pneg %p392
      $region94: #{box_estimator_forward.1} parent=91 // pred_check_branch
        %8323 = sbr.rel (%p8321) target = $region96
      $region95: #{box_estimator_forward.1} parent=91 // pred_region
        %s8324 = smul.u32 64, %s28
        %p8325 = scmp.lt.s32.totalorder %s8324, 127
        %s8326 = scalar_select %p8325, %s8324, 127
        %s8327 = smul.addr %s8326, 8
        %s8328 = scalar_lea.vmem %s16, %s8327
      $region96: #{box_estimator_forward.1} parent=91 // pred_fallthru
        _
    $region92: #{box_estimator_forward.1} parent=5 // pred_fallthru
      _
  $region6: #{box_estimator_forward.1} parent=0 // loop_footer
    %s26 = sadd.s32 1, %s22
  $region7: #{box_estimator_forward.1} parent=0 // loop_footer_branch
    %21 = sbr.rel target = $region3
  $region8: #{box_estimator_forward.1} parent=0 // loop_exit
    _

</llo_original>
